<compile_context>
chip_gen: v6e
topology: v6e:2x2x1
jax: 0.10.0
libtpu: 0.0.40
codegen_flags: <defaults>
</compile_context>

<pallas_src>
import functools

import jax
import jax.numpy as jnp
from jax.experimental import pallas as pl
from jax.experimental.pallas import tpu as pltpu

C_ENC = 45    # encoder width (matches Linear(in_features=45, ...))
C_MID1 = 30   # bottleneck width of residual block 1
C_MID2 = 24   # bottleneck width of residual block 2
_PAD_C = 32   # channel width of the shared padded-activation scratch


# ---------------------------------------------------------------------------
# Fused kernel: stem conv + 2 residual blocks + BN + pool + Linear + logsoftmax
# One grid step == one batch sample; all intermediates stay in VMEM scratch.
# ---------------------------------------------------------------------------
def _fused_kernel(H, W,
                  x_ref,
                  w_stem_ref, b_stem_ref,
                  w1a_ref, b1a_ref, w1b_ref, b1b_ref,
                  w2a_ref, b2a_ref, w2b_ref, b2b_ref,
                  bn_scale_ref, bn_shift_ref,
                  wd_ref, bd_ref,
                  o_ref,
                  h_ref, xpad_ref, mpad_ref):
    M = H * W

    # Zero the padded scratch buffers once per sample.  Their interiors are
    # fully overwritten below; only the 1-pixel halo must remain zero, and the
    # interior writes never touch it, so one memset covers both residual
    # blocks (each block only reads channels it just wrote).
    xpad_ref[...] = jnp.zeros_like(xpad_ref)
    mpad_ref[...] = jnp.zeros_like(mpad_ref)

    # ---- stem: Conv2d(1 -> 45, 3x3, pad=1). Single input channel, so it is
    # nine shifted broadcast multiply-adds on the VPU; negligible next to the
    # MXU work and avoids a K=9 (heavily padded) MXU contraction.
    xpad_ref[1:H + 1, 1:W + 1] = x_ref[0]
    w_stem = w_stem_ref[...]                                  # (3, 3, 45) f32
    acc = jnp.zeros((H, W, C_ENC), jnp.float32)
    for dy in range(3):
        for dx in range(3):
            patch = xpad_ref[dy:dy + H, dx:dx + W]            # (H, W)
            acc = acc + patch[:, :, None] * w_stem[dy, dx]    # bcast over C_ENC
    acc = acc + b_stem_ref[0, :]
    h_ref[...] = acc.reshape(M, C_ENC)                        # running activation

    # ---- residual block: Conv1x1(45->Cmid) -> Conv3x3(Cmid->45, pad=1) + skip
    def res_block(wa_ref, ba_ref, wb_ref, bb_ref, c_mid):
        h = h_ref[...]                                        # (M, 45) f32
        # pointwise conv == channel matmul (bf16 MXU, f32 accumulate)
        m = jnp.dot(h.astype(jnp.bfloat16), wa_ref[...],
                    preferred_element_type=jnp.float32) + ba_ref[0, :]

        # write the conv1x1 output into the (already halo-zeroed) padded scratch
        mpad_ref[1:H + 1, 1:W + 1, :c_mid] = m.reshape(H, W, c_mid)

        # im2col: pack the 9 taps along the contraction dim (K = 9 * c_mid),
        # column order (dy, dx, cin) matches the (3,3,Cin,Cout) weight reshape.
        patches = []
        for dy in range(3):
            for dx in range(3):
                patches.append(
                    mpad_ref[dy:dy + H, dx:dx + W, :c_mid].reshape(M, c_mid))
        slab = jnp.concatenate(patches, axis=-1).astype(jnp.bfloat16)
        y = jnp.dot(slab, wb_ref[...],
                    preferred_element_type=jnp.float32) + bb_ref[0, :]
        h_ref[...] = h + y                                    # residual add (f32)

    res_block(w1a_ref, b1a_ref, w1b_ref, b1b_ref, C_MID1)
    res_block(w2a_ref, b2a_ref, w2b_ref, b2b_ref, C_MID2)

    # ---- head: global avg pool -> folded BN(eval) -> Linear -> log_softmax.
    # BN is affine and pooling is linear, so applying BN to the pooled vector
    # is exactly equivalent to BN-then-pool and far cheaper.
    pooled = jnp.mean(h_ref[...], axis=0, keepdims=True)      # (1, 45)
    pooled = pooled * bn_scale_ref[...] + bn_shift_ref[...]
    logits = jnp.dot(pooled, wd_ref[...],
                     preferred_element_type=jnp.float32) + bd_ref[0, :]
    mmax = jnp.max(logits, axis=-1, keepdims=True)
    lse = mmax + jnp.log(jnp.sum(jnp.exp(logits - mmax), axis=-1, keepdims=True))
    o_ref[...] = (logits - lse).reshape(1, 1, -1).astype(o_ref.dtype)


# ---------------------------------------------------------------------------
# Parameters (deterministic, synthetic)
# ---------------------------------------------------------------------------
def init_params(key, target_n=12):
    def rnd(k, shape, scale):
        return scale * jax.random.normal(k, shape, jnp.float32)

    keys = jax.random.split(key, 16)
    p = {}
    # Conv2d(1, 45, 3, padding=1): weight stored as (kh, kw, Cout)
    p["w_stem"] = rnd(keys[0], (3, 3, C_ENC), 0.20)
    p["b_stem"] = rnd(keys[1], (1, C_ENC), 0.05)
    # Residual block 1: Conv2d(45,30,1) -> Conv2d(30,45,3,pad=1)
    p["w1a"] = rnd(keys[2], (C_ENC, C_MID1), 0.10)
    p["b1a"] = rnd(keys[3], (1, C_MID1), 0.05)
    p["w1b"] = rnd(keys[4], (3, 3, C_MID1, C_ENC), 0.05)
    p["b1b"] = rnd(keys[5], (1, C_ENC), 0.05)
    # Residual block 2: Conv2d(45,24,1) -> Conv2d(24,45,3,pad=1)
    p["w2a"] = rnd(keys[6], (C_ENC, C_MID2), 0.10)
    p["b2a"] = rnd(keys[7], (1, C_MID2), 0.05)
    p["w2b"] = rnd(keys[8], (3, 3, C_MID2, C_ENC), 0.05)
    p["b2b"] = rnd(keys[9], (1, C_ENC), 0.05)
    # BatchNorm2d(45) folded to per-channel scale/shift (eval mode).
    # TODO(synk): training-mode BN (batch statistics) is not implemented; eval
    # mode with deterministic running stats is used instead.
    gamma = 1.0 + 0.1 * jax.random.normal(keys[10], (C_ENC,), jnp.float32)
    beta = 0.1 * jax.random.normal(keys[11], (C_ENC,), jnp.float32)
    rmean = 0.1 * jax.random.normal(keys[12], (C_ENC,), jnp.float32)
    rvar = 1.0 + 0.1 * jax.random.uniform(keys[13], (C_ENC,), jnp.float32)
    eps = 1e-5
    scale = gamma / jnp.sqrt(rvar + eps)
    p["bn_scale"] = scale[None, :]
    p["bn_shift"] = (beta - rmean * scale)[None, :]
    # decoder: Linear(45, target_n), stored as (in, out)
    p["wd"] = rnd(keys[14], (C_ENC, target_n), 0.20)
    p["bd"] = rnd(keys[15], (1, target_n), 0.05)
    return p


# ---------------------------------------------------------------------------
# Forward
# ---------------------------------------------------------------------------
def _full_spec(shape):
    zeros = (0,) * len(shape)
    return pl.BlockSpec(shape, lambda n: zeros)


def edge_speech_net_forward(params, x_nchw):
    """x_nchw: (N, 1, H, W) float32 -> (N, target_n) log-probabilities."""
    N, C, H, W = x_nchw.shape
    assert C == 1
    x = x_nchw[:, 0]                                        # (N, H, W)
    T = params["wd"].shape[1]
    M = H * W

    # Matmul weights in bf16; 3x3 weights reshaped to (9*Cin, Cout) so the
    # kernel's packed im2col does a single K=9*Cin MXU matmul per conv.
    w1a = params["w1a"].astype(jnp.bfloat16)
    w2a = params["w2a"].astype(jnp.bfloat16)
    w1b = params["w1b"].reshape(9 * C_MID1, C_ENC).astype(jnp.bfloat16)
    w2b = params["w2b"].reshape(9 * C_MID2, C_ENC).astype(jnp.bfloat16)

    inputs = (x, params["w_stem"], params["b_stem"],
              w1a, params["b1a"], w1b, params["b1b"],
              w2a, params["b2a"], w2b, params["b2b"],
              params["bn_scale"], params["bn_shift"],
              params["wd"], params["bd"])

    in_specs = [pl.BlockSpec((1, H, W), lambda n: (n, 0, 0))]
    in_specs += [_full_spec(a.shape) for a in inputs[1:]]

    flops = N * (2 * M * C_ENC * 9
                 + 2 * M * C_ENC * C_MID1 + 2 * M * 9 * C_MID1 * C_ENC
                 + 2 * M * C_ENC * C_MID2 + 2 * M * 9 * C_MID2 * C_ENC
                 + 2 * M * C_ENC + 2 * C_ENC * T)
    bytes_accessed = int(x.size * 4
                         + sum(a.size * a.dtype.itemsize for a in inputs[1:])
                         + N * T * 4)

    grid_spec = pltpu.PrefetchScalarGridSpec(
        num_scalar_prefetch=0,
        grid=(N,),
        in_specs=in_specs,
        out_specs=pl.BlockSpec((1, 1, T), lambda n: (n, 0, 0)),
        scratch_shapes=[
            pltpu.VMEM((M, C_ENC), jnp.float32),                 # running act.
            pltpu.VMEM((H + 2, W + 2), jnp.float32),             # padded stem in
            pltpu.VMEM((H + 2, W + 2, _PAD_C), jnp.float32),     # padded 1x1 out
        ],
    )

    out = pl.pallas_call(
        functools.partial(_fused_kernel, H, W),
        out_shape=jax.ShapeDtypeStruct((N, 1, T), jnp.float32),
        grid_spec=grid_spec,
        compiler_params=pltpu.CompilerParams(
            dimension_semantics=("parallel",),        # v7x: shard batch over 2 TCs
            vmem_limit_bytes=32 * 1024 * 1024),
        cost_estimate=pl.CostEstimate(
            flops=int(flops),
            transcendentals=int(N * (T + 1)),
            bytes_accessed=bytes_accessed),
    )(*inputs)
    return out[:, 0, :]


if __name__ == "__main__":
    key = jax.random.PRNGKey(0)
    pkey, xkey = jax.random.split(key)
    target_n = 12
    params = init_params(pkey, target_n=target_n)
    x = jax.random.normal(xkey, (2, 1, 16, 16), jnp.float32)   # (N, C=1, H, W)

    out = jax.jit(edge_speech_net_forward)(params, x)
    out = jax.block_until_ready(out)

    assert out.shape == (2, target_n), out.shape
    # log_softmax rows must exponentiate-sum to 1
    assert bool(jnp.allclose(jnp.sum(jnp.exp(out), axis=1), 1.0, atol=1e-4))
    assert bool(jnp.all(jnp.isfinite(out)))
    print("KERNEL_OK")
</pallas_src>

<mosaic_0001>
module attributes {stable_mosaic.version = 11 : i64} {
  func.func @_fused_kernel(%arg0: i32, %arg1: memref<1x16x16xf32, #tpu.memory_space<vmem>>, %arg2: memref<3x3x45xf32, #tpu.memory_space<vmem>>, %arg3: memref<1x45xf32, #tpu.memory_space<vmem>>, %arg4: memref<45x30xbf16, #tpu.memory_space<vmem>>, %arg5: memref<1x30xf32, #tpu.memory_space<vmem>>, %arg6: memref<270x45xbf16, #tpu.memory_space<vmem>>, %arg7: memref<1x45xf32, #tpu.memory_space<vmem>>, %arg8: memref<45x24xbf16, #tpu.memory_space<vmem>>, %arg9: memref<1x24xf32, #tpu.memory_space<vmem>>, %arg10: memref<216x45xbf16, #tpu.memory_space<vmem>>, %arg11: memref<1x45xf32, #tpu.memory_space<vmem>>, %arg12: memref<1x45xf32, #tpu.memory_space<vmem>>, %arg13: memref<1x45xf32, #tpu.memory_space<vmem>>, %arg14: memref<45x12xf32, #tpu.memory_space<vmem>>, %arg15: memref<1x12xf32, #tpu.memory_space<vmem>>, %arg16: memref<1x1x12xf32, #tpu.memory_space<vmem>>, %arg17: memref<256x45xf32, #tpu.memory_space<vmem>>, %arg18: memref<18x18xf32, #tpu.memory_space<vmem>>, %arg19: memref<18x18x32xf32, #tpu.memory_space<vmem>>) attributes {dimension_semantics = [#tpu.dimension_semantics<parallel>], iteration_bounds = array<i64: 2>, scalar_prefetch = 0 : i64, scratch_operands = 3 : i64, tpu.core_type = #tpu.core_type<tc>, window_params = [{transform_indices = @transform_0, window_bounds = array<i64: 1, 16, 16>}, {pipeline_mode = #tpu.pipeline_mode<synchronous>, transform_indices = @transform_1, window_bounds = array<i64: 3, 3, 45>}, {pipeline_mode = #tpu.pipeline_mode<synchronous>, transform_indices = @transform_2, window_bounds = array<i64: 1, 45>}, {pipeline_mode = #tpu.pipeline_mode<synchronous>, transform_indices = @transform_3, window_bounds = array<i64: 45, 30>}, {pipeline_mode = #tpu.pipeline_mode<synchronous>, transform_indices = @transform_4, window_bounds = array<i64: 1, 30>}, {pipeline_mode = #tpu.pipeline_mode<synchronous>, transform_indices = @transform_5, window_bounds = array<i64: 270, 45>}, {pipeline_mode = #tpu.pipeline_mode<synchronous>, transform_indices = @transform_6, window_bounds = array<i64: 1, 45>}, {pipeline_mode = #tpu.pipeline_mode<synchronous>, transform_indices = @transform_7, window_bounds = array<i64: 45, 24>}, {pipeline_mode = #tpu.pipeline_mode<synchronous>, transform_indices = @transform_8, window_bounds = array<i64: 1, 24>}, {pipeline_mode = #tpu.pipeline_mode<synchronous>, transform_indices = @transform_9, window_bounds = array<i64: 216, 45>}, {pipeline_mode = #tpu.pipeline_mode<synchronous>, transform_indices = @transform_10, window_bounds = array<i64: 1, 45>}, {pipeline_mode = #tpu.pipeline_mode<synchronous>, transform_indices = @transform_11, window_bounds = array<i64: 1, 45>}, {pipeline_mode = #tpu.pipeline_mode<synchronous>, transform_indices = @transform_12, window_bounds = array<i64: 1, 45>}, {pipeline_mode = #tpu.pipeline_mode<synchronous>, transform_indices = @transform_13, window_bounds = array<i64: 45, 12>}, {pipeline_mode = #tpu.pipeline_mode<synchronous>, transform_indices = @transform_14, window_bounds = array<i64: 1, 12>}, {transform_indices = @transform_15, window_bounds = array<i64: 1, 1, 12>}]} {
    %cst = arith.constant 0.000000e+00 : f32
    %0 = vector.broadcast %cst : f32 to vector<18x18xf32>
    %c0 = arith.constant 0 : index
    %c0_0 = arith.constant 0 : index
    %1 = vector.load %arg18[%c0, %c0_0] : memref<18x18xf32, #tpu.memory_space<vmem>>, vector<18x18xf32>
    tpu.vector_store %arg18[%c0, %c0_0], %0 {strides = array<i32>} : memref<18x18xf32, #tpu.memory_space<vmem>>, vector<18x18xf32>,
    %cst_1 = arith.constant 0.000000e+00 : f32
    %2 = vector.broadcast %cst_1 : f32 to vector<18x18x32xf32>
    %c0_2 = arith.constant 0 : index
    %c0_3 = arith.constant 0 : index
    %c0_4 = arith.constant 0 : index
    %3 = vector.load %arg19[%c0_2, %c0_3, %c0_4] : memref<18x18x32xf32, #tpu.memory_space<vmem>>, vector<18x18x32xf32>
    tpu.vector_store %arg19[%c0_2, %c0_3, %c0_4], %2 {strides = array<i32>} : memref<18x18x32xf32, #tpu.memory_space<vmem>>, vector<18x18x32xf32>,
    %c0_5 = arith.constant 0 : index
    %c0_6 = arith.constant 0 : index
    %c0_7 = arith.constant 0 : index
    %4 = vector.load %arg1[%c0_5, %c0_6, %c0_7] : memref<1x16x16xf32, #tpu.memory_space<vmem>>, vector<1x16x16xf32>
    %5 = vector.shape_cast %4 : vector<1x16x16xf32> to vector<16x16xf32>
    %c1 = arith.constant 1 : index
    %c1_8 = arith.constant 1 : index
    %6 = vector.load %arg18[%c1, %c1_8] : memref<18x18xf32, #tpu.memory_space<vmem>>, vector<16x16xf32>
    tpu.vector_store %arg18[%c1, %c1_8], %5 {strides = array<i32>} : memref<18x18xf32, #tpu.memory_space<vmem>>, vector<16x16xf32>,
    %c0_9 = arith.constant 0 : index
    %c0_10 = arith.constant 0 : index
    %c0_11 = arith.constant 0 : index
    %7 = vector.load %arg2[%c0_9, %c0_10, %c0_11] : memref<3x3x45xf32, #tpu.memory_space<vmem>>, vector<3x3x45xf32>
    %cst_12 = arith.constant 0.000000e+00 : f32
    %8 = vector.broadcast %cst_12 : f32 to vector<16x16x45xf32>
    %c0_13 = arith.constant 0 : index
    %c0_14 = arith.constant 0 : index
    %9 = vector.load %arg18[%c0_13, %c0_14] : memref<18x18xf32, #tpu.memory_space<vmem>>, vector<16x16xf32>
    %10 = vector.shape_cast %9 : vector<16x16xf32> to vector<16x16x1xf32>
    %11 = vector.extract_strided_slice %7 {offsets = [0, 0, 0], sizes = [1, 1, 45], strides = [1, 1, 1]} : vector<3x3x45xf32> to vector<1x1x45xf32>
    %12 = vector.shape_cast %11 : vector<1x1x45xf32> to vector<45xf32>
    %13 = vector.shape_cast %12 : vector<45xf32> to vector<1x1x45xf32>
    %14 = vector.broadcast %10 : vector<16x16x1xf32> to vector<16x16x45xf32>
    %15 = vector.broadcast %13 : vector<1x1x45xf32> to vector<16x16x45xf32>
    %16 = arith.mulf %14, %15 : vector<16x16x45xf32>
    %17 = arith.addf %8, %16 : vector<16x16x45xf32>
    %c0_15 = arith.constant 0 : index
    %c1_16 = arith.constant 1 : index
    %18 = vector.load %arg18[%c0_15, %c1_16] : memref<18x18xf32, #tpu.memory_space<vmem>>, vector<16x16xf32>
    %19 = vector.shape_cast %18 : vector<16x16xf32> to vector<16x16x1xf32>
    %20 = vector.extract_strided_slice %7 {offsets = [0, 1, 0], sizes = [1, 1, 45], strides = [1, 1, 1]} : vector<3x3x45xf32> to vector<1x1x45xf32>
    %21 = vector.shape_cast %20 : vector<1x1x45xf32> to vector<45xf32>
    %22 = vector.shape_cast %21 : vector<45xf32> to vector<1x1x45xf32>
    %23 = vector.broadcast %19 : vector<16x16x1xf32> to vector<16x16x45xf32>
    %24 = vector.broadcast %22 : vector<1x1x45xf32> to vector<16x16x45xf32>
    %25 = arith.mulf %23, %24 : vector<16x16x45xf32>
    %26 = arith.addf %17, %25 : vector<16x16x45xf32>
    %c0_17 = arith.constant 0 : index
    %c2 = arith.constant 2 : index
    %27 = vector.load %arg18[%c0_17, %c2] : memref<18x18xf32, #tpu.memory_space<vmem>>, vector<16x16xf32>
    %28 = vector.shape_cast %27 : vector<16x16xf32> to vector<16x16x1xf32>
    %29 = vector.extract_strided_slice %7 {offsets = [0, 2, 0], sizes = [1, 1, 45], strides = [1, 1, 1]} : vector<3x3x45xf32> to vector<1x1x45xf32>
    %30 = vector.shape_cast %29 : vector<1x1x45xf32> to vector<45xf32>
    %31 = vector.shape_cast %30 : vector<45xf32> to vector<1x1x45xf32>
    %32 = vector.broadcast %28 : vector<16x16x1xf32> to vector<16x16x45xf32>
    %33 = vector.broadcast %31 : vector<1x1x45xf32> to vector<16x16x45xf32>
    %34 = arith.mulf %32, %33 : vector<16x16x45xf32>
    %35 = arith.addf %26, %34 : vector<16x16x45xf32>
    %c1_18 = arith.constant 1 : index
    %c0_19 = arith.constant 0 : index
    %36 = vector.load %arg18[%c1_18, %c0_19] : memref<18x18xf32, #tpu.memory_space<vmem>>, vector<16x16xf32>
    %37 = vector.shape_cast %36 : vector<16x16xf32> to vector<16x16x1xf32>
    %38 = vector.extract_strided_slice %7 {offsets = [1, 0, 0], sizes = [1, 1, 45], strides = [1, 1, 1]} : vector<3x3x45xf32> to vector<1x1x45xf32>
    %39 = vector.shape_cast %38 : vector<1x1x45xf32> to vector<45xf32>
    %40 = vector.shape_cast %39 : vector<45xf32> to vector<1x1x45xf32>
    %41 = vector.broadcast %37 : vector<16x16x1xf32> to vector<16x16x45xf32>
    %42 = vector.broadcast %40 : vector<1x1x45xf32> to vector<16x16x45xf32>
    %43 = arith.mulf %41, %42 : vector<16x16x45xf32>
    %44 = arith.addf %35, %43 : vector<16x16x45xf32>
    %c1_20 = arith.constant 1 : index
    %c1_21 = arith.constant 1 : index
    %45 = vector.load %arg18[%c1_20, %c1_21] : memref<18x18xf32, #tpu.memory_space<vmem>>, vector<16x16xf32>
    %46 = vector.shape_cast %45 : vector<16x16xf32> to vector<16x16x1xf32>
    %47 = vector.extract_strided_slice %7 {offsets = [1, 1, 0], sizes = [1, 1, 45], strides = [1, 1, 1]} : vector<3x3x45xf32> to vector<1x1x45xf32>
    %48 = vector.shape_cast %47 : vector<1x1x45xf32> to vector<45xf32>
    %49 = vector.shape_cast %48 : vector<45xf32> to vector<1x1x45xf32>
    %50 = vector.broadcast %46 : vector<16x16x1xf32> to vector<16x16x45xf32>
    %51 = vector.broadcast %49 : vector<1x1x45xf32> to vector<16x16x45xf32>
    %52 = arith.mulf %50, %51 : vector<16x16x45xf32>
    %53 = arith.addf %44, %52 : vector<16x16x45xf32>
    %c1_22 = arith.constant 1 : index
    %c2_23 = arith.constant 2 : index
    %54 = vector.load %arg18[%c1_22, %c2_23] : memref<18x18xf32, #tpu.memory_space<vmem>>, vector<16x16xf32>
    %55 = vector.shape_cast %54 : vector<16x16xf32> to vector<16x16x1xf32>
    %56 = vector.extract_strided_slice %7 {offsets = [1, 2, 0], sizes = [1, 1, 45], strides = [1, 1, 1]} : vector<3x3x45xf32> to vector<1x1x45xf32>
    %57 = vector.shape_cast %56 : vector<1x1x45xf32> to vector<45xf32>
    %58 = vector.shape_cast %57 : vector<45xf32> to vector<1x1x45xf32>
    %59 = vector.broadcast %55 : vector<16x16x1xf32> to vector<16x16x45xf32>
    %60 = vector.broadcast %58 : vector<1x1x45xf32> to vector<16x16x45xf32>
    %61 = arith.mulf %59, %60 : vector<16x16x45xf32>
    %62 = arith.addf %53, %61 : vector<16x16x45xf32>
    %c2_24 = arith.constant 2 : index
    %c0_25 = arith.constant 0 : index
    %63 = vector.load %arg18[%c2_24, %c0_25] : memref<18x18xf32, #tpu.memory_space<vmem>>, vector<16x16xf32>
    %64 = vector.shape_cast %63 : vector<16x16xf32> to vector<16x16x1xf32>
    %65 = vector.extract_strided_slice %7 {offsets = [2, 0, 0], sizes = [1, 1, 45], strides = [1, 1, 1]} : vector<3x3x45xf32> to vector<1x1x45xf32>
    %66 = vector.shape_cast %65 : vector<1x1x45xf32> to vector<45xf32>
    %67 = vector.shape_cast %66 : vector<45xf32> to vector<1x1x45xf32>
    %68 = vector.broadcast %64 : vector<16x16x1xf32> to vector<16x16x45xf32>
    %69 = vector.broadcast %67 : vector<1x1x45xf32> to vector<16x16x45xf32>
    %70 = arith.mulf %68, %69 : vector<16x16x45xf32>
    %71 = arith.addf %62, %70 : vector<16x16x45xf32>
    %c2_26 = arith.constant 2 : index
    %c1_27 = arith.constant 1 : index
    %72 = vector.load %arg18[%c2_26, %c1_27] : memref<18x18xf32, #tpu.memory_space<vmem>>, vector<16x16xf32>
    %73 = vector.shape_cast %72 : vector<16x16xf32> to vector<16x16x1xf32>
    %74 = vector.extract_strided_slice %7 {offsets = [2, 1, 0], sizes = [1, 1, 45], strides = [1, 1, 1]} : vector<3x3x45xf32> to vector<1x1x45xf32>
    %75 = vector.shape_cast %74 : vector<1x1x45xf32> to vector<45xf32>
    %76 = vector.shape_cast %75 : vector<45xf32> to vector<1x1x45xf32>
    %77 = vector.broadcast %73 : vector<16x16x1xf32> to vector<16x16x45xf32>
    %78 = vector.broadcast %76 : vector<1x1x45xf32> to vector<16x16x45xf32>
    %79 = arith.mulf %77, %78 : vector<16x16x45xf32>
    %80 = arith.addf %71, %79 : vector<16x16x45xf32>
    %c2_28 = arith.constant 2 : index
    %c2_29 = arith.constant 2 : index
    %81 = vector.load %arg18[%c2_28, %c2_29] : memref<18x18xf32, #tpu.memory_space<vmem>>, vector<16x16xf32>
    %82 = vector.shape_cast %81 : vector<16x16xf32> to vector<16x16x1xf32>
    %83 = vector.extract_strided_slice %7 {offsets = [2, 2, 0], sizes = [1, 1, 45], strides = [1, 1, 1]} : vector<3x3x45xf32> to vector<1x1x45xf32>
    %84 = vector.shape_cast %83 : vector<1x1x45xf32> to vector<45xf32>
    %85 = vector.shape_cast %84 : vector<45xf32> to vector<1x1x45xf32>
    %86 = vector.broadcast %82 : vector<16x16x1xf32> to vector<16x16x45xf32>
    %87 = vector.broadcast %85 : vector<1x1x45xf32> to vector<16x16x45xf32>
    %88 = arith.mulf %86, %87 : vector<16x16x45xf32>
    %89 = arith.addf %80, %88 : vector<16x16x45xf32>
    %c0_30 = arith.constant 0 : index
    %c0_31 = arith.constant 0 : index
    %90 = vector.load %arg3[%c0_30, %c0_31] : memref<1x45xf32, #tpu.memory_space<vmem>>, vector<1x45xf32>
    %91 = vector.shape_cast %90 : vector<1x45xf32> to vector<45xf32>
    %92 = vector.shape_cast %91 : vector<45xf32> to vector<1x1x45xf32>
    %93 = vector.broadcast %92 : vector<1x1x45xf32> to vector<16x16x45xf32>
    %94 = arith.addf %89, %93 : vector<16x16x45xf32>
    %95 = vector.shape_cast %94 : vector<16x16x45xf32> to vector<256x45xf32>
    %c0_32 = arith.constant 0 : index
    %c0_33 = arith.constant 0 : index
    %96 = vector.load %arg17[%c0_32, %c0_33] : memref<256x45xf32, #tpu.memory_space<vmem>>, vector<256x45xf32>
    tpu.vector_store %arg17[%c0_32, %c0_33], %95 {strides = array<i32>} : memref<256x45xf32, #tpu.memory_space<vmem>>, vector<256x45xf32>,
    %c0_34 = arith.constant 0 : index
    %c0_35 = arith.constant 0 : index
    %97 = vector.load %arg17[%c0_34, %c0_35] : memref<256x45xf32, #tpu.memory_space<vmem>>, vector<256x45xf32>
    %98 = arith.truncf %97 : vector<256x45xf32> to vector<256x45xbf16>
    %c0_36 = arith.constant 0 : index
    %c0_37 = arith.constant 0 : index
    %99 = vector.load %arg4[%c0_36, %c0_37] : memref<45x30xbf16, #tpu.memory_space<vmem>>, vector<45x30xbf16>
    %cst_38 = arith.constant dense<0.000000e+00> : vector<256x30xf32>
    %100 = tpu.matmul %98, %99, %cst_38 {dimension_numbers = #tpu.dot_dimension_numbers<[1], [0], [0], [1], [0, 0, 1, 1], [], []>} : vector<256x45xbf16>, vector<45x30xbf16>, vector<256x30xf32> -> vector<256x30xf32>
    %c0_39 = arith.constant 0 : index
    %c0_40 = arith.constant 0 : index
    %101 = vector.load %arg5[%c0_39, %c0_40] : memref<1x30xf32, #tpu.memory_space<vmem>>, vector<1x30xf32>
    %102 = vector.shape_cast %101 : vector<1x30xf32> to vector<30xf32>
    %103 = vector.shape_cast %102 : vector<30xf32> to vector<1x30xf32>
    %104 = vector.broadcast %103 : vector<1x30xf32> to vector<256x30xf32>
    %105 = arith.addf %100, %104 : vector<256x30xf32>
    %106 = vector.shape_cast %105 : vector<256x30xf32> to vector<16x16x30xf32>
    %c1_41 = arith.constant 1 : index
    %c1_42 = arith.constant 1 : index
    %c0_43 = arith.constant 0 : index
    %107 = vector.load %arg19[%c1_41, %c1_42, %c0_43] : memref<18x18x32xf32, #tpu.memory_space<vmem>>, vector<16x16x30xf32>
    tpu.vector_store %arg19[%c1_41, %c1_42, %c0_43], %106 {strides = array<i32>} : memref<18x18x32xf32, #tpu.memory_space<vmem>>, vector<16x16x30xf32>,
    %c0_44 = arith.constant 0 : index
    %c0_45 = arith.constant 0 : index
    %c0_46 = arith.constant 0 : index
    %108 = vector.load %arg19[%c0_44, %c0_45, %c0_46] : memref<18x18x32xf32, #tpu.memory_space<vmem>>, vector<16x16x30xf32>
    %109 = vector.shape_cast %108 : vector<16x16x30xf32> to vector<256x30xf32>
    %c0_47 = arith.constant 0 : index
    %c1_48 = arith.constant 1 : index
    %c0_49 = arith.constant 0 : index
    %110 = vector.load %arg19[%c0_47, %c1_48, %c0_49] : memref<18x18x32xf32, #tpu.memory_space<vmem>>, vector<16x16x30xf32>
    %111 = vector.shape_cast %110 : vector<16x16x30xf32> to vector<256x30xf32>
    %c0_50 = arith.constant 0 : index
    %c2_51 = arith.constant 2 : index
    %c0_52 = arith.constant 0 : index
    %112 = vector.load %arg19[%c0_50, %c2_51, %c0_52] : memref<18x18x32xf32, #tpu.memory_space<vmem>>, vector<16x16x30xf32>
    %113 = vector.shape_cast %112 : vector<16x16x30xf32> to vector<256x30xf32>
    %c1_53 = arith.constant 1 : index
    %c0_54 = arith.constant 0 : index
    %c0_55 = arith.constant 0 : index
    %114 = vector.load %arg19[%c1_53, %c0_54, %c0_55] : memref<18x18x32xf32, #tpu.memory_space<vmem>>, vector<16x16x30xf32>
    %115 = vector.shape_cast %114 : vector<16x16x30xf32> to vector<256x30xf32>
    %c1_56 = arith.constant 1 : index
    %c1_57 = arith.constant 1 : index
    %c0_58 = arith.constant 0 : index
    %116 = vector.load %arg19[%c1_56, %c1_57, %c0_58] : memref<18x18x32xf32, #tpu.memory_space<vmem>>, vector<16x16x30xf32>
    %117 = vector.shape_cast %116 : vector<16x16x30xf32> to vector<256x30xf32>
    %c1_59 = arith.constant 1 : index
    %c2_60 = arith.constant 2 : index
    %c0_61 = arith.constant 0 : index
    %118 = vector.load %arg19[%c1_59, %c2_60, %c0_61] : memref<18x18x32xf32, #tpu.memory_space<vmem>>, vector<16x16x30xf32>
    %119 = vector.shape_cast %118 : vector<16x16x30xf32> to vector<256x30xf32>
    %c2_62 = arith.constant 2 : index
    %c0_63 = arith.constant 0 : index
    %c0_64 = arith.constant 0 : index
    %120 = vector.load %arg19[%c2_62, %c0_63, %c0_64] : memref<18x18x32xf32, #tpu.memory_space<vmem>>, vector<16x16x30xf32>
    %121 = vector.shape_cast %120 : vector<16x16x30xf32> to vector<256x30xf32>
    %c2_65 = arith.constant 2 : index
    %c1_66 = arith.constant 1 : index
    %c0_67 = arith.constant 0 : index
    %122 = vector.load %arg19[%c2_65, %c1_66, %c0_67] : memref<18x18x32xf32, #tpu.memory_space<vmem>>, vector<16x16x30xf32>
    %123 = vector.shape_cast %122 : vector<16x16x30xf32> to vector<256x30xf32>
    %c2_68 = arith.constant 2 : index
    %c2_69 = arith.constant 2 : index
    %c0_70 = arith.constant 0 : index
    %124 = vector.load %arg19[%c2_68, %c2_69, %c0_70] : memref<18x18x32xf32, #tpu.memory_space<vmem>>, vector<16x16x30xf32>
    %125 = vector.shape_cast %124 : vector<16x16x30xf32> to vector<256x30xf32>
    %126 = tpu.concatenate %109, %111, %113, %115, %117, %119, %121, %123, %125 in 1 : vector<256x30xf32>, vector<256x30xf32>, vector<256x30xf32>, vector<256x30xf32>, vector<256x30xf32>, vector<256x30xf32>, vector<256x30xf32>, vector<256x30xf32>, vector<256x30xf32> -> vector<256x270xf32>
    %127 = arith.truncf %126 : vector<256x270xf32> to vector<256x270xbf16>
    %c0_71 = arith.constant 0 : index
    %c0_72 = arith.constant 0 : index
    %128 = vector.load %arg6[%c0_71, %c0_72] : memref<270x45xbf16, #tpu.memory_space<vmem>>, vector<270x45xbf16>
    %cst_73 = arith.constant dense<0.000000e+00> : vector<256x45xf32>
    %129 = tpu.matmul %127, %128, %cst_73 {dimension_numbers = #tpu.dot_dimension_numbers<[1], [0], [0], [1], [0, 0, 1, 1], [], []>} : vector<256x270xbf16>, vector<270x45xbf16>, vector<256x45xf32> -> vector<256x45xf32>
    %c0_74 = arith.constant 0 : index
    %c0_75 = arith.constant 0 : index
    %130 = vector.load %arg7[%c0_74, %c0_75] : memref<1x45xf32, #tpu.memory_space<vmem>>, vector<1x45xf32>
    %131 = vector.shape_cast %130 : vector<1x45xf32> to vector<45xf32>
    %132 = vector.shape_cast %131 : vector<45xf32> to vector<1x45xf32>
    %133 = vector.broadcast %132 : vector<1x45xf32> to vector<256x45xf32>
    %134 = arith.addf %129, %133 : vector<256x45xf32>
    %135 = arith.addf %97, %134 : vector<256x45xf32>
    %c0_76 = arith.constant 0 : index
    %c0_77 = arith.constant 0 : index
    %136 = vector.load %arg17[%c0_76, %c0_77] : memref<256x45xf32, #tpu.memory_space<vmem>>, vector<256x45xf32>
    tpu.vector_store %arg17[%c0_76, %c0_77], %135 {strides = array<i32>} : memref<256x45xf32, #tpu.memory_space<vmem>>, vector<256x45xf32>,
    %c0_78 = arith.constant 0 : index
    %c0_79 = arith.constant 0 : index
    %137 = vector.load %arg17[%c0_78, %c0_79] : memref<256x45xf32, #tpu.memory_space<vmem>>, vector<256x45xf32>
    %138 = arith.truncf %137 : vector<256x45xf32> to vector<256x45xbf16>
    %c0_80 = arith.constant 0 : index
    %c0_81 = arith.constant 0 : index
    %139 = vector.load %arg8[%c0_80, %c0_81] : memref<45x24xbf16, #tpu.memory_space<vmem>>, vector<45x24xbf16>
    %cst_82 = arith.constant dense<0.000000e+00> : vector<256x24xf32>
    %140 = tpu.matmul %138, %139, %cst_82 {dimension_numbers = #tpu.dot_dimension_numbers<[1], [0], [0], [1], [0, 0, 1, 1], [], []>} : vector<256x45xbf16>, vector<45x24xbf16>, vector<256x24xf32> -> vector<256x24xf32>
    %c0_83 = arith.constant 0 : index
    %c0_84 = arith.constant 0 : index
    %141 = vector.load %arg9[%c0_83, %c0_84] : memref<1x24xf32, #tpu.memory_space<vmem>>, vector<1x24xf32>
    %142 = vector.shape_cast %141 : vector<1x24xf32> to vector<24xf32>
    %143 = vector.shape_cast %142 : vector<24xf32> to vector<1x24xf32>
    %144 = vector.broadcast %143 : vector<1x24xf32> to vector<256x24xf32>
    %145 = arith.addf %140, %144 : vector<256x24xf32>
    %146 = vector.shape_cast %145 : vector<256x24xf32> to vector<16x16x24xf32>
    %c1_85 = arith.constant 1 : index
    %c1_86 = arith.constant 1 : index
    %c0_87 = arith.constant 0 : index
    %147 = vector.load %arg19[%c1_85, %c1_86, %c0_87] : memref<18x18x32xf32, #tpu.memory_space<vmem>>, vector<16x16x24xf32>
    tpu.vector_store %arg19[%c1_85, %c1_86, %c0_87], %146 {strides = array<i32>} : memref<18x18x32xf32, #tpu.memory_space<vmem>>, vector<16x16x24xf32>,
    %c0_88 = arith.constant 0 : index
    %c0_89 = arith.constant 0 : index
    %c0_90 = arith.constant 0 : index
    %148 = vector.load %arg19[%c0_88, %c0_89, %c0_90] : memref<18x18x32xf32, #tpu.memory_space<vmem>>, vector<16x16x24xf32>
    %149 = vector.shape_cast %148 : vector<16x16x24xf32> to vector<256x24xf32>
    %c0_91 = arith.constant 0 : index
    %c1_92 = arith.constant 1 : index
    %c0_93 = arith.constant 0 : index
    %150 = vector.load %arg19[%c0_91, %c1_92, %c0_93] : memref<18x18x32xf32, #tpu.memory_space<vmem>>, vector<16x16x24xf32>
    %151 = vector.shape_cast %150 : vector<16x16x24xf32> to vector<256x24xf32>
    %c0_94 = arith.constant 0 : index
    %c2_95 = arith.constant 2 : index
    %c0_96 = arith.constant 0 : index
    %152 = vector.load %arg19[%c0_94, %c2_95, %c0_96] : memref<18x18x32xf32, #tpu.memory_space<vmem>>, vector<16x16x24xf32>
    %153 = vector.shape_cast %152 : vector<16x16x24xf32> to vector<256x24xf32>
    %c1_97 = arith.constant 1 : index
    %c0_98 = arith.constant 0 : index
    %c0_99 = arith.constant 0 : index
    %154 = vector.load %arg19[%c1_97, %c0_98, %c0_99] : memref<18x18x32xf32, #tpu.memory_space<vmem>>, vector<16x16x24xf32>
    %155 = vector.shape_cast %154 : vector<16x16x24xf32> to vector<256x24xf32>
    %c1_100 = arith.constant 1 : index
    %c1_101 = arith.constant 1 : index
    %c0_102 = arith.constant 0 : index
    %156 = vector.load %arg19[%c1_100, %c1_101, %c0_102] : memref<18x18x32xf32, #tpu.memory_space<vmem>>, vector<16x16x24xf32>
    %157 = vector.shape_cast %156 : vector<16x16x24xf32> to vector<256x24xf32>
    %c1_103 = arith.constant 1 : index
    %c2_104 = arith.constant 2 : index
    %c0_105 = arith.constant 0 : index
    %158 = vector.load %arg19[%c1_103, %c2_104, %c0_105] : memref<18x18x32xf32, #tpu.memory_space<vmem>>, vector<16x16x24xf32>
    %159 = vector.shape_cast %158 : vector<16x16x24xf32> to vector<256x24xf32>
    %c2_106 = arith.constant 2 : index
    %c0_107 = arith.constant 0 : index
    %c0_108 = arith.constant 0 : index
    %160 = vector.load %arg19[%c2_106, %c0_107, %c0_108] : memref<18x18x32xf32, #tpu.memory_space<vmem>>, vector<16x16x24xf32>
    %161 = vector.shape_cast %160 : vector<16x16x24xf32> to vector<256x24xf32>
    %c2_109 = arith.constant 2 : index
    %c1_110 = arith.constant 1 : index
    %c0_111 = arith.constant 0 : index
    %162 = vector.load %arg19[%c2_109, %c1_110, %c0_111] : memref<18x18x32xf32, #tpu.memory_space<vmem>>, vector<16x16x24xf32>
    %163 = vector.shape_cast %162 : vector<16x16x24xf32> to vector<256x24xf32>
    %c2_112 = arith.constant 2 : index
    %c2_113 = arith.constant 2 : index
    %c0_114 = arith.constant 0 : index
    %164 = vector.load %arg19[%c2_112, %c2_113, %c0_114] : memref<18x18x32xf32, #tpu.memory_space<vmem>>, vector<16x16x24xf32>
    %165 = vector.shape_cast %164 : vector<16x16x24xf32> to vector<256x24xf32>
    %166 = tpu.concatenate %149, %151, %153, %155, %157, %159, %161, %163, %165 in 1 : vector<256x24xf32>, vector<256x24xf32>, vector<256x24xf32>, vector<256x24xf32>, vector<256x24xf32>, vector<256x24xf32>, vector<256x24xf32>, vector<256x24xf32>, vector<256x24xf32> -> vector<256x216xf32>
    %167 = arith.truncf %166 : vector<256x216xf32> to vector<256x216xbf16>
    %c0_115 = arith.constant 0 : index
    %c0_116 = arith.constant 0 : index
    %168 = vector.load %arg10[%c0_115, %c0_116] : memref<216x45xbf16, #tpu.memory_space<vmem>>, vector<216x45xbf16>
    %cst_117 = arith.constant dense<0.000000e+00> : vector<256x45xf32>
    %169 = tpu.matmul %167, %168, %cst_117 {dimension_numbers = #tpu.dot_dimension_numbers<[1], [0], [0], [1], [0, 0, 1, 1], [], []>} : vector<256x216xbf16>, vector<216x45xbf16>, vector<256x45xf32> -> vector<256x45xf32>
    %c0_118 = arith.constant 0 : index
    %c0_119 = arith.constant 0 : index
    %170 = vector.load %arg11[%c0_118, %c0_119] : memref<1x45xf32, #tpu.memory_space<vmem>>, vector<1x45xf32>
    %171 = vector.shape_cast %170 : vector<1x45xf32> to vector<45xf32>
    %172 = vector.shape_cast %171 : vector<45xf32> to vector<1x45xf32>
    %173 = vector.broadcast %172 : vector<1x45xf32> to vector<256x45xf32>
    %174 = arith.addf %169, %173 : vector<256x45xf32>
    %175 = arith.addf %137, %174 : vector<256x45xf32>
    %c0_120 = arith.constant 0 : index
    %c0_121 = arith.constant 0 : index
    %176 = vector.load %arg17[%c0_120, %c0_121] : memref<256x45xf32, #tpu.memory_space<vmem>>, vector<256x45xf32>
    tpu.vector_store %arg17[%c0_120, %c0_121], %175 {strides = array<i32>} : memref<256x45xf32, #tpu.memory_space<vmem>>, vector<256x45xf32>,
    %c0_122 = arith.constant 0 : index
    %c0_123 = arith.constant 0 : index
    %177 = vector.load %arg17[%c0_122, %c0_123] : memref<256x45xf32, #tpu.memory_space<vmem>>, vector<256x45xf32>
    %cst_124 = arith.constant dense<0.000000e+00> : vector<45xf32>
    %178 = vector.multi_reduction <add>, %177, %cst_124 [0] : vector<256x45xf32> to vector<45xf32>
    %179 = vector.shape_cast %178 : vector<45xf32> to vector<1x45xf32>
    %cst_125 = arith.constant 2.560000e+02 : f32
    %180 = vector.broadcast %cst_125 : f32 to vector<1x45xf32>
    %181 = arith.divf %179, %180 : vector<1x45xf32>
    %c0_126 = arith.constant 0 : index
    %c0_127 = arith.constant 0 : index
    %182 = vector.load %arg12[%c0_126, %c0_127] : memref<1x45xf32, #tpu.memory_space<vmem>>, vector<1x45xf32>
    %183 = arith.mulf %181, %182 : vector<1x45xf32>
    %c0_128 = arith.constant 0 : index
    %c0_129 = arith.constant 0 : index
    %184 = vector.load %arg13[%c0_128, %c0_129] : memref<1x45xf32, #tpu.memory_space<vmem>>, vector<1x45xf32>
    %185 = arith.addf %183, %184 : vector<1x45xf32>
    %c0_130 = arith.constant 0 : index
    %c0_131 = arith.constant 0 : index
    %186 = vector.load %arg14[%c0_130, %c0_131] : memref<45x12xf32, #tpu.memory_space<vmem>>, vector<45x12xf32>
    %cst_132 = arith.constant dense<0.000000e+00> : vector<1x12xf32>
    %187 = tpu.matmul %185, %186, %cst_132 {dimension_numbers = #tpu.dot_dimension_numbers<[1], [0], [0], [1], [0, 0, 1, 1], [], []>} : vector<1x45xf32>, vector<45x12xf32>, vector<1x12xf32> -> vector<1x12xf32>
    %c0_133 = arith.constant 0 : index
    %c0_134 = arith.constant 0 : index
    %188 = vector.load %arg15[%c0_133, %c0_134] : memref<1x12xf32, #tpu.memory_space<vmem>>, vector<1x12xf32>
    %189 = vector.shape_cast %188 : vector<1x12xf32> to vector<12xf32>
    %190 = vector.shape_cast %189 : vector<12xf32> to vector<1x12xf32>
    %191 = arith.addf %187, %190 : vector<1x12xf32>
    %cst_135 = arith.constant dense<0xFF800000> : vector<1xf32>
    %192 = vector.multi_reduction <maximumf>, %191, %cst_135 [1] : vector<1x12xf32> to vector<1xf32>
    %193 = vector.shape_cast %192 : vector<1xf32> to vector<1x1xf32>
    %194 = vector.broadcast %193 : vector<1x1xf32> to vector<1x12xf32>
    %195 = arith.subf %191, %194 : vector<1x12xf32>
    %196 = math.exp %195 : vector<1x12xf32>
    %cst_136 = arith.constant dense<0.000000e+00> : vector<1xf32>
    %197 = vector.multi_reduction <add>, %196, %cst_136 [1] : vector<1x12xf32> to vector<1xf32>
    %198 = vector.shape_cast %197 : vector<1xf32> to vector<1x1xf32>
    %199 = math.log %198 : vector<1x1xf32>
    %200 = arith.addf %193, %199 : vector<1x1xf32>
    %201 = vector.broadcast %200 : vector<1x1xf32> to vector<1x12xf32>
    %202 = arith.subf %191, %201 : vector<1x12xf32>
    %203 = vector.shape_cast %202 : vector<1x12xf32> to vector<1x1x12xf32>
    %c0_137 = arith.constant 0 : index
    %c0_138 = arith.constant 0 : index
    %c0_139 = arith.constant 0 : index
    %204 = vector.load %arg16[%c0_137, %c0_138, %c0_139] : memref<1x1x12xf32, #tpu.memory_space<vmem>>, vector<1x1x12xf32>
    tpu.vector_store %arg16[%c0_137, %c0_138, %c0_139], %203 {strides = array<i32>} : memref<1x1x12xf32, #tpu.memory_space<vmem>>, vector<1x1x12xf32>,
    return
  }
  func.func @transform_0(%arg0: i32) -> (i32, i32, i32) {
    %c0_i32 = arith.constant 0 : i32
    %c0_i32_0 = arith.constant 0 : i32
    %c0_i32_1 = arith.constant 0 : i32
    return %arg0, %c0_i32, %c0_i32_0 : i32, i32, i32
  }
  func.func @transform_1(%arg0: i32) -> (i32, i32, i32) {
    %c0_i32 = arith.constant 0 : i32
    %c0_i32_0 = arith.constant 0 : i32
    %c0_i32_1 = arith.constant 0 : i32
    %c0_i32_2 = arith.constant 0 : i32
    return %c0_i32, %c0_i32_0, %c0_i32_1 : i32, i32, i32
  }
  func.func @transform_2(%arg0: i32) -> (i32, i32) {
    %c0_i32 = arith.constant 0 : i32
    %c0_i32_0 = arith.constant 0 : i32
    %c0_i32_1 = arith.constant 0 : i32
    return %c0_i32, %c0_i32_0 : i32, i32
  }
  func.func @transform_3(%arg0: i32) -> (i32, i32) {
    %c0_i32 = arith.constant 0 : i32
    %c0_i32_0 = arith.constant 0 : i32
    %c0_i32_1 = arith.constant 0 : i32
    return %c0_i32, %c0_i32_0 : i32, i32
  }
  func.func @transform_4(%arg0: i32) -> (i32, i32) {
    %c0_i32 = arith.constant 0 : i32
    %c0_i32_0 = arith.constant 0 : i32
    %c0_i32_1 = arith.constant 0 : i32
    return %c0_i32, %c0_i32_0 : i32, i32
  }
  func.func @transform_5(%arg0: i32) -> (i32, i32) {
    %c0_i32 = arith.constant 0 : i32
    %c0_i32_0 = arith.constant 0 : i32
    %c0_i32_1 = arith.constant 0 : i32
    return %c0_i32, %c0_i32_0 : i32, i32
  }
  func.func @transform_6(%arg0: i32) -> (i32, i32) {
    %c0_i32 = arith.constant 0 : i32
    %c0_i32_0 = arith.constant 0 : i32
    %c0_i32_1 = arith.constant 0 : i32
    return %c0_i32, %c0_i32_0 : i32, i32
  }
  func.func @transform_7(%arg0: i32) -> (i32, i32) {
    %c0_i32 = arith.constant 0 : i32
    %c0_i32_0 = arith.constant 0 : i32
    %c0_i32_1 = arith.constant 0 : i32
    return %c0_i32, %c0_i32_0 : i32, i32
  }
  func.func @transform_8(%arg0: i32) -> (i32, i32) {
    %c0_i32 = arith.constant 0 : i32
    %c0_i32_0 = arith.constant 0 : i32
    %c0_i32_1 = arith.constant 0 : i32
    return %c0_i32, %c0_i32_0 : i32, i32
  }
  func.func @transform_9(%arg0: i32) -> (i32, i32) {
    %c0_i32 = arith.constant 0 : i32
    %c0_i32_0 = arith.constant 0 : i32
    %c0_i32_1 = arith.constant 0 : i32
    return %c0_i32, %c0_i32_0 : i32, i32
  }
  func.func @transform_10(%arg0: i32) -> (i32, i32) {
    %c0_i32 = arith.constant 0 : i32
    %c0_i32_0 = arith.constant 0 : i32
    %c0_i32_1 = arith.constant 0 : i32
    return %c0_i32, %c0_i32_0 : i32, i32
  }
  func.func @transform_11(%arg0: i32) -> (i32, i32) {
    %c0_i32 = arith.constant 0 : i32
    %c0_i32_0 = arith.constant 0 : i32
    %c0_i32_1 = arith.constant 0 : i32
    return %c0_i32, %c0_i32_0 : i32, i32
  }
  func.func @transform_12(%arg0: i32) -> (i32, i32) {
    %c0_i32 = arith.constant 0 : i32
    %c0_i32_0 = arith.constant 0 : i32
    %c0_i32_1 = arith.constant 0 : i32
    return %c0_i32, %c0_i32_0 : i32, i32
  }
  func.func @transform_13(%arg0: i32) -> (i32, i32) {
    %c0_i32 = arith.constant 0 : i32
    %c0_i32_0 = arith.constant 0 : i32
    %c0_i32_1 = arith.constant 0 : i32
    return %c0_i32, %c0_i32_0 : i32, i32
  }
  func.func @transform_14(%arg0: i32) -> (i32, i32) {
    %c0_i32 = arith.constant 0 : i32
    %c0_i32_0 = arith.constant 0 : i32
    %c0_i32_1 = arith.constant 0 : i32
    return %c0_i32, %c0_i32_0 : i32, i32
  }
  func.func @transform_15(%arg0: i32) -> (i32, i32, i32) {
    %c0_i32 = arith.constant 0 : i32
    %c0_i32_0 = arith.constant 0 : i32
    %c0_i32_1 = arith.constant 0 : i32
    return %arg0, %c0_i32, %c0_i32_0 : i32, i32, i32
  }
}

</mosaic_0001>

<llo_original>
// kernel: edge_speech_net_forward.1
$region0: #{edge_speech_net_forward.1}
  #allocation0 [shape = 'u32[]', space=smem, size = 0x4, offset = 0x4, fixed_abs, tag = 'smem constant byte address 0x4 - core index']
  #allocation1 [shape = 'u32[144,128]{1,0:T(1,128)}', space=vmem, size = 0x12000, scoped, tag = 'internal scratch']
  #allocation2 [shape = 'f32[256,45]{1,0:T(8,128)}', space=vmem, size = 0x20000, scoped, tag = 'scratch operand']
  #allocation3 [shape = 'f32[18,18]{1,0:T(8,128)}', space=vmem, size = 0x3000, scoped, tag = 'scratch operand']
  #allocation4 [shape = 'f32[18,18,32]{2,1,0:T(8,128)}', space=vmem, size = 0x36000, scoped, tag = 'scratch operand']
  %s0 = inlined_call_operand.vmem [shape: f32[2,16,16], index: 0, kind: input, shape index: {}]
  %s1 = inlined_call_operand.vmem [shape: f32[3,3,45], index: 1, kind: input, shape index: {}]
  %s2 = inlined_call_operand.vmem [shape: f32[1,45], index: 2, kind: input, shape index: {}]
  %s3 = inlined_call_operand.vmem [shape: bf16[45,30], index: 3, kind: input, shape index: {}]
  %s4 = inlined_call_operand.vmem [shape: f32[1,30], index: 4, kind: input, shape index: {}]
  %s5 = inlined_call_operand.vmem [shape: bf16[270,45], index: 5, kind: input, shape index: {}]
  %s6 = inlined_call_operand.vmem [shape: f32[1,45], index: 6, kind: input, shape index: {}]
  %s7 = inlined_call_operand.vmem [shape: bf16[45,24], index: 7, kind: input, shape index: {}]
  %s8 = inlined_call_operand.vmem [shape: f32[1,24], index: 8, kind: input, shape index: {}]
  %s9 = inlined_call_operand.vmem [shape: bf16[216,45], index: 9, kind: input, shape index: {}]
  %s10 = inlined_call_operand.vmem [shape: f32[1,45], index: 10, kind: input, shape index: {}]
  %s11 = inlined_call_operand.vmem [shape: f32[1,45], index: 11, kind: input, shape index: {}]
  %s12 = inlined_call_operand.vmem [shape: f32[1,45], index: 12, kind: input, shape index: {}]
  %s13 = inlined_call_operand.vmem [shape: f32[45,12], index: 13, kind: input, shape index: {}]
  %s14 = inlined_call_operand.vmem [shape: f32[1,12], index: 14, kind: input, shape index: {}]
  %s15 = inlined_call_operand.hbm [shape: f32[2,1,12], index: 15, kind: output, shape index: {}]
  %s16 = sld [smem:[#allocation0]]
  $region93: #{edge_speech_net_forward.1} parent=0
    _
  %s18 = ssub.s32 1, %s16
  %s19 = scalar_select 0, %s18, %s16
  $region1: #{edge_speech_net_forward.1} parent=0
    #allocation5 [shape = 'u8[1024]{0}', space=vmem, size = 0x400, scoped, tag = 'output window, operand 0']
    #allocation6 [shape = 's32[2]{0}', space=sflag, size = 0x8, scoped, tag = 'scoped memory for edge_speech_net_forward.1']
    %20 = vsyncpa [#allocation6], 0
    %s21 = scalar_lea.sflag [#allocation6], 1
    %22 = vsyncpa %s21, 0
    loop: start=0, step=1, limit=4
    $region2: #{edge_speech_net_forward.1} parent=1 // loop_pre_header
      _
    $region3: #{edge_speech_net_forward.1} parent=1 // loop_header
      %s24 = sphi 0, %s28
      %p25 = scmp.ge.s32.totalorder %s24, 4
      %s34 = sphi 0, %s36
      %s37 = sphi 0, %s34
      %s38 = sphi 0, %s37
      %s54 = sphi 0, %s38
      %s58 = sphi 0, %s58
      %s60 = sphi 0, %s58
      %s61 = sphi 0, %s60
      %s75 = sphi 0, %s61
      %s79 = sphi 0, %s79
      %s81 = sphi 0, %s79
      %s82 = sphi 0, %s81
      %s96 = sphi 0, %s82
      %s100 = sphi 0, %s100
      %s102 = sphi 0, %s100
      %s103 = sphi 0, %s102
      %s117 = sphi 0, %s103
      %s121 = sphi 0, %s121
      %s123 = sphi 0, %s121
      %s124 = sphi 0, %s123
      %s138 = sphi 0, %s124
      %s142 = sphi 0, %s142
      %s144 = sphi 0, %s142
      %s145 = sphi 0, %s144
      %s159 = sphi 0, %s145
      %s163 = sphi 0, %s163
      %s165 = sphi 0, %s163
      %s166 = sphi 0, %s165
      %s180 = sphi 0, %s166
      %s184 = sphi 0, %s184
      %s186 = sphi 0, %s184
      %s187 = sphi 0, %s186
      %s201 = sphi 0, %s187
      %s205 = sphi 0, %s205
      %s207 = sphi 0, %s205
      %s208 = sphi 0, %s207
      %s222 = sphi 0, %s208
      %s226 = sphi 0, %s226
      %s228 = sphi 0, %s226
      %s229 = sphi 0, %s228
      %s243 = sphi 0, %s229
      %s247 = sphi 0, %s247
      %s249 = sphi 0, %s247
      %s250 = sphi 0, %s249
      %s264 = sphi 0, %s250
      %s268 = sphi 0, %s268
      %s270 = sphi 0, %s268
      %s271 = sphi 0, %s270
      %s285 = sphi 0, %s271
      %s289 = sphi 0, %s289
      %s291 = sphi 0, %s289
      %s292 = sphi 0, %s291
      %s306 = sphi 0, %s292
      %s310 = sphi 0, %s310
      %s312 = sphi 0, %s310
      %s313 = sphi 0, %s312
      %s327 = sphi 0, %s313
      %s331 = sphi 0, %s331
      %s333 = sphi 0, %s331
      %s334 = sphi 0, %s333
      %s348 = sphi 0, %s334
      %s354 = sphi 0, %s356
      %s357 = sphi 0, %s354
      %s358 = sphi 0, %s357
      %s374 = sphi 0, %s358
    $region4: #{edge_speech_net_forward.1} parent=1 // loop_header_branch
      %27 = sbr.rel (%p25) target = $region8
    $region5: #{edge_speech_net_forward.1} parent=1 // loop_body
      %s29 = ssub.s32 %s24, 1
      %s30 = ssub.s32 %s24, 2
      %s31 = sadd.s32 %s24, 1
      %s32 = ssub.s32 %s24, %s31
      %p33 = scmp.eq.s32.totalorder %s32, 0
      %s35 = sadd.s32 %s34, 1
      %s36 = scalar_select %p33, %s34, %s35
      %p39 = pneg %p33
      %p40 = scmp.eq.s32.totalorder %s24, 1
      %p41 = por %p39, %p40
      %p42 = scmp.ne.s32.totalorder %s34, %s37
      %p43 = scmp.eq.s32.totalorder %s24, 0
      %p44 = por %p42, %p43
      %p45 = scmp.ne.s32.totalorder %s34, %s37
      %p46 = scmp.eq.s32.totalorder %s29, 1
      %p47 = por %p45, %p46
      %p48 = scmp.ne.s32.totalorder %s37, %s38
      %p49 = scmp.eq.s32.totalorder %s29, 0
      %p50 = por %p48, %p49
      %p51 = scmp.ne.s32.totalorder %s37, %s38
      %p52 = scmp.eq.s32.totalorder %s30, 1
      %p53 = por %p51, %p52
      %p55 = scmp.ne.s32.totalorder %s38, %s54
      %p56 = scmp.eq.s32.totalorder %s30, 0
      %p57 = por %p55, %p56
      %s59 = sadd.s32 %s58, 1
      %p62 = scmp.eq.s32.totalorder %s24, 1
      %p63 = scmp.ne.s32.totalorder %s58, %s60
      %p64 = scmp.eq.s32.totalorder %s24, 0
      %p65 = por %p63, %p64
      %p66 = scmp.ne.s32.totalorder %s58, %s60
      %p67 = scmp.eq.s32.totalorder %s29, 1
      %p68 = por %p66, %p67
      %p69 = scmp.ne.s32.totalorder %s60, %s61
      %p70 = scmp.eq.s32.totalorder %s29, 0
      %p71 = por %p69, %p70
      %p72 = scmp.ne.s32.totalorder %s60, %s61
      %p73 = scmp.eq.s32.totalorder %s30, 1
      %p74 = por %p72, %p73
      %p76 = scmp.ne.s32.totalorder %s61, %s75
      %p77 = scmp.eq.s32.totalorder %s30, 0
      %p78 = por %p76, %p77
      %s80 = sadd.s32 %s79, 1
      %p83 = scmp.eq.s32.totalorder %s24, 1
      %p84 = scmp.ne.s32.totalorder %s79, %s81
      %p85 = scmp.eq.s32.totalorder %s24, 0
      %p86 = por %p84, %p85
      %p87 = scmp.ne.s32.totalorder %s79, %s81
      %p88 = scmp.eq.s32.totalorder %s29, 1
      %p89 = por %p87, %p88
      %p90 = scmp.ne.s32.totalorder %s81, %s82
      %p91 = scmp.eq.s32.totalorder %s29, 0
      %p92 = por %p90, %p91
      %p93 = scmp.ne.s32.totalorder %s81, %s82
      %p94 = scmp.eq.s32.totalorder %s30, 1
      %p95 = por %p93, %p94
      %p97 = scmp.ne.s32.totalorder %s82, %s96
      %p98 = scmp.eq.s32.totalorder %s30, 0
      %p99 = por %p97, %p98
      %s101 = sadd.s32 %s100, 1
      %p104 = scmp.eq.s32.totalorder %s24, 1
      %p105 = scmp.ne.s32.totalorder %s100, %s102
      %p106 = scmp.eq.s32.totalorder %s24, 0
      %p107 = por %p105, %p106
      %p108 = scmp.ne.s32.totalorder %s100, %s102
      %p109 = scmp.eq.s32.totalorder %s29, 1
      %p110 = por %p108, %p109
      %p111 = scmp.ne.s32.totalorder %s102, %s103
      %p112 = scmp.eq.s32.totalorder %s29, 0
      %p113 = por %p111, %p112
      %p114 = scmp.ne.s32.totalorder %s102, %s103
      %p115 = scmp.eq.s32.totalorder %s30, 1
      %p116 = por %p114, %p115
      %p118 = scmp.ne.s32.totalorder %s103, %s117
      %p119 = scmp.eq.s32.totalorder %s30, 0
      %p120 = por %p118, %p119
      %s122 = sadd.s32 %s121, 1
      %p125 = scmp.eq.s32.totalorder %s24, 1
      %p126 = scmp.ne.s32.totalorder %s121, %s123
      %p127 = scmp.eq.s32.totalorder %s24, 0
      %p128 = por %p126, %p127
      %p129 = scmp.ne.s32.totalorder %s121, %s123
      %p130 = scmp.eq.s32.totalorder %s29, 1
      %p131 = por %p129, %p130
      %p132 = scmp.ne.s32.totalorder %s123, %s124
      %p133 = scmp.eq.s32.totalorder %s29, 0
      %p134 = por %p132, %p133
      %p135 = scmp.ne.s32.totalorder %s123, %s124
      %p136 = scmp.eq.s32.totalorder %s30, 1
      %p137 = por %p135, %p136
      %p139 = scmp.ne.s32.totalorder %s124, %s138
      %p140 = scmp.eq.s32.totalorder %s30, 0
      %p141 = por %p139, %p140
      %s143 = sadd.s32 %s142, 1
      %p146 = scmp.eq.s32.totalorder %s24, 1
      %p147 = scmp.ne.s32.totalorder %s142, %s144
      %p148 = scmp.eq.s32.totalorder %s24, 0
      %p149 = por %p147, %p148
      %p150 = scmp.ne.s32.totalorder %s142, %s144
      %p151 = scmp.eq.s32.totalorder %s29, 1
      %p152 = por %p150, %p151
      %p153 = scmp.ne.s32.totalorder %s144, %s145
      %p154 = scmp.eq.s32.totalorder %s29, 0
      %p155 = por %p153, %p154
      %p156 = scmp.ne.s32.totalorder %s144, %s145
      %p157 = scmp.eq.s32.totalorder %s30, 1
      %p158 = por %p156, %p157
      %p160 = scmp.ne.s32.totalorder %s145, %s159
      %p161 = scmp.eq.s32.totalorder %s30, 0
      %p162 = por %p160, %p161
      %s164 = sadd.s32 %s163, 1
      %p167 = scmp.eq.s32.totalorder %s24, 1
      %p168 = scmp.ne.s32.totalorder %s163, %s165
      %p169 = scmp.eq.s32.totalorder %s24, 0
      %p170 = por %p168, %p169
      %p171 = scmp.ne.s32.totalorder %s163, %s165
      %p172 = scmp.eq.s32.totalorder %s29, 1
      %p173 = por %p171, %p172
      %p174 = scmp.ne.s32.totalorder %s165, %s166
      %p175 = scmp.eq.s32.totalorder %s29, 0
      %p176 = por %p174, %p175
      %p177 = scmp.ne.s32.totalorder %s165, %s166
      %p178 = scmp.eq.s32.totalorder %s30, 1
      %p179 = por %p177, %p178
      %p181 = scmp.ne.s32.totalorder %s166, %s180
      %p182 = scmp.eq.s32.totalorder %s30, 0
      %p183 = por %p181, %p182
      %s185 = sadd.s32 %s184, 1
      %p188 = scmp.eq.s32.totalorder %s24, 1
      %p189 = scmp.ne.s32.totalorder %s184, %s186
      %p190 = scmp.eq.s32.totalorder %s24, 0
      %p191 = por %p189, %p190
      %p192 = scmp.ne.s32.totalorder %s184, %s186
      %p193 = scmp.eq.s32.totalorder %s29, 1
      %p194 = por %p192, %p193
      %p195 = scmp.ne.s32.totalorder %s186, %s187
      %p196 = scmp.eq.s32.totalorder %s29, 0
      %p197 = por %p195, %p196
      %p198 = scmp.ne.s32.totalorder %s186, %s187
      %p199 = scmp.eq.s32.totalorder %s30, 1
      %p200 = por %p198, %p199
      %p202 = scmp.ne.s32.totalorder %s187, %s201
      %p203 = scmp.eq.s32.totalorder %s30, 0
      %p204 = por %p202, %p203
      %s206 = sadd.s32 %s205, 1
      %p209 = scmp.eq.s32.totalorder %s24, 1
      %p210 = scmp.ne.s32.totalorder %s205, %s207
      %p211 = scmp.eq.s32.totalorder %s24, 0
      %p212 = por %p210, %p211
      %p213 = scmp.ne.s32.totalorder %s205, %s207
      %p214 = scmp.eq.s32.totalorder %s29, 1
      %p215 = por %p213, %p214
      %p216 = scmp.ne.s32.totalorder %s207, %s208
      %p217 = scmp.eq.s32.totalorder %s29, 0
      %p218 = por %p216, %p217
      %p219 = scmp.ne.s32.totalorder %s207, %s208
      %p220 = scmp.eq.s32.totalorder %s30, 1
      %p221 = por %p219, %p220
      %p223 = scmp.ne.s32.totalorder %s208, %s222
      %p224 = scmp.eq.s32.totalorder %s30, 0
      %p225 = por %p223, %p224
      %s227 = sadd.s32 %s226, 1
      %p230 = scmp.eq.s32.totalorder %s24, 1
      %p231 = scmp.ne.s32.totalorder %s226, %s228
      %p232 = scmp.eq.s32.totalorder %s24, 0
      %p233 = por %p231, %p232
      %p234 = scmp.ne.s32.totalorder %s226, %s228
      %p235 = scmp.eq.s32.totalorder %s29, 1
      %p236 = por %p234, %p235
      %p237 = scmp.ne.s32.totalorder %s228, %s229
      %p238 = scmp.eq.s32.totalorder %s29, 0
      %p239 = por %p237, %p238
      %p240 = scmp.ne.s32.totalorder %s228, %s229
      %p241 = scmp.eq.s32.totalorder %s30, 1
      %p242 = por %p240, %p241
      %p244 = scmp.ne.s32.totalorder %s229, %s243
      %p245 = scmp.eq.s32.totalorder %s30, 0
      %p246 = por %p244, %p245
      %s248 = sadd.s32 %s247, 1
      %p251 = scmp.eq.s32.totalorder %s24, 1
      %p252 = scmp.ne.s32.totalorder %s247, %s249
      %p253 = scmp.eq.s32.totalorder %s24, 0
      %p254 = por %p252, %p253
      %p255 = scmp.ne.s32.totalorder %s247, %s249
      %p256 = scmp.eq.s32.totalorder %s29, 1
      %p257 = por %p255, %p256
      %p258 = scmp.ne.s32.totalorder %s249, %s250
      %p259 = scmp.eq.s32.totalorder %s29, 0
      %p260 = por %p258, %p259
      %p261 = scmp.ne.s32.totalorder %s249, %s250
      %p262 = scmp.eq.s32.totalorder %s30, 1
      %p263 = por %p261, %p262
      %p265 = scmp.ne.s32.totalorder %s250, %s264
      %p266 = scmp.eq.s32.totalorder %s30, 0
      %p267 = por %p265, %p266
      %s269 = sadd.s32 %s268, 1
      %p272 = scmp.eq.s32.totalorder %s24, 1
      %p273 = scmp.ne.s32.totalorder %s268, %s270
      %p274 = scmp.eq.s32.totalorder %s24, 0
      %p275 = por %p273, %p274
      %p276 = scmp.ne.s32.totalorder %s268, %s270
      %p277 = scmp.eq.s32.totalorder %s29, 1
      %p278 = por %p276, %p277
      %p279 = scmp.ne.s32.totalorder %s270, %s271
      %p280 = scmp.eq.s32.totalorder %s29, 0
      %p281 = por %p279, %p280
      %p282 = scmp.ne.s32.totalorder %s270, %s271
      %p283 = scmp.eq.s32.totalorder %s30, 1
      %p284 = por %p282, %p283
      %p286 = scmp.ne.s32.totalorder %s271, %s285
      %p287 = scmp.eq.s32.totalorder %s30, 0
      %p288 = por %p286, %p287
      %s290 = sadd.s32 %s289, 1
      %p293 = scmp.eq.s32.totalorder %s24, 1
      %p294 = scmp.ne.s32.totalorder %s289, %s291
      %p295 = scmp.eq.s32.totalorder %s24, 0
      %p296 = por %p294, %p295
      %p297 = scmp.ne.s32.totalorder %s289, %s291
      %p298 = scmp.eq.s32.totalorder %s29, 1
      %p299 = por %p297, %p298
      %p300 = scmp.ne.s32.totalorder %s291, %s292
      %p301 = scmp.eq.s32.totalorder %s29, 0
      %p302 = por %p300, %p301
      %p303 = scmp.ne.s32.totalorder %s291, %s292
      %p304 = scmp.eq.s32.totalorder %s30, 1
      %p305 = por %p303, %p304
      %p307 = scmp.ne.s32.totalorder %s292, %s306
      %p308 = scmp.eq.s32.totalorder %s30, 0
      %p309 = por %p307, %p308
      %s311 = sadd.s32 %s310, 1
      %p314 = scmp.eq.s32.totalorder %s24, 1
      %p315 = scmp.ne.s32.totalorder %s310, %s312
      %p316 = scmp.eq.s32.totalorder %s24, 0
      %p317 = por %p315, %p316
      %p318 = scmp.ne.s32.totalorder %s310, %s312
      %p319 = scmp.eq.s32.totalorder %s29, 1
      %p320 = por %p318, %p319
      %p321 = scmp.ne.s32.totalorder %s312, %s313
      %p322 = scmp.eq.s32.totalorder %s29, 0
      %p323 = por %p321, %p322
      %p324 = scmp.ne.s32.totalorder %s312, %s313
      %p325 = scmp.eq.s32.totalorder %s30, 1
      %p326 = por %p324, %p325
      %p328 = scmp.ne.s32.totalorder %s313, %s327
      %p329 = scmp.eq.s32.totalorder %s30, 0
      %p330 = por %p328, %p329
      %s332 = sadd.s32 %s331, 1
      %p335 = scmp.eq.s32.totalorder %s24, 1
      %p336 = scmp.ne.s32.totalorder %s331, %s333
      %p337 = scmp.eq.s32.totalorder %s24, 0
      %p338 = por %p336, %p337
      %p339 = scmp.ne.s32.totalorder %s331, %s333
      %p340 = scmp.eq.s32.totalorder %s29, 1
      %p341 = por %p339, %p340
      %p342 = scmp.ne.s32.totalorder %s333, %s334
      %p343 = scmp.eq.s32.totalorder %s29, 0
      %p344 = por %p342, %p343
      %p345 = scmp.ne.s32.totalorder %s333, %s334
      %p346 = scmp.eq.s32.totalorder %s30, 1
      %p347 = por %p345, %p346
      %p349 = scmp.ne.s32.totalorder %s334, %s348
      %p350 = scmp.eq.s32.totalorder %s30, 0
      %p351 = por %p349, %p350
      %s352 = ssub.s32 %s24, %s31
      %p353 = scmp.eq.s32.totalorder %s352, 0
      %s355 = sadd.s32 %s354, 1
      %s356 = scalar_select %p353, %s354, %s355
      %p359 = pneg %p353
      %p360 = scmp.eq.s32.totalorder %s24, 1
      %p361 = por %p359, %p360
      %p362 = scmp.ne.s32.totalorder %s354, %s357
      %p363 = scmp.eq.s32.totalorder %s24, 0
      %p364 = por %p362, %p363
      %p365 = scmp.ne.s32.totalorder %s354, %s357
      %p366 = scmp.eq.s32.totalorder %s29, 1
      %p367 = por %p365, %p366
      %p368 = scmp.ne.s32.totalorder %s357, %s358
      %p369 = scmp.eq.s32.totalorder %s29, 0
      %p370 = por %p368, %p369
      %p371 = scmp.ne.s32.totalorder %s357, %s358
      %p372 = scmp.eq.s32.totalorder %s30, 1
      %p373 = por %p371, %p372
      %p375 = scmp.ne.s32.totalorder %s358, %s374
      %p376 = scmp.eq.s32.totalorder %s30, 0
      %p377 = por %p375, %p376
      %p378 = scmp.le.s32.totalorder 1, %s24
      %p379 = scmp.lt.s32.totalorder %s24, 3
      %p380 = pnand %p378, %p379
      %p381 = pneg %p380
      // Predicated region
      $region9: #{edge_speech_net_forward.1} parent=5 // pred_check
        _
      $region10: #{edge_speech_net_forward.1} parent=5 // pred_check_branch
        %383 = sbr.rel (%p380) target = $region12
      $region11: #{edge_speech_net_forward.1} parent=5 // pred_region
        %s384 = ssub.s32 %s24, 1
        // Predicated region
        $region13: #{edge_speech_net_forward.1} parent=11 // pred_check
          %p385 = pneg %p71
        $region14: #{edge_speech_net_forward.1} parent=11 // pred_check_branch
          %387 = sbr.rel (%p385) target = $region16
        $region15: #{edge_speech_net_forward.1} parent=11 // pred_region
          _
        $region16: #{edge_speech_net_forward.1} parent=11 // pred_fallthru
          _
        // Predicated region
        $region17: #{edge_speech_net_forward.1} parent=11 // pred_check
          %p388 = pneg %p92
        $region18: #{edge_speech_net_forward.1} parent=11 // pred_check_branch
          %390 = sbr.rel (%p388) target = $region20
        $region19: #{edge_speech_net_forward.1} parent=11 // pred_region
          _
        $region20: #{edge_speech_net_forward.1} parent=11 // pred_fallthru
          _
        // Predicated region
        $region21: #{edge_speech_net_forward.1} parent=11 // pred_check
          %p391 = pneg %p113
        $region22: #{edge_speech_net_forward.1} parent=11 // pred_check_branch
          %393 = sbr.rel (%p391) target = $region24
        $region23: #{edge_speech_net_forward.1} parent=11 // pred_region
          _
        $region24: #{edge_speech_net_forward.1} parent=11 // pred_fallthru
          _
        // Predicated region
        $region25: #{edge_speech_net_forward.1} parent=11 // pred_check
          %p394 = pneg %p134
        $region26: #{edge_speech_net_forward.1} parent=11 // pred_check_branch
          %396 = sbr.rel (%p394) target = $region28
        $region27: #{edge_speech_net_forward.1} parent=11 // pred_region
          _
        $region28: #{edge_speech_net_forward.1} parent=11 // pred_fallthru
          _
        // Predicated region
        $region29: #{edge_speech_net_forward.1} parent=11 // pred_check
          %p397 = pneg %p155
        $region30: #{edge_speech_net_forward.1} parent=11 // pred_check_branch
          %399 = sbr.rel (%p397) target = $region32
        $region31: #{edge_speech_net_forward.1} parent=11 // pred_region
          _
        $region32: #{edge_speech_net_forward.1} parent=11 // pred_fallthru
          _
        // Predicated region
        $region33: #{edge_speech_net_forward.1} parent=11 // pred_check
          %p400 = pneg %p176
        $region34: #{edge_speech_net_forward.1} parent=11 // pred_check_branch
          %402 = sbr.rel (%p400) target = $region36
        $region35: #{edge_speech_net_forward.1} parent=11 // pred_region
          _
        $region36: #{edge_speech_net_forward.1} parent=11 // pred_fallthru
          _
        // Predicated region
        $region37: #{edge_speech_net_forward.1} parent=11 // pred_check
          %p403 = pneg %p197
        $region38: #{edge_speech_net_forward.1} parent=11 // pred_check_branch
          %405 = sbr.rel (%p403) target = $region40
        $region39: #{edge_speech_net_forward.1} parent=11 // pred_region
          _
        $region40: #{edge_speech_net_forward.1} parent=11 // pred_fallthru
          _
        // Predicated region
        $region41: #{edge_speech_net_forward.1} parent=11 // pred_check
          %p406 = pneg %p218
        $region42: #{edge_speech_net_forward.1} parent=11 // pred_check_branch
          %408 = sbr.rel (%p406) target = $region44
        $region43: #{edge_speech_net_forward.1} parent=11 // pred_region
          _
        $region44: #{edge_speech_net_forward.1} parent=11 // pred_fallthru
          _
        // Predicated region
        $region45: #{edge_speech_net_forward.1} parent=11 // pred_check
          %p409 = pneg %p239
        $region46: #{edge_speech_net_forward.1} parent=11 // pred_check_branch
          %411 = sbr.rel (%p409) target = $region48
        $region47: #{edge_speech_net_forward.1} parent=11 // pred_region
          _
        $region48: #{edge_speech_net_forward.1} parent=11 // pred_fallthru
          _
        // Predicated region
        $region49: #{edge_speech_net_forward.1} parent=11 // pred_check
          %p412 = pneg %p260
        $region50: #{edge_speech_net_forward.1} parent=11 // pred_check_branch
          %414 = sbr.rel (%p412) target = $region52
        $region51: #{edge_speech_net_forward.1} parent=11 // pred_region
          _
        $region52: #{edge_speech_net_forward.1} parent=11 // pred_fallthru
          _
        // Predicated region
        $region53: #{edge_speech_net_forward.1} parent=11 // pred_check
          %p415 = pneg %p281
        $region54: #{edge_speech_net_forward.1} parent=11 // pred_check_branch
          %417 = sbr.rel (%p415) target = $region56
        $region55: #{edge_speech_net_forward.1} parent=11 // pred_region
          _
        $region56: #{edge_speech_net_forward.1} parent=11 // pred_fallthru
          _
        // Predicated region
        $region57: #{edge_speech_net_forward.1} parent=11 // pred_check
          %p418 = pneg %p302
        $region58: #{edge_speech_net_forward.1} parent=11 // pred_check_branch
          %420 = sbr.rel (%p418) target = $region60
        $region59: #{edge_speech_net_forward.1} parent=11 // pred_region
          _
        $region60: #{edge_speech_net_forward.1} parent=11 // pred_fallthru
          _
        // Predicated region
        $region61: #{edge_speech_net_forward.1} parent=11 // pred_check
          %p421 = pneg %p323
        $region62: #{edge_speech_net_forward.1} parent=11 // pred_check_branch
          %423 = sbr.rel (%p421) target = $region64
        $region63: #{edge_speech_net_forward.1} parent=11 // pred_region
          _
        $region64: #{edge_speech_net_forward.1} parent=11 // pred_fallthru
          _
        // Predicated region
        $region65: #{edge_speech_net_forward.1} parent=11 // pred_check
          %p424 = pneg %p344
        $region66: #{edge_speech_net_forward.1} parent=11 // pred_check_branch
          %426 = sbr.rel (%p424) target = $region68
        $region67: #{edge_speech_net_forward.1} parent=11 // pred_region
          _
        $region68: #{edge_speech_net_forward.1} parent=11 // pred_fallthru
          _
      $region12: #{edge_speech_net_forward.1} parent=5 // pred_fallthru
        _
      %p427 = scmp.lt.s32.totalorder %s24, 2
      // Predicated region
      $region69: #{edge_speech_net_forward.1} parent=5 // pred_check
        %p428 = pneg %p427
      $region70: #{edge_speech_net_forward.1} parent=5 // pred_check_branch
        %430 = sbr.rel (%p428) target = $region72
      $region71: #{edge_speech_net_forward.1} parent=5 // pred_region
        // Predicated region
        $region73: #{edge_speech_net_forward.1} parent=71 // pred_check
          %p431 = pneg %p44
        $region74: #{edge_speech_net_forward.1} parent=71 // pred_check_branch
          %433 = sbr.rel (%p431) target = $region76
        $region75: #{edge_speech_net_forward.1} parent=71 // pred_region
          %p434 = scmp.lt.s32.totalorder %s24, 1
          %s435 = scalar_select %p434, %s24, 1
          %s436 = smul.addr %s435, 2
          %s437 = smul.addr %s436, 8
          %s438 = scalar_lea.vmem %s0, %s437
        $region76: #{edge_speech_net_forward.1} parent=71 // pred_fallthru
          _
      $region72: #{edge_speech_net_forward.1} parent=5 // pred_fallthru
        _
      %p439 = scmp.le.s32.totalorder 1, %s24
      %p440 = scmp.lt.s32.totalorder %s24, 3
      %p441 = pnand %p439, %p440
      %p442 = pneg %p441
      // Predicated region
      $region77: #{edge_speech_net_forward.1} parent=5 // pred_check
        _
      $region78: #{edge_speech_net_forward.1} parent=5 // pred_check_branch
        %444 = sbr.rel (%p441) target = $region80
      $region79: #{edge_speech_net_forward.1} parent=5 // pred_region
        %s445 = ssub.s32 %s24, 1
        %p446 = scmp.lt.s32.totalorder %s29, 1
        %s447 = scalar_select %p446, %s29, 1
        %s448 = smul.addr %s447, 2
        %s449 = smul.addr %s448, 8
        %s450 = scalar_lea.vmem %s0, %s449
        %p451 = pneg %p50
        %p452 = pneg %p47
        %p453 = pneg %p71
        %p454 = pneg %p68
        %p455 = pneg %p92
        %p456 = pneg %p89
        %p457 = pneg %p113
        %p458 = pneg %p110
        %p459 = pneg %p134
        %p460 = pneg %p131
        %p461 = pneg %p155
        %p462 = pneg %p152
        %p463 = pneg %p176
        %p464 = pneg %p173
        %p465 = pneg %p197
        %p466 = pneg %p194
        %p467 = pneg %p218
        %p468 = pneg %p215
        %p469 = pneg %p239
        %p470 = pneg %p236
        %p471 = pneg %p260
        %p472 = pneg %p257
        %p473 = pneg %p281
        %p474 = pneg %p278
        %p475 = pneg %p302
        %p476 = pneg %p299
        %p477 = pneg %p323
        %p478 = pneg %p320
        %p479 = pneg %p344
        %p480 = pneg %p341
        %p481 = pneg %p370
        %p482 = pneg %p367
        %s483 = sand.u32 %s357, 1
        %s484 = scalar_lea.sflag [#allocation6], %s483
        %s485 = sand.u32 %s357, 1
        %s486 = scalar_lea.vmem [#allocation5], %s485
        %p487 = scmp.lt.s32.totalorder %s29, 1
        %s488 = scalar_select %p487, %s29, 1
        %s489 = smul.addr %s488, 2
        %s490 = smul.addr %s489, 8
        %s491 = scalar_lea.vmem %s0, %s490
        %vm493 = vcmask 146432
        %494 = vst.msk [vmem:[#allocation3] sm:$0xff] %vm493, 0.0
        %495 = vst.msk [vmem:[#allocation3 + $0x8] sm:$0xff] %vm493, 0.0
        %vm496 = vcmask 140288
        %497 = vst.msk [vmem:[#allocation3 + $0x10] sm:$0x3] %vm496, 0.0
        %vm498 = vcmask 261120
        %499 = vst.msk [vmem:[#allocation4] sm:$0xff] %vm498, 0.0
        %500 = vst.msk [vmem:[#allocation4 + $0x8] sm:$0xff] %vm498, 0.0
        %vm501 = vcmask 254976
        %502 = vst.msk [vmem:[#allocation4 + $0x10] sm:$0x3] %vm501, 0.0
        %503 = vst.msk [vmem:[#allocation4 + $0x18] sm:$0xff] %vm498, 0.0
        %504 = vst.msk [vmem:[#allocation4 + $0x20] sm:$0xff] %vm498, 0.0
        %505 = vst.msk [vmem:[#allocation4 + $0x28] sm:$0x3] %vm501, 0.0
        %506 = vst.msk [vmem:[#allocation4 + $0x30] sm:$0xff] %vm498, 0.0
        %507 = vst.msk [vmem:[#allocation4 + $0x38] sm:$0xff] %vm498, 0.0
        %508 = vst.msk [vmem:[#allocation4 + $0x40] sm:$0x3] %vm501, 0.0
        %509 = vst.msk [vmem:[#allocation4 + $0x48] sm:$0xff] %vm498, 0.0
        %510 = vst.msk [vmem:[#allocation4 + $0x50] sm:$0xff] %vm498, 0.0
        %511 = vst.msk [vmem:[#allocation4 + $0x58] sm:$0x3] %vm501, 0.0
        %512 = vst.msk [vmem:[#allocation4 + $0x60] sm:$0xff] %vm498, 0.0
        %513 = vst.msk [vmem:[#allocation4 + $0x68] sm:$0xff] %vm498, 0.0
        %514 = vst.msk [vmem:[#allocation4 + $0x70] sm:$0x3] %vm501, 0.0
        %515 = vst.msk [vmem:[#allocation4 + $0x78] sm:$0xff] %vm498, 0.0
        %516 = vst.msk [vmem:[#allocation4 + $0x80] sm:$0xff] %vm498, 0.0
        %517 = vst.msk [vmem:[#allocation4 + $0x88] sm:$0x3] %vm501, 0.0
        %518 = vst.msk [vmem:[#allocation4 + $0x90] sm:$0xff] %vm498, 0.0
        %519 = vst.msk [vmem:[#allocation4 + $0x98] sm:$0xff] %vm498, 0.0
        %520 = vst.msk [vmem:[#allocation4 + $0xa0] sm:$0x3] %vm501, 0.0
        %521 = vst.msk [vmem:[#allocation4 + $0xa8] sm:$0xff] %vm498, 0.0
        %522 = vst.msk [vmem:[#allocation4 + $0xb0] sm:$0xff] %vm498, 0.0
        %523 = vst.msk [vmem:[#allocation4 + $0xb8] sm:$0x3] %vm501, 0.0
        %524 = vst.msk [vmem:[#allocation4 + $0xc0] sm:$0xff] %vm498, 0.0
        %525 = vst.msk [vmem:[#allocation4 + $0xc8] sm:$0xff] %vm498, 0.0
        %526 = vst.msk [vmem:[#allocation4 + $0xd0] sm:$0x3] %vm501, 0.0
        %527 = vst.msk [vmem:[#allocation4 + $0xd8] sm:$0xff] %vm498, 0.0
        %528 = vst.msk [vmem:[#allocation4 + $0xe0] sm:$0xff] %vm498, 0.0
        %529 = vst.msk [vmem:[#allocation4 + $0xe8] sm:$0x3] %vm501, 0.0
        %530 = vst.msk [vmem:[#allocation4 + $0xf0] sm:$0xff] %vm498, 0.0
        %531 = vst.msk [vmem:[#allocation4 + $0xf8] sm:$0xff] %vm498, 0.0
        %532 = vst.msk [vmem:[#allocation4 + $0x100] sm:$0x3] %vm501, 0.0
        %533 = vst.msk [vmem:[#allocation4 + $0x108] sm:$0xff] %vm498, 0.0
        %534 = vst.msk [vmem:[#allocation4 + $0x110] sm:$0xff] %vm498, 0.0
        %535 = vst.msk [vmem:[#allocation4 + $0x118] sm:$0x3] %vm501, 0.0
        %536 = vst.msk [vmem:[#allocation4 + $0x120] sm:$0xff] %vm498, 0.0
        %537 = vst.msk [vmem:[#allocation4 + $0x128] sm:$0xff] %vm498, 0.0
        %538 = vst.msk [vmem:[#allocation4 + $0x130] sm:$0x3] %vm501, 0.0
        %539 = vst.msk [vmem:[#allocation4 + $0x138] sm:$0xff] %vm498, 0.0
        %540 = vst.msk [vmem:[#allocation4 + $0x140] sm:$0xff] %vm498, 0.0
        %541 = vst.msk [vmem:[#allocation4 + $0x148] sm:$0x3] %vm501, 0.0
        %542 = vst.msk [vmem:[#allocation4 + $0x150] sm:$0xff] %vm498, 0.0
        %543 = vst.msk [vmem:[#allocation4 + $0x158] sm:$0xff] %vm498, 0.0
        %544 = vst.msk [vmem:[#allocation4 + $0x160] sm:$0x3] %vm501, 0.0
        %545 = vst.msk [vmem:[#allocation4 + $0x168] sm:$0xff] %vm498, 0.0
        %546 = vst.msk [vmem:[#allocation4 + $0x170] sm:$0xff] %vm498, 0.0
        %547 = vst.msk [vmem:[#allocation4 + $0x178] sm:$0x3] %vm501, 0.0
        %548 = vst.msk [vmem:[#allocation4 + $0x180] sm:$0xff] %vm498, 0.0
        %549 = vst.msk [vmem:[#allocation4 + $0x188] sm:$0xff] %vm498, 0.0
        %550 = vst.msk [vmem:[#allocation4 + $0x190] sm:$0x3] %vm501, 0.0
        %551 = vst.msk [vmem:[#allocation4 + $0x198] sm:$0xff] %vm498, 0.0
        %552 = vst.msk [vmem:[#allocation4 + $0x1a0] sm:$0xff] %vm498, 0.0
        %553 = vst.msk [vmem:[#allocation4 + $0x1a8] sm:$0x3] %vm501, 0.0
        %v554 = vld [vmem:[%s491] sm:$0xff]
        %v555 = vld [vmem:[%s491 + $0x8] sm:$0xff]
        %558 = vrot.lane.b32.xlu0 %v554, 1
        %v559 = vpop.permute.xlu0 %558
        %560 = vrot.lane.b32.xlu0 %v555, 1
        %v561 = vpop.permute.xlu0 %560
        %vm564 = vcmask 138248
        %565 = vst.msk [vmem:[#allocation3 + $0x1] sm:$0xff] %vm564, %v559
        %566 = vst.msk [vmem:[#allocation3 + $0x9] sm:$0xff] %vm564, %v561
        %v567 = vld [vmem:[%s1] sm:$0x7]
        %v568 = vld [vmem:[%s1 + $0x4] sm:$0x7]
        %v569 = vld [vmem:[%s1 + $0x8] sm:$0x7]
        %v570 = vld [vmem:[#allocation3] sm:$0xff]
        %v571 = vld [vmem:[#allocation3 + $0x8] sm:$0xff]
        %v572 = vlaneseq
        %v573 = vshrl.u32 %v572, 7
        %v574 = vsub.s32 0, %v573
        %v575 = vrot.slane %v570, %v574
        %577 = vbcast.lane.b32.xlu0 %v575, 256
        %v578 = vpop.permute.xlu0 %577
        %s580 = sor.u32 256, 8
        %581 = vbcast.lane.b32.xlu0 %v575, %s580
        %v582 = vpop.permute.xlu0 %581
        %v583 = vlaneseq
        %v584 = vshrl.u32 %v583, 7
        %v585 = vsub.s32 1, %v584
        %v586 = vrot.slane %v570, %v585
        %588 = vbcast.lane.b32.xlu0 %v586, 256
        %v589 = vpop.permute.xlu0 %588
        %s591 = sor.u32 256, 8
        %592 = vbcast.lane.b32.xlu0 %v586, %s591
        %v593 = vpop.permute.xlu0 %592
        %v594 = vlaneseq
        %v595 = vshrl.u32 %v594, 7
        %v596 = vsub.s32 2, %v595
        %v597 = vrot.slane %v570, %v596
        %599 = vbcast.lane.b32.xlu0 %v597, 256
        %v600 = vpop.permute.xlu0 %599
        %s602 = sor.u32 256, 8
        %603 = vbcast.lane.b32.xlu0 %v597, %s602
        %v604 = vpop.permute.xlu0 %603
        %v605 = vlaneseq
        %v606 = vshrl.u32 %v605, 7
        %v607 = vsub.s32 3, %v606
        %v608 = vrot.slane %v570, %v607
        %610 = vbcast.lane.b32.xlu0 %v608, 256
        %v611 = vpop.permute.xlu0 %610
        %s613 = sor.u32 256, 8
        %614 = vbcast.lane.b32.xlu0 %v608, %s613
        %v615 = vpop.permute.xlu0 %614
        %v616 = vlaneseq
        %v617 = vshrl.u32 %v616, 7
        %v618 = vsub.s32 4, %v617
        %v619 = vrot.slane %v570, %v618
        %621 = vbcast.lane.b32.xlu0 %v619, 256
        %v622 = vpop.permute.xlu0 %621
        %s624 = sor.u32 256, 8
        %625 = vbcast.lane.b32.xlu0 %v619, %s624
        %v626 = vpop.permute.xlu0 %625
        %v627 = vlaneseq
        %v628 = vshrl.u32 %v627, 7
        %v629 = vsub.s32 5, %v628
        %v630 = vrot.slane %v570, %v629
        %632 = vbcast.lane.b32.xlu0 %v630, 256
        %v633 = vpop.permute.xlu0 %632
        %s635 = sor.u32 256, 8
        %636 = vbcast.lane.b32.xlu0 %v630, %s635
        %v637 = vpop.permute.xlu0 %636
        %v638 = vlaneseq
        %v639 = vshrl.u32 %v638, 7
        %v640 = vsub.s32 6, %v639
        %v641 = vrot.slane %v570, %v640
        %643 = vbcast.lane.b32.xlu0 %v641, 256
        %v644 = vpop.permute.xlu0 %643
        %s646 = sor.u32 256, 8
        %647 = vbcast.lane.b32.xlu0 %v641, %s646
        %v648 = vpop.permute.xlu0 %647
        %v649 = vlaneseq
        %v650 = vshrl.u32 %v649, 7
        %v651 = vsub.s32 7, %v650
        %v652 = vrot.slane %v570, %v651
        %654 = vbcast.lane.b32.xlu0 %v652, 256
        %v655 = vpop.permute.xlu0 %654
        %s657 = sor.u32 256, 8
        %658 = vbcast.lane.b32.xlu0 %v652, %s657
        %v659 = vpop.permute.xlu0 %658
        %v660 = vlaneseq
        %v661 = vshrl.u32 %v660, 7
        %v662 = vsub.s32 0, %v661
        %v663 = vrot.slane %v571, %v662
        %665 = vbcast.lane.b32.xlu0 %v663, 256
        %v666 = vpop.permute.xlu0 %665
        %s668 = sor.u32 256, 8
        %669 = vbcast.lane.b32.xlu0 %v663, %s668
        %v670 = vpop.permute.xlu0 %669
        %v671 = vlaneseq
        %v672 = vshrl.u32 %v671, 7
        %v673 = vsub.s32 1, %v672
        %v674 = vrot.slane %v571, %v673
        %676 = vbcast.lane.b32.xlu0 %v674, 256
        %v677 = vpop.permute.xlu0 %676
        %s679 = sor.u32 256, 8
        %680 = vbcast.lane.b32.xlu0 %v674, %s679
        %v681 = vpop.permute.xlu0 %680
        %v682 = vlaneseq
        %v683 = vshrl.u32 %v682, 7
        %v684 = vsub.s32 2, %v683
        %v685 = vrot.slane %v571, %v684
        %687 = vbcast.lane.b32.xlu0 %v685, 256
        %v688 = vpop.permute.xlu0 %687
        %s690 = sor.u32 256, 8
        %691 = vbcast.lane.b32.xlu0 %v685, %s690
        %v692 = vpop.permute.xlu0 %691
        %v693 = vlaneseq
        %v694 = vshrl.u32 %v693, 7
        %v695 = vsub.s32 3, %v694
        %v696 = vrot.slane %v571, %v695
        %698 = vbcast.lane.b32.xlu0 %v696, 256
        %v699 = vpop.permute.xlu0 %698
        %s701 = sor.u32 256, 8
        %702 = vbcast.lane.b32.xlu0 %v696, %s701
        %v703 = vpop.permute.xlu0 %702
        %v704 = vlaneseq
        %v705 = vshrl.u32 %v704, 7
        %v706 = vsub.s32 4, %v705
        %v707 = vrot.slane %v571, %v706
        %709 = vbcast.lane.b32.xlu0 %v707, 256
        %v710 = vpop.permute.xlu0 %709
        %s712 = sor.u32 256, 8
        %713 = vbcast.lane.b32.xlu0 %v707, %s712
        %v714 = vpop.permute.xlu0 %713
        %v715 = vlaneseq
        %v716 = vshrl.u32 %v715, 7
        %v717 = vsub.s32 5, %v716
        %v718 = vrot.slane %v571, %v717
        %720 = vbcast.lane.b32.xlu0 %v718, 256
        %v721 = vpop.permute.xlu0 %720
        %s723 = sor.u32 256, 8
        %724 = vbcast.lane.b32.xlu0 %v718, %s723
        %v725 = vpop.permute.xlu0 %724
        %v726 = vlaneseq
        %v727 = vshrl.u32 %v726, 7
        %v728 = vsub.s32 6, %v727
        %v729 = vrot.slane %v571, %v728
        %731 = vbcast.lane.b32.xlu0 %v729, 256
        %v732 = vpop.permute.xlu0 %731
        %s734 = sor.u32 256, 8
        %735 = vbcast.lane.b32.xlu0 %v729, %s734
        %v736 = vpop.permute.xlu0 %735
        %v737 = vlaneseq
        %v738 = vshrl.u32 %v737, 7
        %v739 = vsub.s32 7, %v738
        %v740 = vrot.slane %v571, %v739
        %742 = vbcast.lane.b32.xlu0 %v740, 256
        %v743 = vpop.permute.xlu0 %742
        %s745 = sor.u32 256, 8
        %746 = vbcast.lane.b32.xlu0 %v740, %s745
        %v747 = vpop.permute.xlu0 %746
        %v748 = vlaneseq
        %v749 = vshrl.u32 %v748, 7
        %v750 = vsub.s32 0, %v749
        %v751 = vrot.slane %v567, %v750
        %v752 = vmul.f32 %v578, %v751
        %v753 = vmul.f32 %v582, %v751
        %v754 = vmul.f32 %v589, %v751
        %v755 = vmul.f32 %v593, %v751
        %v756 = vmul.f32 %v600, %v751
        %v757 = vmul.f32 %v604, %v751
        %v758 = vmul.f32 %v611, %v751
        %v759 = vmul.f32 %v615, %v751
        %v760 = vmul.f32 %v622, %v751
        %v761 = vmul.f32 %v626, %v751
        %v762 = vmul.f32 %v633, %v751
        %v763 = vmul.f32 %v637, %v751
        %v764 = vmul.f32 %v644, %v751
        %v765 = vmul.f32 %v648, %v751
        %v766 = vmul.f32 %v655, %v751
        %v767 = vmul.f32 %v659, %v751
        %v768 = vmul.f32 %v666, %v751
        %v769 = vmul.f32 %v670, %v751
        %v770 = vmul.f32 %v677, %v751
        %v771 = vmul.f32 %v681, %v751
        %v772 = vmul.f32 %v688, %v751
        %v773 = vmul.f32 %v692, %v751
        %v774 = vmul.f32 %v699, %v751
        %v775 = vmul.f32 %v703, %v751
        %v776 = vmul.f32 %v710, %v751
        %v777 = vmul.f32 %v714, %v751
        %v778 = vmul.f32 %v721, %v751
        %v779 = vmul.f32 %v725, %v751
        %v780 = vmul.f32 %v732, %v751
        %v781 = vmul.f32 %v736, %v751
        %v782 = vmul.f32 %v743, %v751
        %v783 = vmul.f32 %v747, %v751
        %v784 = vadd.f32 %v752, 0.0
        %v785 = vadd.f32 %v753, 0.0
        %v786 = vadd.f32 %v754, 0.0
        %v787 = vadd.f32 %v755, 0.0
        %v788 = vadd.f32 %v756, 0.0
        %v789 = vadd.f32 %v757, 0.0
        %v790 = vadd.f32 %v758, 0.0
        %v791 = vadd.f32 %v759, 0.0
        %v792 = vadd.f32 %v760, 0.0
        %v793 = vadd.f32 %v761, 0.0
        %v794 = vadd.f32 %v762, 0.0
        %v795 = vadd.f32 %v763, 0.0
        %v796 = vadd.f32 %v764, 0.0
        %v797 = vadd.f32 %v765, 0.0
        %v798 = vadd.f32 %v766, 0.0
        %v799 = vadd.f32 %v767, 0.0
        %v800 = vadd.f32 %v768, 0.0
        %v801 = vadd.f32 %v769, 0.0
        %v802 = vadd.f32 %v770, 0.0
        %v803 = vadd.f32 %v771, 0.0
        %v804 = vadd.f32 %v772, 0.0
        %v805 = vadd.f32 %v773, 0.0
        %v806 = vadd.f32 %v774, 0.0
        %v807 = vadd.f32 %v775, 0.0
        %v808 = vadd.f32 %v776, 0.0
        %v809 = vadd.f32 %v777, 0.0
        %v810 = vadd.f32 %v778, 0.0
        %v811 = vadd.f32 %v779, 0.0
        %v812 = vadd.f32 %v780, 0.0
        %v813 = vadd.f32 %v781, 0.0
        %v814 = vadd.f32 %v782, 0.0
        %v815 = vadd.f32 %v783, 0.0
        %s817 = sor.u32 256, 1
        %818 = vbcast.lane.b32.xlu0 %v575, %s817
        %v819 = vpop.permute.xlu0 %818
        %s821 = sor.u32 256, 9
        %822 = vbcast.lane.b32.xlu0 %v575, %s821
        %v823 = vpop.permute.xlu0 %822
        %s825 = sor.u32 256, 1
        %826 = vbcast.lane.b32.xlu0 %v586, %s825
        %v827 = vpop.permute.xlu0 %826
        %s829 = sor.u32 256, 9
        %830 = vbcast.lane.b32.xlu0 %v586, %s829
        %v831 = vpop.permute.xlu0 %830
        %s833 = sor.u32 256, 1
        %834 = vbcast.lane.b32.xlu0 %v597, %s833
        %v835 = vpop.permute.xlu0 %834
        %s837 = sor.u32 256, 9
        %838 = vbcast.lane.b32.xlu0 %v597, %s837
        %v839 = vpop.permute.xlu0 %838
        %s841 = sor.u32 256, 1
        %842 = vbcast.lane.b32.xlu0 %v608, %s841
        %v843 = vpop.permute.xlu0 %842
        %s845 = sor.u32 256, 9
        %846 = vbcast.lane.b32.xlu0 %v608, %s845
        %v847 = vpop.permute.xlu0 %846
        %s849 = sor.u32 256, 1
        %850 = vbcast.lane.b32.xlu0 %v619, %s849
        %v851 = vpop.permute.xlu0 %850
        %s853 = sor.u32 256, 9
        %854 = vbcast.lane.b32.xlu0 %v619, %s853
        %v855 = vpop.permute.xlu0 %854
        %s857 = sor.u32 256, 1
        %858 = vbcast.lane.b32.xlu0 %v630, %s857
        %v859 = vpop.permute.xlu0 %858
        %s861 = sor.u32 256, 9
        %862 = vbcast.lane.b32.xlu0 %v630, %s861
        %v863 = vpop.permute.xlu0 %862
        %s865 = sor.u32 256, 1
        %866 = vbcast.lane.b32.xlu0 %v641, %s865
        %v867 = vpop.permute.xlu0 %866
        %s869 = sor.u32 256, 9
        %870 = vbcast.lane.b32.xlu0 %v641, %s869
        %v871 = vpop.permute.xlu0 %870
        %s873 = sor.u32 256, 1
        %874 = vbcast.lane.b32.xlu0 %v652, %s873
        %v875 = vpop.permute.xlu0 %874
        %s877 = sor.u32 256, 9
        %878 = vbcast.lane.b32.xlu0 %v652, %s877
        %v879 = vpop.permute.xlu0 %878
        %s881 = sor.u32 256, 1
        %882 = vbcast.lane.b32.xlu0 %v663, %s881
        %v883 = vpop.permute.xlu0 %882
        %s885 = sor.u32 256, 9
        %886 = vbcast.lane.b32.xlu0 %v663, %s885
        %v887 = vpop.permute.xlu0 %886
        %s889 = sor.u32 256, 1
        %890 = vbcast.lane.b32.xlu0 %v674, %s889
        %v891 = vpop.permute.xlu0 %890
        %s893 = sor.u32 256, 9
        %894 = vbcast.lane.b32.xlu0 %v674, %s893
        %v895 = vpop.permute.xlu0 %894
        %s897 = sor.u32 256, 1
        %898 = vbcast.lane.b32.xlu0 %v685, %s897
        %v899 = vpop.permute.xlu0 %898
        %s901 = sor.u32 256, 9
        %902 = vbcast.lane.b32.xlu0 %v685, %s901
        %v903 = vpop.permute.xlu0 %902
        %s905 = sor.u32 256, 1
        %906 = vbcast.lane.b32.xlu0 %v696, %s905
        %v907 = vpop.permute.xlu0 %906
        %s909 = sor.u32 256, 9
        %910 = vbcast.lane.b32.xlu0 %v696, %s909
        %v911 = vpop.permute.xlu0 %910
        %s913 = sor.u32 256, 1
        %914 = vbcast.lane.b32.xlu0 %v707, %s913
        %v915 = vpop.permute.xlu0 %914
        %s917 = sor.u32 256, 9
        %918 = vbcast.lane.b32.xlu0 %v707, %s917
        %v919 = vpop.permute.xlu0 %918
        %s921 = sor.u32 256, 1
        %922 = vbcast.lane.b32.xlu0 %v718, %s921
        %v923 = vpop.permute.xlu0 %922
        %s925 = sor.u32 256, 9
        %926 = vbcast.lane.b32.xlu0 %v718, %s925
        %v927 = vpop.permute.xlu0 %926
        %s929 = sor.u32 256, 1
        %930 = vbcast.lane.b32.xlu0 %v729, %s929
        %v931 = vpop.permute.xlu0 %930
        %s933 = sor.u32 256, 9
        %934 = vbcast.lane.b32.xlu0 %v729, %s933
        %v935 = vpop.permute.xlu0 %934
        %s937 = sor.u32 256, 1
        %938 = vbcast.lane.b32.xlu0 %v740, %s937
        %v939 = vpop.permute.xlu0 %938
        %s941 = sor.u32 256, 9
        %942 = vbcast.lane.b32.xlu0 %v740, %s941
        %v943 = vpop.permute.xlu0 %942
        %v944 = vlaneseq
        %v945 = vshrl.u32 %v944, 7
        %v946 = vsub.s32 1, %v945
        %v947 = vrot.slane %v567, %v946
        %v948 = vmul.f32 %v819, %v947
        %v949 = vmul.f32 %v823, %v947
        %v950 = vmul.f32 %v827, %v947
        %v951 = vmul.f32 %v831, %v947
        %v952 = vmul.f32 %v835, %v947
        %v953 = vmul.f32 %v839, %v947
        %v954 = vmul.f32 %v843, %v947
        %v955 = vmul.f32 %v847, %v947
        %v956 = vmul.f32 %v851, %v947
        %v957 = vmul.f32 %v855, %v947
        %v958 = vmul.f32 %v859, %v947
        %v959 = vmul.f32 %v863, %v947
        %v960 = vmul.f32 %v867, %v947
        %v961 = vmul.f32 %v871, %v947
        %v962 = vmul.f32 %v875, %v947
        %v963 = vmul.f32 %v879, %v947
        %v964 = vmul.f32 %v883, %v947
        %v965 = vmul.f32 %v887, %v947
        %v966 = vmul.f32 %v891, %v947
        %v967 = vmul.f32 %v895, %v947
        %v968 = vmul.f32 %v899, %v947
        %v969 = vmul.f32 %v903, %v947
        %v970 = vmul.f32 %v907, %v947
        %v971 = vmul.f32 %v911, %v947
        %v972 = vmul.f32 %v915, %v947
        %v973 = vmul.f32 %v919, %v947
        %v974 = vmul.f32 %v923, %v947
        %v975 = vmul.f32 %v927, %v947
        %v976 = vmul.f32 %v931, %v947
        %v977 = vmul.f32 %v935, %v947
        %v978 = vmul.f32 %v939, %v947
        %v979 = vmul.f32 %v943, %v947
        %v980 = vadd.f32 %v784, %v948
        %v981 = vadd.f32 %v785, %v949
        %v982 = vadd.f32 %v786, %v950
        %v983 = vadd.f32 %v787, %v951
        %v984 = vadd.f32 %v788, %v952
        %v985 = vadd.f32 %v789, %v953
        %v986 = vadd.f32 %v790, %v954
        %v987 = vadd.f32 %v791, %v955
        %v988 = vadd.f32 %v792, %v956
        %v989 = vadd.f32 %v793, %v957
        %v990 = vadd.f32 %v794, %v958
        %v991 = vadd.f32 %v795, %v959
        %v992 = vadd.f32 %v796, %v960
        %v993 = vadd.f32 %v797, %v961
        %v994 = vadd.f32 %v798, %v962
        %v995 = vadd.f32 %v799, %v963
        %v996 = vadd.f32 %v800, %v964
        %v997 = vadd.f32 %v801, %v965
        %v998 = vadd.f32 %v802, %v966
        %v999 = vadd.f32 %v803, %v967
        %v1000 = vadd.f32 %v804, %v968
        %v1001 = vadd.f32 %v805, %v969
        %v1002 = vadd.f32 %v806, %v970
        %v1003 = vadd.f32 %v807, %v971
        %v1004 = vadd.f32 %v808, %v972
        %v1005 = vadd.f32 %v809, %v973
        %v1006 = vadd.f32 %v810, %v974
        %v1007 = vadd.f32 %v811, %v975
        %v1008 = vadd.f32 %v812, %v976
        %v1009 = vadd.f32 %v813, %v977
        %v1010 = vadd.f32 %v814, %v978
        %v1011 = vadd.f32 %v815, %v979
        %s1013 = sor.u32 256, 2
        %1014 = vbcast.lane.b32.xlu0 %v575, %s1013
        %v1015 = vpop.permute.xlu0 %1014
        %s1017 = sor.u32 256, 10
        %1018 = vbcast.lane.b32.xlu0 %v575, %s1017
        %v1019 = vpop.permute.xlu0 %1018
        %s1021 = sor.u32 256, 2
        %1022 = vbcast.lane.b32.xlu0 %v586, %s1021
        %v1023 = vpop.permute.xlu0 %1022
        %s1025 = sor.u32 256, 10
        %1026 = vbcast.lane.b32.xlu0 %v586, %s1025
        %v1027 = vpop.permute.xlu0 %1026
        %s1029 = sor.u32 256, 2
        %1030 = vbcast.lane.b32.xlu0 %v597, %s1029
        %v1031 = vpop.permute.xlu0 %1030
        %s1033 = sor.u32 256, 10
        %1034 = vbcast.lane.b32.xlu0 %v597, %s1033
        %v1035 = vpop.permute.xlu0 %1034
        %s1037 = sor.u32 256, 2
        %1038 = vbcast.lane.b32.xlu0 %v608, %s1037
        %v1039 = vpop.permute.xlu0 %1038
        %s1041 = sor.u32 256, 10
        %1042 = vbcast.lane.b32.xlu0 %v608, %s1041
        %v1043 = vpop.permute.xlu0 %1042
        %s1045 = sor.u32 256, 2
        %1046 = vbcast.lane.b32.xlu0 %v619, %s1045
        %v1047 = vpop.permute.xlu0 %1046
        %s1049 = sor.u32 256, 10
        %1050 = vbcast.lane.b32.xlu0 %v619, %s1049
        %v1051 = vpop.permute.xlu0 %1050
        %s1053 = sor.u32 256, 2
        %1054 = vbcast.lane.b32.xlu0 %v630, %s1053
        %v1055 = vpop.permute.xlu0 %1054
        %s1057 = sor.u32 256, 10
        %1058 = vbcast.lane.b32.xlu0 %v630, %s1057
        %v1059 = vpop.permute.xlu0 %1058
        %s1061 = sor.u32 256, 2
        %1062 = vbcast.lane.b32.xlu0 %v641, %s1061
        %v1063 = vpop.permute.xlu0 %1062
        %s1065 = sor.u32 256, 10
        %1066 = vbcast.lane.b32.xlu0 %v641, %s1065
        %v1067 = vpop.permute.xlu0 %1066
        %s1069 = sor.u32 256, 2
        %1070 = vbcast.lane.b32.xlu0 %v652, %s1069
        %v1071 = vpop.permute.xlu0 %1070
        %s1073 = sor.u32 256, 10
        %1074 = vbcast.lane.b32.xlu0 %v652, %s1073
        %v1075 = vpop.permute.xlu0 %1074
        %s1077 = sor.u32 256, 2
        %1078 = vbcast.lane.b32.xlu0 %v663, %s1077
        %v1079 = vpop.permute.xlu0 %1078
        %s1081 = sor.u32 256, 10
        %1082 = vbcast.lane.b32.xlu0 %v663, %s1081
        %v1083 = vpop.permute.xlu0 %1082
        %s1085 = sor.u32 256, 2
        %1086 = vbcast.lane.b32.xlu0 %v674, %s1085
        %v1087 = vpop.permute.xlu0 %1086
        %s1089 = sor.u32 256, 10
        %1090 = vbcast.lane.b32.xlu0 %v674, %s1089
        %v1091 = vpop.permute.xlu0 %1090
        %s1093 = sor.u32 256, 2
        %1094 = vbcast.lane.b32.xlu0 %v685, %s1093
        %v1095 = vpop.permute.xlu0 %1094
        %s1097 = sor.u32 256, 10
        %1098 = vbcast.lane.b32.xlu0 %v685, %s1097
        %v1099 = vpop.permute.xlu0 %1098
        %s1101 = sor.u32 256, 2
        %1102 = vbcast.lane.b32.xlu0 %v696, %s1101
        %v1103 = vpop.permute.xlu0 %1102
        %s1105 = sor.u32 256, 10
        %1106 = vbcast.lane.b32.xlu0 %v696, %s1105
        %v1107 = vpop.permute.xlu0 %1106
        %s1109 = sor.u32 256, 2
        %1110 = vbcast.lane.b32.xlu0 %v707, %s1109
        %v1111 = vpop.permute.xlu0 %1110
        %s1113 = sor.u32 256, 10
        %1114 = vbcast.lane.b32.xlu0 %v707, %s1113
        %v1115 = vpop.permute.xlu0 %1114
        %s1117 = sor.u32 256, 2
        %1118 = vbcast.lane.b32.xlu0 %v718, %s1117
        %v1119 = vpop.permute.xlu0 %1118
        %s1121 = sor.u32 256, 10
        %1122 = vbcast.lane.b32.xlu0 %v718, %s1121
        %v1123 = vpop.permute.xlu0 %1122
        %s1125 = sor.u32 256, 2
        %1126 = vbcast.lane.b32.xlu0 %v729, %s1125
        %v1127 = vpop.permute.xlu0 %1126
        %s1129 = sor.u32 256, 10
        %1130 = vbcast.lane.b32.xlu0 %v729, %s1129
        %v1131 = vpop.permute.xlu0 %1130
        %s1133 = sor.u32 256, 2
        %1134 = vbcast.lane.b32.xlu0 %v740, %s1133
        %v1135 = vpop.permute.xlu0 %1134
        %s1137 = sor.u32 256, 10
        %1138 = vbcast.lane.b32.xlu0 %v740, %s1137
        %v1139 = vpop.permute.xlu0 %1138
        %v1140 = vlaneseq
        %v1141 = vshrl.u32 %v1140, 7
        %v1142 = vsub.s32 2, %v1141
        %v1143 = vrot.slane %v567, %v1142
        %v1144 = vmul.f32 %v1015, %v1143
        %v1145 = vmul.f32 %v1019, %v1143
        %v1146 = vmul.f32 %v1023, %v1143
        %v1147 = vmul.f32 %v1027, %v1143
        %v1148 = vmul.f32 %v1031, %v1143
        %v1149 = vmul.f32 %v1035, %v1143
        %v1150 = vmul.f32 %v1039, %v1143
        %v1151 = vmul.f32 %v1043, %v1143
        %v1152 = vmul.f32 %v1047, %v1143
        %v1153 = vmul.f32 %v1051, %v1143
        %v1154 = vmul.f32 %v1055, %v1143
        %v1155 = vmul.f32 %v1059, %v1143
        %v1156 = vmul.f32 %v1063, %v1143
        %v1157 = vmul.f32 %v1067, %v1143
        %v1158 = vmul.f32 %v1071, %v1143
        %v1159 = vmul.f32 %v1075, %v1143
        %v1160 = vmul.f32 %v1079, %v1143
        %v1161 = vmul.f32 %v1083, %v1143
        %v1162 = vmul.f32 %v1087, %v1143
        %v1163 = vmul.f32 %v1091, %v1143
        %v1164 = vmul.f32 %v1095, %v1143
        %v1165 = vmul.f32 %v1099, %v1143
        %v1166 = vmul.f32 %v1103, %v1143
        %v1167 = vmul.f32 %v1107, %v1143
        %v1168 = vmul.f32 %v1111, %v1143
        %v1169 = vmul.f32 %v1115, %v1143
        %v1170 = vmul.f32 %v1119, %v1143
        %v1171 = vmul.f32 %v1123, %v1143
        %v1172 = vmul.f32 %v1127, %v1143
        %v1173 = vmul.f32 %v1131, %v1143
        %v1174 = vmul.f32 %v1135, %v1143
        %v1175 = vmul.f32 %v1139, %v1143
        %v1176 = vadd.f32 %v980, %v1144
        %v1177 = vadd.f32 %v981, %v1145
        %v1178 = vadd.f32 %v982, %v1146
        %v1179 = vadd.f32 %v983, %v1147
        %v1180 = vadd.f32 %v984, %v1148
        %v1181 = vadd.f32 %v985, %v1149
        %v1182 = vadd.f32 %v986, %v1150
        %v1183 = vadd.f32 %v987, %v1151
        %v1184 = vadd.f32 %v988, %v1152
        %v1185 = vadd.f32 %v989, %v1153
        %v1186 = vadd.f32 %v990, %v1154
        %v1187 = vadd.f32 %v991, %v1155
        %v1188 = vadd.f32 %v992, %v1156
        %v1189 = vadd.f32 %v993, %v1157
        %v1190 = vadd.f32 %v994, %v1158
        %v1191 = vadd.f32 %v995, %v1159
        %v1192 = vadd.f32 %v996, %v1160
        %v1193 = vadd.f32 %v997, %v1161
        %v1194 = vadd.f32 %v998, %v1162
        %v1195 = vadd.f32 %v999, %v1163
        %v1196 = vadd.f32 %v1000, %v1164
        %v1197 = vadd.f32 %v1001, %v1165
        %v1198 = vadd.f32 %v1002, %v1166
        %v1199 = vadd.f32 %v1003, %v1167
        %v1200 = vadd.f32 %v1004, %v1168
        %v1201 = vadd.f32 %v1005, %v1169
        %v1202 = vadd.f32 %v1006, %v1170
        %v1203 = vadd.f32 %v1007, %v1171
        %v1204 = vadd.f32 %v1008, %v1172
        %v1205 = vadd.f32 %v1009, %v1173
        %v1206 = vadd.f32 %v1010, %v1174
        %v1207 = vadd.f32 %v1011, %v1175
        %v1208 = vld [vmem:[#allocation3 + $0x1] sm:$0xff]
        %v1209 = vld [vmem:[#allocation3 + $0x9] sm:$0xff]
        %v1210 = vlaneseq
        %v1211 = vshrl.u32 %v1210, 7
        %v1212 = vsub.s32 0, %v1211
        %v1213 = vrot.slane %v1208, %v1212
        %1215 = vbcast.lane.b32.xlu0 %v1213, 256
        %v1216 = vpop.permute.xlu0 %1215
        %s1218 = sor.u32 256, 8
        %1219 = vbcast.lane.b32.xlu0 %v1213, %s1218
        %v1220 = vpop.permute.xlu0 %1219
        %v1221 = vlaneseq
        %v1222 = vshrl.u32 %v1221, 7
        %v1223 = vsub.s32 1, %v1222
        %v1224 = vrot.slane %v1208, %v1223
        %1226 = vbcast.lane.b32.xlu0 %v1224, 256
        %v1227 = vpop.permute.xlu0 %1226
        %s1229 = sor.u32 256, 8
        %1230 = vbcast.lane.b32.xlu0 %v1224, %s1229
        %v1231 = vpop.permute.xlu0 %1230
        %v1232 = vlaneseq
        %v1233 = vshrl.u32 %v1232, 7
        %v1234 = vsub.s32 2, %v1233
        %v1235 = vrot.slane %v1208, %v1234
        %1237 = vbcast.lane.b32.xlu0 %v1235, 256
        %v1238 = vpop.permute.xlu0 %1237
        %s1240 = sor.u32 256, 8
        %1241 = vbcast.lane.b32.xlu0 %v1235, %s1240
        %v1242 = vpop.permute.xlu0 %1241
        %v1243 = vlaneseq
        %v1244 = vshrl.u32 %v1243, 7
        %v1245 = vsub.s32 3, %v1244
        %v1246 = vrot.slane %v1208, %v1245
        %1248 = vbcast.lane.b32.xlu0 %v1246, 256
        %v1249 = vpop.permute.xlu0 %1248
        %s1251 = sor.u32 256, 8
        %1252 = vbcast.lane.b32.xlu0 %v1246, %s1251
        %v1253 = vpop.permute.xlu0 %1252
        %v1254 = vlaneseq
        %v1255 = vshrl.u32 %v1254, 7
        %v1256 = vsub.s32 4, %v1255
        %v1257 = vrot.slane %v1208, %v1256
        %1259 = vbcast.lane.b32.xlu0 %v1257, 256
        %v1260 = vpop.permute.xlu0 %1259
        %s1262 = sor.u32 256, 8
        %1263 = vbcast.lane.b32.xlu0 %v1257, %s1262
        %v1264 = vpop.permute.xlu0 %1263
        %v1265 = vlaneseq
        %v1266 = vshrl.u32 %v1265, 7
        %v1267 = vsub.s32 5, %v1266
        %v1268 = vrot.slane %v1208, %v1267
        %1270 = vbcast.lane.b32.xlu0 %v1268, 256
        %v1271 = vpop.permute.xlu0 %1270
        %s1273 = sor.u32 256, 8
        %1274 = vbcast.lane.b32.xlu0 %v1268, %s1273
        %v1275 = vpop.permute.xlu0 %1274
        %v1276 = vlaneseq
        %v1277 = vshrl.u32 %v1276, 7
        %v1278 = vsub.s32 6, %v1277
        %v1279 = vrot.slane %v1208, %v1278
        %1281 = vbcast.lane.b32.xlu0 %v1279, 256
        %v1282 = vpop.permute.xlu0 %1281
        %s1284 = sor.u32 256, 8
        %1285 = vbcast.lane.b32.xlu0 %v1279, %s1284
        %v1286 = vpop.permute.xlu0 %1285
        %v1287 = vlaneseq
        %v1288 = vshrl.u32 %v1287, 7
        %v1289 = vsub.s32 7, %v1288
        %v1290 = vrot.slane %v1208, %v1289
        %1292 = vbcast.lane.b32.xlu0 %v1290, 256
        %v1293 = vpop.permute.xlu0 %1292
        %s1295 = sor.u32 256, 8
        %1296 = vbcast.lane.b32.xlu0 %v1290, %s1295
        %v1297 = vpop.permute.xlu0 %1296
        %v1298 = vlaneseq
        %v1299 = vshrl.u32 %v1298, 7
        %v1300 = vsub.s32 0, %v1299
        %v1301 = vrot.slane %v1209, %v1300
        %1303 = vbcast.lane.b32.xlu0 %v1301, 256
        %v1304 = vpop.permute.xlu0 %1303
        %s1306 = sor.u32 256, 8
        %1307 = vbcast.lane.b32.xlu0 %v1301, %s1306
        %v1308 = vpop.permute.xlu0 %1307
        %v1309 = vlaneseq
        %v1310 = vshrl.u32 %v1309, 7
        %v1311 = vsub.s32 1, %v1310
        %v1312 = vrot.slane %v1209, %v1311
        %1314 = vbcast.lane.b32.xlu0 %v1312, 256
        %v1315 = vpop.permute.xlu0 %1314
        %s1317 = sor.u32 256, 8
        %1318 = vbcast.lane.b32.xlu0 %v1312, %s1317
        %v1319 = vpop.permute.xlu0 %1318
        %v1320 = vlaneseq
        %v1321 = vshrl.u32 %v1320, 7
        %v1322 = vsub.s32 2, %v1321
        %v1323 = vrot.slane %v1209, %v1322
        %1325 = vbcast.lane.b32.xlu0 %v1323, 256
        %v1326 = vpop.permute.xlu0 %1325
        %s1328 = sor.u32 256, 8
        %1329 = vbcast.lane.b32.xlu0 %v1323, %s1328
        %v1330 = vpop.permute.xlu0 %1329
        %v1331 = vlaneseq
        %v1332 = vshrl.u32 %v1331, 7
        %v1333 = vsub.s32 3, %v1332
        %v1334 = vrot.slane %v1209, %v1333
        %1336 = vbcast.lane.b32.xlu0 %v1334, 256
        %v1337 = vpop.permute.xlu0 %1336
        %s1339 = sor.u32 256, 8
        %1340 = vbcast.lane.b32.xlu0 %v1334, %s1339
        %v1341 = vpop.permute.xlu0 %1340
        %v1342 = vlaneseq
        %v1343 = vshrl.u32 %v1342, 7
        %v1344 = vsub.s32 4, %v1343
        %v1345 = vrot.slane %v1209, %v1344
        %1347 = vbcast.lane.b32.xlu0 %v1345, 256
        %v1348 = vpop.permute.xlu0 %1347
        %s1350 = sor.u32 256, 8
        %1351 = vbcast.lane.b32.xlu0 %v1345, %s1350
        %v1352 = vpop.permute.xlu0 %1351
        %v1353 = vlaneseq
        %v1354 = vshrl.u32 %v1353, 7
        %v1355 = vsub.s32 5, %v1354
        %v1356 = vrot.slane %v1209, %v1355
        %1358 = vbcast.lane.b32.xlu0 %v1356, 256
        %v1359 = vpop.permute.xlu0 %1358
        %s1361 = sor.u32 256, 8
        %1362 = vbcast.lane.b32.xlu0 %v1356, %s1361
        %v1363 = vpop.permute.xlu0 %1362
        %v1364 = vlaneseq
        %v1365 = vshrl.u32 %v1364, 7
        %v1366 = vsub.s32 6, %v1365
        %v1367 = vrot.slane %v1209, %v1366
        %1369 = vbcast.lane.b32.xlu0 %v1367, 256
        %v1370 = vpop.permute.xlu0 %1369
        %s1372 = sor.u32 256, 8
        %1373 = vbcast.lane.b32.xlu0 %v1367, %s1372
        %v1374 = vpop.permute.xlu0 %1373
        %v1375 = vlaneseq
        %v1376 = vshrl.u32 %v1375, 7
        %v1377 = vsub.s32 7, %v1376
        %v1378 = vrot.slane %v1209, %v1377
        %1380 = vbcast.lane.b32.xlu0 %v1378, 256
        %v1381 = vpop.permute.xlu0 %1380
        %s1383 = sor.u32 256, 8
        %1384 = vbcast.lane.b32.xlu0 %v1378, %s1383
        %v1385 = vpop.permute.xlu0 %1384
        %v1386 = vlaneseq
        %v1387 = vshrl.u32 %v1386, 7
        %v1388 = vsub.s32 0, %v1387
        %v1389 = vrot.slane %v568, %v1388
        %v1390 = vmul.f32 %v1216, %v1389
        %v1391 = vmul.f32 %v1220, %v1389
        %v1392 = vmul.f32 %v1227, %v1389
        %v1393 = vmul.f32 %v1231, %v1389
        %v1394 = vmul.f32 %v1238, %v1389
        %v1395 = vmul.f32 %v1242, %v1389
        %v1396 = vmul.f32 %v1249, %v1389
        %v1397 = vmul.f32 %v1253, %v1389
        %v1398 = vmul.f32 %v1260, %v1389
        %v1399 = vmul.f32 %v1264, %v1389
        %v1400 = vmul.f32 %v1271, %v1389
        %v1401 = vmul.f32 %v1275, %v1389
        %v1402 = vmul.f32 %v1282, %v1389
        %v1403 = vmul.f32 %v1286, %v1389
        %v1404 = vmul.f32 %v1293, %v1389
        %v1405 = vmul.f32 %v1297, %v1389
        %v1406 = vmul.f32 %v1304, %v1389
        %v1407 = vmul.f32 %v1308, %v1389
        %v1408 = vmul.f32 %v1315, %v1389
        %v1409 = vmul.f32 %v1319, %v1389
        %v1410 = vmul.f32 %v1326, %v1389
        %v1411 = vmul.f32 %v1330, %v1389
        %v1412 = vmul.f32 %v1337, %v1389
        %v1413 = vmul.f32 %v1341, %v1389
        %v1414 = vmul.f32 %v1348, %v1389
        %v1415 = vmul.f32 %v1352, %v1389
        %v1416 = vmul.f32 %v1359, %v1389
        %v1417 = vmul.f32 %v1363, %v1389
        %v1418 = vmul.f32 %v1370, %v1389
        %v1419 = vmul.f32 %v1374, %v1389
        %v1420 = vmul.f32 %v1381, %v1389
        %v1421 = vmul.f32 %v1385, %v1389
        %v1422 = vadd.f32 %v1176, %v1390
        %v1423 = vadd.f32 %v1177, %v1391
        %v1424 = vadd.f32 %v1178, %v1392
        %v1425 = vadd.f32 %v1179, %v1393
        %v1426 = vadd.f32 %v1180, %v1394
        %v1427 = vadd.f32 %v1181, %v1395
        %v1428 = vadd.f32 %v1182, %v1396
        %v1429 = vadd.f32 %v1183, %v1397
        %v1430 = vadd.f32 %v1184, %v1398
        %v1431 = vadd.f32 %v1185, %v1399
        %v1432 = vadd.f32 %v1186, %v1400
        %v1433 = vadd.f32 %v1187, %v1401
        %v1434 = vadd.f32 %v1188, %v1402
        %v1435 = vadd.f32 %v1189, %v1403
        %v1436 = vadd.f32 %v1190, %v1404
        %v1437 = vadd.f32 %v1191, %v1405
        %v1438 = vadd.f32 %v1192, %v1406
        %v1439 = vadd.f32 %v1193, %v1407
        %v1440 = vadd.f32 %v1194, %v1408
        %v1441 = vadd.f32 %v1195, %v1409
        %v1442 = vadd.f32 %v1196, %v1410
        %v1443 = vadd.f32 %v1197, %v1411
        %v1444 = vadd.f32 %v1198, %v1412
        %v1445 = vadd.f32 %v1199, %v1413
        %v1446 = vadd.f32 %v1200, %v1414
        %v1447 = vadd.f32 %v1201, %v1415
        %v1448 = vadd.f32 %v1202, %v1416
        %v1449 = vadd.f32 %v1203, %v1417
        %v1450 = vadd.f32 %v1204, %v1418
        %v1451 = vadd.f32 %v1205, %v1419
        %v1452 = vadd.f32 %v1206, %v1420
        %v1453 = vadd.f32 %v1207, %v1421
        %s1455 = sor.u32 256, 1
        %1456 = vbcast.lane.b32.xlu0 %v1213, %s1455
        %v1457 = vpop.permute.xlu0 %1456
        %s1459 = sor.u32 256, 9
        %1460 = vbcast.lane.b32.xlu0 %v1213, %s1459
        %v1461 = vpop.permute.xlu0 %1460
        %s1463 = sor.u32 256, 1
        %1464 = vbcast.lane.b32.xlu0 %v1224, %s1463
        %v1465 = vpop.permute.xlu0 %1464
        %s1467 = sor.u32 256, 9
        %1468 = vbcast.lane.b32.xlu0 %v1224, %s1467
        %v1469 = vpop.permute.xlu0 %1468
        %s1471 = sor.u32 256, 1
        %1472 = vbcast.lane.b32.xlu0 %v1235, %s1471
        %v1473 = vpop.permute.xlu0 %1472
        %s1475 = sor.u32 256, 9
        %1476 = vbcast.lane.b32.xlu0 %v1235, %s1475
        %v1477 = vpop.permute.xlu0 %1476
        %s1479 = sor.u32 256, 1
        %1480 = vbcast.lane.b32.xlu0 %v1246, %s1479
        %v1481 = vpop.permute.xlu0 %1480
        %s1483 = sor.u32 256, 9
        %1484 = vbcast.lane.b32.xlu0 %v1246, %s1483
        %v1485 = vpop.permute.xlu0 %1484
        %s1487 = sor.u32 256, 1
        %1488 = vbcast.lane.b32.xlu0 %v1257, %s1487
        %v1489 = vpop.permute.xlu0 %1488
        %s1491 = sor.u32 256, 9
        %1492 = vbcast.lane.b32.xlu0 %v1257, %s1491
        %v1493 = vpop.permute.xlu0 %1492
        %s1495 = sor.u32 256, 1
        %1496 = vbcast.lane.b32.xlu0 %v1268, %s1495
        %v1497 = vpop.permute.xlu0 %1496
        %s1499 = sor.u32 256, 9
        %1500 = vbcast.lane.b32.xlu0 %v1268, %s1499
        %v1501 = vpop.permute.xlu0 %1500
        %s1503 = sor.u32 256, 1
        %1504 = vbcast.lane.b32.xlu0 %v1279, %s1503
        %v1505 = vpop.permute.xlu0 %1504
        %s1507 = sor.u32 256, 9
        %1508 = vbcast.lane.b32.xlu0 %v1279, %s1507
        %v1509 = vpop.permute.xlu0 %1508
        %s1511 = sor.u32 256, 1
        %1512 = vbcast.lane.b32.xlu0 %v1290, %s1511
        %v1513 = vpop.permute.xlu0 %1512
        %s1515 = sor.u32 256, 9
        %1516 = vbcast.lane.b32.xlu0 %v1290, %s1515
        %v1517 = vpop.permute.xlu0 %1516
        %s1519 = sor.u32 256, 1
        %1520 = vbcast.lane.b32.xlu0 %v1301, %s1519
        %v1521 = vpop.permute.xlu0 %1520
        %s1523 = sor.u32 256, 9
        %1524 = vbcast.lane.b32.xlu0 %v1301, %s1523
        %v1525 = vpop.permute.xlu0 %1524
        %s1527 = sor.u32 256, 1
        %1528 = vbcast.lane.b32.xlu0 %v1312, %s1527
        %v1529 = vpop.permute.xlu0 %1528
        %s1531 = sor.u32 256, 9
        %1532 = vbcast.lane.b32.xlu0 %v1312, %s1531
        %v1533 = vpop.permute.xlu0 %1532
        %s1535 = sor.u32 256, 1
        %1536 = vbcast.lane.b32.xlu0 %v1323, %s1535
        %v1537 = vpop.permute.xlu0 %1536
        %s1539 = sor.u32 256, 9
        %1540 = vbcast.lane.b32.xlu0 %v1323, %s1539
        %v1541 = vpop.permute.xlu0 %1540
        %s1543 = sor.u32 256, 1
        %1544 = vbcast.lane.b32.xlu0 %v1334, %s1543
        %v1545 = vpop.permute.xlu0 %1544
        %s1547 = sor.u32 256, 9
        %1548 = vbcast.lane.b32.xlu0 %v1334, %s1547
        %v1549 = vpop.permute.xlu0 %1548
        %s1551 = sor.u32 256, 1
        %1552 = vbcast.lane.b32.xlu0 %v1345, %s1551
        %v1553 = vpop.permute.xlu0 %1552
        %s1555 = sor.u32 256, 9
        %1556 = vbcast.lane.b32.xlu0 %v1345, %s1555
        %v1557 = vpop.permute.xlu0 %1556
        %s1559 = sor.u32 256, 1
        %1560 = vbcast.lane.b32.xlu0 %v1356, %s1559
        %v1561 = vpop.permute.xlu0 %1560
        %s1563 = sor.u32 256, 9
        %1564 = vbcast.lane.b32.xlu0 %v1356, %s1563
        %v1565 = vpop.permute.xlu0 %1564
        %s1567 = sor.u32 256, 1
        %1568 = vbcast.lane.b32.xlu0 %v1367, %s1567
        %v1569 = vpop.permute.xlu0 %1568
        %s1571 = sor.u32 256, 9
        %1572 = vbcast.lane.b32.xlu0 %v1367, %s1571
        %v1573 = vpop.permute.xlu0 %1572
        %s1575 = sor.u32 256, 1
        %1576 = vbcast.lane.b32.xlu0 %v1378, %s1575
        %v1577 = vpop.permute.xlu0 %1576
        %s1579 = sor.u32 256, 9
        %1580 = vbcast.lane.b32.xlu0 %v1378, %s1579
        %v1581 = vpop.permute.xlu0 %1580
        %v1582 = vlaneseq
        %v1583 = vshrl.u32 %v1582, 7
        %v1584 = vsub.s32 1, %v1583
        %v1585 = vrot.slane %v568, %v1584
        %v1586 = vmul.f32 %v1457, %v1585
        %v1587 = vmul.f32 %v1461, %v1585
        %v1588 = vmul.f32 %v1465, %v1585
        %v1589 = vmul.f32 %v1469, %v1585
        %v1590 = vmul.f32 %v1473, %v1585
        %v1591 = vmul.f32 %v1477, %v1585
        %v1592 = vmul.f32 %v1481, %v1585
        %v1593 = vmul.f32 %v1485, %v1585
        %v1594 = vmul.f32 %v1489, %v1585
        %v1595 = vmul.f32 %v1493, %v1585
        %v1596 = vmul.f32 %v1497, %v1585
        %v1597 = vmul.f32 %v1501, %v1585
        %v1598 = vmul.f32 %v1505, %v1585
        %v1599 = vmul.f32 %v1509, %v1585
        %v1600 = vmul.f32 %v1513, %v1585
        %v1601 = vmul.f32 %v1517, %v1585
        %v1602 = vmul.f32 %v1521, %v1585
        %v1603 = vmul.f32 %v1525, %v1585
        %v1604 = vmul.f32 %v1529, %v1585
        %v1605 = vmul.f32 %v1533, %v1585
        %v1606 = vmul.f32 %v1537, %v1585
        %v1607 = vmul.f32 %v1541, %v1585
        %v1608 = vmul.f32 %v1545, %v1585
        %v1609 = vmul.f32 %v1549, %v1585
        %v1610 = vmul.f32 %v1553, %v1585
        %v1611 = vmul.f32 %v1557, %v1585
        %v1612 = vmul.f32 %v1561, %v1585
        %v1613 = vmul.f32 %v1565, %v1585
        %v1614 = vmul.f32 %v1569, %v1585
        %v1615 = vmul.f32 %v1573, %v1585
        %v1616 = vmul.f32 %v1577, %v1585
        %v1617 = vmul.f32 %v1581, %v1585
        %v1618 = vadd.f32 %v1422, %v1586
        %v1619 = vadd.f32 %v1423, %v1587
        %v1620 = vadd.f32 %v1424, %v1588
        %v1621 = vadd.f32 %v1425, %v1589
        %v1622 = vadd.f32 %v1426, %v1590
        %v1623 = vadd.f32 %v1427, %v1591
        %v1624 = vadd.f32 %v1428, %v1592
        %v1625 = vadd.f32 %v1429, %v1593
        %v1626 = vadd.f32 %v1430, %v1594
        %v1627 = vadd.f32 %v1431, %v1595
        %v1628 = vadd.f32 %v1432, %v1596
        %v1629 = vadd.f32 %v1433, %v1597
        %v1630 = vadd.f32 %v1434, %v1598
        %v1631 = vadd.f32 %v1435, %v1599
        %v1632 = vadd.f32 %v1436, %v1600
        %v1633 = vadd.f32 %v1437, %v1601
        %v1634 = vadd.f32 %v1438, %v1602
        %v1635 = vadd.f32 %v1439, %v1603
        %v1636 = vadd.f32 %v1440, %v1604
        %v1637 = vadd.f32 %v1441, %v1605
        %v1638 = vadd.f32 %v1442, %v1606
        %v1639 = vadd.f32 %v1443, %v1607
        %v1640 = vadd.f32 %v1444, %v1608
        %v1641 = vadd.f32 %v1445, %v1609
        %v1642 = vadd.f32 %v1446, %v1610
        %v1643 = vadd.f32 %v1447, %v1611
        %v1644 = vadd.f32 %v1448, %v1612
        %v1645 = vadd.f32 %v1449, %v1613
        %v1646 = vadd.f32 %v1450, %v1614
        %v1647 = vadd.f32 %v1451, %v1615
        %v1648 = vadd.f32 %v1452, %v1616
        %v1649 = vadd.f32 %v1453, %v1617
        %s1651 = sor.u32 256, 2
        %1652 = vbcast.lane.b32.xlu0 %v1213, %s1651
        %v1653 = vpop.permute.xlu0 %1652
        %s1655 = sor.u32 256, 10
        %1656 = vbcast.lane.b32.xlu0 %v1213, %s1655
        %v1657 = vpop.permute.xlu0 %1656
        %s1659 = sor.u32 256, 2
        %1660 = vbcast.lane.b32.xlu0 %v1224, %s1659
        %v1661 = vpop.permute.xlu0 %1660
        %s1663 = sor.u32 256, 10
        %1664 = vbcast.lane.b32.xlu0 %v1224, %s1663
        %v1665 = vpop.permute.xlu0 %1664
        %s1667 = sor.u32 256, 2
        %1668 = vbcast.lane.b32.xlu0 %v1235, %s1667
        %v1669 = vpop.permute.xlu0 %1668
        %s1671 = sor.u32 256, 10
        %1672 = vbcast.lane.b32.xlu0 %v1235, %s1671
        %v1673 = vpop.permute.xlu0 %1672
        %s1675 = sor.u32 256, 2
        %1676 = vbcast.lane.b32.xlu0 %v1246, %s1675
        %v1677 = vpop.permute.xlu0 %1676
        %s1679 = sor.u32 256, 10
        %1680 = vbcast.lane.b32.xlu0 %v1246, %s1679
        %v1681 = vpop.permute.xlu0 %1680
        %s1683 = sor.u32 256, 2
        %1684 = vbcast.lane.b32.xlu0 %v1257, %s1683
        %v1685 = vpop.permute.xlu0 %1684
        %s1687 = sor.u32 256, 10
        %1688 = vbcast.lane.b32.xlu0 %v1257, %s1687
        %v1689 = vpop.permute.xlu0 %1688
        %s1691 = sor.u32 256, 2
        %1692 = vbcast.lane.b32.xlu0 %v1268, %s1691
        %v1693 = vpop.permute.xlu0 %1692
        %s1695 = sor.u32 256, 10
        %1696 = vbcast.lane.b32.xlu0 %v1268, %s1695
        %v1697 = vpop.permute.xlu0 %1696
        %s1699 = sor.u32 256, 2
        %1700 = vbcast.lane.b32.xlu0 %v1279, %s1699
        %v1701 = vpop.permute.xlu0 %1700
        %s1703 = sor.u32 256, 10
        %1704 = vbcast.lane.b32.xlu0 %v1279, %s1703
        %v1705 = vpop.permute.xlu0 %1704
        %s1707 = sor.u32 256, 2
        %1708 = vbcast.lane.b32.xlu0 %v1290, %s1707
        %v1709 = vpop.permute.xlu0 %1708
        %s1711 = sor.u32 256, 10
        %1712 = vbcast.lane.b32.xlu0 %v1290, %s1711
        %v1713 = vpop.permute.xlu0 %1712
        %s1715 = sor.u32 256, 2
        %1716 = vbcast.lane.b32.xlu0 %v1301, %s1715
        %v1717 = vpop.permute.xlu0 %1716
        %s1719 = sor.u32 256, 10
        %1720 = vbcast.lane.b32.xlu0 %v1301, %s1719
        %v1721 = vpop.permute.xlu0 %1720
        %s1723 = sor.u32 256, 2
        %1724 = vbcast.lane.b32.xlu0 %v1312, %s1723
        %v1725 = vpop.permute.xlu0 %1724
        %s1727 = sor.u32 256, 10
        %1728 = vbcast.lane.b32.xlu0 %v1312, %s1727
        %v1729 = vpop.permute.xlu0 %1728
        %s1731 = sor.u32 256, 2
        %1732 = vbcast.lane.b32.xlu0 %v1323, %s1731
        %v1733 = vpop.permute.xlu0 %1732
        %s1735 = sor.u32 256, 10
        %1736 = vbcast.lane.b32.xlu0 %v1323, %s1735
        %v1737 = vpop.permute.xlu0 %1736
        %s1739 = sor.u32 256, 2
        %1740 = vbcast.lane.b32.xlu0 %v1334, %s1739
        %v1741 = vpop.permute.xlu0 %1740
        %s1743 = sor.u32 256, 10
        %1744 = vbcast.lane.b32.xlu0 %v1334, %s1743
        %v1745 = vpop.permute.xlu0 %1744
        %s1747 = sor.u32 256, 2
        %1748 = vbcast.lane.b32.xlu0 %v1345, %s1747
        %v1749 = vpop.permute.xlu0 %1748
        %s1751 = sor.u32 256, 10
        %1752 = vbcast.lane.b32.xlu0 %v1345, %s1751
        %v1753 = vpop.permute.xlu0 %1752
        %s1755 = sor.u32 256, 2
        %1756 = vbcast.lane.b32.xlu0 %v1356, %s1755
        %v1757 = vpop.permute.xlu0 %1756
        %s1759 = sor.u32 256, 10
        %1760 = vbcast.lane.b32.xlu0 %v1356, %s1759
        %v1761 = vpop.permute.xlu0 %1760
        %s1763 = sor.u32 256, 2
        %1764 = vbcast.lane.b32.xlu0 %v1367, %s1763
        %v1765 = vpop.permute.xlu0 %1764
        %s1767 = sor.u32 256, 10
        %1768 = vbcast.lane.b32.xlu0 %v1367, %s1767
        %v1769 = vpop.permute.xlu0 %1768
        %s1771 = sor.u32 256, 2
        %1772 = vbcast.lane.b32.xlu0 %v1378, %s1771
        %v1773 = vpop.permute.xlu0 %1772
        %s1775 = sor.u32 256, 10
        %1776 = vbcast.lane.b32.xlu0 %v1378, %s1775
        %v1777 = vpop.permute.xlu0 %1776
        %v1778 = vlaneseq
        %v1779 = vshrl.u32 %v1778, 7
        %v1780 = vsub.s32 2, %v1779
        %v1781 = vrot.slane %v568, %v1780
        %v1782 = vmul.f32 %v1653, %v1781
        %v1783 = vmul.f32 %v1657, %v1781
        %v1784 = vmul.f32 %v1661, %v1781
        %v1785 = vmul.f32 %v1665, %v1781
        %v1786 = vmul.f32 %v1669, %v1781
        %v1787 = vmul.f32 %v1673, %v1781
        %v1788 = vmul.f32 %v1677, %v1781
        %v1789 = vmul.f32 %v1681, %v1781
        %v1790 = vmul.f32 %v1685, %v1781
        %v1791 = vmul.f32 %v1689, %v1781
        %v1792 = vmul.f32 %v1693, %v1781
        %v1793 = vmul.f32 %v1697, %v1781
        %v1794 = vmul.f32 %v1701, %v1781
        %v1795 = vmul.f32 %v1705, %v1781
        %v1796 = vmul.f32 %v1709, %v1781
        %v1797 = vmul.f32 %v1713, %v1781
        %v1798 = vmul.f32 %v1717, %v1781
        %v1799 = vmul.f32 %v1721, %v1781
        %v1800 = vmul.f32 %v1725, %v1781
        %v1801 = vmul.f32 %v1729, %v1781
        %v1802 = vmul.f32 %v1733, %v1781
        %v1803 = vmul.f32 %v1737, %v1781
        %v1804 = vmul.f32 %v1741, %v1781
        %v1805 = vmul.f32 %v1745, %v1781
        %v1806 = vmul.f32 %v1749, %v1781
        %v1807 = vmul.f32 %v1753, %v1781
        %v1808 = vmul.f32 %v1757, %v1781
        %v1809 = vmul.f32 %v1761, %v1781
        %v1810 = vmul.f32 %v1765, %v1781
        %v1811 = vmul.f32 %v1769, %v1781
        %v1812 = vmul.f32 %v1773, %v1781
        %v1813 = vmul.f32 %v1777, %v1781
        %v1814 = vadd.f32 %v1618, %v1782
        %v1815 = vadd.f32 %v1619, %v1783
        %v1816 = vadd.f32 %v1620, %v1784
        %v1817 = vadd.f32 %v1621, %v1785
        %v1818 = vadd.f32 %v1622, %v1786
        %v1819 = vadd.f32 %v1623, %v1787
        %v1820 = vadd.f32 %v1624, %v1788
        %v1821 = vadd.f32 %v1625, %v1789
        %v1822 = vadd.f32 %v1626, %v1790
        %v1823 = vadd.f32 %v1627, %v1791
        %v1824 = vadd.f32 %v1628, %v1792
        %v1825 = vadd.f32 %v1629, %v1793
        %v1826 = vadd.f32 %v1630, %v1794
        %v1827 = vadd.f32 %v1631, %v1795
        %v1828 = vadd.f32 %v1632, %v1796
        %v1829 = vadd.f32 %v1633, %v1797
        %v1830 = vadd.f32 %v1634, %v1798
        %v1831 = vadd.f32 %v1635, %v1799
        %v1832 = vadd.f32 %v1636, %v1800
        %v1833 = vadd.f32 %v1637, %v1801
        %v1834 = vadd.f32 %v1638, %v1802
        %v1835 = vadd.f32 %v1639, %v1803
        %v1836 = vadd.f32 %v1640, %v1804
        %v1837 = vadd.f32 %v1641, %v1805
        %v1838 = vadd.f32 %v1642, %v1806
        %v1839 = vadd.f32 %v1643, %v1807
        %v1840 = vadd.f32 %v1644, %v1808
        %v1841 = vadd.f32 %v1645, %v1809
        %v1842 = vadd.f32 %v1646, %v1810
        %v1843 = vadd.f32 %v1647, %v1811
        %v1844 = vadd.f32 %v1648, %v1812
        %v1845 = vadd.f32 %v1649, %v1813
        %v1846 = vld [vmem:[#allocation3 + $0x2] sm:$0xff]
        %v1847 = vld [vmem:[#allocation3 + $0xa] sm:$0xff]
        %v1848 = vlaneseq
        %v1849 = vshrl.u32 %v1848, 7
        %v1850 = vsub.s32 0, %v1849
        %v1851 = vrot.slane %v1846, %v1850
        %1853 = vbcast.lane.b32.xlu0 %v1851, 256
        %v1854 = vpop.permute.xlu0 %1853
        %s1856 = sor.u32 256, 8
        %1857 = vbcast.lane.b32.xlu0 %v1851, %s1856
        %v1858 = vpop.permute.xlu0 %1857
        %v1859 = vlaneseq
        %v1860 = vshrl.u32 %v1859, 7
        %v1861 = vsub.s32 1, %v1860
        %v1862 = vrot.slane %v1846, %v1861
        %1864 = vbcast.lane.b32.xlu0 %v1862, 256
        %v1865 = vpop.permute.xlu0 %1864
        %s1867 = sor.u32 256, 8
        %1868 = vbcast.lane.b32.xlu0 %v1862, %s1867
        %v1869 = vpop.permute.xlu0 %1868
        %v1870 = vlaneseq
        %v1871 = vshrl.u32 %v1870, 7
        %v1872 = vsub.s32 2, %v1871
        %v1873 = vrot.slane %v1846, %v1872
        %1875 = vbcast.lane.b32.xlu0 %v1873, 256
        %v1876 = vpop.permute.xlu0 %1875
        %s1878 = sor.u32 256, 8
        %1879 = vbcast.lane.b32.xlu0 %v1873, %s1878
        %v1880 = vpop.permute.xlu0 %1879
        %v1881 = vlaneseq
        %v1882 = vshrl.u32 %v1881, 7
        %v1883 = vsub.s32 3, %v1882
        %v1884 = vrot.slane %v1846, %v1883
        %1886 = vbcast.lane.b32.xlu0 %v1884, 256
        %v1887 = vpop.permute.xlu0 %1886
        %s1889 = sor.u32 256, 8
        %1890 = vbcast.lane.b32.xlu0 %v1884, %s1889
        %v1891 = vpop.permute.xlu0 %1890
        %v1892 = vlaneseq
        %v1893 = vshrl.u32 %v1892, 7
        %v1894 = vsub.s32 4, %v1893
        %v1895 = vrot.slane %v1846, %v1894
        %1897 = vbcast.lane.b32.xlu0 %v1895, 256
        %v1898 = vpop.permute.xlu0 %1897
        %s1900 = sor.u32 256, 8
        %1901 = vbcast.lane.b32.xlu0 %v1895, %s1900
        %v1902 = vpop.permute.xlu0 %1901
        %v1903 = vlaneseq
        %v1904 = vshrl.u32 %v1903, 7
        %v1905 = vsub.s32 5, %v1904
        %v1906 = vrot.slane %v1846, %v1905
        %1908 = vbcast.lane.b32.xlu0 %v1906, 256
        %v1909 = vpop.permute.xlu0 %1908
        %s1911 = sor.u32 256, 8
        %1912 = vbcast.lane.b32.xlu0 %v1906, %s1911
        %v1913 = vpop.permute.xlu0 %1912
        %v1914 = vlaneseq
        %v1915 = vshrl.u32 %v1914, 7
        %v1916 = vsub.s32 6, %v1915
        %v1917 = vrot.slane %v1846, %v1916
        %1919 = vbcast.lane.b32.xlu0 %v1917, 256
        %v1920 = vpop.permute.xlu0 %1919
        %s1922 = sor.u32 256, 8
        %1923 = vbcast.lane.b32.xlu0 %v1917, %s1922
        %v1924 = vpop.permute.xlu0 %1923
        %v1925 = vlaneseq
        %v1926 = vshrl.u32 %v1925, 7
        %v1927 = vsub.s32 7, %v1926
        %v1928 = vrot.slane %v1846, %v1927
        %1930 = vbcast.lane.b32.xlu0 %v1928, 256
        %v1931 = vpop.permute.xlu0 %1930
        %s1933 = sor.u32 256, 8
        %1934 = vbcast.lane.b32.xlu0 %v1928, %s1933
        %v1935 = vpop.permute.xlu0 %1934
        %v1936 = vlaneseq
        %v1937 = vshrl.u32 %v1936, 7
        %v1938 = vsub.s32 0, %v1937
        %v1939 = vrot.slane %v1847, %v1938
        %1941 = vbcast.lane.b32.xlu0 %v1939, 256
        %v1942 = vpop.permute.xlu0 %1941
        %s1944 = sor.u32 256, 8
        %1945 = vbcast.lane.b32.xlu0 %v1939, %s1944
        %v1946 = vpop.permute.xlu0 %1945
        %v1947 = vlaneseq
        %v1948 = vshrl.u32 %v1947, 7
        %v1949 = vsub.s32 1, %v1948
        %v1950 = vrot.slane %v1847, %v1949
        %1952 = vbcast.lane.b32.xlu0 %v1950, 256
        %v1953 = vpop.permute.xlu0 %1952
        %s1955 = sor.u32 256, 8
        %1956 = vbcast.lane.b32.xlu0 %v1950, %s1955
        %v1957 = vpop.permute.xlu0 %1956
        %v1958 = vlaneseq
        %v1959 = vshrl.u32 %v1958, 7
        %v1960 = vsub.s32 2, %v1959
        %v1961 = vrot.slane %v1847, %v1960
        %1963 = vbcast.lane.b32.xlu0 %v1961, 256
        %v1964 = vpop.permute.xlu0 %1963
        %s1966 = sor.u32 256, 8
        %1967 = vbcast.lane.b32.xlu0 %v1961, %s1966
        %v1968 = vpop.permute.xlu0 %1967
        %v1969 = vlaneseq
        %v1970 = vshrl.u32 %v1969, 7
        %v1971 = vsub.s32 3, %v1970
        %v1972 = vrot.slane %v1847, %v1971
        %1974 = vbcast.lane.b32.xlu0 %v1972, 256
        %v1975 = vpop.permute.xlu0 %1974
        %s1977 = sor.u32 256, 8
        %1978 = vbcast.lane.b32.xlu0 %v1972, %s1977
        %v1979 = vpop.permute.xlu0 %1978
        %v1980 = vlaneseq
        %v1981 = vshrl.u32 %v1980, 7
        %v1982 = vsub.s32 4, %v1981
        %v1983 = vrot.slane %v1847, %v1982
        %1985 = vbcast.lane.b32.xlu0 %v1983, 256
        %v1986 = vpop.permute.xlu0 %1985
        %s1988 = sor.u32 256, 8
        %1989 = vbcast.lane.b32.xlu0 %v1983, %s1988
        %v1990 = vpop.permute.xlu0 %1989
        %v1991 = vlaneseq
        %v1992 = vshrl.u32 %v1991, 7
        %v1993 = vsub.s32 5, %v1992
        %v1994 = vrot.slane %v1847, %v1993
        %1996 = vbcast.lane.b32.xlu0 %v1994, 256
        %v1997 = vpop.permute.xlu0 %1996
        %s1999 = sor.u32 256, 8
        %2000 = vbcast.lane.b32.xlu0 %v1994, %s1999
        %v2001 = vpop.permute.xlu0 %2000
        %v2002 = vlaneseq
        %v2003 = vshrl.u32 %v2002, 7
        %v2004 = vsub.s32 6, %v2003
        %v2005 = vrot.slane %v1847, %v2004
        %2007 = vbcast.lane.b32.xlu0 %v2005, 256
        %v2008 = vpop.permute.xlu0 %2007
        %s2010 = sor.u32 256, 8
        %2011 = vbcast.lane.b32.xlu0 %v2005, %s2010
        %v2012 = vpop.permute.xlu0 %2011
        %v2013 = vlaneseq
        %v2014 = vshrl.u32 %v2013, 7
        %v2015 = vsub.s32 7, %v2014
        %v2016 = vrot.slane %v1847, %v2015
        %2018 = vbcast.lane.b32.xlu0 %v2016, 256
        %v2019 = vpop.permute.xlu0 %2018
        %s2021 = sor.u32 256, 8
        %2022 = vbcast.lane.b32.xlu0 %v2016, %s2021
        %v2023 = vpop.permute.xlu0 %2022
        %v2024 = vlaneseq
        %v2025 = vshrl.u32 %v2024, 7
        %v2026 = vsub.s32 0, %v2025
        %v2027 = vrot.slane %v569, %v2026
        %v2028 = vmul.f32 %v1854, %v2027
        %v2029 = vmul.f32 %v1858, %v2027
        %v2030 = vmul.f32 %v1865, %v2027
        %v2031 = vmul.f32 %v1869, %v2027
        %v2032 = vmul.f32 %v1876, %v2027
        %v2033 = vmul.f32 %v1880, %v2027
        %v2034 = vmul.f32 %v1887, %v2027
        %v2035 = vmul.f32 %v1891, %v2027
        %v2036 = vmul.f32 %v1898, %v2027
        %v2037 = vmul.f32 %v1902, %v2027
        %v2038 = vmul.f32 %v1909, %v2027
        %v2039 = vmul.f32 %v1913, %v2027
        %v2040 = vmul.f32 %v1920, %v2027
        %v2041 = vmul.f32 %v1924, %v2027
        %v2042 = vmul.f32 %v1931, %v2027
        %v2043 = vmul.f32 %v1935, %v2027
        %v2044 = vmul.f32 %v1942, %v2027
        %v2045 = vmul.f32 %v1946, %v2027
        %v2046 = vmul.f32 %v1953, %v2027
        %v2047 = vmul.f32 %v1957, %v2027
        %v2048 = vmul.f32 %v1964, %v2027
        %v2049 = vmul.f32 %v1968, %v2027
        %v2050 = vmul.f32 %v1975, %v2027
        %v2051 = vmul.f32 %v1979, %v2027
        %v2052 = vmul.f32 %v1986, %v2027
        %v2053 = vmul.f32 %v1990, %v2027
        %v2054 = vmul.f32 %v1997, %v2027
        %v2055 = vmul.f32 %v2001, %v2027
        %v2056 = vmul.f32 %v2008, %v2027
        %v2057 = vmul.f32 %v2012, %v2027
        %v2058 = vmul.f32 %v2019, %v2027
        %v2059 = vmul.f32 %v2023, %v2027
        %v2060 = vadd.f32 %v1814, %v2028
        %v2061 = vadd.f32 %v1815, %v2029
        %v2062 = vadd.f32 %v1816, %v2030
        %v2063 = vadd.f32 %v1817, %v2031
        %v2064 = vadd.f32 %v1818, %v2032
        %v2065 = vadd.f32 %v1819, %v2033
        %v2066 = vadd.f32 %v1820, %v2034
        %v2067 = vadd.f32 %v1821, %v2035
        %v2068 = vadd.f32 %v1822, %v2036
        %v2069 = vadd.f32 %v1823, %v2037
        %v2070 = vadd.f32 %v1824, %v2038
        %v2071 = vadd.f32 %v1825, %v2039
        %v2072 = vadd.f32 %v1826, %v2040
        %v2073 = vadd.f32 %v1827, %v2041
        %v2074 = vadd.f32 %v1828, %v2042
        %v2075 = vadd.f32 %v1829, %v2043
        %v2076 = vadd.f32 %v1830, %v2044
        %v2077 = vadd.f32 %v1831, %v2045
        %v2078 = vadd.f32 %v1832, %v2046
        %v2079 = vadd.f32 %v1833, %v2047
        %v2080 = vadd.f32 %v1834, %v2048
        %v2081 = vadd.f32 %v1835, %v2049
        %v2082 = vadd.f32 %v1836, %v2050
        %v2083 = vadd.f32 %v1837, %v2051
        %v2084 = vadd.f32 %v1838, %v2052
        %v2085 = vadd.f32 %v1839, %v2053
        %v2086 = vadd.f32 %v1840, %v2054
        %v2087 = vadd.f32 %v1841, %v2055
        %v2088 = vadd.f32 %v1842, %v2056
        %v2089 = vadd.f32 %v1843, %v2057
        %v2090 = vadd.f32 %v1844, %v2058
        %v2091 = vadd.f32 %v1845, %v2059
        %s2093 = sor.u32 256, 1
        %2094 = vbcast.lane.b32.xlu0 %v1851, %s2093
        %v2095 = vpop.permute.xlu0 %2094
        %s2097 = sor.u32 256, 9
        %2098 = vbcast.lane.b32.xlu0 %v1851, %s2097
        %v2099 = vpop.permute.xlu0 %2098
        %s2101 = sor.u32 256, 1
        %2102 = vbcast.lane.b32.xlu0 %v1862, %s2101
        %v2103 = vpop.permute.xlu0 %2102
        %s2105 = sor.u32 256, 9
        %2106 = vbcast.lane.b32.xlu0 %v1862, %s2105
        %v2107 = vpop.permute.xlu0 %2106
        %s2109 = sor.u32 256, 1
        %2110 = vbcast.lane.b32.xlu0 %v1873, %s2109
        %v2111 = vpop.permute.xlu0 %2110
        %s2113 = sor.u32 256, 9
        %2114 = vbcast.lane.b32.xlu0 %v1873, %s2113
        %v2115 = vpop.permute.xlu0 %2114
        %s2117 = sor.u32 256, 1
        %2118 = vbcast.lane.b32.xlu0 %v1884, %s2117
        %v2119 = vpop.permute.xlu0 %2118
        %s2121 = sor.u32 256, 9
        %2122 = vbcast.lane.b32.xlu0 %v1884, %s2121
        %v2123 = vpop.permute.xlu0 %2122
        %s2125 = sor.u32 256, 1
        %2126 = vbcast.lane.b32.xlu0 %v1895, %s2125
        %v2127 = vpop.permute.xlu0 %2126
        %s2129 = sor.u32 256, 9
        %2130 = vbcast.lane.b32.xlu0 %v1895, %s2129
        %v2131 = vpop.permute.xlu0 %2130
        %s2133 = sor.u32 256, 1
        %2134 = vbcast.lane.b32.xlu0 %v1906, %s2133
        %v2135 = vpop.permute.xlu0 %2134
        %s2137 = sor.u32 256, 9
        %2138 = vbcast.lane.b32.xlu0 %v1906, %s2137
        %v2139 = vpop.permute.xlu0 %2138
        %s2141 = sor.u32 256, 1
        %2142 = vbcast.lane.b32.xlu0 %v1917, %s2141
        %v2143 = vpop.permute.xlu0 %2142
        %s2145 = sor.u32 256, 9
        %2146 = vbcast.lane.b32.xlu0 %v1917, %s2145
        %v2147 = vpop.permute.xlu0 %2146
        %s2149 = sor.u32 256, 1
        %2150 = vbcast.lane.b32.xlu0 %v1928, %s2149
        %v2151 = vpop.permute.xlu0 %2150
        %s2153 = sor.u32 256, 9
        %2154 = vbcast.lane.b32.xlu0 %v1928, %s2153
        %v2155 = vpop.permute.xlu0 %2154
        %s2157 = sor.u32 256, 1
        %2158 = vbcast.lane.b32.xlu0 %v1939, %s2157
        %v2159 = vpop.permute.xlu0 %2158
        %s2161 = sor.u32 256, 9
        %2162 = vbcast.lane.b32.xlu0 %v1939, %s2161
        %v2163 = vpop.permute.xlu0 %2162
        %s2165 = sor.u32 256, 1
        %2166 = vbcast.lane.b32.xlu0 %v1950, %s2165
        %v2167 = vpop.permute.xlu0 %2166
        %s2169 = sor.u32 256, 9
        %2170 = vbcast.lane.b32.xlu0 %v1950, %s2169
        %v2171 = vpop.permute.xlu0 %2170
        %s2173 = sor.u32 256, 1
        %2174 = vbcast.lane.b32.xlu0 %v1961, %s2173
        %v2175 = vpop.permute.xlu0 %2174
        %s2177 = sor.u32 256, 9
        %2178 = vbcast.lane.b32.xlu0 %v1961, %s2177
        %v2179 = vpop.permute.xlu0 %2178
        %s2181 = sor.u32 256, 1
        %2182 = vbcast.lane.b32.xlu0 %v1972, %s2181
        %v2183 = vpop.permute.xlu0 %2182
        %s2185 = sor.u32 256, 9
        %2186 = vbcast.lane.b32.xlu0 %v1972, %s2185
        %v2187 = vpop.permute.xlu0 %2186
        %s2189 = sor.u32 256, 1
        %2190 = vbcast.lane.b32.xlu0 %v1983, %s2189
        %v2191 = vpop.permute.xlu0 %2190
        %s2193 = sor.u32 256, 9
        %2194 = vbcast.lane.b32.xlu0 %v1983, %s2193
        %v2195 = vpop.permute.xlu0 %2194
        %s2197 = sor.u32 256, 1
        %2198 = vbcast.lane.b32.xlu0 %v1994, %s2197
        %v2199 = vpop.permute.xlu0 %2198
        %s2201 = sor.u32 256, 9
        %2202 = vbcast.lane.b32.xlu0 %v1994, %s2201
        %v2203 = vpop.permute.xlu0 %2202
        %s2205 = sor.u32 256, 1
        %2206 = vbcast.lane.b32.xlu0 %v2005, %s2205
        %v2207 = vpop.permute.xlu0 %2206
        %s2209 = sor.u32 256, 9
        %2210 = vbcast.lane.b32.xlu0 %v2005, %s2209
        %v2211 = vpop.permute.xlu0 %2210
        %s2213 = sor.u32 256, 1
        %2214 = vbcast.lane.b32.xlu0 %v2016, %s2213
        %v2215 = vpop.permute.xlu0 %2214
        %s2217 = sor.u32 256, 9
        %2218 = vbcast.lane.b32.xlu0 %v2016, %s2217
        %v2219 = vpop.permute.xlu0 %2218
        %v2220 = vlaneseq
        %v2221 = vshrl.u32 %v2220, 7
        %v2222 = vsub.s32 1, %v2221
        %v2223 = vrot.slane %v569, %v2222
        %v2224 = vmul.f32 %v2095, %v2223
        %v2225 = vmul.f32 %v2099, %v2223
        %v2226 = vmul.f32 %v2103, %v2223
        %v2227 = vmul.f32 %v2107, %v2223
        %v2228 = vmul.f32 %v2111, %v2223
        %v2229 = vmul.f32 %v2115, %v2223
        %v2230 = vmul.f32 %v2119, %v2223
        %v2231 = vmul.f32 %v2123, %v2223
        %v2232 = vmul.f32 %v2127, %v2223
        %v2233 = vmul.f32 %v2131, %v2223
        %v2234 = vmul.f32 %v2135, %v2223
        %v2235 = vmul.f32 %v2139, %v2223
        %v2236 = vmul.f32 %v2143, %v2223
        %v2237 = vmul.f32 %v2147, %v2223
        %v2238 = vmul.f32 %v2151, %v2223
        %v2239 = vmul.f32 %v2155, %v2223
        %v2240 = vmul.f32 %v2159, %v2223
        %v2241 = vmul.f32 %v2163, %v2223
        %v2242 = vmul.f32 %v2167, %v2223
        %v2243 = vmul.f32 %v2171, %v2223
        %v2244 = vmul.f32 %v2175, %v2223
        %v2245 = vmul.f32 %v2179, %v2223
        %v2246 = vmul.f32 %v2183, %v2223
        %v2247 = vmul.f32 %v2187, %v2223
        %v2248 = vmul.f32 %v2191, %v2223
        %v2249 = vmul.f32 %v2195, %v2223
        %v2250 = vmul.f32 %v2199, %v2223
        %v2251 = vmul.f32 %v2203, %v2223
        %v2252 = vmul.f32 %v2207, %v2223
        %v2253 = vmul.f32 %v2211, %v2223
        %v2254 = vmul.f32 %v2215, %v2223
        %v2255 = vmul.f32 %v2219, %v2223
        %v2256 = vadd.f32 %v2060, %v2224
        %v2257 = vadd.f32 %v2061, %v2225
        %v2258 = vadd.f32 %v2062, %v2226
        %v2259 = vadd.f32 %v2063, %v2227
        %v2260 = vadd.f32 %v2064, %v2228
        %v2261 = vadd.f32 %v2065, %v2229
        %v2262 = vadd.f32 %v2066, %v2230
        %v2263 = vadd.f32 %v2067, %v2231
        %v2264 = vadd.f32 %v2068, %v2232
        %v2265 = vadd.f32 %v2069, %v2233
        %v2266 = vadd.f32 %v2070, %v2234
        %v2267 = vadd.f32 %v2071, %v2235
        %v2268 = vadd.f32 %v2072, %v2236
        %v2269 = vadd.f32 %v2073, %v2237
        %v2270 = vadd.f32 %v2074, %v2238
        %v2271 = vadd.f32 %v2075, %v2239
        %v2272 = vadd.f32 %v2076, %v2240
        %v2273 = vadd.f32 %v2077, %v2241
        %v2274 = vadd.f32 %v2078, %v2242
        %v2275 = vadd.f32 %v2079, %v2243
        %v2276 = vadd.f32 %v2080, %v2244
        %v2277 = vadd.f32 %v2081, %v2245
        %v2278 = vadd.f32 %v2082, %v2246
        %v2279 = vadd.f32 %v2083, %v2247
        %v2280 = vadd.f32 %v2084, %v2248
        %v2281 = vadd.f32 %v2085, %v2249
        %v2282 = vadd.f32 %v2086, %v2250
        %v2283 = vadd.f32 %v2087, %v2251
        %v2284 = vadd.f32 %v2088, %v2252
        %v2285 = vadd.f32 %v2089, %v2253
        %v2286 = vadd.f32 %v2090, %v2254
        %v2287 = vadd.f32 %v2091, %v2255
        %s2289 = sor.u32 256, 2
        %2290 = vbcast.lane.b32.xlu0 %v1851, %s2289
        %v2291 = vpop.permute.xlu0 %2290
        %s2293 = sor.u32 256, 10
        %2294 = vbcast.lane.b32.xlu0 %v1851, %s2293
        %v2295 = vpop.permute.xlu0 %2294
        %s2297 = sor.u32 256, 2
        %2298 = vbcast.lane.b32.xlu0 %v1862, %s2297
        %v2299 = vpop.permute.xlu0 %2298
        %s2301 = sor.u32 256, 10
        %2302 = vbcast.lane.b32.xlu0 %v1862, %s2301
        %v2303 = vpop.permute.xlu0 %2302
        %s2305 = sor.u32 256, 2
        %2306 = vbcast.lane.b32.xlu0 %v1873, %s2305
        %v2307 = vpop.permute.xlu0 %2306
        %s2309 = sor.u32 256, 10
        %2310 = vbcast.lane.b32.xlu0 %v1873, %s2309
        %v2311 = vpop.permute.xlu0 %2310
        %s2313 = sor.u32 256, 2
        %2314 = vbcast.lane.b32.xlu0 %v1884, %s2313
        %v2315 = vpop.permute.xlu0 %2314
        %s2317 = sor.u32 256, 10
        %2318 = vbcast.lane.b32.xlu0 %v1884, %s2317
        %v2319 = vpop.permute.xlu0 %2318
        %s2321 = sor.u32 256, 2
        %2322 = vbcast.lane.b32.xlu0 %v1895, %s2321
        %v2323 = vpop.permute.xlu0 %2322
        %s2325 = sor.u32 256, 10
        %2326 = vbcast.lane.b32.xlu0 %v1895, %s2325
        %v2327 = vpop.permute.xlu0 %2326
        %s2329 = sor.u32 256, 2
        %2330 = vbcast.lane.b32.xlu0 %v1906, %s2329
        %v2331 = vpop.permute.xlu0 %2330
        %s2333 = sor.u32 256, 10
        %2334 = vbcast.lane.b32.xlu0 %v1906, %s2333
        %v2335 = vpop.permute.xlu0 %2334
        %s2337 = sor.u32 256, 2
        %2338 = vbcast.lane.b32.xlu0 %v1917, %s2337
        %v2339 = vpop.permute.xlu0 %2338
        %s2341 = sor.u32 256, 10
        %2342 = vbcast.lane.b32.xlu0 %v1917, %s2341
        %v2343 = vpop.permute.xlu0 %2342
        %s2345 = sor.u32 256, 2
        %2346 = vbcast.lane.b32.xlu0 %v1928, %s2345
        %v2347 = vpop.permute.xlu0 %2346
        %s2349 = sor.u32 256, 10
        %2350 = vbcast.lane.b32.xlu0 %v1928, %s2349
        %v2351 = vpop.permute.xlu0 %2350
        %s2353 = sor.u32 256, 2
        %2354 = vbcast.lane.b32.xlu0 %v1939, %s2353
        %v2355 = vpop.permute.xlu0 %2354
        %s2357 = sor.u32 256, 10
        %2358 = vbcast.lane.b32.xlu0 %v1939, %s2357
        %v2359 = vpop.permute.xlu0 %2358
        %s2361 = sor.u32 256, 2
        %2362 = vbcast.lane.b32.xlu0 %v1950, %s2361
        %v2363 = vpop.permute.xlu0 %2362
        %s2365 = sor.u32 256, 10
        %2366 = vbcast.lane.b32.xlu0 %v1950, %s2365
        %v2367 = vpop.permute.xlu0 %2366
        %s2369 = sor.u32 256, 2
        %2370 = vbcast.lane.b32.xlu0 %v1961, %s2369
        %v2371 = vpop.permute.xlu0 %2370
        %s2373 = sor.u32 256, 10
        %2374 = vbcast.lane.b32.xlu0 %v1961, %s2373
        %v2375 = vpop.permute.xlu0 %2374
        %s2377 = sor.u32 256, 2
        %2378 = vbcast.lane.b32.xlu0 %v1972, %s2377
        %v2379 = vpop.permute.xlu0 %2378
        %s2381 = sor.u32 256, 10
        %2382 = vbcast.lane.b32.xlu0 %v1972, %s2381
        %v2383 = vpop.permute.xlu0 %2382
        %s2385 = sor.u32 256, 2
        %2386 = vbcast.lane.b32.xlu0 %v1983, %s2385
        %v2387 = vpop.permute.xlu0 %2386
        %s2389 = sor.u32 256, 10
        %2390 = vbcast.lane.b32.xlu0 %v1983, %s2389
        %v2391 = vpop.permute.xlu0 %2390
        %s2393 = sor.u32 256, 2
        %2394 = vbcast.lane.b32.xlu0 %v1994, %s2393
        %v2395 = vpop.permute.xlu0 %2394
        %s2397 = sor.u32 256, 10
        %2398 = vbcast.lane.b32.xlu0 %v1994, %s2397
        %v2399 = vpop.permute.xlu0 %2398
        %s2401 = sor.u32 256, 2
        %2402 = vbcast.lane.b32.xlu0 %v2005, %s2401
        %v2403 = vpop.permute.xlu0 %2402
        %s2405 = sor.u32 256, 10
        %2406 = vbcast.lane.b32.xlu0 %v2005, %s2405
        %v2407 = vpop.permute.xlu0 %2406
        %s2409 = sor.u32 256, 2
        %2410 = vbcast.lane.b32.xlu0 %v2016, %s2409
        %v2411 = vpop.permute.xlu0 %2410
        %s2413 = sor.u32 256, 10
        %2414 = vbcast.lane.b32.xlu0 %v2016, %s2413
        %v2415 = vpop.permute.xlu0 %2414
        %v2416 = vlaneseq
        %v2417 = vshrl.u32 %v2416, 7
        %v2418 = vsub.s32 2, %v2417
        %v2419 = vrot.slane %v569, %v2418
        %v2420 = vmul.f32 %v2291, %v2419
        %v2421 = vmul.f32 %v2295, %v2419
        %v2422 = vmul.f32 %v2299, %v2419
        %v2423 = vmul.f32 %v2303, %v2419
        %v2424 = vmul.f32 %v2307, %v2419
        %v2425 = vmul.f32 %v2311, %v2419
        %v2426 = vmul.f32 %v2315, %v2419
        %v2427 = vmul.f32 %v2319, %v2419
        %v2428 = vmul.f32 %v2323, %v2419
        %v2429 = vmul.f32 %v2327, %v2419
        %v2430 = vmul.f32 %v2331, %v2419
        %v2431 = vmul.f32 %v2335, %v2419
        %v2432 = vmul.f32 %v2339, %v2419
        %v2433 = vmul.f32 %v2343, %v2419
        %v2434 = vmul.f32 %v2347, %v2419
        %v2435 = vmul.f32 %v2351, %v2419
        %v2436 = vmul.f32 %v2355, %v2419
        %v2437 = vmul.f32 %v2359, %v2419
        %v2438 = vmul.f32 %v2363, %v2419
        %v2439 = vmul.f32 %v2367, %v2419
        %v2440 = vmul.f32 %v2371, %v2419
        %v2441 = vmul.f32 %v2375, %v2419
        %v2442 = vmul.f32 %v2379, %v2419
        %v2443 = vmul.f32 %v2383, %v2419
        %v2444 = vmul.f32 %v2387, %v2419
        %v2445 = vmul.f32 %v2391, %v2419
        %v2446 = vmul.f32 %v2395, %v2419
        %v2447 = vmul.f32 %v2399, %v2419
        %v2448 = vmul.f32 %v2403, %v2419
        %v2449 = vmul.f32 %v2407, %v2419
        %v2450 = vmul.f32 %v2411, %v2419
        %v2451 = vmul.f32 %v2415, %v2419
        %v2452 = vadd.f32 %v2256, %v2420
        %v2453 = vadd.f32 %v2257, %v2421
        %v2454 = vadd.f32 %v2258, %v2422
        %v2455 = vadd.f32 %v2259, %v2423
        %v2456 = vadd.f32 %v2260, %v2424
        %v2457 = vadd.f32 %v2261, %v2425
        %v2458 = vadd.f32 %v2262, %v2426
        %v2459 = vadd.f32 %v2263, %v2427
        %v2460 = vadd.f32 %v2264, %v2428
        %v2461 = vadd.f32 %v2265, %v2429
        %v2462 = vadd.f32 %v2266, %v2430
        %v2463 = vadd.f32 %v2267, %v2431
        %v2464 = vadd.f32 %v2268, %v2432
        %v2465 = vadd.f32 %v2269, %v2433
        %v2466 = vadd.f32 %v2270, %v2434
        %v2467 = vadd.f32 %v2271, %v2435
        %v2468 = vadd.f32 %v2272, %v2436
        %v2469 = vadd.f32 %v2273, %v2437
        %v2470 = vadd.f32 %v2274, %v2438
        %v2471 = vadd.f32 %v2275, %v2439
        %v2472 = vadd.f32 %v2276, %v2440
        %v2473 = vadd.f32 %v2277, %v2441
        %v2474 = vadd.f32 %v2278, %v2442
        %v2475 = vadd.f32 %v2279, %v2443
        %v2476 = vadd.f32 %v2280, %v2444
        %v2477 = vadd.f32 %v2281, %v2445
        %v2478 = vadd.f32 %v2282, %v2446
        %v2479 = vadd.f32 %v2283, %v2447
        %v2480 = vadd.f32 %v2284, %v2448
        %v2481 = vadd.f32 %v2285, %v2449
        %v2482 = vadd.f32 %v2286, %v2450
        %v2483 = vadd.f32 %v2287, %v2451
        %v2484 = vld [vmem:[%s2] sm:$0x1]
        %v2486 = vlaneseq
        %v2487 = vshrl.u32 %v2486, 7
        %v2488 = vsub.s32 0, %v2487
        %v2489 = vrot.slane %v2484, %v2488
        %v2491 = vadd.f32 %v2452, %v2489
        %v2492 = vadd.f32 %v2453, %v2489
        %v2493 = vadd.f32 %v2454, %v2489
        %v2494 = vadd.f32 %v2455, %v2489
        %v2495 = vadd.f32 %v2456, %v2489
        %v2496 = vadd.f32 %v2457, %v2489
        %v2497 = vadd.f32 %v2458, %v2489
        %v2498 = vadd.f32 %v2459, %v2489
        %v2499 = vadd.f32 %v2460, %v2489
        %v2500 = vadd.f32 %v2461, %v2489
        %v2501 = vadd.f32 %v2462, %v2489
        %v2502 = vadd.f32 %v2463, %v2489
        %v2503 = vadd.f32 %v2464, %v2489
        %v2504 = vadd.f32 %v2465, %v2489
        %v2505 = vadd.f32 %v2466, %v2489
        %v2506 = vadd.f32 %v2467, %v2489
        %v2507 = vadd.f32 %v2468, %v2489
        %v2508 = vadd.f32 %v2469, %v2489
        %v2509 = vadd.f32 %v2470, %v2489
        %v2510 = vadd.f32 %v2471, %v2489
        %v2511 = vadd.f32 %v2472, %v2489
        %v2512 = vadd.f32 %v2473, %v2489
        %v2513 = vadd.f32 %v2474, %v2489
        %v2514 = vadd.f32 %v2475, %v2489
        %v2515 = vadd.f32 %v2476, %v2489
        %v2516 = vadd.f32 %v2477, %v2489
        %v2517 = vadd.f32 %v2478, %v2489
        %v2518 = vadd.f32 %v2479, %v2489
        %v2519 = vadd.f32 %v2480, %v2489
        %v2520 = vadd.f32 %v2481, %v2489
        %v2521 = vadd.f32 %v2482, %v2489
        %v2522 = vadd.f32 %v2483, %v2489
        %vm2523 = vcmask 367616
        %2524 = vst.msk [vmem:[#allocation2] sm:$0xff] %vm2523, %v2491
        %2525 = vst.msk [vmem:[#allocation2 + $0x8] sm:$0xff] %vm2523, %v2492
        %2526 = vst.msk [vmem:[#allocation2 + $0x10] sm:$0xff] %vm2523, %v2493
        %2527 = vst.msk [vmem:[#allocation2 + $0x18] sm:$0xff] %vm2523, %v2494
        %2528 = vst.msk [vmem:[#allocation2 + $0x20] sm:$0xff] %vm2523, %v2495
        %2529 = vst.msk [vmem:[#allocation2 + $0x28] sm:$0xff] %vm2523, %v2496
        %2530 = vst.msk [vmem:[#allocation2 + $0x30] sm:$0xff] %vm2523, %v2497
        %2531 = vst.msk [vmem:[#allocation2 + $0x38] sm:$0xff] %vm2523, %v2498
        %2532 = vst.msk [vmem:[#allocation2 + $0x40] sm:$0xff] %vm2523, %v2499
        %2533 = vst.msk [vmem:[#allocation2 + $0x48] sm:$0xff] %vm2523, %v2500
        %2534 = vst.msk [vmem:[#allocation2 + $0x50] sm:$0xff] %vm2523, %v2501
        %2535 = vst.msk [vmem:[#allocation2 + $0x58] sm:$0xff] %vm2523, %v2502
        %2536 = vst.msk [vmem:[#allocation2 + $0x60] sm:$0xff] %vm2523, %v2503
        %2537 = vst.msk [vmem:[#allocation2 + $0x68] sm:$0xff] %vm2523, %v2504
        %2538 = vst.msk [vmem:[#allocation2 + $0x70] sm:$0xff] %vm2523, %v2505
        %2539 = vst.msk [vmem:[#allocation2 + $0x78] sm:$0xff] %vm2523, %v2506
        %2540 = vst.msk [vmem:[#allocation2 + $0x80] sm:$0xff] %vm2523, %v2507
        %2541 = vst.msk [vmem:[#allocation2 + $0x88] sm:$0xff] %vm2523, %v2508
        %2542 = vst.msk [vmem:[#allocation2 + $0x90] sm:$0xff] %vm2523, %v2509
        %2543 = vst.msk [vmem:[#allocation2 + $0x98] sm:$0xff] %vm2523, %v2510
        %2544 = vst.msk [vmem:[#allocation2 + $0xa0] sm:$0xff] %vm2523, %v2511
        %2545 = vst.msk [vmem:[#allocation2 + $0xa8] sm:$0xff] %vm2523, %v2512
        %2546 = vst.msk [vmem:[#allocation2 + $0xb0] sm:$0xff] %vm2523, %v2513
        %2547 = vst.msk [vmem:[#allocation2 + $0xb8] sm:$0xff] %vm2523, %v2514
        %2548 = vst.msk [vmem:[#allocation2 + $0xc0] sm:$0xff] %vm2523, %v2515
        %2549 = vst.msk [vmem:[#allocation2 + $0xc8] sm:$0xff] %vm2523, %v2516
        %2550 = vst.msk [vmem:[#allocation2 + $0xd0] sm:$0xff] %vm2523, %v2517
        %2551 = vst.msk [vmem:[#allocation2 + $0xd8] sm:$0xff] %vm2523, %v2518
        %2552 = vst.msk [vmem:[#allocation2 + $0xe0] sm:$0xff] %vm2523, %v2519
        %2553 = vst.msk [vmem:[#allocation2 + $0xe8] sm:$0xff] %vm2523, %v2520
        %2554 = vst.msk [vmem:[#allocation2 + $0xf0] sm:$0xff] %vm2523, %v2521
        %2555 = vst.msk [vmem:[#allocation2 + $0xf8] sm:$0xff] %vm2523, %v2522
        %v2556 = vld [vmem:[#allocation2] sm:$0xff]
        %v2557 = vld [vmem:[#allocation2 + $0x8] sm:$0xff]
        %v2558 = vld [vmem:[#allocation2 + $0x10] sm:$0xff]
        %v2559 = vld [vmem:[#allocation2 + $0x18] sm:$0xff]
        %v2560 = vld [vmem:[#allocation2 + $0x20] sm:$0xff]
        %v2561 = vld [vmem:[#allocation2 + $0x28] sm:$0xff]
        %v2562 = vld [vmem:[#allocation2 + $0x30] sm:$0xff]
        %v2563 = vld [vmem:[#allocation2 + $0x38] sm:$0xff]
        %v2564 = vld [vmem:[#allocation2 + $0x40] sm:$0xff]
        %v2565 = vld [vmem:[#allocation2 + $0x48] sm:$0xff]
        %v2566 = vld [vmem:[#allocation2 + $0x50] sm:$0xff]
        %v2567 = vld [vmem:[#allocation2 + $0x58] sm:$0xff]
        %v2568 = vld [vmem:[#allocation2 + $0x60] sm:$0xff]
        %v2569 = vld [vmem:[#allocation2 + $0x68] sm:$0xff]
        %v2570 = vld [vmem:[#allocation2 + $0x70] sm:$0xff]
        %v2571 = vld [vmem:[#allocation2 + $0x78] sm:$0xff]
        %v2572 = vld [vmem:[#allocation2 + $0x80] sm:$0xff]
        %v2573 = vld [vmem:[#allocation2 + $0x88] sm:$0xff]
        %v2574 = vld [vmem:[#allocation2 + $0x90] sm:$0xff]
        %v2575 = vld [vmem:[#allocation2 + $0x98] sm:$0xff]
        %v2576 = vld [vmem:[#allocation2 + $0xa0] sm:$0xff]
        %v2577 = vld [vmem:[#allocation2 + $0xa8] sm:$0xff]
        %v2578 = vld [vmem:[#allocation2 + $0xb0] sm:$0xff]
        %v2579 = vld [vmem:[#allocation2 + $0xb8] sm:$0xff]
        %v2580 = vld [vmem:[#allocation2 + $0xc0] sm:$0xff]
        %v2581 = vld [vmem:[#allocation2 + $0xc8] sm:$0xff]
        %v2582 = vld [vmem:[#allocation2 + $0xd0] sm:$0xff]
        %v2583 = vld [vmem:[#allocation2 + $0xd8] sm:$0xff]
        %v2584 = vld [vmem:[#allocation2 + $0xe0] sm:$0xff]
        %v2585 = vld [vmem:[#allocation2 + $0xe8] sm:$0xff]
        %v2586 = vld [vmem:[#allocation2 + $0xf0] sm:$0xff]
        %v2587 = vld [vmem:[#allocation2 + $0xf8] sm:$0xff]
        %v2588 = vpack.c.bf16 %v2557, %v2556
        %v2589 = vpack.c.bf16 %v2559, %v2558
        %v2590 = vpack.c.bf16 %v2561, %v2560
        %v2591 = vpack.c.bf16 %v2563, %v2562
        %v2592 = vpack.c.bf16 %v2565, %v2564
        %v2593 = vpack.c.bf16 %v2567, %v2566
        %v2594 = vpack.c.bf16 %v2569, %v2568
        %v2595 = vpack.c.bf16 %v2571, %v2570
        %v2596 = vpack.c.bf16 %v2573, %v2572
        %v2597 = vpack.c.bf16 %v2575, %v2574
        %v2598 = vpack.c.bf16 %v2577, %v2576
        %v2599 = vpack.c.bf16 %v2579, %v2578
        %v2600 = vpack.c.bf16 %v2581, %v2580
        %v2601 = vpack.c.bf16 %v2583, %v2582
        %v2602 = vpack.c.bf16 %v2585, %v2584
        %v2603 = vpack.c.bf16 %v2587, %v2586
        %v2604 = vld [vmem:[%s3] sm:$0xf]
        %v2605 = vld [vmem:[%s3 + $0x4] sm:$0xf]
        %v2606 = vld [vmem:[%s3 + $0x8] sm:$0xf]
        %v2607 = vld [vmem:[%s3 + $0xc] sm:$0xf]
        %v2608 = vld [vmem:[%s3 + $0x10] sm:$0xf]
        %v2609 = vld [vmem:[%s3 + $0x14] sm:$0x7]
        %v2610 = vld [vmem:[%s4] sm:$0x1]
        %v2612 = vlaneseq
        %v2613 = vshrl.u32 %v2612, 7
        %v2614 = vsub.s32 0, %v2613
        %v2615 = vrot.slane %v2610, %v2614
        %v2623 = vunpack.c.l.b16 %v2604
        %v2624 = vunpack.c.l.b16 %v2605
        %v2625 = vunpack.c.l.b16 %v2606
        %v2626 = vunpack.c.l.b16 %v2607
        %v2627 = vunpack.c.l.b16 %v2608
        %v2628 = vunpack.c.l.b16 %v2609
        %v2629 = vpack.c.b16 %v2624, %v2623
        %v2630 = vpack.c.b16 %v2626, %v2625
        %v2631 = vpack.c.b16 %v2628, %v2627
        %v2635 = vsel %vm2523, %v2588, 0
        %v2638 = vsel %vm2523, %v2589, 0
        %v2641 = vsel %vm2523, %v2590, 0
        %v2644 = vsel %vm2523, %v2591, 0
        %v2647 = vsel %vm2523, %v2592, 0
        %v2650 = vsel %vm2523, %v2593, 0
        %v2653 = vsel %vm2523, %v2594, 0
        %v2656 = vsel %vm2523, %v2595, 0
        %v2659 = vsel %vm2523, %v2596, 0
        %v2662 = vsel %vm2523, %v2597, 0
        %v2665 = vsel %vm2523, %v2598, 0
        %v2668 = vsel %vm2523, %v2599, 0
        %v2671 = vsel %vm2523, %v2600, 0
        %v2674 = vsel %vm2523, %v2601, 0
        %v2677 = vsel %vm2523, %v2602, 0
        %v2680 = vsel %vm2523, %v2603, 0
        %vm2682 = vcmask 1045504
        %vm2683 = vcmask 1046528
        %v2684 = vsel %vm2682, 4294967295, 65535
        %v2685 = vsel %vm2683, %v2684, 0
        %v2687 = vand.u32 %v2631, %v2685
        %2689 = vmatprep.subr.bf16.mxu0 0
        %2690 = vmatpush1.bf16.msra.mxu0 0
        %2691 = vmatprep.subr.bf16.mxu0 0
        %2692 = vmatpush1.bf16.msra.mxu0 0
        %2693 = vmatprep.subr.bf16.mxu0 0
        %2694 = vmatpush1.bf16.msra.mxu0 0
        %2695 = vmatprep.subr.bf16.mxu0 0
        %2696 = vmatpush1.bf16.msra.mxu0 0
        %2697 = vmatprep.subr.bf16.mxu0 0
        %2698 = vmatpush1.bf16.msra.mxu0 0
        %2699 = vmatprep.subr.bf16.mxu0 0
        %2700 = vmatpush1.bf16.msra.mxu0 %v2687
        %2701 = vmatprep.subr.bf16.mxu0 0
        %2702 = vmatpush1.bf16.msra.mxu0 %v2630
        %2703 = vmatprep.subr.bf16.mxu0 0
        %2704 = vmatpush1.bf16.msra.mxu0 %v2629
        %2705 = vmatprep.subr.bf16.mxu0 0
        %2706 = vmatpush2.bf16.msra.mxu0 0
        %2707 = vmatprep.subr.bf16.mxu0 0
        %2708 = vmatpush2.bf16.msra.mxu0 0
        %2709 = vmatprep.subr.bf16.mxu0 0
        %2710 = vmatpush2.bf16.msra.mxu0 0
        %2711 = vmatprep.subr.bf16.mxu0 0
        %2712 = vmatpush2.bf16.msra.mxu0 0
        %2713 = vmatprep.subr.bf16.mxu0 0
        %2714 = vmatpush2.bf16.msra.mxu0 0
        %2715 = vmatprep.subr.bf16.mxu0 0
        %2716 = vmatpush2.bf16.msra.mxu0 0
        %2717 = vmatprep.subr.bf16.mxu0 0
        %2718 = vmatpush2.bf16.msra.mxu0 0
        %2719 = vmatprep.subr.bf16.mxu0 0
        %2720 = vmatpush2.bf16.msra.mxu0 0
        %2721 = vmatprep.mubr.bf16.mxu0 0
        %2722 = vmatmul.mubr.bf16.gmra.mxu0 %v2635
        %v2723 = vpop.f32.mrf.mxu0
        %v2724 = vadd.f32 %v2615, %v2723
        %v2725 = vpop.f32.mrf.mxu0
        %v2726 = vpop.f32.mrf.mxu0
        %v2727 = vadd.f32 %v2615, %v2726
        %v2728 = vpop.f32.mrf.mxu0
        %2729 = vmatprep.mubr.bf16.mxu0 0
        %2730 = vmatmul.mubr.bf16.gmra.mxu0 %v2638
        %v2731 = vpop.f32.mrf.mxu0
        %v2732 = vadd.f32 %v2615, %v2731
        %v2733 = vpop.f32.mrf.mxu0
        %v2734 = vpop.f32.mrf.mxu0
        %v2735 = vadd.f32 %v2615, %v2734
        %v2736 = vpop.f32.mrf.mxu0
        %2737 = vmatprep.mubr.bf16.mxu0 0
        %2738 = vmatmul.mubr.bf16.gmra.mxu0 %v2641
        %v2739 = vpop.f32.mrf.mxu0
        %v2740 = vadd.f32 %v2615, %v2739
        %v2741 = vpop.f32.mrf.mxu0
        %v2742 = vpop.f32.mrf.mxu0
        %v2743 = vadd.f32 %v2615, %v2742
        %v2744 = vpop.f32.mrf.mxu0
        %2745 = vmatprep.mubr.bf16.mxu0 0
        %2746 = vmatmul.mubr.bf16.gmra.mxu0 %v2644
        %v2747 = vpop.f32.mrf.mxu0
        %v2748 = vadd.f32 %v2615, %v2747
        %v2749 = vpop.f32.mrf.mxu0
        %v2750 = vpop.f32.mrf.mxu0
        %v2751 = vadd.f32 %v2615, %v2750
        %v2752 = vpop.f32.mrf.mxu0
        %2753 = vmatprep.mubr.bf16.mxu0 0
        %2754 = vmatmul.mubr.bf16.gmra.mxu0 %v2647
        %v2755 = vpop.f32.mrf.mxu0
        %v2756 = vadd.f32 %v2615, %v2755
        %v2757 = vpop.f32.mrf.mxu0
        %v2758 = vpop.f32.mrf.mxu0
        %v2759 = vadd.f32 %v2615, %v2758
        %v2760 = vpop.f32.mrf.mxu0
        %2761 = vmatprep.mubr.bf16.mxu0 0
        %2762 = vmatmul.mubr.bf16.gmra.mxu0 %v2650
        %v2763 = vpop.f32.mrf.mxu0
        %v2764 = vadd.f32 %v2615, %v2763
        %v2765 = vpop.f32.mrf.mxu0
        %v2766 = vpop.f32.mrf.mxu0
        %v2767 = vadd.f32 %v2615, %v2766
        %v2768 = vpop.f32.mrf.mxu0
        %2769 = vmatprep.mubr.bf16.mxu0 0
        %2770 = vmatmul.mubr.bf16.gmra.mxu0 %v2653
        %v2771 = vpop.f32.mrf.mxu0
        %v2772 = vadd.f32 %v2615, %v2771
        %v2773 = vpop.f32.mrf.mxu0
        %v2774 = vpop.f32.mrf.mxu0
        %v2775 = vadd.f32 %v2615, %v2774
        %v2776 = vpop.f32.mrf.mxu0
        %2777 = vmatprep.mubr.bf16.mxu0 0
        %2778 = vmatmul.mubr.bf16.gmra.mxu0 %v2656
        %v2779 = vpop.f32.mrf.mxu0
        %v2780 = vadd.f32 %v2615, %v2779
        %v2781 = vpop.f32.mrf.mxu0
        %v2782 = vpop.f32.mrf.mxu0
        %v2783 = vadd.f32 %v2615, %v2782
        %v2784 = vpop.f32.mrf.mxu0
        %2785 = vmatprep.mubr.bf16.mxu0 0
        %2786 = vmatmul.mubr.bf16.gmra.mxu0 %v2659
        %v2787 = vpop.f32.mrf.mxu0
        %v2788 = vadd.f32 %v2615, %v2787
        %v2789 = vpop.f32.mrf.mxu0
        %v2790 = vpop.f32.mrf.mxu0
        %v2791 = vadd.f32 %v2615, %v2790
        %v2792 = vpop.f32.mrf.mxu0
        %2793 = vmatprep.mubr.bf16.mxu0 0
        %2794 = vmatmul.mubr.bf16.gmra.mxu0 %v2662
        %v2795 = vpop.f32.mrf.mxu0
        %v2796 = vadd.f32 %v2615, %v2795
        %v2797 = vpop.f32.mrf.mxu0
        %v2798 = vpop.f32.mrf.mxu0
        %v2799 = vadd.f32 %v2615, %v2798
        %v2800 = vpop.f32.mrf.mxu0
        %2801 = vmatprep.mubr.bf16.mxu0 0
        %2802 = vmatmul.mubr.bf16.gmra.mxu0 %v2665
        %v2803 = vpop.f32.mrf.mxu0
        %v2804 = vadd.f32 %v2615, %v2803
        %v2805 = vpop.f32.mrf.mxu0
        %v2806 = vpop.f32.mrf.mxu0
        %v2807 = vadd.f32 %v2615, %v2806
        %v2808 = vpop.f32.mrf.mxu0
        %2809 = vmatprep.mubr.bf16.mxu0 0
        %2810 = vmatmul.mubr.bf16.gmra.mxu0 %v2668
        %v2811 = vpop.f32.mrf.mxu0
        %v2812 = vadd.f32 %v2615, %v2811
        %v2813 = vpop.f32.mrf.mxu0
        %v2814 = vpop.f32.mrf.mxu0
        %v2815 = vadd.f32 %v2615, %v2814
        %v2816 = vpop.f32.mrf.mxu0
        %2817 = vmatprep.mubr.bf16.mxu0 0
        %2818 = vmatmul.mubr.bf16.gmra.mxu0 %v2671
        %v2819 = vpop.f32.mrf.mxu0
        %v2820 = vadd.f32 %v2615, %v2819
        %v2821 = vpop.f32.mrf.mxu0
        %v2822 = vpop.f32.mrf.mxu0
        %v2823 = vadd.f32 %v2615, %v2822
        %v2824 = vpop.f32.mrf.mxu0
        %2825 = vmatprep.mubr.bf16.mxu0 0
        %2826 = vmatmul.mubr.bf16.gmra.mxu0 %v2674
        %v2827 = vpop.f32.mrf.mxu0
        %v2828 = vadd.f32 %v2615, %v2827
        %v2829 = vpop.f32.mrf.mxu0
        %v2830 = vpop.f32.mrf.mxu0
        %v2831 = vadd.f32 %v2615, %v2830
        %v2832 = vpop.f32.mrf.mxu0
        %2833 = vmatprep.mubr.bf16.mxu0 0
        %2834 = vmatmul.mubr.bf16.gmra.mxu0 %v2677
        %v2835 = vpop.f32.mrf.mxu0
        %v2836 = vadd.f32 %v2615, %v2835
        %v2837 = vpop.f32.mrf.mxu0
        %v2838 = vpop.f32.mrf.mxu0
        %v2839 = vadd.f32 %v2615, %v2838
        %v2840 = vpop.f32.mrf.mxu0
        %2841 = vmatprep.mubr.bf16.mxu0 0
        %2842 = vmatmul.mubr.bf16.gmra.mxu0 %v2680
        %v2843 = vpop.f32.mrf.mxu0
        %v2844 = vadd.f32 %v2615, %v2843
        %v2845 = vpop.f32.mrf.mxu0
        %v2846 = vpop.f32.mrf.mxu0
        %v2847 = vadd.f32 %v2615, %v2846
        %v2848 = vpop.f32.mrf.mxu0
        %2849 = vdwg.mxu0
        %s2850 = scalar_lea.vmem [#allocation4], 24
        %vm2851 = vcmask 244736
        %2852 = vst.msk [vmem:[%s2850 + $0x1] sm:$0xff] %vm2851, %v2724
        %2853 = vst.msk [vmem:[%s2850 + $0x9] sm:$0xff] %vm2851, %v2727
        %2854 = vst.msk [vmem:[%s2850 + $0x19] sm:$0xff] %vm2851, %v2732
        %2855 = vst.msk [vmem:[%s2850 + $0x21] sm:$0xff] %vm2851, %v2735
        %2856 = vst.msk [vmem:[%s2850 + $0x31] sm:$0xff] %vm2851, %v2740
        %2857 = vst.msk [vmem:[%s2850 + $0x39] sm:$0xff] %vm2851, %v2743
        %2858 = vst.msk [vmem:[%s2850 + $0x49] sm:$0xff] %vm2851, %v2748
        %2859 = vst.msk [vmem:[%s2850 + $0x51] sm:$0xff] %vm2851, %v2751
        %2860 = vst.msk [vmem:[%s2850 + $0x61] sm:$0xff] %vm2851, %v2756
        %2861 = vst.msk [vmem:[%s2850 + $0x69] sm:$0xff] %vm2851, %v2759
        %2862 = vst.msk [vmem:[%s2850 + $0x79] sm:$0xff] %vm2851, %v2764
        %2863 = vst.msk [vmem:[%s2850 + $0x81] sm:$0xff] %vm2851, %v2767
        %2864 = vst.msk [vmem:[%s2850 + $0x91] sm:$0xff] %vm2851, %v2772
        %2865 = vst.msk [vmem:[%s2850 + $0x99] sm:$0xff] %vm2851, %v2775
        %2866 = vst.msk [vmem:[%s2850 + $0xa9] sm:$0xff] %vm2851, %v2780
        %2867 = vst.msk [vmem:[%s2850 + $0xb1] sm:$0xff] %vm2851, %v2783
        %2868 = vst.msk [vmem:[%s2850 + $0xc1] sm:$0xff] %vm2851, %v2788
        %2869 = vst.msk [vmem:[%s2850 + $0xc9] sm:$0xff] %vm2851, %v2791
        %2870 = vst.msk [vmem:[%s2850 + $0xd9] sm:$0xff] %vm2851, %v2796
        %2871 = vst.msk [vmem:[%s2850 + $0xe1] sm:$0xff] %vm2851, %v2799
        %2872 = vst.msk [vmem:[%s2850 + $0xf1] sm:$0xff] %vm2851, %v2804
        %2873 = vst.msk [vmem:[%s2850 + $0xf9] sm:$0xff] %vm2851, %v2807
        %2874 = vst.msk [vmem:[%s2850 + $0x109] sm:$0xff] %vm2851, %v2812
        %2875 = vst.msk [vmem:[%s2850 + $0x111] sm:$0xff] %vm2851, %v2815
        %2876 = vst.msk [vmem:[%s2850 + $0x121] sm:$0xff] %vm2851, %v2820
        %2877 = vst.msk [vmem:[%s2850 + $0x129] sm:$0xff] %vm2851, %v2823
        %2878 = vst.msk [vmem:[%s2850 + $0x139] sm:$0xff] %vm2851, %v2828
        %2879 = vst.msk [vmem:[%s2850 + $0x141] sm:$0xff] %vm2851, %v2831
        %2880 = vst.msk [vmem:[%s2850 + $0x151] sm:$0xff] %vm2851, %v2836
        %2881 = vst.msk [vmem:[%s2850 + $0x159] sm:$0xff] %vm2851, %v2839
        %2882 = vst.msk [vmem:[%s2850 + $0x169] sm:$0xff] %vm2851, %v2844
        %2883 = vst.msk [vmem:[%s2850 + $0x171] sm:$0xff] %vm2851, %v2847
        %v2884 = vld [vmem:[#allocation4] sm:$0xff]
        %v2885 = vld [vmem:[#allocation4 + $0x8] sm:$0xff]
        %v2886 = vld [vmem:[#allocation4 + $0x18] sm:$0xff]
        %v2887 = vld [vmem:[#allocation4 + $0x20] sm:$0xff]
        %v2888 = vld [vmem:[#allocation4 + $0x30] sm:$0xff]
        %v2889 = vld [vmem:[#allocation4 + $0x38] sm:$0xff]
        %v2890 = vld [vmem:[#allocation4 + $0x48] sm:$0xff]
        %v2891 = vld [vmem:[#allocation4 + $0x50] sm:$0xff]
        %v2892 = vld [vmem:[#allocation4 + $0x60] sm:$0xff]
        %v2893 = vld [vmem:[#allocation4 + $0x68] sm:$0xff]
        %v2894 = vld [vmem:[#allocation4 + $0x78] sm:$0xff]
        %v2895 = vld [vmem:[#allocation4 + $0x80] sm:$0xff]
        %v2896 = vld [vmem:[#allocation4 + $0x90] sm:$0xff]
        %v2897 = vld [vmem:[#allocation4 + $0x98] sm:$0xff]
        %v2898 = vld [vmem:[#allocation4 + $0xa8] sm:$0xff]
        %v2899 = vld [vmem:[#allocation4 + $0xb0] sm:$0xff]
        %v2900 = vld [vmem:[#allocation4 + $0xc0] sm:$0xff]
        %v2901 = vld [vmem:[#allocation4 + $0xc8] sm:$0xff]
        %v2902 = vld [vmem:[#allocation4 + $0xd8] sm:$0xff]
        %v2903 = vld [vmem:[#allocation4 + $0xe0] sm:$0xff]
        %v2904 = vld [vmem:[#allocation4 + $0xf0] sm:$0xff]
        %v2905 = vld [vmem:[#allocation4 + $0xf8] sm:$0xff]
        %v2906 = vld [vmem:[#allocation4 + $0x108] sm:$0xff]
        %v2907 = vld [vmem:[#allocation4 + $0x110] sm:$0xff]
        %v2908 = vld [vmem:[#allocation4 + $0x120] sm:$0xff]
        %v2909 = vld [vmem:[#allocation4 + $0x128] sm:$0xff]
        %v2910 = vld [vmem:[#allocation4 + $0x138] sm:$0xff]
        %v2911 = vld [vmem:[#allocation4 + $0x140] sm:$0xff]
        %v2912 = vld [vmem:[#allocation4 + $0x150] sm:$0xff]
        %v2913 = vld [vmem:[#allocation4 + $0x158] sm:$0xff]
        %v2914 = vld [vmem:[#allocation4 + $0x168] sm:$0xff]
        %v2915 = vld [vmem:[#allocation4 + $0x170] sm:$0xff]
        %v2916 = vld [vmem:[#allocation4 + $0x1] sm:$0xff]
        %v2917 = vld [vmem:[#allocation4 + $0x9] sm:$0xff]
        %v2918 = vld [vmem:[#allocation4 + $0x19] sm:$0xff]
        %v2919 = vld [vmem:[#allocation4 + $0x21] sm:$0xff]
        %v2920 = vld [vmem:[#allocation4 + $0x31] sm:$0xff]
        %v2921 = vld [vmem:[#allocation4 + $0x39] sm:$0xff]
        %v2922 = vld [vmem:[#allocation4 + $0x49] sm:$0xff]
        %v2923 = vld [vmem:[#allocation4 + $0x51] sm:$0xff]
        %v2924 = vld [vmem:[#allocation4 + $0x61] sm:$0xff]
        %v2925 = vld [vmem:[#allocation4 + $0x69] sm:$0xff]
        %v2926 = vld [vmem:[#allocation4 + $0x79] sm:$0xff]
        %v2927 = vld [vmem:[#allocation4 + $0x81] sm:$0xff]
        %v2928 = vld [vmem:[#allocation4 + $0x91] sm:$0xff]
        %v2929 = vld [vmem:[#allocation4 + $0x99] sm:$0xff]
        %v2930 = vld [vmem:[#allocation4 + $0xa9] sm:$0xff]
        %v2931 = vld [vmem:[#allocation4 + $0xb1] sm:$0xff]
        %v2932 = vld [vmem:[#allocation4 + $0xc1] sm:$0xff]
        %v2933 = vld [vmem:[#allocation4 + $0xc9] sm:$0xff]
        %v2934 = vld [vmem:[#allocation4 + $0xd9] sm:$0xff]
        %v2935 = vld [vmem:[#allocation4 + $0xe1] sm:$0xff]
        %v2936 = vld [vmem:[#allocation4 + $0xf1] sm:$0xff]
        %v2937 = vld [vmem:[#allocation4 + $0xf9] sm:$0xff]
        %v2938 = vld [vmem:[#allocation4 + $0x109] sm:$0xff]
        %v2939 = vld [vmem:[#allocation4 + $0x111] sm:$0xff]
        %v2940 = vld [vmem:[#allocation4 + $0x121] sm:$0xff]
        %v2941 = vld [vmem:[#allocation4 + $0x129] sm:$0xff]
        %v2942 = vld [vmem:[#allocation4 + $0x139] sm:$0xff]
        %v2943 = vld [vmem:[#allocation4 + $0x141] sm:$0xff]
        %v2944 = vld [vmem:[#allocation4 + $0x151] sm:$0xff]
        %v2945 = vld [vmem:[#allocation4 + $0x159] sm:$0xff]
        %v2946 = vld [vmem:[#allocation4 + $0x169] sm:$0xff]
        %v2947 = vld [vmem:[#allocation4 + $0x171] sm:$0xff]
        %v2948 = vld [vmem:[#allocation4 + $0x2] sm:$0xff]
        %v2949 = vld [vmem:[#allocation4 + $0xa] sm:$0xff]
        %v2950 = vld [vmem:[#allocation4 + $0x1a] sm:$0xff]
        %v2951 = vld [vmem:[#allocation4 + $0x22] sm:$0xff]
        %v2952 = vld [vmem:[#allocation4 + $0x32] sm:$0xff]
        %v2953 = vld [vmem:[#allocation4 + $0x3a] sm:$0xff]
        %v2954 = vld [vmem:[#allocation4 + $0x4a] sm:$0xff]
        %v2955 = vld [vmem:[#allocation4 + $0x52] sm:$0xff]
        %v2956 = vld [vmem:[#allocation4 + $0x62] sm:$0xff]
        %v2957 = vld [vmem:[#allocation4 + $0x6a] sm:$0xff]
        %v2958 = vld [vmem:[#allocation4 + $0x7a] sm:$0xff]
        %v2959 = vld [vmem:[#allocation4 + $0x82] sm:$0xff]
        %v2960 = vld [vmem:[#allocation4 + $0x92] sm:$0xff]
        %v2961 = vld [vmem:[#allocation4 + $0x9a] sm:$0xff]
        %v2962 = vld [vmem:[#allocation4 + $0xaa] sm:$0xff]
        %v2963 = vld [vmem:[#allocation4 + $0xb2] sm:$0xff]
        %v2964 = vld [vmem:[#allocation4 + $0xc2] sm:$0xff]
        %v2965 = vld [vmem:[#allocation4 + $0xca] sm:$0xff]
        %v2966 = vld [vmem:[#allocation4 + $0xda] sm:$0xff]
        %v2967 = vld [vmem:[#allocation4 + $0xe2] sm:$0xff]
        %v2968 = vld [vmem:[#allocation4 + $0xf2] sm:$0xff]
        %v2969 = vld [vmem:[#allocation4 + $0xfa] sm:$0xff]
        %v2970 = vld [vmem:[#allocation4 + $0x10a] sm:$0xff]
        %v2971 = vld [vmem:[#allocation4 + $0x112] sm:$0xff]
        %v2972 = vld [vmem:[#allocation4 + $0x122] sm:$0xff]
        %v2973 = vld [vmem:[#allocation4 + $0x12a] sm:$0xff]
        %v2974 = vld [vmem:[#allocation4 + $0x13a] sm:$0xff]
        %v2975 = vld [vmem:[#allocation4 + $0x142] sm:$0xff]
        %v2976 = vld [vmem:[#allocation4 + $0x152] sm:$0xff]
        %v2977 = vld [vmem:[#allocation4 + $0x15a] sm:$0xff]
        %v2978 = vld [vmem:[#allocation4 + $0x16a] sm:$0xff]
        %v2979 = vld [vmem:[#allocation4 + $0x172] sm:$0xff]
        %v2980 = vld [vmem:[%s2850] sm:$0xff]
        %v2981 = vld [vmem:[%s2850 + $0x8] sm:$0xff]
        %v2982 = vld [vmem:[%s2850 + $0x18] sm:$0xff]
        %v2983 = vld [vmem:[%s2850 + $0x20] sm:$0xff]
        %v2984 = vld [vmem:[%s2850 + $0x30] sm:$0xff]
        %v2985 = vld [vmem:[%s2850 + $0x38] sm:$0xff]
        %v2986 = vld [vmem:[%s2850 + $0x48] sm:$0xff]
        %v2987 = vld [vmem:[%s2850 + $0x50] sm:$0xff]
        %v2988 = vld [vmem:[%s2850 + $0x60] sm:$0xff]
        %v2989 = vld [vmem:[%s2850 + $0x68] sm:$0xff]
        %v2990 = vld [vmem:[%s2850 + $0x78] sm:$0xff]
        %v2991 = vld [vmem:[%s2850 + $0x80] sm:$0xff]
        %v2992 = vld [vmem:[%s2850 + $0x90] sm:$0xff]
        %v2993 = vld [vmem:[%s2850 + $0x98] sm:$0xff]
        %v2994 = vld [vmem:[%s2850 + $0xa8] sm:$0xff]
        %v2995 = vld [vmem:[%s2850 + $0xb0] sm:$0xff]
        %v2996 = vld [vmem:[%s2850 + $0xc0] sm:$0xff]
        %v2997 = vld [vmem:[%s2850 + $0xc8] sm:$0xff]
        %v2998 = vld [vmem:[%s2850 + $0xd8] sm:$0xff]
        %v2999 = vld [vmem:[%s2850 + $0xe0] sm:$0xff]
        %v3000 = vld [vmem:[%s2850 + $0xf0] sm:$0xff]
        %v3001 = vld [vmem:[%s2850 + $0xf8] sm:$0xff]
        %v3002 = vld [vmem:[%s2850 + $0x108] sm:$0xff]
        %v3003 = vld [vmem:[%s2850 + $0x110] sm:$0xff]
        %v3004 = vld [vmem:[%s2850 + $0x120] sm:$0xff]
        %v3005 = vld [vmem:[%s2850 + $0x128] sm:$0xff]
        %v3006 = vld [vmem:[%s2850 + $0x138] sm:$0xff]
        %v3007 = vld [vmem:[%s2850 + $0x140] sm:$0xff]
        %v3008 = vld [vmem:[%s2850 + $0x150] sm:$0xff]
        %v3009 = vld [vmem:[%s2850 + $0x158] sm:$0xff]
        %v3010 = vld [vmem:[%s2850 + $0x168] sm:$0xff]
        %v3011 = vld [vmem:[%s2850 + $0x170] sm:$0xff]
        %v3012 = vld [vmem:[%s2850 + $0x1] sm:$0xff]
        %v3013 = vld [vmem:[%s2850 + $0x9] sm:$0xff]
        %v3014 = vld [vmem:[%s2850 + $0x19] sm:$0xff]
        %v3015 = vld [vmem:[%s2850 + $0x21] sm:$0xff]
        %v3016 = vld [vmem:[%s2850 + $0x31] sm:$0xff]
        %v3017 = vld [vmem:[%s2850 + $0x39] sm:$0xff]
        %v3018 = vld [vmem:[%s2850 + $0x49] sm:$0xff]
        %v3019 = vld [vmem:[%s2850 + $0x51] sm:$0xff]
        %v3020 = vld [vmem:[%s2850 + $0x61] sm:$0xff]
        %v3021 = vld [vmem:[%s2850 + $0x69] sm:$0xff]
        %v3022 = vld [vmem:[%s2850 + $0x79] sm:$0xff]
        %v3023 = vld [vmem:[%s2850 + $0x81] sm:$0xff]
        %v3024 = vld [vmem:[%s2850 + $0x91] sm:$0xff]
        %v3025 = vld [vmem:[%s2850 + $0x99] sm:$0xff]
        %v3026 = vld [vmem:[%s2850 + $0xa9] sm:$0xff]
        %v3027 = vld [vmem:[%s2850 + $0xb1] sm:$0xff]
        %v3028 = vld [vmem:[%s2850 + $0xc1] sm:$0xff]
        %v3029 = vld [vmem:[%s2850 + $0xc9] sm:$0xff]
        %v3030 = vld [vmem:[%s2850 + $0xd9] sm:$0xff]
        %v3031 = vld [vmem:[%s2850 + $0xe1] sm:$0xff]
        %v3032 = vld [vmem:[%s2850 + $0xf1] sm:$0xff]
        %v3033 = vld [vmem:[%s2850 + $0xf9] sm:$0xff]
        %v3034 = vld [vmem:[%s2850 + $0x109] sm:$0xff]
        %v3035 = vld [vmem:[%s2850 + $0x111] sm:$0xff]
        %v3036 = vld [vmem:[%s2850 + $0x121] sm:$0xff]
        %v3037 = vld [vmem:[%s2850 + $0x129] sm:$0xff]
        %v3038 = vld [vmem:[%s2850 + $0x139] sm:$0xff]
        %v3039 = vld [vmem:[%s2850 + $0x141] sm:$0xff]
        %v3040 = vld [vmem:[%s2850 + $0x151] sm:$0xff]
        %v3041 = vld [vmem:[%s2850 + $0x159] sm:$0xff]
        %v3042 = vld [vmem:[%s2850 + $0x169] sm:$0xff]
        %v3043 = vld [vmem:[%s2850 + $0x171] sm:$0xff]
        %v3044 = vld [vmem:[%s2850 + $0x2] sm:$0xff]
        %v3045 = vld [vmem:[%s2850 + $0xa] sm:$0xff]
        %v3046 = vld [vmem:[%s2850 + $0x1a] sm:$0xff]
        %v3047 = vld [vmem:[%s2850 + $0x22] sm:$0xff]
        %v3048 = vld [vmem:[%s2850 + $0x32] sm:$0xff]
        %v3049 = vld [vmem:[%s2850 + $0x3a] sm:$0xff]
        %v3050 = vld [vmem:[%s2850 + $0x4a] sm:$0xff]
        %v3051 = vld [vmem:[%s2850 + $0x52] sm:$0xff]
        %v3052 = vld [vmem:[%s2850 + $0x62] sm:$0xff]
        %v3053 = vld [vmem:[%s2850 + $0x6a] sm:$0xff]
        %v3054 = vld [vmem:[%s2850 + $0x7a] sm:$0xff]
        %v3055 = vld [vmem:[%s2850 + $0x82] sm:$0xff]
        %v3056 = vld [vmem:[%s2850 + $0x92] sm:$0xff]
        %v3057 = vld [vmem:[%s2850 + $0x9a] sm:$0xff]
        %v3058 = vld [vmem:[%s2850 + $0xaa] sm:$0xff]
        %v3059 = vld [vmem:[%s2850 + $0xb2] sm:$0xff]
        %v3060 = vld [vmem:[%s2850 + $0xc2] sm:$0xff]
        %v3061 = vld [vmem:[%s2850 + $0xca] sm:$0xff]
        %v3062 = vld [vmem:[%s2850 + $0xda] sm:$0xff]
        %v3063 = vld [vmem:[%s2850 + $0xe2] sm:$0xff]
        %v3064 = vld [vmem:[%s2850 + $0xf2] sm:$0xff]
        %v3065 = vld [vmem:[%s2850 + $0xfa] sm:$0xff]
        %v3066 = vld [vmem:[%s2850 + $0x10a] sm:$0xff]
        %v3067 = vld [vmem:[%s2850 + $0x112] sm:$0xff]
        %v3068 = vld [vmem:[%s2850 + $0x122] sm:$0xff]
        %v3069 = vld [vmem:[%s2850 + $0x12a] sm:$0xff]
        %v3070 = vld [vmem:[%s2850 + $0x13a] sm:$0xff]
        %v3071 = vld [vmem:[%s2850 + $0x142] sm:$0xff]
        %v3072 = vld [vmem:[%s2850 + $0x152] sm:$0xff]
        %v3073 = vld [vmem:[%s2850 + $0x15a] sm:$0xff]
        %v3074 = vld [vmem:[%s2850 + $0x16a] sm:$0xff]
        %v3075 = vld [vmem:[%s2850 + $0x172] sm:$0xff]
        %s3076 = scalar_lea.vmem [#allocation4], 48
        %v3077 = vld [vmem:[%s3076] sm:$0xff]
        %v3078 = vld [vmem:[%s3076 + $0x8] sm:$0xff]
        %v3079 = vld [vmem:[%s3076 + $0x18] sm:$0xff]
        %v3080 = vld [vmem:[%s3076 + $0x20] sm:$0xff]
        %v3081 = vld [vmem:[%s3076 + $0x30] sm:$0xff]
        %v3082 = vld [vmem:[%s3076 + $0x38] sm:$0xff]
        %v3083 = vld [vmem:[%s3076 + $0x48] sm:$0xff]
        %v3084 = vld [vmem:[%s3076 + $0x50] sm:$0xff]
        %v3085 = vld [vmem:[%s3076 + $0x60] sm:$0xff]
        %v3086 = vld [vmem:[%s3076 + $0x68] sm:$0xff]
        %v3087 = vld [vmem:[%s3076 + $0x78] sm:$0xff]
        %v3088 = vld [vmem:[%s3076 + $0x80] sm:$0xff]
        %v3089 = vld [vmem:[%s3076 + $0x90] sm:$0xff]
        %v3090 = vld [vmem:[%s3076 + $0x98] sm:$0xff]
        %v3091 = vld [vmem:[%s3076 + $0xa8] sm:$0xff]
        %v3092 = vld [vmem:[%s3076 + $0xb0] sm:$0xff]
        %v3093 = vld [vmem:[%s3076 + $0xc0] sm:$0xff]
        %v3094 = vld [vmem:[%s3076 + $0xc8] sm:$0xff]
        %v3095 = vld [vmem:[%s3076 + $0xd8] sm:$0xff]
        %v3096 = vld [vmem:[%s3076 + $0xe0] sm:$0xff]
        %v3097 = vld [vmem:[%s3076 + $0xf0] sm:$0xff]
        %v3098 = vld [vmem:[%s3076 + $0xf8] sm:$0xff]
        %v3099 = vld [vmem:[%s3076 + $0x108] sm:$0xff]
        %v3100 = vld [vmem:[%s3076 + $0x110] sm:$0xff]
        %v3101 = vld [vmem:[%s3076 + $0x120] sm:$0xff]
        %v3102 = vld [vmem:[%s3076 + $0x128] sm:$0xff]
        %v3103 = vld [vmem:[%s3076 + $0x138] sm:$0xff]
        %v3104 = vld [vmem:[%s3076 + $0x140] sm:$0xff]
        %v3105 = vld [vmem:[%s3076 + $0x150] sm:$0xff]
        %v3106 = vld [vmem:[%s3076 + $0x158] sm:$0xff]
        %v3107 = vld [vmem:[%s3076 + $0x168] sm:$0xff]
        %v3108 = vld [vmem:[%s3076 + $0x170] sm:$0xff]
        %v3109 = vld [vmem:[%s3076 + $0x1] sm:$0xff]
        %v3110 = vld [vmem:[%s3076 + $0x9] sm:$0xff]
        %v3111 = vld [vmem:[%s3076 + $0x19] sm:$0xff]
        %v3112 = vld [vmem:[%s3076 + $0x21] sm:$0xff]
        %v3113 = vld [vmem:[%s3076 + $0x31] sm:$0xff]
        %v3114 = vld [vmem:[%s3076 + $0x39] sm:$0xff]
        %v3115 = vld [vmem:[%s3076 + $0x49] sm:$0xff]
        %v3116 = vld [vmem:[%s3076 + $0x51] sm:$0xff]
        %v3117 = vld [vmem:[%s3076 + $0x61] sm:$0xff]
        %v3118 = vld [vmem:[%s3076 + $0x69] sm:$0xff]
        %v3119 = vld [vmem:[%s3076 + $0x79] sm:$0xff]
        %v3120 = vld [vmem:[%s3076 + $0x81] sm:$0xff]
        %v3121 = vld [vmem:[%s3076 + $0x91] sm:$0xff]
        %v3122 = vld [vmem:[%s3076 + $0x99] sm:$0xff]
        %v3123 = vld [vmem:[%s3076 + $0xa9] sm:$0xff]
        %v3124 = vld [vmem:[%s3076 + $0xb1] sm:$0xff]
        %v3125 = vld [vmem:[%s3076 + $0xc1] sm:$0xff]
        %v3126 = vld [vmem:[%s3076 + $0xc9] sm:$0xff]
        %v3127 = vld [vmem:[%s3076 + $0xd9] sm:$0xff]
        %v3128 = vld [vmem:[%s3076 + $0xe1] sm:$0xff]
        %v3129 = vld [vmem:[%s3076 + $0xf1] sm:$0xff]
        %v3130 = vld [vmem:[%s3076 + $0xf9] sm:$0xff]
        %v3131 = vld [vmem:[%s3076 + $0x109] sm:$0xff]
        %v3132 = vld [vmem:[%s3076 + $0x111] sm:$0xff]
        %v3133 = vld [vmem:[%s3076 + $0x121] sm:$0xff]
        %v3134 = vld [vmem:[%s3076 + $0x129] sm:$0xff]
        %v3135 = vld [vmem:[%s3076 + $0x139] sm:$0xff]
        %v3136 = vld [vmem:[%s3076 + $0x141] sm:$0xff]
        %v3137 = vld [vmem:[%s3076 + $0x151] sm:$0xff]
        %v3138 = vld [vmem:[%s3076 + $0x159] sm:$0xff]
        %v3139 = vld [vmem:[%s3076 + $0x169] sm:$0xff]
        %v3140 = vld [vmem:[%s3076 + $0x171] sm:$0xff]
        %v3141 = vld [vmem:[%s3076 + $0x2] sm:$0xff]
        %v3142 = vld [vmem:[%s3076 + $0xa] sm:$0xff]
        %v3143 = vld [vmem:[%s3076 + $0x1a] sm:$0xff]
        %v3144 = vld [vmem:[%s3076 + $0x22] sm:$0xff]
        %v3145 = vld [vmem:[%s3076 + $0x32] sm:$0xff]
        %v3146 = vld [vmem:[%s3076 + $0x3a] sm:$0xff]
        %v3147 = vld [vmem:[%s3076 + $0x4a] sm:$0xff]
        %v3148 = vld [vmem:[%s3076 + $0x52] sm:$0xff]
        %v3149 = vld [vmem:[%s3076 + $0x62] sm:$0xff]
        %v3150 = vld [vmem:[%s3076 + $0x6a] sm:$0xff]
        %v3151 = vld [vmem:[%s3076 + $0x7a] sm:$0xff]
        %v3152 = vld [vmem:[%s3076 + $0x82] sm:$0xff]
        %v3153 = vld [vmem:[%s3076 + $0x92] sm:$0xff]
        %v3154 = vld [vmem:[%s3076 + $0x9a] sm:$0xff]
        %v3155 = vld [vmem:[%s3076 + $0xaa] sm:$0xff]
        %v3156 = vld [vmem:[%s3076 + $0xb2] sm:$0xff]
        %v3157 = vld [vmem:[%s3076 + $0xc2] sm:$0xff]
        %v3158 = vld [vmem:[%s3076 + $0xca] sm:$0xff]
        %v3159 = vld [vmem:[%s3076 + $0xda] sm:$0xff]
        %v3160 = vld [vmem:[%s3076 + $0xe2] sm:$0xff]
        %v3161 = vld [vmem:[%s3076 + $0xf2] sm:$0xff]
        %v3162 = vld [vmem:[%s3076 + $0xfa] sm:$0xff]
        %v3163 = vld [vmem:[%s3076 + $0x10a] sm:$0xff]
        %v3164 = vld [vmem:[%s3076 + $0x112] sm:$0xff]
        %v3165 = vld [vmem:[%s3076 + $0x122] sm:$0xff]
        %v3166 = vld [vmem:[%s3076 + $0x12a] sm:$0xff]
        %v3167 = vld [vmem:[%s3076 + $0x13a] sm:$0xff]
        %v3168 = vld [vmem:[%s3076 + $0x142] sm:$0xff]
        %v3169 = vld [vmem:[%s3076 + $0x152] sm:$0xff]
        %v3170 = vld [vmem:[%s3076 + $0x15a] sm:$0xff]
        %v3171 = vld [vmem:[%s3076 + $0x16a] sm:$0xff]
        %v3172 = vld [vmem:[%s3076 + $0x172] sm:$0xff]
        %3205 = vrot.lane.b32.xlu0 %v2916, 30
        %v3206 = vpop.permute.xlu0 %3205
        %3207 = vrot.lane.b32.xlu0 %v2917, 30
        %v3208 = vpop.permute.xlu0 %3207
        %3209 = vrot.lane.b32.xlu0 %v2918, 30
        %v3210 = vpop.permute.xlu0 %3209
        %3211 = vrot.lane.b32.xlu0 %v2919, 30
        %v3212 = vpop.permute.xlu0 %3211
        %3213 = vrot.lane.b32.xlu0 %v2920, 30
        %v3214 = vpop.permute.xlu0 %3213
        %3215 = vrot.lane.b32.xlu0 %v2921, 30
        %v3216 = vpop.permute.xlu0 %3215
        %3217 = vrot.lane.b32.xlu0 %v2922, 30
        %v3218 = vpop.permute.xlu0 %3217
        %3219 = vrot.lane.b32.xlu0 %v2923, 30
        %v3220 = vpop.permute.xlu0 %3219
        %3221 = vrot.lane.b32.xlu0 %v2924, 30
        %v3222 = vpop.permute.xlu0 %3221
        %3223 = vrot.lane.b32.xlu0 %v2925, 30
        %v3224 = vpop.permute.xlu0 %3223
        %3225 = vrot.lane.b32.xlu0 %v2926, 30
        %v3226 = vpop.permute.xlu0 %3225
        %3227 = vrot.lane.b32.xlu0 %v2927, 30
        %v3228 = vpop.permute.xlu0 %3227
        %3229 = vrot.lane.b32.xlu0 %v2928, 30
        %v3230 = vpop.permute.xlu0 %3229
        %3231 = vrot.lane.b32.xlu0 %v2929, 30
        %v3232 = vpop.permute.xlu0 %3231
        %3233 = vrot.lane.b32.xlu0 %v2930, 30
        %v3234 = vpop.permute.xlu0 %3233
        %3235 = vrot.lane.b32.xlu0 %v2931, 30
        %v3236 = vpop.permute.xlu0 %3235
        %3237 = vrot.lane.b32.xlu0 %v2932, 30
        %v3238 = vpop.permute.xlu0 %3237
        %3239 = vrot.lane.b32.xlu0 %v2933, 30
        %v3240 = vpop.permute.xlu0 %3239
        %3241 = vrot.lane.b32.xlu0 %v2934, 30
        %v3242 = vpop.permute.xlu0 %3241
        %3243 = vrot.lane.b32.xlu0 %v2935, 30
        %v3244 = vpop.permute.xlu0 %3243
        %3245 = vrot.lane.b32.xlu0 %v2936, 30
        %v3246 = vpop.permute.xlu0 %3245
        %3247 = vrot.lane.b32.xlu0 %v2937, 30
        %v3248 = vpop.permute.xlu0 %3247
        %3249 = vrot.lane.b32.xlu0 %v2938, 30
        %v3250 = vpop.permute.xlu0 %3249
        %3251 = vrot.lane.b32.xlu0 %v2939, 30
        %v3252 = vpop.permute.xlu0 %3251
        %3253 = vrot.lane.b32.xlu0 %v2940, 30
        %v3254 = vpop.permute.xlu0 %3253
        %3255 = vrot.lane.b32.xlu0 %v2941, 30
        %v3256 = vpop.permute.xlu0 %3255
        %3257 = vrot.lane.b32.xlu0 %v2942, 30
        %v3258 = vpop.permute.xlu0 %3257
        %3259 = vrot.lane.b32.xlu0 %v2943, 30
        %v3260 = vpop.permute.xlu0 %3259
        %3261 = vrot.lane.b32.xlu0 %v2944, 30
        %v3262 = vpop.permute.xlu0 %3261
        %3263 = vrot.lane.b32.xlu0 %v2945, 30
        %v3264 = vpop.permute.xlu0 %3263
        %3265 = vrot.lane.b32.xlu0 %v2946, 30
        %v3266 = vpop.permute.xlu0 %3265
        %3267 = vrot.lane.b32.xlu0 %v2947, 30
        %v3268 = vpop.permute.xlu0 %3267
        %3333 = vrot.lane.b32.xlu0 %v2948, 60
        %v3334 = vpop.permute.xlu0 %3333
        %3335 = vrot.lane.b32.xlu0 %v2949, 60
        %v3336 = vpop.permute.xlu0 %3335
        %3337 = vrot.lane.b32.xlu0 %v2950, 60
        %v3338 = vpop.permute.xlu0 %3337
        %3339 = vrot.lane.b32.xlu0 %v2951, 60
        %v3340 = vpop.permute.xlu0 %3339
        %3341 = vrot.lane.b32.xlu0 %v2952, 60
        %v3342 = vpop.permute.xlu0 %3341
        %3343 = vrot.lane.b32.xlu0 %v2953, 60
        %v3344 = vpop.permute.xlu0 %3343
        %3345 = vrot.lane.b32.xlu0 %v2954, 60
        %v3346 = vpop.permute.xlu0 %3345
        %3347 = vrot.lane.b32.xlu0 %v2955, 60
        %v3348 = vpop.permute.xlu0 %3347
        %3349 = vrot.lane.b32.xlu0 %v2956, 60
        %v3350 = vpop.permute.xlu0 %3349
        %3351 = vrot.lane.b32.xlu0 %v2957, 60
        %v3352 = vpop.permute.xlu0 %3351
        %3353 = vrot.lane.b32.xlu0 %v2958, 60
        %v3354 = vpop.permute.xlu0 %3353
        %3355 = vrot.lane.b32.xlu0 %v2959, 60
        %v3356 = vpop.permute.xlu0 %3355
        %3357 = vrot.lane.b32.xlu0 %v2960, 60
        %v3358 = vpop.permute.xlu0 %3357
        %3359 = vrot.lane.b32.xlu0 %v2961, 60
        %v3360 = vpop.permute.xlu0 %3359
        %3361 = vrot.lane.b32.xlu0 %v2962, 60
        %v3362 = vpop.permute.xlu0 %3361
        %3363 = vrot.lane.b32.xlu0 %v2963, 60
        %v3364 = vpop.permute.xlu0 %3363
        %3365 = vrot.lane.b32.xlu0 %v2964, 60
        %v3366 = vpop.permute.xlu0 %3365
        %3367 = vrot.lane.b32.xlu0 %v2965, 60
        %v3368 = vpop.permute.xlu0 %3367
        %3369 = vrot.lane.b32.xlu0 %v2966, 60
        %v3370 = vpop.permute.xlu0 %3369
        %3371 = vrot.lane.b32.xlu0 %v2967, 60
        %v3372 = vpop.permute.xlu0 %3371
        %3373 = vrot.lane.b32.xlu0 %v2968, 60
        %v3374 = vpop.permute.xlu0 %3373
        %3375 = vrot.lane.b32.xlu0 %v2969, 60
        %v3376 = vpop.permute.xlu0 %3375
        %3377 = vrot.lane.b32.xlu0 %v2970, 60
        %v3378 = vpop.permute.xlu0 %3377
        %3379 = vrot.lane.b32.xlu0 %v2971, 60
        %v3380 = vpop.permute.xlu0 %3379
        %3381 = vrot.lane.b32.xlu0 %v2972, 60
        %v3382 = vpop.permute.xlu0 %3381
        %3383 = vrot.lane.b32.xlu0 %v2973, 60
        %v3384 = vpop.permute.xlu0 %3383
        %3385 = vrot.lane.b32.xlu0 %v2974, 60
        %v3386 = vpop.permute.xlu0 %3385
        %3387 = vrot.lane.b32.xlu0 %v2975, 60
        %v3388 = vpop.permute.xlu0 %3387
        %3389 = vrot.lane.b32.xlu0 %v2976, 60
        %v3390 = vpop.permute.xlu0 %3389
        %3391 = vrot.lane.b32.xlu0 %v2977, 60
        %v3392 = vpop.permute.xlu0 %3391
        %3393 = vrot.lane.b32.xlu0 %v2978, 60
        %v3394 = vpop.permute.xlu0 %3393
        %3395 = vrot.lane.b32.xlu0 %v2979, 60
        %v3396 = vpop.permute.xlu0 %3395
        %3461 = vrot.lane.b32.xlu0 %v2980, 90
        %v3462 = vpop.permute.xlu0 %3461
        %3463 = vrot.lane.b32.xlu0 %v2981, 90
        %v3464 = vpop.permute.xlu0 %3463
        %3465 = vrot.lane.b32.xlu0 %v2982, 90
        %v3466 = vpop.permute.xlu0 %3465
        %3467 = vrot.lane.b32.xlu0 %v2983, 90
        %v3468 = vpop.permute.xlu0 %3467
        %3469 = vrot.lane.b32.xlu0 %v2984, 90
        %v3470 = vpop.permute.xlu0 %3469
        %3471 = vrot.lane.b32.xlu0 %v2985, 90
        %v3472 = vpop.permute.xlu0 %3471
        %3473 = vrot.lane.b32.xlu0 %v2986, 90
        %v3474 = vpop.permute.xlu0 %3473
        %3475 = vrot.lane.b32.xlu0 %v2987, 90
        %v3476 = vpop.permute.xlu0 %3475
        %3477 = vrot.lane.b32.xlu0 %v2988, 90
        %v3478 = vpop.permute.xlu0 %3477
        %3479 = vrot.lane.b32.xlu0 %v2989, 90
        %v3480 = vpop.permute.xlu0 %3479
        %3481 = vrot.lane.b32.xlu0 %v2990, 90
        %v3482 = vpop.permute.xlu0 %3481
        %3483 = vrot.lane.b32.xlu0 %v2991, 90
        %v3484 = vpop.permute.xlu0 %3483
        %3485 = vrot.lane.b32.xlu0 %v2992, 90
        %v3486 = vpop.permute.xlu0 %3485
        %3487 = vrot.lane.b32.xlu0 %v2993, 90
        %v3488 = vpop.permute.xlu0 %3487
        %3489 = vrot.lane.b32.xlu0 %v2994, 90
        %v3490 = vpop.permute.xlu0 %3489
        %3491 = vrot.lane.b32.xlu0 %v2995, 90
        %v3492 = vpop.permute.xlu0 %3491
        %3493 = vrot.lane.b32.xlu0 %v2996, 90
        %v3494 = vpop.permute.xlu0 %3493
        %3495 = vrot.lane.b32.xlu0 %v2997, 90
        %v3496 = vpop.permute.xlu0 %3495
        %3497 = vrot.lane.b32.xlu0 %v2998, 90
        %v3498 = vpop.permute.xlu0 %3497
        %3499 = vrot.lane.b32.xlu0 %v2999, 90
        %v3500 = vpop.permute.xlu0 %3499
        %3501 = vrot.lane.b32.xlu0 %v3000, 90
        %v3502 = vpop.permute.xlu0 %3501
        %3503 = vrot.lane.b32.xlu0 %v3001, 90
        %v3504 = vpop.permute.xlu0 %3503
        %3505 = vrot.lane.b32.xlu0 %v3002, 90
        %v3506 = vpop.permute.xlu0 %3505
        %3507 = vrot.lane.b32.xlu0 %v3003, 90
        %v3508 = vpop.permute.xlu0 %3507
        %3509 = vrot.lane.b32.xlu0 %v3004, 90
        %v3510 = vpop.permute.xlu0 %3509
        %3511 = vrot.lane.b32.xlu0 %v3005, 90
        %v3512 = vpop.permute.xlu0 %3511
        %3513 = vrot.lane.b32.xlu0 %v3006, 90
        %v3514 = vpop.permute.xlu0 %3513
        %3515 = vrot.lane.b32.xlu0 %v3007, 90
        %v3516 = vpop.permute.xlu0 %3515
        %3517 = vrot.lane.b32.xlu0 %v3008, 90
        %v3518 = vpop.permute.xlu0 %3517
        %3519 = vrot.lane.b32.xlu0 %v3009, 90
        %v3520 = vpop.permute.xlu0 %3519
        %3521 = vrot.lane.b32.xlu0 %v3010, 90
        %v3522 = vpop.permute.xlu0 %3521
        %3523 = vrot.lane.b32.xlu0 %v3011, 90
        %v3524 = vpop.permute.xlu0 %3523
        %3589 = vrot.lane.b32.xlu0 %v3012, 120
        %v3590 = vpop.permute.xlu0 %3589
        %3591 = vrot.lane.b32.xlu0 %v3013, 120
        %v3592 = vpop.permute.xlu0 %3591
        %3593 = vrot.lane.b32.xlu0 %v3014, 120
        %v3594 = vpop.permute.xlu0 %3593
        %3595 = vrot.lane.b32.xlu0 %v3015, 120
        %v3596 = vpop.permute.xlu0 %3595
        %3597 = vrot.lane.b32.xlu0 %v3016, 120
        %v3598 = vpop.permute.xlu0 %3597
        %3599 = vrot.lane.b32.xlu0 %v3017, 120
        %v3600 = vpop.permute.xlu0 %3599
        %3601 = vrot.lane.b32.xlu0 %v3018, 120
        %v3602 = vpop.permute.xlu0 %3601
        %3603 = vrot.lane.b32.xlu0 %v3019, 120
        %v3604 = vpop.permute.xlu0 %3603
        %3605 = vrot.lane.b32.xlu0 %v3020, 120
        %v3606 = vpop.permute.xlu0 %3605
        %3607 = vrot.lane.b32.xlu0 %v3021, 120
        %v3608 = vpop.permute.xlu0 %3607
        %3609 = vrot.lane.b32.xlu0 %v3022, 120
        %v3610 = vpop.permute.xlu0 %3609
        %3611 = vrot.lane.b32.xlu0 %v3023, 120
        %v3612 = vpop.permute.xlu0 %3611
        %3613 = vrot.lane.b32.xlu0 %v3024, 120
        %v3614 = vpop.permute.xlu0 %3613
        %3615 = vrot.lane.b32.xlu0 %v3025, 120
        %v3616 = vpop.permute.xlu0 %3615
        %3617 = vrot.lane.b32.xlu0 %v3026, 120
        %v3618 = vpop.permute.xlu0 %3617
        %3619 = vrot.lane.b32.xlu0 %v3027, 120
        %v3620 = vpop.permute.xlu0 %3619
        %3621 = vrot.lane.b32.xlu0 %v3028, 120
        %v3622 = vpop.permute.xlu0 %3621
        %3623 = vrot.lane.b32.xlu0 %v3029, 120
        %v3624 = vpop.permute.xlu0 %3623
        %3625 = vrot.lane.b32.xlu0 %v3030, 120
        %v3626 = vpop.permute.xlu0 %3625
        %3627 = vrot.lane.b32.xlu0 %v3031, 120
        %v3628 = vpop.permute.xlu0 %3627
        %3629 = vrot.lane.b32.xlu0 %v3032, 120
        %v3630 = vpop.permute.xlu0 %3629
        %3631 = vrot.lane.b32.xlu0 %v3033, 120
        %v3632 = vpop.permute.xlu0 %3631
        %3633 = vrot.lane.b32.xlu0 %v3034, 120
        %v3634 = vpop.permute.xlu0 %3633
        %3635 = vrot.lane.b32.xlu0 %v3035, 120
        %v3636 = vpop.permute.xlu0 %3635
        %3637 = vrot.lane.b32.xlu0 %v3036, 120
        %v3638 = vpop.permute.xlu0 %3637
        %3639 = vrot.lane.b32.xlu0 %v3037, 120
        %v3640 = vpop.permute.xlu0 %3639
        %3641 = vrot.lane.b32.xlu0 %v3038, 120
        %v3642 = vpop.permute.xlu0 %3641
        %3643 = vrot.lane.b32.xlu0 %v3039, 120
        %v3644 = vpop.permute.xlu0 %3643
        %3645 = vrot.lane.b32.xlu0 %v3040, 120
        %v3646 = vpop.permute.xlu0 %3645
        %3647 = vrot.lane.b32.xlu0 %v3041, 120
        %v3648 = vpop.permute.xlu0 %3647
        %3649 = vrot.lane.b32.xlu0 %v3042, 120
        %v3650 = vpop.permute.xlu0 %3649
        %3651 = vrot.lane.b32.xlu0 %v3043, 120
        %v3652 = vpop.permute.xlu0 %3651
        %3717 = vrot.lane.b32.xlu0 %v3044, 22
        %v3718 = vpop.permute.xlu0 %3717
        %3719 = vrot.lane.b32.xlu0 %v3045, 22
        %v3720 = vpop.permute.xlu0 %3719
        %3721 = vrot.lane.b32.xlu0 %v3046, 22
        %v3722 = vpop.permute.xlu0 %3721
        %3723 = vrot.lane.b32.xlu0 %v3047, 22
        %v3724 = vpop.permute.xlu0 %3723
        %3725 = vrot.lane.b32.xlu0 %v3048, 22
        %v3726 = vpop.permute.xlu0 %3725
        %3727 = vrot.lane.b32.xlu0 %v3049, 22
        %v3728 = vpop.permute.xlu0 %3727
        %3729 = vrot.lane.b32.xlu0 %v3050, 22
        %v3730 = vpop.permute.xlu0 %3729
        %3731 = vrot.lane.b32.xlu0 %v3051, 22
        %v3732 = vpop.permute.xlu0 %3731
        %3733 = vrot.lane.b32.xlu0 %v3052, 22
        %v3734 = vpop.permute.xlu0 %3733
        %3735 = vrot.lane.b32.xlu0 %v3053, 22
        %v3736 = vpop.permute.xlu0 %3735
        %3737 = vrot.lane.b32.xlu0 %v3054, 22
        %v3738 = vpop.permute.xlu0 %3737
        %3739 = vrot.lane.b32.xlu0 %v3055, 22
        %v3740 = vpop.permute.xlu0 %3739
        %3741 = vrot.lane.b32.xlu0 %v3056, 22
        %v3742 = vpop.permute.xlu0 %3741
        %3743 = vrot.lane.b32.xlu0 %v3057, 22
        %v3744 = vpop.permute.xlu0 %3743
        %3745 = vrot.lane.b32.xlu0 %v3058, 22
        %v3746 = vpop.permute.xlu0 %3745
        %3747 = vrot.lane.b32.xlu0 %v3059, 22
        %v3748 = vpop.permute.xlu0 %3747
        %3749 = vrot.lane.b32.xlu0 %v3060, 22
        %v3750 = vpop.permute.xlu0 %3749
        %3751 = vrot.lane.b32.xlu0 %v3061, 22
        %v3752 = vpop.permute.xlu0 %3751
        %3753 = vrot.lane.b32.xlu0 %v3062, 22
        %v3754 = vpop.permute.xlu0 %3753
        %3755 = vrot.lane.b32.xlu0 %v3063, 22
        %v3756 = vpop.permute.xlu0 %3755
        %3757 = vrot.lane.b32.xlu0 %v3064, 22
        %v3758 = vpop.permute.xlu0 %3757
        %3759 = vrot.lane.b32.xlu0 %v3065, 22
        %v3760 = vpop.permute.xlu0 %3759
        %3761 = vrot.lane.b32.xlu0 %v3066, 22
        %v3762 = vpop.permute.xlu0 %3761
        %3763 = vrot.lane.b32.xlu0 %v3067, 22
        %v3764 = vpop.permute.xlu0 %3763
        %3765 = vrot.lane.b32.xlu0 %v3068, 22
        %v3766 = vpop.permute.xlu0 %3765
        %3767 = vrot.lane.b32.xlu0 %v3069, 22
        %v3768 = vpop.permute.xlu0 %3767
        %3769 = vrot.lane.b32.xlu0 %v3070, 22
        %v3770 = vpop.permute.xlu0 %3769
        %3771 = vrot.lane.b32.xlu0 %v3071, 22
        %v3772 = vpop.permute.xlu0 %3771
        %3773 = vrot.lane.b32.xlu0 %v3072, 22
        %v3774 = vpop.permute.xlu0 %3773
        %3775 = vrot.lane.b32.xlu0 %v3073, 22
        %v3776 = vpop.permute.xlu0 %3775
        %3777 = vrot.lane.b32.xlu0 %v3074, 22
        %v3778 = vpop.permute.xlu0 %3777
        %3779 = vrot.lane.b32.xlu0 %v3075, 22
        %v3780 = vpop.permute.xlu0 %3779
        %3845 = vrot.lane.b32.xlu0 %v3077, 52
        %v3846 = vpop.permute.xlu0 %3845
        %3847 = vrot.lane.b32.xlu0 %v3078, 52
        %v3848 = vpop.permute.xlu0 %3847
        %3849 = vrot.lane.b32.xlu0 %v3079, 52
        %v3850 = vpop.permute.xlu0 %3849
        %3851 = vrot.lane.b32.xlu0 %v3080, 52
        %v3852 = vpop.permute.xlu0 %3851
        %3853 = vrot.lane.b32.xlu0 %v3081, 52
        %v3854 = vpop.permute.xlu0 %3853
        %3855 = vrot.lane.b32.xlu0 %v3082, 52
        %v3856 = vpop.permute.xlu0 %3855
        %3857 = vrot.lane.b32.xlu0 %v3083, 52
        %v3858 = vpop.permute.xlu0 %3857
        %3859 = vrot.lane.b32.xlu0 %v3084, 52
        %v3860 = vpop.permute.xlu0 %3859
        %3861 = vrot.lane.b32.xlu0 %v3085, 52
        %v3862 = vpop.permute.xlu0 %3861
        %3863 = vrot.lane.b32.xlu0 %v3086, 52
        %v3864 = vpop.permute.xlu0 %3863
        %3865 = vrot.lane.b32.xlu0 %v3087, 52
        %v3866 = vpop.permute.xlu0 %3865
        %3867 = vrot.lane.b32.xlu0 %v3088, 52
        %v3868 = vpop.permute.xlu0 %3867
        %3869 = vrot.lane.b32.xlu0 %v3089, 52
        %v3870 = vpop.permute.xlu0 %3869
        %3871 = vrot.lane.b32.xlu0 %v3090, 52
        %v3872 = vpop.permute.xlu0 %3871
        %3873 = vrot.lane.b32.xlu0 %v3091, 52
        %v3874 = vpop.permute.xlu0 %3873
        %3875 = vrot.lane.b32.xlu0 %v3092, 52
        %v3876 = vpop.permute.xlu0 %3875
        %3877 = vrot.lane.b32.xlu0 %v3093, 52
        %v3878 = vpop.permute.xlu0 %3877
        %3879 = vrot.lane.b32.xlu0 %v3094, 52
        %v3880 = vpop.permute.xlu0 %3879
        %3881 = vrot.lane.b32.xlu0 %v3095, 52
        %v3882 = vpop.permute.xlu0 %3881
        %3883 = vrot.lane.b32.xlu0 %v3096, 52
        %v3884 = vpop.permute.xlu0 %3883
        %3885 = vrot.lane.b32.xlu0 %v3097, 52
        %v3886 = vpop.permute.xlu0 %3885
        %3887 = vrot.lane.b32.xlu0 %v3098, 52
        %v3888 = vpop.permute.xlu0 %3887
        %3889 = vrot.lane.b32.xlu0 %v3099, 52
        %v3890 = vpop.permute.xlu0 %3889
        %3891 = vrot.lane.b32.xlu0 %v3100, 52
        %v3892 = vpop.permute.xlu0 %3891
        %3893 = vrot.lane.b32.xlu0 %v3101, 52
        %v3894 = vpop.permute.xlu0 %3893
        %3895 = vrot.lane.b32.xlu0 %v3102, 52
        %v3896 = vpop.permute.xlu0 %3895
        %3897 = vrot.lane.b32.xlu0 %v3103, 52
        %v3898 = vpop.permute.xlu0 %3897
        %3899 = vrot.lane.b32.xlu0 %v3104, 52
        %v3900 = vpop.permute.xlu0 %3899
        %3901 = vrot.lane.b32.xlu0 %v3105, 52
        %v3902 = vpop.permute.xlu0 %3901
        %3903 = vrot.lane.b32.xlu0 %v3106, 52
        %v3904 = vpop.permute.xlu0 %3903
        %3905 = vrot.lane.b32.xlu0 %v3107, 52
        %v3906 = vpop.permute.xlu0 %3905
        %3907 = vrot.lane.b32.xlu0 %v3108, 52
        %v3908 = vpop.permute.xlu0 %3907
        %3973 = vrot.lane.b32.xlu0 %v3109, 82
        %v3974 = vpop.permute.xlu0 %3973
        %3975 = vrot.lane.b32.xlu0 %v3110, 82
        %v3976 = vpop.permute.xlu0 %3975
        %3977 = vrot.lane.b32.xlu0 %v3111, 82
        %v3978 = vpop.permute.xlu0 %3977
        %3979 = vrot.lane.b32.xlu0 %v3112, 82
        %v3980 = vpop.permute.xlu0 %3979
        %3981 = vrot.lane.b32.xlu0 %v3113, 82
        %v3982 = vpop.permute.xlu0 %3981
        %3983 = vrot.lane.b32.xlu0 %v3114, 82
        %v3984 = vpop.permute.xlu0 %3983
        %3985 = vrot.lane.b32.xlu0 %v3115, 82
        %v3986 = vpop.permute.xlu0 %3985
        %3987 = vrot.lane.b32.xlu0 %v3116, 82
        %v3988 = vpop.permute.xlu0 %3987
        %3989 = vrot.lane.b32.xlu0 %v3117, 82
        %v3990 = vpop.permute.xlu0 %3989
        %3991 = vrot.lane.b32.xlu0 %v3118, 82
        %v3992 = vpop.permute.xlu0 %3991
        %3993 = vrot.lane.b32.xlu0 %v3119, 82
        %v3994 = vpop.permute.xlu0 %3993
        %3995 = vrot.lane.b32.xlu0 %v3120, 82
        %v3996 = vpop.permute.xlu0 %3995
        %3997 = vrot.lane.b32.xlu0 %v3121, 82
        %v3998 = vpop.permute.xlu0 %3997
        %3999 = vrot.lane.b32.xlu0 %v3122, 82
        %v4000 = vpop.permute.xlu0 %3999
        %4001 = vrot.lane.b32.xlu0 %v3123, 82
        %v4002 = vpop.permute.xlu0 %4001
        %4003 = vrot.lane.b32.xlu0 %v3124, 82
        %v4004 = vpop.permute.xlu0 %4003
        %4005 = vrot.lane.b32.xlu0 %v3125, 82
        %v4006 = vpop.permute.xlu0 %4005
        %4007 = vrot.lane.b32.xlu0 %v3126, 82
        %v4008 = vpop.permute.xlu0 %4007
        %4009 = vrot.lane.b32.xlu0 %v3127, 82
        %v4010 = vpop.permute.xlu0 %4009
        %4011 = vrot.lane.b32.xlu0 %v3128, 82
        %v4012 = vpop.permute.xlu0 %4011
        %4013 = vrot.lane.b32.xlu0 %v3129, 82
        %v4014 = vpop.permute.xlu0 %4013
        %4015 = vrot.lane.b32.xlu0 %v3130, 82
        %v4016 = vpop.permute.xlu0 %4015
        %4017 = vrot.lane.b32.xlu0 %v3131, 82
        %v4018 = vpop.permute.xlu0 %4017
        %4019 = vrot.lane.b32.xlu0 %v3132, 82
        %v4020 = vpop.permute.xlu0 %4019
        %4021 = vrot.lane.b32.xlu0 %v3133, 82
        %v4022 = vpop.permute.xlu0 %4021
        %4023 = vrot.lane.b32.xlu0 %v3134, 82
        %v4024 = vpop.permute.xlu0 %4023
        %4025 = vrot.lane.b32.xlu0 %v3135, 82
        %v4026 = vpop.permute.xlu0 %4025
        %4027 = vrot.lane.b32.xlu0 %v3136, 82
        %v4028 = vpop.permute.xlu0 %4027
        %4029 = vrot.lane.b32.xlu0 %v3137, 82
        %v4030 = vpop.permute.xlu0 %4029
        %4031 = vrot.lane.b32.xlu0 %v3138, 82
        %v4032 = vpop.permute.xlu0 %4031
        %4033 = vrot.lane.b32.xlu0 %v3139, 82
        %v4034 = vpop.permute.xlu0 %4033
        %4035 = vrot.lane.b32.xlu0 %v3140, 82
        %v4036 = vpop.permute.xlu0 %4035
        %4101 = vrot.lane.b32.xlu0 %v3141, 112
        %v4102 = vpop.permute.xlu0 %4101
        %4103 = vrot.lane.b32.xlu0 %v3142, 112
        %v4104 = vpop.permute.xlu0 %4103
        %4105 = vrot.lane.b32.xlu0 %v3143, 112
        %v4106 = vpop.permute.xlu0 %4105
        %4107 = vrot.lane.b32.xlu0 %v3144, 112
        %v4108 = vpop.permute.xlu0 %4107
        %4109 = vrot.lane.b32.xlu0 %v3145, 112
        %v4110 = vpop.permute.xlu0 %4109
        %4111 = vrot.lane.b32.xlu0 %v3146, 112
        %v4112 = vpop.permute.xlu0 %4111
        %4113 = vrot.lane.b32.xlu0 %v3147, 112
        %v4114 = vpop.permute.xlu0 %4113
        %4115 = vrot.lane.b32.xlu0 %v3148, 112
        %v4116 = vpop.permute.xlu0 %4115
        %4117 = vrot.lane.b32.xlu0 %v3149, 112
        %v4118 = vpop.permute.xlu0 %4117
        %4119 = vrot.lane.b32.xlu0 %v3150, 112
        %v4120 = vpop.permute.xlu0 %4119
        %4121 = vrot.lane.b32.xlu0 %v3151, 112
        %v4122 = vpop.permute.xlu0 %4121
        %4123 = vrot.lane.b32.xlu0 %v3152, 112
        %v4124 = vpop.permute.xlu0 %4123
        %4125 = vrot.lane.b32.xlu0 %v3153, 112
        %v4126 = vpop.permute.xlu0 %4125
        %4127 = vrot.lane.b32.xlu0 %v3154, 112
        %v4128 = vpop.permute.xlu0 %4127
        %4129 = vrot.lane.b32.xlu0 %v3155, 112
        %v4130 = vpop.permute.xlu0 %4129
        %4131 = vrot.lane.b32.xlu0 %v3156, 112
        %v4132 = vpop.permute.xlu0 %4131
        %4133 = vrot.lane.b32.xlu0 %v3157, 112
        %v4134 = vpop.permute.xlu0 %4133
        %4135 = vrot.lane.b32.xlu0 %v3158, 112
        %v4136 = vpop.permute.xlu0 %4135
        %4137 = vrot.lane.b32.xlu0 %v3159, 112
        %v4138 = vpop.permute.xlu0 %4137
        %4139 = vrot.lane.b32.xlu0 %v3160, 112
        %v4140 = vpop.permute.xlu0 %4139
        %4141 = vrot.lane.b32.xlu0 %v3161, 112
        %v4142 = vpop.permute.xlu0 %4141
        %4143 = vrot.lane.b32.xlu0 %v3162, 112
        %v4144 = vpop.permute.xlu0 %4143
        %4145 = vrot.lane.b32.xlu0 %v3163, 112
        %v4146 = vpop.permute.xlu0 %4145
        %4147 = vrot.lane.b32.xlu0 %v3164, 112
        %v4148 = vpop.permute.xlu0 %4147
        %4149 = vrot.lane.b32.xlu0 %v3165, 112
        %v4150 = vpop.permute.xlu0 %4149
        %4151 = vrot.lane.b32.xlu0 %v3166, 112
        %v4152 = vpop.permute.xlu0 %4151
        %4153 = vrot.lane.b32.xlu0 %v3167, 112
        %v4154 = vpop.permute.xlu0 %4153
        %4155 = vrot.lane.b32.xlu0 %v3168, 112
        %v4156 = vpop.permute.xlu0 %4155
        %4157 = vrot.lane.b32.xlu0 %v3169, 112
        %v4158 = vpop.permute.xlu0 %4157
        %4159 = vrot.lane.b32.xlu0 %v3170, 112
        %v4160 = vpop.permute.xlu0 %4159
        %4161 = vrot.lane.b32.xlu0 %v3171, 112
        %v4162 = vpop.permute.xlu0 %4161
        %4163 = vrot.lane.b32.xlu0 %v3172, 112
        %v4164 = vpop.permute.xlu0 %4163
        %v4197 = vsel %vm2851, %v2884, %v3206
        %v4198 = vsel %vm2851, %v2885, %v3208
        %v4199 = vsel %vm2851, %v2886, %v3210
        %v4200 = vsel %vm2851, %v2887, %v3212
        %v4201 = vsel %vm2851, %v2888, %v3214
        %v4202 = vsel %vm2851, %v2889, %v3216
        %v4203 = vsel %vm2851, %v2890, %v3218
        %v4204 = vsel %vm2851, %v2891, %v3220
        %v4205 = vsel %vm2851, %v2892, %v3222
        %v4206 = vsel %vm2851, %v2893, %v3224
        %v4207 = vsel %vm2851, %v2894, %v3226
        %v4208 = vsel %vm2851, %v2895, %v3228
        %v4209 = vsel %vm2851, %v2896, %v3230
        %v4210 = vsel %vm2851, %v2897, %v3232
        %v4211 = vsel %vm2851, %v2898, %v3234
        %v4212 = vsel %vm2851, %v2899, %v3236
        %v4213 = vsel %vm2851, %v2900, %v3238
        %v4214 = vsel %vm2851, %v2901, %v3240
        %v4215 = vsel %vm2851, %v2902, %v3242
        %v4216 = vsel %vm2851, %v2903, %v3244
        %v4217 = vsel %vm2851, %v2904, %v3246
        %v4218 = vsel %vm2851, %v2905, %v3248
        %v4219 = vsel %vm2851, %v2906, %v3250
        %v4220 = vsel %vm2851, %v2907, %v3252
        %v4221 = vsel %vm2851, %v2908, %v3254
        %v4222 = vsel %vm2851, %v2909, %v3256
        %v4223 = vsel %vm2851, %v2910, %v3258
        %v4224 = vsel %vm2851, %v2911, %v3260
        %v4225 = vsel %vm2851, %v2912, %v3262
        %v4226 = vsel %vm2851, %v2913, %v3264
        %v4227 = vsel %vm2851, %v2914, %v3266
        %v4228 = vsel %vm2851, %v2915, %v3268
        %vm4229 = vcmask 490496
        %v4230 = vsel %vm4229, %v4197, %v3334
        %v4231 = vsel %vm4229, %v4198, %v3336
        %v4232 = vsel %vm4229, %v4199, %v3338
        %v4233 = vsel %vm4229, %v4200, %v3340
        %v4234 = vsel %vm4229, %v4201, %v3342
        %v4235 = vsel %vm4229, %v4202, %v3344
        %v4236 = vsel %vm4229, %v4203, %v3346
        %v4237 = vsel %vm4229, %v4204, %v3348
        %v4238 = vsel %vm4229, %v4205, %v3350
        %v4239 = vsel %vm4229, %v4206, %v3352
        %v4240 = vsel %vm4229, %v4207, %v3354
        %v4241 = vsel %vm4229, %v4208, %v3356
        %v4242 = vsel %vm4229, %v4209, %v3358
        %v4243 = vsel %vm4229, %v4210, %v3360
        %v4244 = vsel %vm4229, %v4211, %v3362
        %v4245 = vsel %vm4229, %v4212, %v3364
        %v4246 = vsel %vm4229, %v4213, %v3366
        %v4247 = vsel %vm4229, %v4214, %v3368
        %v4248 = vsel %vm4229, %v4215, %v3370
        %v4249 = vsel %vm4229, %v4216, %v3372
        %v4250 = vsel %vm4229, %v4217, %v3374
        %v4251 = vsel %vm4229, %v4218, %v3376
        %v4252 = vsel %vm4229, %v4219, %v3378
        %v4253 = vsel %vm4229, %v4220, %v3380
        %v4254 = vsel %vm4229, %v4221, %v3382
        %v4255 = vsel %vm4229, %v4222, %v3384
        %v4256 = vsel %vm4229, %v4223, %v3386
        %v4257 = vsel %vm4229, %v4224, %v3388
        %v4258 = vsel %vm4229, %v4225, %v3390
        %v4259 = vsel %vm4229, %v4226, %v3392
        %v4260 = vsel %vm4229, %v4227, %v3394
        %v4261 = vsel %vm4229, %v4228, %v3396
        %vm4262 = vcmask 736256
        %v4263 = vsel %vm4262, %v4230, %v3462
        %v4264 = vsel %vm4262, %v4231, %v3464
        %v4265 = vsel %vm4262, %v4232, %v3466
        %v4266 = vsel %vm4262, %v4233, %v3468
        %v4267 = vsel %vm4262, %v4234, %v3470
        %v4268 = vsel %vm4262, %v4235, %v3472
        %v4269 = vsel %vm4262, %v4236, %v3474
        %v4270 = vsel %vm4262, %v4237, %v3476
        %v4271 = vsel %vm4262, %v4238, %v3478
        %v4272 = vsel %vm4262, %v4239, %v3480
        %v4273 = vsel %vm4262, %v4240, %v3482
        %v4274 = vsel %vm4262, %v4241, %v3484
        %v4275 = vsel %vm4262, %v4242, %v3486
        %v4276 = vsel %vm4262, %v4243, %v3488
        %v4277 = vsel %vm4262, %v4244, %v3490
        %v4278 = vsel %vm4262, %v4245, %v3492
        %v4279 = vsel %vm4262, %v4246, %v3494
        %v4280 = vsel %vm4262, %v4247, %v3496
        %v4281 = vsel %vm4262, %v4248, %v3498
        %v4282 = vsel %vm4262, %v4249, %v3500
        %v4283 = vsel %vm4262, %v4250, %v3502
        %v4284 = vsel %vm4262, %v4251, %v3504
        %v4285 = vsel %vm4262, %v4252, %v3506
        %v4286 = vsel %vm4262, %v4253, %v3508
        %v4287 = vsel %vm4262, %v4254, %v3510
        %v4288 = vsel %vm4262, %v4255, %v3512
        %v4289 = vsel %vm4262, %v4256, %v3514
        %v4290 = vsel %vm4262, %v4257, %v3516
        %v4291 = vsel %vm4262, %v4258, %v3518
        %v4292 = vsel %vm4262, %v4259, %v3520
        %v4293 = vsel %vm4262, %v4260, %v3522
        %v4294 = vsel %vm4262, %v4261, %v3524
        %vm4295 = vcmask 982016
        %v4296 = vsel %vm4295, %v4263, %v3590
        %v4297 = vsel %vm4295, %v4264, %v3592
        %v4298 = vsel %vm4295, %v4265, %v3594
        %v4299 = vsel %vm4295, %v4266, %v3596
        %v4300 = vsel %vm4295, %v4267, %v3598
        %v4301 = vsel %vm4295, %v4268, %v3600
        %v4302 = vsel %vm4295, %v4269, %v3602
        %v4303 = vsel %vm4295, %v4270, %v3604
        %v4304 = vsel %vm4295, %v4271, %v3606
        %v4305 = vsel %vm4295, %v4272, %v3608
        %v4306 = vsel %vm4295, %v4273, %v3610
        %v4307 = vsel %vm4295, %v4274, %v3612
        %v4308 = vsel %vm4295, %v4275, %v3614
        %v4309 = vsel %vm4295, %v4276, %v3616
        %v4310 = vsel %vm4295, %v4277, %v3618
        %v4311 = vsel %vm4295, %v4278, %v3620
        %v4312 = vsel %vm4295, %v4279, %v3622
        %v4313 = vsel %vm4295, %v4280, %v3624
        %v4314 = vsel %vm4295, %v4281, %v3626
        %v4315 = vsel %vm4295, %v4282, %v3628
        %v4316 = vsel %vm4295, %v4283, %v3630
        %v4317 = vsel %vm4295, %v4284, %v3632
        %v4318 = vsel %vm4295, %v4285, %v3634
        %v4319 = vsel %vm4295, %v4286, %v3636
        %v4320 = vsel %vm4295, %v4287, %v3638
        %v4321 = vsel %vm4295, %v4288, %v3640
        %v4322 = vsel %vm4295, %v4289, %v3642
        %v4323 = vsel %vm4295, %v4290, %v3644
        %v4324 = vsel %vm4295, %v4291, %v3646
        %v4325 = vsel %vm4295, %v4292, %v3648
        %v4326 = vsel %vm4295, %v4293, %v3650
        %v4327 = vsel %vm4295, %v4294, %v3652
        %vm4328 = vcmask 179200
        %v4329 = vsel %vm4328, %v3590, %v3718
        %v4330 = vsel %vm4328, %v3592, %v3720
        %v4331 = vsel %vm4328, %v3594, %v3722
        %v4332 = vsel %vm4328, %v3596, %v3724
        %v4333 = vsel %vm4328, %v3598, %v3726
        %v4334 = vsel %vm4328, %v3600, %v3728
        %v4335 = vsel %vm4328, %v3602, %v3730
        %v4336 = vsel %vm4328, %v3604, %v3732
        %v4337 = vsel %vm4328, %v3606, %v3734
        %v4338 = vsel %vm4328, %v3608, %v3736
        %v4339 = vsel %vm4328, %v3610, %v3738
        %v4340 = vsel %vm4328, %v3612, %v3740
        %v4341 = vsel %vm4328, %v3614, %v3742
        %v4342 = vsel %vm4328, %v3616, %v3744
        %v4343 = vsel %vm4328, %v3618, %v3746
        %v4344 = vsel %vm4328, %v3620, %v3748
        %v4345 = vsel %vm4328, %v3622, %v3750
        %v4346 = vsel %vm4328, %v3624, %v3752
        %v4347 = vsel %vm4328, %v3626, %v3754
        %v4348 = vsel %vm4328, %v3628, %v3756
        %v4349 = vsel %vm4328, %v3630, %v3758
        %v4350 = vsel %vm4328, %v3632, %v3760
        %v4351 = vsel %vm4328, %v3634, %v3762
        %v4352 = vsel %vm4328, %v3636, %v3764
        %v4353 = vsel %vm4328, %v3638, %v3766
        %v4354 = vsel %vm4328, %v3640, %v3768
        %v4355 = vsel %vm4328, %v3642, %v3770
        %v4356 = vsel %vm4328, %v3644, %v3772
        %v4357 = vsel %vm4328, %v3646, %v3774
        %v4358 = vsel %vm4328, %v3648, %v3776
        %v4359 = vsel %vm4328, %v3650, %v3778
        %v4360 = vsel %vm4328, %v3652, %v3780
        %vm4361 = vcmask 424960
        %v4362 = vsel %vm4361, %v4329, %v3846
        %v4363 = vsel %vm4361, %v4330, %v3848
        %v4364 = vsel %vm4361, %v4331, %v3850
        %v4365 = vsel %vm4361, %v4332, %v3852
        %v4366 = vsel %vm4361, %v4333, %v3854
        %v4367 = vsel %vm4361, %v4334, %v3856
        %v4368 = vsel %vm4361, %v4335, %v3858
        %v4369 = vsel %vm4361, %v4336, %v3860
        %v4370 = vsel %vm4361, %v4337, %v3862
        %v4371 = vsel %vm4361, %v4338, %v3864
        %v4372 = vsel %vm4361, %v4339, %v3866
        %v4373 = vsel %vm4361, %v4340, %v3868
        %v4374 = vsel %vm4361, %v4341, %v3870
        %v4375 = vsel %vm4361, %v4342, %v3872
        %v4376 = vsel %vm4361, %v4343, %v3874
        %v4377 = vsel %vm4361, %v4344, %v3876
        %v4378 = vsel %vm4361, %v4345, %v3878
        %v4379 = vsel %vm4361, %v4346, %v3880
        %v4380 = vsel %vm4361, %v4347, %v3882
        %v4381 = vsel %vm4361, %v4348, %v3884
        %v4382 = vsel %vm4361, %v4349, %v3886
        %v4383 = vsel %vm4361, %v4350, %v3888
        %v4384 = vsel %vm4361, %v4351, %v3890
        %v4385 = vsel %vm4361, %v4352, %v3892
        %v4386 = vsel %vm4361, %v4353, %v3894
        %v4387 = vsel %vm4361, %v4354, %v3896
        %v4388 = vsel %vm4361, %v4355, %v3898
        %v4389 = vsel %vm4361, %v4356, %v3900
        %v4390 = vsel %vm4361, %v4357, %v3902
        %v4391 = vsel %vm4361, %v4358, %v3904
        %v4392 = vsel %vm4361, %v4359, %v3906
        %v4393 = vsel %vm4361, %v4360, %v3908
        %vm4394 = vcmask 670720
        %v4395 = vsel %vm4394, %v4362, %v3974
        %v4396 = vsel %vm4394, %v4363, %v3976
        %v4397 = vsel %vm4394, %v4364, %v3978
        %v4398 = vsel %vm4394, %v4365, %v3980
        %v4399 = vsel %vm4394, %v4366, %v3982
        %v4400 = vsel %vm4394, %v4367, %v3984
        %v4401 = vsel %vm4394, %v4368, %v3986
        %v4402 = vsel %vm4394, %v4369, %v3988
        %v4403 = vsel %vm4394, %v4370, %v3990
        %v4404 = vsel %vm4394, %v4371, %v3992
        %v4405 = vsel %vm4394, %v4372, %v3994
        %v4406 = vsel %vm4394, %v4373, %v3996
        %v4407 = vsel %vm4394, %v4374, %v3998
        %v4408 = vsel %vm4394, %v4375, %v4000
        %v4409 = vsel %vm4394, %v4376, %v4002
        %v4410 = vsel %vm4394, %v4377, %v4004
        %v4411 = vsel %vm4394, %v4378, %v4006
        %v4412 = vsel %vm4394, %v4379, %v4008
        %v4413 = vsel %vm4394, %v4380, %v4010
        %v4414 = vsel %vm4394, %v4381, %v4012
        %v4415 = vsel %vm4394, %v4382, %v4014
        %v4416 = vsel %vm4394, %v4383, %v4016
        %v4417 = vsel %vm4394, %v4384, %v4018
        %v4418 = vsel %vm4394, %v4385, %v4020
        %v4419 = vsel %vm4394, %v4386, %v4022
        %v4420 = vsel %vm4394, %v4387, %v4024
        %v4421 = vsel %vm4394, %v4388, %v4026
        %v4422 = vsel %vm4394, %v4389, %v4028
        %v4423 = vsel %vm4394, %v4390, %v4030
        %v4424 = vsel %vm4394, %v4391, %v4032
        %v4425 = vsel %vm4394, %v4392, %v4034
        %v4426 = vsel %vm4394, %v4393, %v4036
        %vm4427 = vcmask 916480
        %v4428 = vsel %vm4427, %v4395, %v4102
        %v4429 = vsel %vm4427, %v4396, %v4104
        %v4430 = vsel %vm4427, %v4397, %v4106
        %v4431 = vsel %vm4427, %v4398, %v4108
        %v4432 = vsel %vm4427, %v4399, %v4110
        %v4433 = vsel %vm4427, %v4400, %v4112
        %v4434 = vsel %vm4427, %v4401, %v4114
        %v4435 = vsel %vm4427, %v4402, %v4116
        %v4436 = vsel %vm4427, %v4403, %v4118
        %v4437 = vsel %vm4427, %v4404, %v4120
        %v4438 = vsel %vm4427, %v4405, %v4122
        %v4439 = vsel %vm4427, %v4406, %v4124
        %v4440 = vsel %vm4427, %v4407, %v4126
        %v4441 = vsel %vm4427, %v4408, %v4128
        %v4442 = vsel %vm4427, %v4409, %v4130
        %v4443 = vsel %vm4427, %v4410, %v4132
        %v4444 = vsel %vm4427, %v4411, %v4134
        %v4445 = vsel %vm4427, %v4412, %v4136
        %v4446 = vsel %vm4427, %v4413, %v4138
        %v4447 = vsel %vm4427, %v4414, %v4140
        %v4448 = vsel %vm4427, %v4415, %v4142
        %v4449 = vsel %vm4427, %v4416, %v4144
        %v4450 = vsel %vm4427, %v4417, %v4146
        %v4451 = vsel %vm4427, %v4418, %v4148
        %v4452 = vsel %vm4427, %v4419, %v4150
        %v4453 = vsel %vm4427, %v4420, %v4152
        %v4454 = vsel %vm4427, %v4421, %v4154
        %v4455 = vsel %vm4427, %v4422, %v4156
        %v4456 = vsel %vm4427, %v4423, %v4158
        %v4457 = vsel %vm4427, %v4424, %v4160
        %v4458 = vsel %vm4427, %v4425, %v4162
        %v4459 = vsel %vm4427, %v4426, %v4164
        %v4460 = vpack.c.bf16 %v4297, %v4296
        %v4461 = vpack.c.bf16 %v4429, %v4428
        %v4462 = vpack.c.bf16 %v4104, %v4102
        %v4463 = vpack.c.bf16 %v4299, %v4298
        %v4464 = vpack.c.bf16 %v4431, %v4430
        %v4465 = vpack.c.bf16 %v4108, %v4106
        %v4466 = vpack.c.bf16 %v4301, %v4300
        %v4467 = vpack.c.bf16 %v4433, %v4432
        %v4468 = vpack.c.bf16 %v4112, %v4110
        %v4469 = vpack.c.bf16 %v4303, %v4302
        %v4470 = vpack.c.bf16 %v4435, %v4434
        %v4471 = vpack.c.bf16 %v4116, %v4114
        %v4472 = vpack.c.bf16 %v4305, %v4304
        %v4473 = vpack.c.bf16 %v4437, %v4436
        %v4474 = vpack.c.bf16 %v4120, %v4118
        %v4475 = vpack.c.bf16 %v4307, %v4306
        %v4476 = vpack.c.bf16 %v4439, %v4438
        %v4477 = vpack.c.bf16 %v4124, %v4122
        %v4478 = vpack.c.bf16 %v4309, %v4308
        %v4479 = vpack.c.bf16 %v4441, %v4440
        %v4480 = vpack.c.bf16 %v4128, %v4126
        %v4481 = vpack.c.bf16 %v4311, %v4310
        %v4482 = vpack.c.bf16 %v4443, %v4442
        %v4483 = vpack.c.bf16 %v4132, %v4130
        %v4484 = vpack.c.bf16 %v4313, %v4312
        %v4485 = vpack.c.bf16 %v4445, %v4444
        %v4486 = vpack.c.bf16 %v4136, %v4134
        %v4487 = vpack.c.bf16 %v4315, %v4314
        %v4488 = vpack.c.bf16 %v4447, %v4446
        %v4489 = vpack.c.bf16 %v4140, %v4138
        %v4490 = vpack.c.bf16 %v4317, %v4316
        %v4491 = vpack.c.bf16 %v4449, %v4448
        %v4492 = vpack.c.bf16 %v4144, %v4142
        %v4493 = vpack.c.bf16 %v4319, %v4318
        %v4494 = vpack.c.bf16 %v4451, %v4450
        %v4495 = vpack.c.bf16 %v4148, %v4146
        %v4496 = vpack.c.bf16 %v4321, %v4320
        %v4497 = vpack.c.bf16 %v4453, %v4452
        %v4498 = vpack.c.bf16 %v4152, %v4150
        %v4499 = vpack.c.bf16 %v4323, %v4322
        %v4500 = vpack.c.bf16 %v4455, %v4454
        %v4501 = vpack.c.bf16 %v4156, %v4154
        %v4502 = vpack.c.bf16 %v4325, %v4324
        %v4503 = vpack.c.bf16 %v4457, %v4456
        %v4504 = vpack.c.bf16 %v4160, %v4158
        %v4505 = vpack.c.bf16 %v4327, %v4326
        %v4506 = vpack.c.bf16 %v4459, %v4458
        %v4507 = vpack.c.bf16 %v4164, %v4162
        %v4508 = vld [vmem:[%s5] sm:$0xf]
        %v4509 = vld [vmem:[%s5 + $0x4] sm:$0xf]
        %v4510 = vld [vmem:[%s5 + $0x8] sm:$0xf]
        %v4511 = vld [vmem:[%s5 + $0xc] sm:$0xf]
        %v4512 = vld [vmem:[%s5 + $0x10] sm:$0xf]
        %v4513 = vld [vmem:[%s5 + $0x14] sm:$0xf]
        %v4514 = vld [vmem:[%s5 + $0x18] sm:$0xf]
        %v4515 = vld [vmem:[%s5 + $0x1c] sm:$0xf]
        %v4516 = vld [vmem:[%s5 + $0x20] sm:$0xf]
        %v4517 = vld [vmem:[%s5 + $0x24] sm:$0xf]
        %v4518 = vld [vmem:[%s5 + $0x28] sm:$0xf]
        %v4519 = vld [vmem:[%s5 + $0x2c] sm:$0xf]
        %v4520 = vld [vmem:[%s5 + $0x30] sm:$0xf]
        %v4521 = vld [vmem:[%s5 + $0x34] sm:$0xf]
        %v4522 = vld [vmem:[%s5 + $0x38] sm:$0xf]
        %v4523 = vld [vmem:[%s5 + $0x3c] sm:$0xf]
        %v4524 = vld [vmem:[%s5 + $0x40] sm:$0xf]
        %v4525 = vld [vmem:[%s5 + $0x44] sm:$0xf]
        %v4526 = vld [vmem:[%s5 + $0x48] sm:$0xf]
        %v4527 = vld [vmem:[%s5 + $0x4c] sm:$0xf]
        %v4528 = vld [vmem:[%s5 + $0x50] sm:$0xf]
        %v4529 = vld [vmem:[%s5 + $0x54] sm:$0xf]
        %v4530 = vld [vmem:[%s5 + $0x58] sm:$0xf]
        %v4531 = vld [vmem:[%s5 + $0x5c] sm:$0xf]
        %v4532 = vld [vmem:[%s5 + $0x60] sm:$0xf]
        %v4533 = vld [vmem:[%s5 + $0x64] sm:$0xf]
        %v4534 = vld [vmem:[%s5 + $0x68] sm:$0xf]
        %v4535 = vld [vmem:[%s5 + $0x6c] sm:$0xf]
        %v4536 = vld [vmem:[%s5 + $0x70] sm:$0xf]
        %v4537 = vld [vmem:[%s5 + $0x74] sm:$0xf]
        %v4538 = vld [vmem:[%s5 + $0x78] sm:$0xf]
        %v4539 = vld [vmem:[%s5 + $0x7c] sm:$0xf]
        %v4540 = vld [vmem:[%s5 + $0x80] sm:$0xf]
        %v4541 = vld [vmem:[%s5 + $0x84] sm:$0x7]
        %v4542 = vld [vmem:[%s6] sm:$0x1]
        %v4544 = vlaneseq
        %v4545 = vshrl.u32 %v4544, 7
        %v4546 = vsub.s32 0, %v4545
        %v4547 = vrot.slane %v4542, %v4546
        %v4583 = vunpack.c.l.b16 %v4508
        %v4584 = vunpack.c.l.b16 %v4509
        %v4585 = vunpack.c.l.b16 %v4510
        %v4586 = vunpack.c.l.b16 %v4511
        %v4587 = vunpack.c.l.b16 %v4512
        %v4588 = vunpack.c.l.b16 %v4513
        %v4589 = vunpack.c.l.b16 %v4514
        %v4590 = vunpack.c.l.b16 %v4515
        %v4591 = vunpack.c.l.b16 %v4516
        %v4592 = vunpack.c.l.b16 %v4517
        %v4593 = vunpack.c.l.b16 %v4518
        %v4594 = vunpack.c.l.b16 %v4519
        %v4595 = vunpack.c.l.b16 %v4520
        %v4596 = vunpack.c.l.b16 %v4521
        %v4597 = vunpack.c.l.b16 %v4522
        %v4598 = vunpack.c.l.b16 %v4523
        %v4599 = vunpack.c.l.b16 %v4524
        %v4600 = vunpack.c.l.b16 %v4525
        %v4601 = vunpack.c.l.b16 %v4526
        %v4602 = vunpack.c.l.b16 %v4527
        %v4603 = vunpack.c.l.b16 %v4528
        %v4604 = vunpack.c.l.b16 %v4529
        %v4605 = vunpack.c.l.b16 %v4530
        %v4606 = vunpack.c.l.b16 %v4531
        %v4607 = vunpack.c.l.b16 %v4532
        %v4608 = vunpack.c.l.b16 %v4533
        %v4609 = vunpack.c.l.b16 %v4534
        %v4610 = vunpack.c.l.b16 %v4535
        %v4611 = vunpack.c.l.b16 %v4536
        %v4612 = vunpack.c.l.b16 %v4537
        %v4613 = vunpack.c.l.b16 %v4538
        %v4614 = vunpack.c.l.b16 %v4539
        %v4615 = vunpack.c.l.b16 %v4540
        %v4616 = vunpack.c.l.b16 %v4541
        %v4617 = vpack.c.b16 %v4584, %v4583
        %v4618 = vpack.c.b16 %v4586, %v4585
        %v4619 = vpack.c.b16 %v4588, %v4587
        %v4620 = vpack.c.b16 %v4590, %v4589
        %v4621 = vpack.c.b16 %v4592, %v4591
        %v4622 = vpack.c.b16 %v4594, %v4593
        %v4623 = vpack.c.b16 %v4596, %v4595
        %v4624 = vpack.c.b16 %v4598, %v4597
        %v4625 = vpack.c.b16 %v4600, %v4599
        %v4626 = vpack.c.b16 %v4602, %v4601
        %v4627 = vpack.c.b16 %v4604, %v4603
        %v4628 = vpack.c.b16 %v4606, %v4605
        %v4629 = vpack.c.b16 %v4608, %v4607
        %v4630 = vpack.c.b16 %v4610, %v4609
        %v4631 = vpack.c.b16 %v4612, %v4611
        %v4632 = vpack.c.b16 %v4614, %v4613
        %v4633 = vpack.c.b16 %v4616, %v4615
        %vm4650 = vcmask 113664
        %v4652 = vsel %vm4650, %v4462, 0
        %v4655 = vsel %vm4650, %v4465, 0
        %v4658 = vsel %vm4650, %v4468, 0
        %v4661 = vsel %vm4650, %v4471, 0
        %v4664 = vsel %vm4650, %v4474, 0
        %v4667 = vsel %vm4650, %v4477, 0
        %v4670 = vsel %vm4650, %v4480, 0
        %v4673 = vsel %vm4650, %v4483, 0
        %v4676 = vsel %vm4650, %v4486, 0
        %v4679 = vsel %vm4650, %v4489, 0
        %v4682 = vsel %vm4650, %v4492, 0
        %v4685 = vsel %vm4650, %v4495, 0
        %v4688 = vsel %vm4650, %v4498, 0
        %v4691 = vsel %vm4650, %v4501, 0
        %v4694 = vsel %vm4650, %v4504, 0
        %v4697 = vsel %vm4650, %v4507, 0
        %v4700 = vsel %vm2683, %v4633, 0
        %4702 = vmatprep.subr.bf16.mxu0 0
        %4703 = vmatpush1.bf16.msra.mxu0 %v4624
        %4704 = vmatprep.subr.bf16.mxu0 0
        %4705 = vmatpush1.bf16.msra.mxu0 %v4623
        %4706 = vmatprep.subr.bf16.mxu0 0
        %4707 = vmatpush1.bf16.msra.mxu0 %v4622
        %4708 = vmatprep.subr.bf16.mxu0 0
        %4709 = vmatpush1.bf16.msra.mxu0 %v4621
        %4710 = vmatprep.subr.bf16.mxu0 0
        %4711 = vmatpush1.bf16.msra.mxu0 %v4620
        %4712 = vmatprep.subr.bf16.mxu0 0
        %4713 = vmatpush1.bf16.msra.mxu0 %v4619
        %4714 = vmatprep.subr.bf16.mxu0 0
        %4715 = vmatpush1.bf16.msra.mxu0 %v4618
        %4716 = vmatprep.subr.bf16.mxu0 0
        %4717 = vmatpush1.bf16.msra.mxu0 %v4617
        %4718 = vmatprep.subr.bf16.mxu0 0
        %4719 = vmatpush2.bf16.msra.mxu0 %v4632
        %4720 = vmatprep.subr.bf16.mxu0 0
        %4721 = vmatpush2.bf16.msra.mxu0 %v4631
        %4722 = vmatprep.subr.bf16.mxu0 0
        %4723 = vmatpush2.bf16.msra.mxu0 %v4630
        %4724 = vmatprep.subr.bf16.mxu0 0
        %4725 = vmatpush2.bf16.msra.mxu0 %v4629
        %4726 = vmatprep.subr.bf16.mxu0 0
        %4727 = vmatpush2.bf16.msra.mxu0 %v4628
        %4728 = vmatprep.subr.bf16.mxu0 0
        %4729 = vmatpush2.bf16.msra.mxu0 %v4627
        %4730 = vmatprep.subr.bf16.mxu0 0
        %4731 = vmatpush2.bf16.msra.mxu0 %v4626
        %4732 = vmatprep.subr.bf16.mxu0 0
        %4733 = vmatpush2.bf16.msra.mxu0 %v4625
        %4734 = vmatprep.mubr.bf16.mxu0 %v4461
        %4735 = vmatmul.mubr.bf16.gmra.mxu0 %v4460
        %v4736 = vpop.f32.mrf.mxu0
        %v4737 = vadd.f32 %v4547, %v4736
        %v4738 = vpop.f32.mrf.mxu0
        %v4739 = vpop.f32.mrf.mxu0
        %v4740 = vadd.f32 %v4547, %v4739
        %v4741 = vpop.f32.mrf.mxu0
        %4742 = vmatprep.mubr.bf16.mxu0 %v4464
        %4743 = vmatmul.mubr.bf16.gmra.mxu0 %v4463
        %v4744 = vpop.f32.mrf.mxu0
        %v4745 = vadd.f32 %v4547, %v4744
        %v4746 = vpop.f32.mrf.mxu0
        %v4747 = vpop.f32.mrf.mxu0
        %v4748 = vadd.f32 %v4547, %v4747
        %v4749 = vpop.f32.mrf.mxu0
        %4750 = vmatprep.mubr.bf16.mxu0 %v4467
        %4751 = vmatmul.mubr.bf16.gmra.mxu0 %v4466
        %v4752 = vpop.f32.mrf.mxu0
        %v4753 = vadd.f32 %v4547, %v4752
        %v4754 = vpop.f32.mrf.mxu0
        %v4755 = vpop.f32.mrf.mxu0
        %v4756 = vadd.f32 %v4547, %v4755
        %v4757 = vpop.f32.mrf.mxu0
        %4758 = vmatprep.mubr.bf16.mxu0 %v4470
        %4759 = vmatmul.mubr.bf16.gmra.mxu0 %v4469
        %v4760 = vpop.f32.mrf.mxu0
        %v4761 = vadd.f32 %v4547, %v4760
        %v4762 = vpop.f32.mrf.mxu0
        %v4763 = vpop.f32.mrf.mxu0
        %v4764 = vadd.f32 %v4547, %v4763
        %v4765 = vpop.f32.mrf.mxu0
        %4766 = vmatprep.mubr.bf16.mxu0 %v4473
        %4767 = vmatmul.mubr.bf16.gmra.mxu0 %v4472
        %v4768 = vpop.f32.mrf.mxu0
        %v4769 = vadd.f32 %v4547, %v4768
        %v4770 = vpop.f32.mrf.mxu0
        %v4771 = vpop.f32.mrf.mxu0
        %v4772 = vadd.f32 %v4547, %v4771
        %v4773 = vpop.f32.mrf.mxu0
        %4774 = vmatprep.mubr.bf16.mxu0 %v4476
        %4775 = vmatmul.mubr.bf16.gmra.mxu0 %v4475
        %v4776 = vpop.f32.mrf.mxu0
        %v4777 = vadd.f32 %v4547, %v4776
        %v4778 = vpop.f32.mrf.mxu0
        %v4779 = vpop.f32.mrf.mxu0
        %v4780 = vadd.f32 %v4547, %v4779
        %v4781 = vpop.f32.mrf.mxu0
        %4782 = vmatprep.mubr.bf16.mxu0 %v4479
        %4783 = vmatmul.mubr.bf16.gmra.mxu0 %v4478
        %v4784 = vpop.f32.mrf.mxu0
        %v4785 = vadd.f32 %v4547, %v4784
        %v4786 = vpop.f32.mrf.mxu0
        %v4787 = vpop.f32.mrf.mxu0
        %v4788 = vadd.f32 %v4547, %v4787
        %v4789 = vpop.f32.mrf.mxu0
        %4790 = vmatprep.mubr.bf16.mxu0 %v4482
        %4791 = vmatmul.mubr.bf16.gmra.mxu0 %v4481
        %v4792 = vpop.f32.mrf.mxu0
        %v4793 = vadd.f32 %v4547, %v4792
        %v4794 = vpop.f32.mrf.mxu0
        %v4795 = vpop.f32.mrf.mxu0
        %v4796 = vadd.f32 %v4547, %v4795
        %v4797 = vpop.f32.mrf.mxu0
        %4798 = vmatprep.mubr.bf16.mxu0 %v4485
        %4799 = vmatmul.mubr.bf16.gmra.mxu0 %v4484
        %v4800 = vpop.f32.mrf.mxu0
        %v4801 = vadd.f32 %v4547, %v4800
        %v4802 = vpop.f32.mrf.mxu0
        %v4803 = vpop.f32.mrf.mxu0
        %v4804 = vadd.f32 %v4547, %v4803
        %v4805 = vpop.f32.mrf.mxu0
        %4806 = vmatprep.mubr.bf16.mxu0 %v4488
        %4807 = vmatmul.mubr.bf16.gmra.mxu0 %v4487
        %v4808 = vpop.f32.mrf.mxu0
        %v4809 = vadd.f32 %v4547, %v4808
        %v4810 = vpop.f32.mrf.mxu0
        %v4811 = vpop.f32.mrf.mxu0
        %v4812 = vadd.f32 %v4547, %v4811
        %v4813 = vpop.f32.mrf.mxu0
        %4814 = vmatprep.mubr.bf16.mxu0 %v4491
        %4815 = vmatmul.mubr.bf16.gmra.mxu0 %v4490
        %v4816 = vpop.f32.mrf.mxu0
        %v4817 = vadd.f32 %v4547, %v4816
        %v4818 = vpop.f32.mrf.mxu0
        %v4819 = vpop.f32.mrf.mxu0
        %v4820 = vadd.f32 %v4547, %v4819
        %v4821 = vpop.f32.mrf.mxu0
        %4822 = vmatprep.mubr.bf16.mxu0 %v4494
        %4823 = vmatmul.mubr.bf16.gmra.mxu0 %v4493
        %v4824 = vpop.f32.mrf.mxu0
        %v4825 = vadd.f32 %v4547, %v4824
        %v4826 = vpop.f32.mrf.mxu0
        %v4827 = vpop.f32.mrf.mxu0
        %v4828 = vadd.f32 %v4547, %v4827
        %v4829 = vpop.f32.mrf.mxu0
        %4830 = vmatprep.mubr.bf16.mxu0 %v4497
        %4831 = vmatmul.mubr.bf16.gmra.mxu0 %v4496
        %v4832 = vpop.f32.mrf.mxu0
        %v4833 = vadd.f32 %v4547, %v4832
        %v4834 = vpop.f32.mrf.mxu0
        %v4835 = vpop.f32.mrf.mxu0
        %v4836 = vadd.f32 %v4547, %v4835
        %v4837 = vpop.f32.mrf.mxu0
        %4838 = vmatprep.mubr.bf16.mxu0 %v4500
        %4839 = vmatmul.mubr.bf16.gmra.mxu0 %v4499
        %v4840 = vpop.f32.mrf.mxu0
        %v4841 = vadd.f32 %v4547, %v4840
        %v4842 = vpop.f32.mrf.mxu0
        %v4843 = vpop.f32.mrf.mxu0
        %v4844 = vadd.f32 %v4547, %v4843
        %v4845 = vpop.f32.mrf.mxu0
        %4846 = vmatprep.mubr.bf16.mxu0 %v4503
        %4847 = vmatmul.mubr.bf16.gmra.mxu0 %v4502
        %v4848 = vpop.f32.mrf.mxu0
        %v4849 = vadd.f32 %v4547, %v4848
        %v4850 = vpop.f32.mrf.mxu0
        %v4851 = vpop.f32.mrf.mxu0
        %v4852 = vadd.f32 %v4547, %v4851
        %v4853 = vpop.f32.mrf.mxu0
        %4854 = vmatprep.mubr.bf16.mxu0 %v4506
        %4855 = vmatmul.mubr.bf16.gmra.mxu0 %v4505
        %v4856 = vpop.f32.mrf.mxu0
        %v4857 = vadd.f32 %v4547, %v4856
        %v4858 = vpop.f32.mrf.mxu0
        %v4859 = vpop.f32.mrf.mxu0
        %v4860 = vadd.f32 %v4547, %v4859
        %v4861 = vpop.f32.mrf.mxu0
        %4862 = vdwg.mxu0
        %4863 = vmatprep.subr.bf16.mxu0 0
        %4864 = vmatpush1.bf16.msra.mxu0 0
        %4865 = vmatprep.subr.bf16.mxu0 0
        %4866 = vmatpush1.bf16.msra.mxu0 0
        %4867 = vmatprep.subr.bf16.mxu0 0
        %4868 = vmatpush1.bf16.msra.mxu0 0
        %4869 = vmatprep.subr.bf16.mxu0 0
        %4870 = vmatpush1.bf16.msra.mxu0 0
        %4871 = vmatprep.subr.bf16.mxu0 0
        %4872 = vmatpush1.bf16.msra.mxu0 0
        %4873 = vmatprep.subr.bf16.mxu0 0
        %4874 = vmatpush1.bf16.msra.mxu0 0
        %4875 = vmatprep.subr.bf16.mxu0 0
        %4876 = vmatpush1.bf16.msra.mxu0 0
        %4877 = vmatprep.subr.bf16.mxu0 0
        %4878 = vmatpush1.bf16.msra.mxu0 %v4700
        %4879 = vmatprep.subr.bf16.mxu0 0
        %4880 = vmatpush2.bf16.msra.mxu0 0
        %4881 = vmatprep.subr.bf16.mxu0 0
        %4882 = vmatpush2.bf16.msra.mxu0 0
        %4883 = vmatprep.subr.bf16.mxu0 0
        %4884 = vmatpush2.bf16.msra.mxu0 0
        %4885 = vmatprep.subr.bf16.mxu0 0
        %4886 = vmatpush2.bf16.msra.mxu0 0
        %4887 = vmatprep.subr.bf16.mxu0 0
        %4888 = vmatpush2.bf16.msra.mxu0 0
        %4889 = vmatprep.subr.bf16.mxu0 0
        %4890 = vmatpush2.bf16.msra.mxu0 0
        %4891 = vmatprep.subr.bf16.mxu0 0
        %4892 = vmatpush2.bf16.msra.mxu0 0
        %4893 = vmatprep.subr.bf16.mxu0 0
        %4894 = vmatpush2.bf16.msra.mxu0 0
        %4895 = vmatprep.mubr.bf16.mxu0 0
        %4896 = vmatmul.mubr.bf16.gmra.mxu0 %v4652
        %v4897 = vpop.f32.mrf.mxu0
        %v4898 = vadd.f32 %v4737, %v4897
        %v4899 = vpop.f32.mrf.mxu0
        %v4900 = vpop.f32.mrf.mxu0
        %v4901 = vadd.f32 %v4740, %v4900
        %v4902 = vpop.f32.mrf.mxu0
        %4903 = vmatprep.mubr.bf16.mxu0 0
        %4904 = vmatmul.mubr.bf16.gmra.mxu0 %v4655
        %v4905 = vpop.f32.mrf.mxu0
        %v4906 = vadd.f32 %v4745, %v4905
        %v4907 = vpop.f32.mrf.mxu0
        %v4908 = vpop.f32.mrf.mxu0
        %v4909 = vadd.f32 %v4748, %v4908
        %v4910 = vpop.f32.mrf.mxu0
        %4911 = vmatprep.mubr.bf16.mxu0 0
        %4912 = vmatmul.mubr.bf16.gmra.mxu0 %v4658
        %v4913 = vpop.f32.mrf.mxu0
        %v4914 = vadd.f32 %v4753, %v4913
        %v4915 = vpop.f32.mrf.mxu0
        %v4916 = vpop.f32.mrf.mxu0
        %v4917 = vadd.f32 %v4756, %v4916
        %v4918 = vpop.f32.mrf.mxu0
        %4919 = vmatprep.mubr.bf16.mxu0 0
        %4920 = vmatmul.mubr.bf16.gmra.mxu0 %v4661
        %v4921 = vpop.f32.mrf.mxu0
        %v4922 = vadd.f32 %v4761, %v4921
        %v4923 = vpop.f32.mrf.mxu0
        %v4924 = vpop.f32.mrf.mxu0
        %v4925 = vadd.f32 %v4764, %v4924
        %v4926 = vpop.f32.mrf.mxu0
        %4927 = vmatprep.mubr.bf16.mxu0 0
        %4928 = vmatmul.mubr.bf16.gmra.mxu0 %v4664
        %v4929 = vpop.f32.mrf.mxu0
        %v4930 = vadd.f32 %v4769, %v4929
        %v4931 = vpop.f32.mrf.mxu0
        %v4932 = vpop.f32.mrf.mxu0
        %v4933 = vadd.f32 %v4772, %v4932
        %v4934 = vpop.f32.mrf.mxu0
        %4935 = vmatprep.mubr.bf16.mxu0 0
        %4936 = vmatmul.mubr.bf16.gmra.mxu0 %v4667
        %v4937 = vpop.f32.mrf.mxu0
        %v4938 = vadd.f32 %v4777, %v4937
        %v4939 = vpop.f32.mrf.mxu0
        %v4940 = vpop.f32.mrf.mxu0
        %v4941 = vadd.f32 %v4780, %v4940
        %v4942 = vpop.f32.mrf.mxu0
        %4943 = vmatprep.mubr.bf16.mxu0 0
        %4944 = vmatmul.mubr.bf16.gmra.mxu0 %v4670
        %v4945 = vpop.f32.mrf.mxu0
        %v4946 = vadd.f32 %v4785, %v4945
        %v4947 = vpop.f32.mrf.mxu0
        %v4948 = vpop.f32.mrf.mxu0
        %v4949 = vadd.f32 %v4788, %v4948
        %v4950 = vpop.f32.mrf.mxu0
        %4951 = vmatprep.mubr.bf16.mxu0 0
        %4952 = vmatmul.mubr.bf16.gmra.mxu0 %v4673
        %v4953 = vpop.f32.mrf.mxu0
        %v4954 = vadd.f32 %v4793, %v4953
        %v4955 = vpop.f32.mrf.mxu0
        %v4956 = vpop.f32.mrf.mxu0
        %v4957 = vadd.f32 %v4796, %v4956
        %v4958 = vpop.f32.mrf.mxu0
        %4959 = vmatprep.mubr.bf16.mxu0 0
        %4960 = vmatmul.mubr.bf16.gmra.mxu0 %v4676
        %v4961 = vpop.f32.mrf.mxu0
        %v4962 = vadd.f32 %v4801, %v4961
        %v4963 = vpop.f32.mrf.mxu0
        %v4964 = vpop.f32.mrf.mxu0
        %v4965 = vadd.f32 %v4804, %v4964
        %v4966 = vpop.f32.mrf.mxu0
        %4967 = vmatprep.mubr.bf16.mxu0 0
        %4968 = vmatmul.mubr.bf16.gmra.mxu0 %v4679
        %v4969 = vpop.f32.mrf.mxu0
        %v4970 = vadd.f32 %v4809, %v4969
        %v4971 = vpop.f32.mrf.mxu0
        %v4972 = vpop.f32.mrf.mxu0
        %v4973 = vadd.f32 %v4812, %v4972
        %v4974 = vpop.f32.mrf.mxu0
        %4975 = vmatprep.mubr.bf16.mxu0 0
        %4976 = vmatmul.mubr.bf16.gmra.mxu0 %v4682
        %v4977 = vpop.f32.mrf.mxu0
        %v4978 = vadd.f32 %v4817, %v4977
        %v4979 = vpop.f32.mrf.mxu0
        %v4980 = vpop.f32.mrf.mxu0
        %v4981 = vadd.f32 %v4820, %v4980
        %v4982 = vpop.f32.mrf.mxu0
        %4983 = vmatprep.mubr.bf16.mxu0 0
        %4984 = vmatmul.mubr.bf16.gmra.mxu0 %v4685
        %v4985 = vpop.f32.mrf.mxu0
        %v4986 = vadd.f32 %v4825, %v4985
        %v4987 = vpop.f32.mrf.mxu0
        %v4988 = vpop.f32.mrf.mxu0
        %v4989 = vadd.f32 %v4828, %v4988
        %v4990 = vpop.f32.mrf.mxu0
        %4991 = vmatprep.mubr.bf16.mxu0 0
        %4992 = vmatmul.mubr.bf16.gmra.mxu0 %v4688
        %v4993 = vpop.f32.mrf.mxu0
        %v4994 = vadd.f32 %v4833, %v4993
        %v4995 = vpop.f32.mrf.mxu0
        %v4996 = vpop.f32.mrf.mxu0
        %v4997 = vadd.f32 %v4836, %v4996
        %v4998 = vpop.f32.mrf.mxu0
        %4999 = vmatprep.mubr.bf16.mxu0 0
        %5000 = vmatmul.mubr.bf16.gmra.mxu0 %v4691
        %v5001 = vpop.f32.mrf.mxu0
        %v5002 = vadd.f32 %v4841, %v5001
        %v5003 = vpop.f32.mrf.mxu0
        %v5004 = vpop.f32.mrf.mxu0
        %v5005 = vadd.f32 %v4844, %v5004
        %v5006 = vpop.f32.mrf.mxu0
        %5007 = vmatprep.mubr.bf16.mxu0 0
        %5008 = vmatmul.mubr.bf16.gmra.mxu0 %v4694
        %v5009 = vpop.f32.mrf.mxu0
        %v5010 = vadd.f32 %v4849, %v5009
        %v5011 = vpop.f32.mrf.mxu0
        %v5012 = vpop.f32.mrf.mxu0
        %v5013 = vadd.f32 %v4852, %v5012
        %v5014 = vpop.f32.mrf.mxu0
        %5015 = vmatprep.mubr.bf16.mxu0 0
        %5016 = vmatmul.mubr.bf16.gmra.mxu0 %v4697
        %v5017 = vpop.f32.mrf.mxu0
        %v5018 = vadd.f32 %v4857, %v5017
        %v5019 = vpop.f32.mrf.mxu0
        %v5020 = vpop.f32.mrf.mxu0
        %v5021 = vadd.f32 %v4860, %v5020
        %v5022 = vpop.f32.mrf.mxu0
        %5023 = vdwg.mxu0
        %v5024 = vadd.f32 %v2556, %v4898
        %v5025 = vadd.f32 %v2557, %v4901
        %v5026 = vadd.f32 %v2558, %v4906
        %v5027 = vadd.f32 %v2559, %v4909
        %v5028 = vadd.f32 %v2560, %v4914
        %v5029 = vadd.f32 %v2561, %v4917
        %v5030 = vadd.f32 %v2562, %v4922
        %v5031 = vadd.f32 %v2563, %v4925
        %v5032 = vadd.f32 %v2564, %v4930
        %v5033 = vadd.f32 %v2565, %v4933
        %v5034 = vadd.f32 %v2566, %v4938
        %v5035 = vadd.f32 %v2567, %v4941
        %v5036 = vadd.f32 %v2568, %v4946
        %v5037 = vadd.f32 %v2569, %v4949
        %v5038 = vadd.f32 %v2570, %v4954
        %v5039 = vadd.f32 %v2571, %v4957
        %v5040 = vadd.f32 %v2572, %v4962
        %v5041 = vadd.f32 %v2573, %v4965
        %v5042 = vadd.f32 %v2574, %v4970
        %v5043 = vadd.f32 %v2575, %v4973
        %v5044 = vadd.f32 %v2576, %v4978
        %v5045 = vadd.f32 %v2577, %v4981
        %v5046 = vadd.f32 %v2578, %v4986
        %v5047 = vadd.f32 %v2579, %v4989
        %v5048 = vadd.f32 %v2580, %v4994
        %v5049 = vadd.f32 %v2581, %v4997
        %v5050 = vadd.f32 %v2582, %v5002
        %v5051 = vadd.f32 %v2583, %v5005
        %v5052 = vadd.f32 %v2584, %v5010
        %v5053 = vadd.f32 %v2585, %v5013
        %v5054 = vadd.f32 %v2586, %v5018
        %v5055 = vadd.f32 %v2587, %v5021
        %5056 = vst.msk [vmem:[#allocation2] sm:$0xff] %vm2523, %v5024
        %5057 = vst.msk [vmem:[#allocation2 + $0x8] sm:$0xff] %vm2523, %v5025
        %5058 = vst.msk [vmem:[#allocation2 + $0x10] sm:$0xff] %vm2523, %v5026
        %5059 = vst.msk [vmem:[#allocation2 + $0x18] sm:$0xff] %vm2523, %v5027
        %5060 = vst.msk [vmem:[#allocation2 + $0x20] sm:$0xff] %vm2523, %v5028
        %5061 = vst.msk [vmem:[#allocation2 + $0x28] sm:$0xff] %vm2523, %v5029
        %5062 = vst.msk [vmem:[#allocation2 + $0x30] sm:$0xff] %vm2523, %v5030
        %5063 = vst.msk [vmem:[#allocation2 + $0x38] sm:$0xff] %vm2523, %v5031
        %5064 = vst.msk [vmem:[#allocation2 + $0x40] sm:$0xff] %vm2523, %v5032
        %5065 = vst.msk [vmem:[#allocation2 + $0x48] sm:$0xff] %vm2523, %v5033
        %5066 = vst.msk [vmem:[#allocation2 + $0x50] sm:$0xff] %vm2523, %v5034
        %5067 = vst.msk [vmem:[#allocation2 + $0x58] sm:$0xff] %vm2523, %v5035
        %5068 = vst.msk [vmem:[#allocation2 + $0x60] sm:$0xff] %vm2523, %v5036
        %5069 = vst.msk [vmem:[#allocation2 + $0x68] sm:$0xff] %vm2523, %v5037
        %5070 = vst.msk [vmem:[#allocation2 + $0x70] sm:$0xff] %vm2523, %v5038
        %5071 = vst.msk [vmem:[#allocation2 + $0x78] sm:$0xff] %vm2523, %v5039
        %5072 = vst.msk [vmem:[#allocation2 + $0x80] sm:$0xff] %vm2523, %v5040
        %5073 = vst.msk [vmem:[#allocation2 + $0x88] sm:$0xff] %vm2523, %v5041
        %5074 = vst.msk [vmem:[#allocation2 + $0x90] sm:$0xff] %vm2523, %v5042
        %5075 = vst.msk [vmem:[#allocation2 + $0x98] sm:$0xff] %vm2523, %v5043
        %5076 = vst.msk [vmem:[#allocation2 + $0xa0] sm:$0xff] %vm2523, %v5044
        %5077 = vst.msk [vmem:[#allocation2 + $0xa8] sm:$0xff] %vm2523, %v5045
        %5078 = vst.msk [vmem:[#allocation2 + $0xb0] sm:$0xff] %vm2523, %v5046
        %5079 = vst.msk [vmem:[#allocation2 + $0xb8] sm:$0xff] %vm2523, %v5047
        %5080 = vst.msk [vmem:[#allocation2 + $0xc0] sm:$0xff] %vm2523, %v5048
        %5081 = vst.msk [vmem:[#allocation2 + $0xc8] sm:$0xff] %vm2523, %v5049
        %5082 = vst.msk [vmem:[#allocation2 + $0xd0] sm:$0xff] %vm2523, %v5050
        %5083 = vst.msk [vmem:[#allocation2 + $0xd8] sm:$0xff] %vm2523, %v5051
        %5084 = vst.msk [vmem:[#allocation2 + $0xe0] sm:$0xff] %vm2523, %v5052
        %5085 = vst.msk [vmem:[#allocation2 + $0xe8] sm:$0xff] %vm2523, %v5053
        %5086 = vst.msk [vmem:[#allocation2 + $0xf0] sm:$0xff] %vm2523, %v5054
        %5087 = vst.msk [vmem:[#allocation2 + $0xf8] sm:$0xff] %vm2523, %v5055
        %v5088 = vld [vmem:[#allocation2] sm:$0xff]
        %v5089 = vld [vmem:[#allocation2 + $0x8] sm:$0xff]
        %v5090 = vld [vmem:[#allocation2 + $0x10] sm:$0xff]
        %v5091 = vld [vmem:[#allocation2 + $0x18] sm:$0xff]
        %v5092 = vld [vmem:[#allocation2 + $0x20] sm:$0xff]
        %v5093 = vld [vmem:[#allocation2 + $0x28] sm:$0xff]
        %v5094 = vld [vmem:[#allocation2 + $0x30] sm:$0xff]
        %v5095 = vld [vmem:[#allocation2 + $0x38] sm:$0xff]
        %v5096 = vld [vmem:[#allocation2 + $0x40] sm:$0xff]
        %v5097 = vld [vmem:[#allocation2 + $0x48] sm:$0xff]
        %v5098 = vld [vmem:[#allocation2 + $0x50] sm:$0xff]
        %v5099 = vld [vmem:[#allocation2 + $0x58] sm:$0xff]
        %v5100 = vld [vmem:[#allocation2 + $0x60] sm:$0xff]
        %v5101 = vld [vmem:[#allocation2 + $0x68] sm:$0xff]
        %v5102 = vld [vmem:[#allocation2 + $0x70] sm:$0xff]
        %v5103 = vld [vmem:[#allocation2 + $0x78] sm:$0xff]
        %v5104 = vld [vmem:[#allocation2 + $0x80] sm:$0xff]
        %v5105 = vld [vmem:[#allocation2 + $0x88] sm:$0xff]
        %v5106 = vld [vmem:[#allocation2 + $0x90] sm:$0xff]
        %v5107 = vld [vmem:[#allocation2 + $0x98] sm:$0xff]
        %v5108 = vld [vmem:[#allocation2 + $0xa0] sm:$0xff]
        %v5109 = vld [vmem:[#allocation2 + $0xa8] sm:$0xff]
        %v5110 = vld [vmem:[#allocation2 + $0xb0] sm:$0xff]
        %v5111 = vld [vmem:[#allocation2 + $0xb8] sm:$0xff]
        %v5112 = vld [vmem:[#allocation2 + $0xc0] sm:$0xff]
        %v5113 = vld [vmem:[#allocation2 + $0xc8] sm:$0xff]
        %v5114 = vld [vmem:[#allocation2 + $0xd0] sm:$0xff]
        %v5115 = vld [vmem:[#allocation2 + $0xd8] sm:$0xff]
        %v5116 = vld [vmem:[#allocation2 + $0xe0] sm:$0xff]
        %v5117 = vld [vmem:[#allocation2 + $0xe8] sm:$0xff]
        %v5118 = vld [vmem:[#allocation2 + $0xf0] sm:$0xff]
        %v5119 = vld [vmem:[#allocation2 + $0xf8] sm:$0xff]
        %v5120 = vpack.c.bf16 %v5089, %v5088
        %v5121 = vpack.c.bf16 %v5091, %v5090
        %v5122 = vpack.c.bf16 %v5093, %v5092
        %v5123 = vpack.c.bf16 %v5095, %v5094
        %v5124 = vpack.c.bf16 %v5097, %v5096
        %v5125 = vpack.c.bf16 %v5099, %v5098
        %v5126 = vpack.c.bf16 %v5101, %v5100
        %v5127 = vpack.c.bf16 %v5103, %v5102
        %v5128 = vpack.c.bf16 %v5105, %v5104
        %v5129 = vpack.c.bf16 %v5107, %v5106
        %v5130 = vpack.c.bf16 %v5109, %v5108
        %v5131 = vpack.c.bf16 %v5111, %v5110
        %v5132 = vpack.c.bf16 %v5113, %v5112
        %v5133 = vpack.c.bf16 %v5115, %v5114
        %v5134 = vpack.c.bf16 %v5117, %v5116
        %v5135 = vpack.c.bf16 %v5119, %v5118
        %v5136 = vld [vmem:[%s7] sm:$0xf]
        %v5137 = vld [vmem:[%s7 + $0x4] sm:$0xf]
        %v5138 = vld [vmem:[%s7 + $0x8] sm:$0xf]
        %v5139 = vld [vmem:[%s7 + $0xc] sm:$0xf]
        %v5140 = vld [vmem:[%s7 + $0x10] sm:$0xf]
        %v5141 = vld [vmem:[%s7 + $0x14] sm:$0x7]
        %v5142 = vld [vmem:[%s8] sm:$0x1]
        %v5144 = vlaneseq
        %v5145 = vshrl.u32 %v5144, 7
        %v5146 = vsub.s32 0, %v5145
        %v5147 = vrot.slane %v5142, %v5146
        %v5155 = vunpack.c.l.b16 %v5136
        %v5156 = vunpack.c.l.b16 %v5137
        %v5157 = vunpack.c.l.b16 %v5138
        %v5158 = vunpack.c.l.b16 %v5139
        %v5159 = vunpack.c.l.b16 %v5140
        %v5160 = vunpack.c.l.b16 %v5141
        %v5161 = vpack.c.b16 %v5156, %v5155
        %v5162 = vpack.c.b16 %v5158, %v5157
        %v5163 = vpack.c.b16 %v5160, %v5159
        %v5167 = vsel %vm2523, %v5120, 0
        %v5170 = vsel %vm2523, %v5121, 0
        %v5173 = vsel %vm2523, %v5122, 0
        %v5176 = vsel %vm2523, %v5123, 0
        %v5179 = vsel %vm2523, %v5124, 0
        %v5182 = vsel %vm2523, %v5125, 0
        %v5185 = vsel %vm2523, %v5126, 0
        %v5188 = vsel %vm2523, %v5127, 0
        %v5191 = vsel %vm2523, %v5128, 0
        %v5194 = vsel %vm2523, %v5129, 0
        %v5197 = vsel %vm2523, %v5130, 0
        %v5200 = vsel %vm2523, %v5131, 0
        %v5203 = vsel %vm2523, %v5132, 0
        %v5206 = vsel %vm2523, %v5133, 0
        %v5209 = vsel %vm2523, %v5134, 0
        %v5212 = vsel %vm2523, %v5135, 0
        %v5215 = vand.u32 %v5163, %v2685
        %5217 = vmatprep.subr.bf16.mxu0 0
        %5218 = vmatpush1.bf16.msra.mxu0 0
        %5219 = vmatprep.subr.bf16.mxu0 0
        %5220 = vmatpush1.bf16.msra.mxu0 0
        %5221 = vmatprep.subr.bf16.mxu0 0
        %5222 = vmatpush1.bf16.msra.mxu0 0
        %5223 = vmatprep.subr.bf16.mxu0 0
        %5224 = vmatpush1.bf16.msra.mxu0 0
        %5225 = vmatprep.subr.bf16.mxu0 0
        %5226 = vmatpush1.bf16.msra.mxu0 0
        %5227 = vmatprep.subr.bf16.mxu0 0
        %5228 = vmatpush1.bf16.msra.mxu0 %v5215
        %5229 = vmatprep.subr.bf16.mxu0 0
        %5230 = vmatpush1.bf16.msra.mxu0 %v5162
        %5231 = vmatprep.subr.bf16.mxu0 0
        %5232 = vmatpush1.bf16.msra.mxu0 %v5161
        %5233 = vmatprep.subr.bf16.mxu0 0
        %5234 = vmatpush2.bf16.msra.mxu0 0
        %5235 = vmatprep.subr.bf16.mxu0 0
        %5236 = vmatpush2.bf16.msra.mxu0 0
        %5237 = vmatprep.subr.bf16.mxu0 0
        %5238 = vmatpush2.bf16.msra.mxu0 0
        %5239 = vmatprep.subr.bf16.mxu0 0
        %5240 = vmatpush2.bf16.msra.mxu0 0
        %5241 = vmatprep.subr.bf16.mxu0 0
        %5242 = vmatpush2.bf16.msra.mxu0 0
        %5243 = vmatprep.subr.bf16.mxu0 0
        %5244 = vmatpush2.bf16.msra.mxu0 0
        %5245 = vmatprep.subr.bf16.mxu0 0
        %5246 = vmatpush2.bf16.msra.mxu0 0
        %5247 = vmatprep.subr.bf16.mxu0 0
        %5248 = vmatpush2.bf16.msra.mxu0 0
        %5249 = vmatprep.mubr.bf16.mxu0 0
        %5250 = vmatmul.mubr.bf16.gmra.mxu0 %v5167
        %v5251 = vpop.f32.mrf.mxu0
        %v5252 = vadd.f32 %v5147, %v5251
        %v5253 = vpop.f32.mrf.mxu0
        %v5254 = vpop.f32.mrf.mxu0
        %v5255 = vadd.f32 %v5147, %v5254
        %v5256 = vpop.f32.mrf.mxu0
        %5257 = vmatprep.mubr.bf16.mxu0 0
        %5258 = vmatmul.mubr.bf16.gmra.mxu0 %v5170
        %v5259 = vpop.f32.mrf.mxu0
        %v5260 = vadd.f32 %v5147, %v5259
        %v5261 = vpop.f32.mrf.mxu0
        %v5262 = vpop.f32.mrf.mxu0
        %v5263 = vadd.f32 %v5147, %v5262
        %v5264 = vpop.f32.mrf.mxu0
        %5265 = vmatprep.mubr.bf16.mxu0 0
        %5266 = vmatmul.mubr.bf16.gmra.mxu0 %v5173
        %v5267 = vpop.f32.mrf.mxu0
        %v5268 = vadd.f32 %v5147, %v5267
        %v5269 = vpop.f32.mrf.mxu0
        %v5270 = vpop.f32.mrf.mxu0
        %v5271 = vadd.f32 %v5147, %v5270
        %v5272 = vpop.f32.mrf.mxu0
        %5273 = vmatprep.mubr.bf16.mxu0 0
        %5274 = vmatmul.mubr.bf16.gmra.mxu0 %v5176
        %v5275 = vpop.f32.mrf.mxu0
        %v5276 = vadd.f32 %v5147, %v5275
        %v5277 = vpop.f32.mrf.mxu0
        %v5278 = vpop.f32.mrf.mxu0
        %v5279 = vadd.f32 %v5147, %v5278
        %v5280 = vpop.f32.mrf.mxu0
        %5281 = vmatprep.mubr.bf16.mxu0 0
        %5282 = vmatmul.mubr.bf16.gmra.mxu0 %v5179
        %v5283 = vpop.f32.mrf.mxu0
        %v5284 = vadd.f32 %v5147, %v5283
        %v5285 = vpop.f32.mrf.mxu0
        %v5286 = vpop.f32.mrf.mxu0
        %v5287 = vadd.f32 %v5147, %v5286
        %v5288 = vpop.f32.mrf.mxu0
        %5289 = vmatprep.mubr.bf16.mxu0 0
        %5290 = vmatmul.mubr.bf16.gmra.mxu0 %v5182
        %v5291 = vpop.f32.mrf.mxu0
        %v5292 = vadd.f32 %v5147, %v5291
        %v5293 = vpop.f32.mrf.mxu0
        %v5294 = vpop.f32.mrf.mxu0
        %v5295 = vadd.f32 %v5147, %v5294
        %v5296 = vpop.f32.mrf.mxu0
        %5297 = vmatprep.mubr.bf16.mxu0 0
        %5298 = vmatmul.mubr.bf16.gmra.mxu0 %v5185
        %v5299 = vpop.f32.mrf.mxu0
        %v5300 = vadd.f32 %v5147, %v5299
        %v5301 = vpop.f32.mrf.mxu0
        %v5302 = vpop.f32.mrf.mxu0
        %v5303 = vadd.f32 %v5147, %v5302
        %v5304 = vpop.f32.mrf.mxu0
        %5305 = vmatprep.mubr.bf16.mxu0 0
        %5306 = vmatmul.mubr.bf16.gmra.mxu0 %v5188
        %v5307 = vpop.f32.mrf.mxu0
        %v5308 = vadd.f32 %v5147, %v5307
        %v5309 = vpop.f32.mrf.mxu0
        %v5310 = vpop.f32.mrf.mxu0
        %v5311 = vadd.f32 %v5147, %v5310
        %v5312 = vpop.f32.mrf.mxu0
        %5313 = vmatprep.mubr.bf16.mxu0 0
        %5314 = vmatmul.mubr.bf16.gmra.mxu0 %v5191
        %v5315 = vpop.f32.mrf.mxu0
        %v5316 = vadd.f32 %v5147, %v5315
        %v5317 = vpop.f32.mrf.mxu0
        %v5318 = vpop.f32.mrf.mxu0
        %v5319 = vadd.f32 %v5147, %v5318
        %v5320 = vpop.f32.mrf.mxu0
        %5321 = vmatprep.mubr.bf16.mxu0 0
        %5322 = vmatmul.mubr.bf16.gmra.mxu0 %v5194
        %v5323 = vpop.f32.mrf.mxu0
        %v5324 = vadd.f32 %v5147, %v5323
        %v5325 = vpop.f32.mrf.mxu0
        %v5326 = vpop.f32.mrf.mxu0
        %v5327 = vadd.f32 %v5147, %v5326
        %v5328 = vpop.f32.mrf.mxu0
        %5329 = vmatprep.mubr.bf16.mxu0 0
        %5330 = vmatmul.mubr.bf16.gmra.mxu0 %v5197
        %v5331 = vpop.f32.mrf.mxu0
        %v5332 = vadd.f32 %v5147, %v5331
        %v5333 = vpop.f32.mrf.mxu0
        %v5334 = vpop.f32.mrf.mxu0
        %v5335 = vadd.f32 %v5147, %v5334
        %v5336 = vpop.f32.mrf.mxu0
        %5337 = vmatprep.mubr.bf16.mxu0 0
        %5338 = vmatmul.mubr.bf16.gmra.mxu0 %v5200
        %v5339 = vpop.f32.mrf.mxu0
        %v5340 = vadd.f32 %v5147, %v5339
        %v5341 = vpop.f32.mrf.mxu0
        %v5342 = vpop.f32.mrf.mxu0
        %v5343 = vadd.f32 %v5147, %v5342
        %v5344 = vpop.f32.mrf.mxu0
        %5345 = vmatprep.mubr.bf16.mxu0 0
        %5346 = vmatmul.mubr.bf16.gmra.mxu0 %v5203
        %v5347 = vpop.f32.mrf.mxu0
        %v5348 = vadd.f32 %v5147, %v5347
        %v5349 = vpop.f32.mrf.mxu0
        %v5350 = vpop.f32.mrf.mxu0
        %v5351 = vadd.f32 %v5147, %v5350
        %v5352 = vpop.f32.mrf.mxu0
        %5353 = vmatprep.mubr.bf16.mxu0 0
        %5354 = vmatmul.mubr.bf16.gmra.mxu0 %v5206
        %v5355 = vpop.f32.mrf.mxu0
        %v5356 = vadd.f32 %v5147, %v5355
        %v5357 = vpop.f32.mrf.mxu0
        %v5358 = vpop.f32.mrf.mxu0
        %v5359 = vadd.f32 %v5147, %v5358
        %v5360 = vpop.f32.mrf.mxu0
        %5361 = vmatprep.mubr.bf16.mxu0 0
        %5362 = vmatmul.mubr.bf16.gmra.mxu0 %v5209
        %v5363 = vpop.f32.mrf.mxu0
        %v5364 = vadd.f32 %v5147, %v5363
        %v5365 = vpop.f32.mrf.mxu0
        %v5366 = vpop.f32.mrf.mxu0
        %v5367 = vadd.f32 %v5147, %v5366
        %v5368 = vpop.f32.mrf.mxu0
        %5369 = vmatprep.mubr.bf16.mxu0 0
        %5370 = vmatmul.mubr.bf16.gmra.mxu0 %v5212
        %v5371 = vpop.f32.mrf.mxu0
        %v5372 = vadd.f32 %v5147, %v5371
        %v5373 = vpop.f32.mrf.mxu0
        %v5374 = vpop.f32.mrf.mxu0
        %v5375 = vadd.f32 %v5147, %v5374
        %v5376 = vpop.f32.mrf.mxu0
        %5377 = vdwg.mxu0
        %vm5378 = vcmask 195584
        %5379 = vst.msk [vmem:[%s2850 + $0x1] sm:$0xff] %vm5378, %v5252
        %5380 = vst.msk [vmem:[%s2850 + $0x9] sm:$0xff] %vm5378, %v5255
        %5381 = vst.msk [vmem:[%s2850 + $0x19] sm:$0xff] %vm5378, %v5260
        %5382 = vst.msk [vmem:[%s2850 + $0x21] sm:$0xff] %vm5378, %v5263
        %5383 = vst.msk [vmem:[%s2850 + $0x31] sm:$0xff] %vm5378, %v5268
        %5384 = vst.msk [vmem:[%s2850 + $0x39] sm:$0xff] %vm5378, %v5271
        %5385 = vst.msk [vmem:[%s2850 + $0x49] sm:$0xff] %vm5378, %v5276
        %5386 = vst.msk [vmem:[%s2850 + $0x51] sm:$0xff] %vm5378, %v5279
        %5387 = vst.msk [vmem:[%s2850 + $0x61] sm:$0xff] %vm5378, %v5284
        %5388 = vst.msk [vmem:[%s2850 + $0x69] sm:$0xff] %vm5378, %v5287
        %5389 = vst.msk [vmem:[%s2850 + $0x79] sm:$0xff] %vm5378, %v5292
        %5390 = vst.msk [vmem:[%s2850 + $0x81] sm:$0xff] %vm5378, %v5295
        %5391 = vst.msk [vmem:[%s2850 + $0x91] sm:$0xff] %vm5378, %v5300
        %5392 = vst.msk [vmem:[%s2850 + $0x99] sm:$0xff] %vm5378, %v5303
        %5393 = vst.msk [vmem:[%s2850 + $0xa9] sm:$0xff] %vm5378, %v5308
        %5394 = vst.msk [vmem:[%s2850 + $0xb1] sm:$0xff] %vm5378, %v5311
        %5395 = vst.msk [vmem:[%s2850 + $0xc1] sm:$0xff] %vm5378, %v5316
        %5396 = vst.msk [vmem:[%s2850 + $0xc9] sm:$0xff] %vm5378, %v5319
        %5397 = vst.msk [vmem:[%s2850 + $0xd9] sm:$0xff] %vm5378, %v5324
        %5398 = vst.msk [vmem:[%s2850 + $0xe1] sm:$0xff] %vm5378, %v5327
        %5399 = vst.msk [vmem:[%s2850 + $0xf1] sm:$0xff] %vm5378, %v5332
        %5400 = vst.msk [vmem:[%s2850 + $0xf9] sm:$0xff] %vm5378, %v5335
        %5401 = vst.msk [vmem:[%s2850 + $0x109] sm:$0xff] %vm5378, %v5340
        %5402 = vst.msk [vmem:[%s2850 + $0x111] sm:$0xff] %vm5378, %v5343
        %5403 = vst.msk [vmem:[%s2850 + $0x121] sm:$0xff] %vm5378, %v5348
        %5404 = vst.msk [vmem:[%s2850 + $0x129] sm:$0xff] %vm5378, %v5351
        %5405 = vst.msk [vmem:[%s2850 + $0x139] sm:$0xff] %vm5378, %v5356
        %5406 = vst.msk [vmem:[%s2850 + $0x141] sm:$0xff] %vm5378, %v5359
        %5407 = vst.msk [vmem:[%s2850 + $0x151] sm:$0xff] %vm5378, %v5364
        %5408 = vst.msk [vmem:[%s2850 + $0x159] sm:$0xff] %vm5378, %v5367
        %5409 = vst.msk [vmem:[%s2850 + $0x169] sm:$0xff] %vm5378, %v5372
        %5410 = vst.msk [vmem:[%s2850 + $0x171] sm:$0xff] %vm5378, %v5375
        %v5411 = vld [vmem:[#allocation4] sm:$0xff]
        %v5412 = vld [vmem:[#allocation4 + $0x8] sm:$0xff]
        %v5413 = vld [vmem:[#allocation4 + $0x18] sm:$0xff]
        %v5414 = vld [vmem:[#allocation4 + $0x20] sm:$0xff]
        %v5415 = vld [vmem:[#allocation4 + $0x30] sm:$0xff]
        %v5416 = vld [vmem:[#allocation4 + $0x38] sm:$0xff]
        %v5417 = vld [vmem:[#allocation4 + $0x48] sm:$0xff]
        %v5418 = vld [vmem:[#allocation4 + $0x50] sm:$0xff]
        %v5419 = vld [vmem:[#allocation4 + $0x60] sm:$0xff]
        %v5420 = vld [vmem:[#allocation4 + $0x68] sm:$0xff]
        %v5421 = vld [vmem:[#allocation4 + $0x78] sm:$0xff]
        %v5422 = vld [vmem:[#allocation4 + $0x80] sm:$0xff]
        %v5423 = vld [vmem:[#allocation4 + $0x90] sm:$0xff]
        %v5424 = vld [vmem:[#allocation4 + $0x98] sm:$0xff]
        %v5425 = vld [vmem:[#allocation4 + $0xa8] sm:$0xff]
        %v5426 = vld [vmem:[#allocation4 + $0xb0] sm:$0xff]
        %v5427 = vld [vmem:[#allocation4 + $0xc0] sm:$0xff]
        %v5428 = vld [vmem:[#allocation4 + $0xc8] sm:$0xff]
        %v5429 = vld [vmem:[#allocation4 + $0xd8] sm:$0xff]
        %v5430 = vld [vmem:[#allocation4 + $0xe0] sm:$0xff]
        %v5431 = vld [vmem:[#allocation4 + $0xf0] sm:$0xff]
        %v5432 = vld [vmem:[#allocation4 + $0xf8] sm:$0xff]
        %v5433 = vld [vmem:[#allocation4 + $0x108] sm:$0xff]
        %v5434 = vld [vmem:[#allocation4 + $0x110] sm:$0xff]
        %v5435 = vld [vmem:[#allocation4 + $0x120] sm:$0xff]
        %v5436 = vld [vmem:[#allocation4 + $0x128] sm:$0xff]
        %v5437 = vld [vmem:[#allocation4 + $0x138] sm:$0xff]
        %v5438 = vld [vmem:[#allocation4 + $0x140] sm:$0xff]
        %v5439 = vld [vmem:[#allocation4 + $0x150] sm:$0xff]
        %v5440 = vld [vmem:[#allocation4 + $0x158] sm:$0xff]
        %v5441 = vld [vmem:[#allocation4 + $0x168] sm:$0xff]
        %v5442 = vld [vmem:[#allocation4 + $0x170] sm:$0xff]
        %v5443 = vld [vmem:[#allocation4 + $0x1] sm:$0xff]
        %v5444 = vld [vmem:[#allocation4 + $0x9] sm:$0xff]
        %v5445 = vld [vmem:[#allocation4 + $0x19] sm:$0xff]
        %v5446 = vld [vmem:[#allocation4 + $0x21] sm:$0xff]
        %v5447 = vld [vmem:[#allocation4 + $0x31] sm:$0xff]
        %v5448 = vld [vmem:[#allocation4 + $0x39] sm:$0xff]
        %v5449 = vld [vmem:[#allocation4 + $0x49] sm:$0xff]
        %v5450 = vld [vmem:[#allocation4 + $0x51] sm:$0xff]
        %v5451 = vld [vmem:[#allocation4 + $0x61] sm:$0xff]
        %v5452 = vld [vmem:[#allocation4 + $0x69] sm:$0xff]
        %v5453 = vld [vmem:[#allocation4 + $0x79] sm:$0xff]
        %v5454 = vld [vmem:[#allocation4 + $0x81] sm:$0xff]
        %v5455 = vld [vmem:[#allocation4 + $0x91] sm:$0xff]
        %v5456 = vld [vmem:[#allocation4 + $0x99] sm:$0xff]
        %v5457 = vld [vmem:[#allocation4 + $0xa9] sm:$0xff]
        %v5458 = vld [vmem:[#allocation4 + $0xb1] sm:$0xff]
        %v5459 = vld [vmem:[#allocation4 + $0xc1] sm:$0xff]
        %v5460 = vld [vmem:[#allocation4 + $0xc9] sm:$0xff]
        %v5461 = vld [vmem:[#allocation4 + $0xd9] sm:$0xff]
        %v5462 = vld [vmem:[#allocation4 + $0xe1] sm:$0xff]
        %v5463 = vld [vmem:[#allocation4 + $0xf1] sm:$0xff]
        %v5464 = vld [vmem:[#allocation4 + $0xf9] sm:$0xff]
        %v5465 = vld [vmem:[#allocation4 + $0x109] sm:$0xff]
        %v5466 = vld [vmem:[#allocation4 + $0x111] sm:$0xff]
        %v5467 = vld [vmem:[#allocation4 + $0x121] sm:$0xff]
        %v5468 = vld [vmem:[#allocation4 + $0x129] sm:$0xff]
        %v5469 = vld [vmem:[#allocation4 + $0x139] sm:$0xff]
        %v5470 = vld [vmem:[#allocation4 + $0x141] sm:$0xff]
        %v5471 = vld [vmem:[#allocation4 + $0x151] sm:$0xff]
        %v5472 = vld [vmem:[#allocation4 + $0x159] sm:$0xff]
        %v5473 = vld [vmem:[#allocation4 + $0x169] sm:$0xff]
        %v5474 = vld [vmem:[#allocation4 + $0x171] sm:$0xff]
        %v5475 = vld [vmem:[#allocation4 + $0x2] sm:$0xff]
        %v5476 = vld [vmem:[#allocation4 + $0xa] sm:$0xff]
        %v5477 = vld [vmem:[#allocation4 + $0x1a] sm:$0xff]
        %v5478 = vld [vmem:[#allocation4 + $0x22] sm:$0xff]
        %v5479 = vld [vmem:[#allocation4 + $0x32] sm:$0xff]
        %v5480 = vld [vmem:[#allocation4 + $0x3a] sm:$0xff]
        %v5481 = vld [vmem:[#allocation4 + $0x4a] sm:$0xff]
        %v5482 = vld [vmem:[#allocation4 + $0x52] sm:$0xff]
        %v5483 = vld [vmem:[#allocation4 + $0x62] sm:$0xff]
        %v5484 = vld [vmem:[#allocation4 + $0x6a] sm:$0xff]
        %v5485 = vld [vmem:[#allocation4 + $0x7a] sm:$0xff]
        %v5486 = vld [vmem:[#allocation4 + $0x82] sm:$0xff]
        %v5487 = vld [vmem:[#allocation4 + $0x92] sm:$0xff]
        %v5488 = vld [vmem:[#allocation4 + $0x9a] sm:$0xff]
        %v5489 = vld [vmem:[#allocation4 + $0xaa] sm:$0xff]
        %v5490 = vld [vmem:[#allocation4 + $0xb2] sm:$0xff]
        %v5491 = vld [vmem:[#allocation4 + $0xc2] sm:$0xff]
        %v5492 = vld [vmem:[#allocation4 + $0xca] sm:$0xff]
        %v5493 = vld [vmem:[#allocation4 + $0xda] sm:$0xff]
        %v5494 = vld [vmem:[#allocation4 + $0xe2] sm:$0xff]
        %v5495 = vld [vmem:[#allocation4 + $0xf2] sm:$0xff]
        %v5496 = vld [vmem:[#allocation4 + $0xfa] sm:$0xff]
        %v5497 = vld [vmem:[#allocation4 + $0x10a] sm:$0xff]
        %v5498 = vld [vmem:[#allocation4 + $0x112] sm:$0xff]
        %v5499 = vld [vmem:[#allocation4 + $0x122] sm:$0xff]
        %v5500 = vld [vmem:[#allocation4 + $0x12a] sm:$0xff]
        %v5501 = vld [vmem:[#allocation4 + $0x13a] sm:$0xff]
        %v5502 = vld [vmem:[#allocation4 + $0x142] sm:$0xff]
        %v5503 = vld [vmem:[#allocation4 + $0x152] sm:$0xff]
        %v5504 = vld [vmem:[#allocation4 + $0x15a] sm:$0xff]
        %v5505 = vld [vmem:[#allocation4 + $0x16a] sm:$0xff]
        %v5506 = vld [vmem:[#allocation4 + $0x172] sm:$0xff]
        %v5507 = vld [vmem:[%s2850] sm:$0xff]
        %v5508 = vld [vmem:[%s2850 + $0x8] sm:$0xff]
        %v5509 = vld [vmem:[%s2850 + $0x18] sm:$0xff]
        %v5510 = vld [vmem:[%s2850 + $0x20] sm:$0xff]
        %v5511 = vld [vmem:[%s2850 + $0x30] sm:$0xff]
        %v5512 = vld [vmem:[%s2850 + $0x38] sm:$0xff]
        %v5513 = vld [vmem:[%s2850 + $0x48] sm:$0xff]
        %v5514 = vld [vmem:[%s2850 + $0x50] sm:$0xff]
        %v5515 = vld [vmem:[%s2850 + $0x60] sm:$0xff]
        %v5516 = vld [vmem:[%s2850 + $0x68] sm:$0xff]
        %v5517 = vld [vmem:[%s2850 + $0x78] sm:$0xff]
        %v5518 = vld [vmem:[%s2850 + $0x80] sm:$0xff]
        %v5519 = vld [vmem:[%s2850 + $0x90] sm:$0xff]
        %v5520 = vld [vmem:[%s2850 + $0x98] sm:$0xff]
        %v5521 = vld [vmem:[%s2850 + $0xa8] sm:$0xff]
        %v5522 = vld [vmem:[%s2850 + $0xb0] sm:$0xff]
        %v5523 = vld [vmem:[%s2850 + $0xc0] sm:$0xff]
        %v5524 = vld [vmem:[%s2850 + $0xc8] sm:$0xff]
        %v5525 = vld [vmem:[%s2850 + $0xd8] sm:$0xff]
        %v5526 = vld [vmem:[%s2850 + $0xe0] sm:$0xff]
        %v5527 = vld [vmem:[%s2850 + $0xf0] sm:$0xff]
        %v5528 = vld [vmem:[%s2850 + $0xf8] sm:$0xff]
        %v5529 = vld [vmem:[%s2850 + $0x108] sm:$0xff]
        %v5530 = vld [vmem:[%s2850 + $0x110] sm:$0xff]
        %v5531 = vld [vmem:[%s2850 + $0x120] sm:$0xff]
        %v5532 = vld [vmem:[%s2850 + $0x128] sm:$0xff]
        %v5533 = vld [vmem:[%s2850 + $0x138] sm:$0xff]
        %v5534 = vld [vmem:[%s2850 + $0x140] sm:$0xff]
        %v5535 = vld [vmem:[%s2850 + $0x150] sm:$0xff]
        %v5536 = vld [vmem:[%s2850 + $0x158] sm:$0xff]
        %v5537 = vld [vmem:[%s2850 + $0x168] sm:$0xff]
        %v5538 = vld [vmem:[%s2850 + $0x170] sm:$0xff]
        %v5539 = vld [vmem:[%s2850 + $0x1] sm:$0xff]
        %v5540 = vld [vmem:[%s2850 + $0x9] sm:$0xff]
        %v5541 = vld [vmem:[%s2850 + $0x19] sm:$0xff]
        %v5542 = vld [vmem:[%s2850 + $0x21] sm:$0xff]
        %v5543 = vld [vmem:[%s2850 + $0x31] sm:$0xff]
        %v5544 = vld [vmem:[%s2850 + $0x39] sm:$0xff]
        %v5545 = vld [vmem:[%s2850 + $0x49] sm:$0xff]
        %v5546 = vld [vmem:[%s2850 + $0x51] sm:$0xff]
        %v5547 = vld [vmem:[%s2850 + $0x61] sm:$0xff]
        %v5548 = vld [vmem:[%s2850 + $0x69] sm:$0xff]
        %v5549 = vld [vmem:[%s2850 + $0x79] sm:$0xff]
        %v5550 = vld [vmem:[%s2850 + $0x81] sm:$0xff]
        %v5551 = vld [vmem:[%s2850 + $0x91] sm:$0xff]
        %v5552 = vld [vmem:[%s2850 + $0x99] sm:$0xff]
        %v5553 = vld [vmem:[%s2850 + $0xa9] sm:$0xff]
        %v5554 = vld [vmem:[%s2850 + $0xb1] sm:$0xff]
        %v5555 = vld [vmem:[%s2850 + $0xc1] sm:$0xff]
        %v5556 = vld [vmem:[%s2850 + $0xc9] sm:$0xff]
        %v5557 = vld [vmem:[%s2850 + $0xd9] sm:$0xff]
        %v5558 = vld [vmem:[%s2850 + $0xe1] sm:$0xff]
        %v5559 = vld [vmem:[%s2850 + $0xf1] sm:$0xff]
        %v5560 = vld [vmem:[%s2850 + $0xf9] sm:$0xff]
        %v5561 = vld [vmem:[%s2850 + $0x109] sm:$0xff]
        %v5562 = vld [vmem:[%s2850 + $0x111] sm:$0xff]
        %v5563 = vld [vmem:[%s2850 + $0x121] sm:$0xff]
        %v5564 = vld [vmem:[%s2850 + $0x129] sm:$0xff]
        %v5565 = vld [vmem:[%s2850 + $0x139] sm:$0xff]
        %v5566 = vld [vmem:[%s2850 + $0x141] sm:$0xff]
        %v5567 = vld [vmem:[%s2850 + $0x151] sm:$0xff]
        %v5568 = vld [vmem:[%s2850 + $0x159] sm:$0xff]
        %v5569 = vld [vmem:[%s2850 + $0x169] sm:$0xff]
        %v5570 = vld [vmem:[%s2850 + $0x171] sm:$0xff]
        %v5571 = vld [vmem:[%s2850 + $0x2] sm:$0xff]
        %v5572 = vld [vmem:[%s2850 + $0xa] sm:$0xff]
        %v5573 = vld [vmem:[%s2850 + $0x1a] sm:$0xff]
        %v5574 = vld [vmem:[%s2850 + $0x22] sm:$0xff]
        %v5575 = vld [vmem:[%s2850 + $0x32] sm:$0xff]
        %v5576 = vld [vmem:[%s2850 + $0x3a] sm:$0xff]
        %v5577 = vld [vmem:[%s2850 + $0x4a] sm:$0xff]
        %v5578 = vld [vmem:[%s2850 + $0x52] sm:$0xff]
        %v5579 = vld [vmem:[%s2850 + $0x62] sm:$0xff]
        %v5580 = vld [vmem:[%s2850 + $0x6a] sm:$0xff]
        %v5581 = vld [vmem:[%s2850 + $0x7a] sm:$0xff]
        %v5582 = vld [vmem:[%s2850 + $0x82] sm:$0xff]
        %v5583 = vld [vmem:[%s2850 + $0x92] sm:$0xff]
        %v5584 = vld [vmem:[%s2850 + $0x9a] sm:$0xff]
        %v5585 = vld [vmem:[%s2850 + $0xaa] sm:$0xff]
        %v5586 = vld [vmem:[%s2850 + $0xb2] sm:$0xff]
        %v5587 = vld [vmem:[%s2850 + $0xc2] sm:$0xff]
        %v5588 = vld [vmem:[%s2850 + $0xca] sm:$0xff]
        %v5589 = vld [vmem:[%s2850 + $0xda] sm:$0xff]
        %v5590 = vld [vmem:[%s2850 + $0xe2] sm:$0xff]
        %v5591 = vld [vmem:[%s2850 + $0xf2] sm:$0xff]
        %v5592 = vld [vmem:[%s2850 + $0xfa] sm:$0xff]
        %v5593 = vld [vmem:[%s2850 + $0x10a] sm:$0xff]
        %v5594 = vld [vmem:[%s2850 + $0x112] sm:$0xff]
        %v5595 = vld [vmem:[%s2850 + $0x122] sm:$0xff]
        %v5596 = vld [vmem:[%s2850 + $0x12a] sm:$0xff]
        %v5597 = vld [vmem:[%s2850 + $0x13a] sm:$0xff]
        %v5598 = vld [vmem:[%s2850 + $0x142] sm:$0xff]
        %v5599 = vld [vmem:[%s2850 + $0x152] sm:$0xff]
        %v5600 = vld [vmem:[%s2850 + $0x15a] sm:$0xff]
        %v5601 = vld [vmem:[%s2850 + $0x16a] sm:$0xff]
        %v5602 = vld [vmem:[%s2850 + $0x172] sm:$0xff]
        %v5603 = vld [vmem:[%s3076] sm:$0xff]
        %v5604 = vld [vmem:[%s3076 + $0x8] sm:$0xff]
        %v5605 = vld [vmem:[%s3076 + $0x18] sm:$0xff]
        %v5606 = vld [vmem:[%s3076 + $0x20] sm:$0xff]
        %v5607 = vld [vmem:[%s3076 + $0x30] sm:$0xff]
        %v5608 = vld [vmem:[%s3076 + $0x38] sm:$0xff]
        %v5609 = vld [vmem:[%s3076 + $0x48] sm:$0xff]
        %v5610 = vld [vmem:[%s3076 + $0x50] sm:$0xff]
        %v5611 = vld [vmem:[%s3076 + $0x60] sm:$0xff]
        %v5612 = vld [vmem:[%s3076 + $0x68] sm:$0xff]
        %v5613 = vld [vmem:[%s3076 + $0x78] sm:$0xff]
        %v5614 = vld [vmem:[%s3076 + $0x80] sm:$0xff]
        %v5615 = vld [vmem:[%s3076 + $0x90] sm:$0xff]
        %v5616 = vld [vmem:[%s3076 + $0x98] sm:$0xff]
        %v5617 = vld [vmem:[%s3076 + $0xa8] sm:$0xff]
        %v5618 = vld [vmem:[%s3076 + $0xb0] sm:$0xff]
        %v5619 = vld [vmem:[%s3076 + $0xc0] sm:$0xff]
        %v5620 = vld [vmem:[%s3076 + $0xc8] sm:$0xff]
        %v5621 = vld [vmem:[%s3076 + $0xd8] sm:$0xff]
        %v5622 = vld [vmem:[%s3076 + $0xe0] sm:$0xff]
        %v5623 = vld [vmem:[%s3076 + $0xf0] sm:$0xff]
        %v5624 = vld [vmem:[%s3076 + $0xf8] sm:$0xff]
        %v5625 = vld [vmem:[%s3076 + $0x108] sm:$0xff]
        %v5626 = vld [vmem:[%s3076 + $0x110] sm:$0xff]
        %v5627 = vld [vmem:[%s3076 + $0x120] sm:$0xff]
        %v5628 = vld [vmem:[%s3076 + $0x128] sm:$0xff]
        %v5629 = vld [vmem:[%s3076 + $0x138] sm:$0xff]
        %v5630 = vld [vmem:[%s3076 + $0x140] sm:$0xff]
        %v5631 = vld [vmem:[%s3076 + $0x150] sm:$0xff]
        %v5632 = vld [vmem:[%s3076 + $0x158] sm:$0xff]
        %v5633 = vld [vmem:[%s3076 + $0x168] sm:$0xff]
        %v5634 = vld [vmem:[%s3076 + $0x170] sm:$0xff]
        %v5635 = vld [vmem:[%s3076 + $0x1] sm:$0xff]
        %v5636 = vld [vmem:[%s3076 + $0x9] sm:$0xff]
        %v5637 = vld [vmem:[%s3076 + $0x19] sm:$0xff]
        %v5638 = vld [vmem:[%s3076 + $0x21] sm:$0xff]
        %v5639 = vld [vmem:[%s3076 + $0x31] sm:$0xff]
        %v5640 = vld [vmem:[%s3076 + $0x39] sm:$0xff]
        %v5641 = vld [vmem:[%s3076 + $0x49] sm:$0xff]
        %v5642 = vld [vmem:[%s3076 + $0x51] sm:$0xff]
        %v5643 = vld [vmem:[%s3076 + $0x61] sm:$0xff]
        %v5644 = vld [vmem:[%s3076 + $0x69] sm:$0xff]
        %v5645 = vld [vmem:[%s3076 + $0x79] sm:$0xff]
        %v5646 = vld [vmem:[%s3076 + $0x81] sm:$0xff]
        %v5647 = vld [vmem:[%s3076 + $0x91] sm:$0xff]
        %v5648 = vld [vmem:[%s3076 + $0x99] sm:$0xff]
        %v5649 = vld [vmem:[%s3076 + $0xa9] sm:$0xff]
        %v5650 = vld [vmem:[%s3076 + $0xb1] sm:$0xff]
        %v5651 = vld [vmem:[%s3076 + $0xc1] sm:$0xff]
        %v5652 = vld [vmem:[%s3076 + $0xc9] sm:$0xff]
        %v5653 = vld [vmem:[%s3076 + $0xd9] sm:$0xff]
        %v5654 = vld [vmem:[%s3076 + $0xe1] sm:$0xff]
        %v5655 = vld [vmem:[%s3076 + $0xf1] sm:$0xff]
        %v5656 = vld [vmem:[%s3076 + $0xf9] sm:$0xff]
        %v5657 = vld [vmem:[%s3076 + $0x109] sm:$0xff]
        %v5658 = vld [vmem:[%s3076 + $0x111] sm:$0xff]
        %v5659 = vld [vmem:[%s3076 + $0x121] sm:$0xff]
        %v5660 = vld [vmem:[%s3076 + $0x129] sm:$0xff]
        %v5661 = vld [vmem:[%s3076 + $0x139] sm:$0xff]
        %v5662 = vld [vmem:[%s3076 + $0x141] sm:$0xff]
        %v5663 = vld [vmem:[%s3076 + $0x151] sm:$0xff]
        %v5664 = vld [vmem:[%s3076 + $0x159] sm:$0xff]
        %v5665 = vld [vmem:[%s3076 + $0x169] sm:$0xff]
        %v5666 = vld [vmem:[%s3076 + $0x171] sm:$0xff]
        %v5667 = vld [vmem:[%s3076 + $0x2] sm:$0xff]
        %v5668 = vld [vmem:[%s3076 + $0xa] sm:$0xff]
        %v5669 = vld [vmem:[%s3076 + $0x1a] sm:$0xff]
        %v5670 = vld [vmem:[%s3076 + $0x22] sm:$0xff]
        %v5671 = vld [vmem:[%s3076 + $0x32] sm:$0xff]
        %v5672 = vld [vmem:[%s3076 + $0x3a] sm:$0xff]
        %v5673 = vld [vmem:[%s3076 + $0x4a] sm:$0xff]
        %v5674 = vld [vmem:[%s3076 + $0x52] sm:$0xff]
        %v5675 = vld [vmem:[%s3076 + $0x62] sm:$0xff]
        %v5676 = vld [vmem:[%s3076 + $0x6a] sm:$0xff]
        %v5677 = vld [vmem:[%s3076 + $0x7a] sm:$0xff]
        %v5678 = vld [vmem:[%s3076 + $0x82] sm:$0xff]
        %v5679 = vld [vmem:[%s3076 + $0x92] sm:$0xff]
        %v5680 = vld [vmem:[%s3076 + $0x9a] sm:$0xff]
        %v5681 = vld [vmem:[%s3076 + $0xaa] sm:$0xff]
        %v5682 = vld [vmem:[%s3076 + $0xb2] sm:$0xff]
        %v5683 = vld [vmem:[%s3076 + $0xc2] sm:$0xff]
        %v5684 = vld [vmem:[%s3076 + $0xca] sm:$0xff]
        %v5685 = vld [vmem:[%s3076 + $0xda] sm:$0xff]
        %v5686 = vld [vmem:[%s3076 + $0xe2] sm:$0xff]
        %v5687 = vld [vmem:[%s3076 + $0xf2] sm:$0xff]
        %v5688 = vld [vmem:[%s3076 + $0xfa] sm:$0xff]
        %v5689 = vld [vmem:[%s3076 + $0x10a] sm:$0xff]
        %v5690 = vld [vmem:[%s3076 + $0x112] sm:$0xff]
        %v5691 = vld [vmem:[%s3076 + $0x122] sm:$0xff]
        %v5692 = vld [vmem:[%s3076 + $0x12a] sm:$0xff]
        %v5693 = vld [vmem:[%s3076 + $0x13a] sm:$0xff]
        %v5694 = vld [vmem:[%s3076 + $0x142] sm:$0xff]
        %v5695 = vld [vmem:[%s3076 + $0x152] sm:$0xff]
        %v5696 = vld [vmem:[%s3076 + $0x15a] sm:$0xff]
        %v5697 = vld [vmem:[%s3076 + $0x16a] sm:$0xff]
        %v5698 = vld [vmem:[%s3076 + $0x172] sm:$0xff]
        %5731 = vrot.lane.b32.xlu0 %v5443, 24
        %v5732 = vpop.permute.xlu0 %5731
        %5733 = vrot.lane.b32.xlu0 %v5444, 24
        %v5734 = vpop.permute.xlu0 %5733
        %5735 = vrot.lane.b32.xlu0 %v5445, 24
        %v5736 = vpop.permute.xlu0 %5735
        %5737 = vrot.lane.b32.xlu0 %v5446, 24
        %v5738 = vpop.permute.xlu0 %5737
        %5739 = vrot.lane.b32.xlu0 %v5447, 24
        %v5740 = vpop.permute.xlu0 %5739
        %5741 = vrot.lane.b32.xlu0 %v5448, 24
        %v5742 = vpop.permute.xlu0 %5741
        %5743 = vrot.lane.b32.xlu0 %v5449, 24
        %v5744 = vpop.permute.xlu0 %5743
        %5745 = vrot.lane.b32.xlu0 %v5450, 24
        %v5746 = vpop.permute.xlu0 %5745
        %5747 = vrot.lane.b32.xlu0 %v5451, 24
        %v5748 = vpop.permute.xlu0 %5747
        %5749 = vrot.lane.b32.xlu0 %v5452, 24
        %v5750 = vpop.permute.xlu0 %5749
        %5751 = vrot.lane.b32.xlu0 %v5453, 24
        %v5752 = vpop.permute.xlu0 %5751
        %5753 = vrot.lane.b32.xlu0 %v5454, 24
        %v5754 = vpop.permute.xlu0 %5753
        %5755 = vrot.lane.b32.xlu0 %v5455, 24
        %v5756 = vpop.permute.xlu0 %5755
        %5757 = vrot.lane.b32.xlu0 %v5456, 24
        %v5758 = vpop.permute.xlu0 %5757
        %5759 = vrot.lane.b32.xlu0 %v5457, 24
        %v5760 = vpop.permute.xlu0 %5759
        %5761 = vrot.lane.b32.xlu0 %v5458, 24
        %v5762 = vpop.permute.xlu0 %5761
        %5763 = vrot.lane.b32.xlu0 %v5459, 24
        %v5764 = vpop.permute.xlu0 %5763
        %5765 = vrot.lane.b32.xlu0 %v5460, 24
        %v5766 = vpop.permute.xlu0 %5765
        %5767 = vrot.lane.b32.xlu0 %v5461, 24
        %v5768 = vpop.permute.xlu0 %5767
        %5769 = vrot.lane.b32.xlu0 %v5462, 24
        %v5770 = vpop.permute.xlu0 %5769
        %5771 = vrot.lane.b32.xlu0 %v5463, 24
        %v5772 = vpop.permute.xlu0 %5771
        %5773 = vrot.lane.b32.xlu0 %v5464, 24
        %v5774 = vpop.permute.xlu0 %5773
        %5775 = vrot.lane.b32.xlu0 %v5465, 24
        %v5776 = vpop.permute.xlu0 %5775
        %5777 = vrot.lane.b32.xlu0 %v5466, 24
        %v5778 = vpop.permute.xlu0 %5777
        %5779 = vrot.lane.b32.xlu0 %v5467, 24
        %v5780 = vpop.permute.xlu0 %5779
        %5781 = vrot.lane.b32.xlu0 %v5468, 24
        %v5782 = vpop.permute.xlu0 %5781
        %5783 = vrot.lane.b32.xlu0 %v5469, 24
        %v5784 = vpop.permute.xlu0 %5783
        %5785 = vrot.lane.b32.xlu0 %v5470, 24
        %v5786 = vpop.permute.xlu0 %5785
        %5787 = vrot.lane.b32.xlu0 %v5471, 24
        %v5788 = vpop.permute.xlu0 %5787
        %5789 = vrot.lane.b32.xlu0 %v5472, 24
        %v5790 = vpop.permute.xlu0 %5789
        %5791 = vrot.lane.b32.xlu0 %v5473, 24
        %v5792 = vpop.permute.xlu0 %5791
        %5793 = vrot.lane.b32.xlu0 %v5474, 24
        %v5794 = vpop.permute.xlu0 %5793
        %5859 = vrot.lane.b32.xlu0 %v5475, 48
        %v5860 = vpop.permute.xlu0 %5859
        %5861 = vrot.lane.b32.xlu0 %v5476, 48
        %v5862 = vpop.permute.xlu0 %5861
        %5863 = vrot.lane.b32.xlu0 %v5477, 48
        %v5864 = vpop.permute.xlu0 %5863
        %5865 = vrot.lane.b32.xlu0 %v5478, 48
        %v5866 = vpop.permute.xlu0 %5865
        %5867 = vrot.lane.b32.xlu0 %v5479, 48
        %v5868 = vpop.permute.xlu0 %5867
        %5869 = vrot.lane.b32.xlu0 %v5480, 48
        %v5870 = vpop.permute.xlu0 %5869
        %5871 = vrot.lane.b32.xlu0 %v5481, 48
        %v5872 = vpop.permute.xlu0 %5871
        %5873 = vrot.lane.b32.xlu0 %v5482, 48
        %v5874 = vpop.permute.xlu0 %5873
        %5875 = vrot.lane.b32.xlu0 %v5483, 48
        %v5876 = vpop.permute.xlu0 %5875
        %5877 = vrot.lane.b32.xlu0 %v5484, 48
        %v5878 = vpop.permute.xlu0 %5877
        %5879 = vrot.lane.b32.xlu0 %v5485, 48
        %v5880 = vpop.permute.xlu0 %5879
        %5881 = vrot.lane.b32.xlu0 %v5486, 48
        %v5882 = vpop.permute.xlu0 %5881
        %5883 = vrot.lane.b32.xlu0 %v5487, 48
        %v5884 = vpop.permute.xlu0 %5883
        %5885 = vrot.lane.b32.xlu0 %v5488, 48
        %v5886 = vpop.permute.xlu0 %5885
        %5887 = vrot.lane.b32.xlu0 %v5489, 48
        %v5888 = vpop.permute.xlu0 %5887
        %5889 = vrot.lane.b32.xlu0 %v5490, 48
        %v5890 = vpop.permute.xlu0 %5889
        %5891 = vrot.lane.b32.xlu0 %v5491, 48
        %v5892 = vpop.permute.xlu0 %5891
        %5893 = vrot.lane.b32.xlu0 %v5492, 48
        %v5894 = vpop.permute.xlu0 %5893
        %5895 = vrot.lane.b32.xlu0 %v5493, 48
        %v5896 = vpop.permute.xlu0 %5895
        %5897 = vrot.lane.b32.xlu0 %v5494, 48
        %v5898 = vpop.permute.xlu0 %5897
        %5899 = vrot.lane.b32.xlu0 %v5495, 48
        %v5900 = vpop.permute.xlu0 %5899
        %5901 = vrot.lane.b32.xlu0 %v5496, 48
        %v5902 = vpop.permute.xlu0 %5901
        %5903 = vrot.lane.b32.xlu0 %v5497, 48
        %v5904 = vpop.permute.xlu0 %5903
        %5905 = vrot.lane.b32.xlu0 %v5498, 48
        %v5906 = vpop.permute.xlu0 %5905
        %5907 = vrot.lane.b32.xlu0 %v5499, 48
        %v5908 = vpop.permute.xlu0 %5907
        %5909 = vrot.lane.b32.xlu0 %v5500, 48
        %v5910 = vpop.permute.xlu0 %5909
        %5911 = vrot.lane.b32.xlu0 %v5501, 48
        %v5912 = vpop.permute.xlu0 %5911
        %5913 = vrot.lane.b32.xlu0 %v5502, 48
        %v5914 = vpop.permute.xlu0 %5913
        %5915 = vrot.lane.b32.xlu0 %v5503, 48
        %v5916 = vpop.permute.xlu0 %5915
        %5917 = vrot.lane.b32.xlu0 %v5504, 48
        %v5918 = vpop.permute.xlu0 %5917
        %5919 = vrot.lane.b32.xlu0 %v5505, 48
        %v5920 = vpop.permute.xlu0 %5919
        %5921 = vrot.lane.b32.xlu0 %v5506, 48
        %v5922 = vpop.permute.xlu0 %5921
        %5987 = vrot.lane.b32.xlu0 %v5507, 72
        %v5988 = vpop.permute.xlu0 %5987
        %5989 = vrot.lane.b32.xlu0 %v5508, 72
        %v5990 = vpop.permute.xlu0 %5989
        %5991 = vrot.lane.b32.xlu0 %v5509, 72
        %v5992 = vpop.permute.xlu0 %5991
        %5993 = vrot.lane.b32.xlu0 %v5510, 72
        %v5994 = vpop.permute.xlu0 %5993
        %5995 = vrot.lane.b32.xlu0 %v5511, 72
        %v5996 = vpop.permute.xlu0 %5995
        %5997 = vrot.lane.b32.xlu0 %v5512, 72
        %v5998 = vpop.permute.xlu0 %5997
        %5999 = vrot.lane.b32.xlu0 %v5513, 72
        %v6000 = vpop.permute.xlu0 %5999
        %6001 = vrot.lane.b32.xlu0 %v5514, 72
        %v6002 = vpop.permute.xlu0 %6001
        %6003 = vrot.lane.b32.xlu0 %v5515, 72
        %v6004 = vpop.permute.xlu0 %6003
        %6005 = vrot.lane.b32.xlu0 %v5516, 72
        %v6006 = vpop.permute.xlu0 %6005
        %6007 = vrot.lane.b32.xlu0 %v5517, 72
        %v6008 = vpop.permute.xlu0 %6007
        %6009 = vrot.lane.b32.xlu0 %v5518, 72
        %v6010 = vpop.permute.xlu0 %6009
        %6011 = vrot.lane.b32.xlu0 %v5519, 72
        %v6012 = vpop.permute.xlu0 %6011
        %6013 = vrot.lane.b32.xlu0 %v5520, 72
        %v6014 = vpop.permute.xlu0 %6013
        %6015 = vrot.lane.b32.xlu0 %v5521, 72
        %v6016 = vpop.permute.xlu0 %6015
        %6017 = vrot.lane.b32.xlu0 %v5522, 72
        %v6018 = vpop.permute.xlu0 %6017
        %6019 = vrot.lane.b32.xlu0 %v5523, 72
        %v6020 = vpop.permute.xlu0 %6019
        %6021 = vrot.lane.b32.xlu0 %v5524, 72
        %v6022 = vpop.permute.xlu0 %6021
        %6023 = vrot.lane.b32.xlu0 %v5525, 72
        %v6024 = vpop.permute.xlu0 %6023
        %6025 = vrot.lane.b32.xlu0 %v5526, 72
        %v6026 = vpop.permute.xlu0 %6025
        %6027 = vrot.lane.b32.xlu0 %v5527, 72
        %v6028 = vpop.permute.xlu0 %6027
        %6029 = vrot.lane.b32.xlu0 %v5528, 72
        %v6030 = vpop.permute.xlu0 %6029
        %6031 = vrot.lane.b32.xlu0 %v5529, 72
        %v6032 = vpop.permute.xlu0 %6031
        %6033 = vrot.lane.b32.xlu0 %v5530, 72
        %v6034 = vpop.permute.xlu0 %6033
        %6035 = vrot.lane.b32.xlu0 %v5531, 72
        %v6036 = vpop.permute.xlu0 %6035
        %6037 = vrot.lane.b32.xlu0 %v5532, 72
        %v6038 = vpop.permute.xlu0 %6037
        %6039 = vrot.lane.b32.xlu0 %v5533, 72
        %v6040 = vpop.permute.xlu0 %6039
        %6041 = vrot.lane.b32.xlu0 %v5534, 72
        %v6042 = vpop.permute.xlu0 %6041
        %6043 = vrot.lane.b32.xlu0 %v5535, 72
        %v6044 = vpop.permute.xlu0 %6043
        %6045 = vrot.lane.b32.xlu0 %v5536, 72
        %v6046 = vpop.permute.xlu0 %6045
        %6047 = vrot.lane.b32.xlu0 %v5537, 72
        %v6048 = vpop.permute.xlu0 %6047
        %6049 = vrot.lane.b32.xlu0 %v5538, 72
        %v6050 = vpop.permute.xlu0 %6049
        %6115 = vrot.lane.b32.xlu0 %v5539, 96
        %v6116 = vpop.permute.xlu0 %6115
        %6117 = vrot.lane.b32.xlu0 %v5540, 96
        %v6118 = vpop.permute.xlu0 %6117
        %6119 = vrot.lane.b32.xlu0 %v5541, 96
        %v6120 = vpop.permute.xlu0 %6119
        %6121 = vrot.lane.b32.xlu0 %v5542, 96
        %v6122 = vpop.permute.xlu0 %6121
        %6123 = vrot.lane.b32.xlu0 %v5543, 96
        %v6124 = vpop.permute.xlu0 %6123
        %6125 = vrot.lane.b32.xlu0 %v5544, 96
        %v6126 = vpop.permute.xlu0 %6125
        %6127 = vrot.lane.b32.xlu0 %v5545, 96
        %v6128 = vpop.permute.xlu0 %6127
        %6129 = vrot.lane.b32.xlu0 %v5546, 96
        %v6130 = vpop.permute.xlu0 %6129
        %6131 = vrot.lane.b32.xlu0 %v5547, 96
        %v6132 = vpop.permute.xlu0 %6131
        %6133 = vrot.lane.b32.xlu0 %v5548, 96
        %v6134 = vpop.permute.xlu0 %6133
        %6135 = vrot.lane.b32.xlu0 %v5549, 96
        %v6136 = vpop.permute.xlu0 %6135
        %6137 = vrot.lane.b32.xlu0 %v5550, 96
        %v6138 = vpop.permute.xlu0 %6137
        %6139 = vrot.lane.b32.xlu0 %v5551, 96
        %v6140 = vpop.permute.xlu0 %6139
        %6141 = vrot.lane.b32.xlu0 %v5552, 96
        %v6142 = vpop.permute.xlu0 %6141
        %6143 = vrot.lane.b32.xlu0 %v5553, 96
        %v6144 = vpop.permute.xlu0 %6143
        %6145 = vrot.lane.b32.xlu0 %v5554, 96
        %v6146 = vpop.permute.xlu0 %6145
        %6147 = vrot.lane.b32.xlu0 %v5555, 96
        %v6148 = vpop.permute.xlu0 %6147
        %6149 = vrot.lane.b32.xlu0 %v5556, 96
        %v6150 = vpop.permute.xlu0 %6149
        %6151 = vrot.lane.b32.xlu0 %v5557, 96
        %v6152 = vpop.permute.xlu0 %6151
        %6153 = vrot.lane.b32.xlu0 %v5558, 96
        %v6154 = vpop.permute.xlu0 %6153
        %6155 = vrot.lane.b32.xlu0 %v5559, 96
        %v6156 = vpop.permute.xlu0 %6155
        %6157 = vrot.lane.b32.xlu0 %v5560, 96
        %v6158 = vpop.permute.xlu0 %6157
        %6159 = vrot.lane.b32.xlu0 %v5561, 96
        %v6160 = vpop.permute.xlu0 %6159
        %6161 = vrot.lane.b32.xlu0 %v5562, 96
        %v6162 = vpop.permute.xlu0 %6161
        %6163 = vrot.lane.b32.xlu0 %v5563, 96
        %v6164 = vpop.permute.xlu0 %6163
        %6165 = vrot.lane.b32.xlu0 %v5564, 96
        %v6166 = vpop.permute.xlu0 %6165
        %6167 = vrot.lane.b32.xlu0 %v5565, 96
        %v6168 = vpop.permute.xlu0 %6167
        %6169 = vrot.lane.b32.xlu0 %v5566, 96
        %v6170 = vpop.permute.xlu0 %6169
        %6171 = vrot.lane.b32.xlu0 %v5567, 96
        %v6172 = vpop.permute.xlu0 %6171
        %6173 = vrot.lane.b32.xlu0 %v5568, 96
        %v6174 = vpop.permute.xlu0 %6173
        %6175 = vrot.lane.b32.xlu0 %v5569, 96
        %v6176 = vpop.permute.xlu0 %6175
        %6177 = vrot.lane.b32.xlu0 %v5570, 96
        %v6178 = vpop.permute.xlu0 %6177
        %6243 = vrot.lane.b32.xlu0 %v5571, 120
        %v6244 = vpop.permute.xlu0 %6243
        %6245 = vrot.lane.b32.xlu0 %v5572, 120
        %v6246 = vpop.permute.xlu0 %6245
        %6247 = vrot.lane.b32.xlu0 %v5573, 120
        %v6248 = vpop.permute.xlu0 %6247
        %6249 = vrot.lane.b32.xlu0 %v5574, 120
        %v6250 = vpop.permute.xlu0 %6249
        %6251 = vrot.lane.b32.xlu0 %v5575, 120
        %v6252 = vpop.permute.xlu0 %6251
        %6253 = vrot.lane.b32.xlu0 %v5576, 120
        %v6254 = vpop.permute.xlu0 %6253
        %6255 = vrot.lane.b32.xlu0 %v5577, 120
        %v6256 = vpop.permute.xlu0 %6255
        %6257 = vrot.lane.b32.xlu0 %v5578, 120
        %v6258 = vpop.permute.xlu0 %6257
        %6259 = vrot.lane.b32.xlu0 %v5579, 120
        %v6260 = vpop.permute.xlu0 %6259
        %6261 = vrot.lane.b32.xlu0 %v5580, 120
        %v6262 = vpop.permute.xlu0 %6261
        %6263 = vrot.lane.b32.xlu0 %v5581, 120
        %v6264 = vpop.permute.xlu0 %6263
        %6265 = vrot.lane.b32.xlu0 %v5582, 120
        %v6266 = vpop.permute.xlu0 %6265
        %6267 = vrot.lane.b32.xlu0 %v5583, 120
        %v6268 = vpop.permute.xlu0 %6267
        %6269 = vrot.lane.b32.xlu0 %v5584, 120
        %v6270 = vpop.permute.xlu0 %6269
        %6271 = vrot.lane.b32.xlu0 %v5585, 120
        %v6272 = vpop.permute.xlu0 %6271
        %6273 = vrot.lane.b32.xlu0 %v5586, 120
        %v6274 = vpop.permute.xlu0 %6273
        %6275 = vrot.lane.b32.xlu0 %v5587, 120
        %v6276 = vpop.permute.xlu0 %6275
        %6277 = vrot.lane.b32.xlu0 %v5588, 120
        %v6278 = vpop.permute.xlu0 %6277
        %6279 = vrot.lane.b32.xlu0 %v5589, 120
        %v6280 = vpop.permute.xlu0 %6279
        %6281 = vrot.lane.b32.xlu0 %v5590, 120
        %v6282 = vpop.permute.xlu0 %6281
        %6283 = vrot.lane.b32.xlu0 %v5591, 120
        %v6284 = vpop.permute.xlu0 %6283
        %6285 = vrot.lane.b32.xlu0 %v5592, 120
        %v6286 = vpop.permute.xlu0 %6285
        %6287 = vrot.lane.b32.xlu0 %v5593, 120
        %v6288 = vpop.permute.xlu0 %6287
        %6289 = vrot.lane.b32.xlu0 %v5594, 120
        %v6290 = vpop.permute.xlu0 %6289
        %6291 = vrot.lane.b32.xlu0 %v5595, 120
        %v6292 = vpop.permute.xlu0 %6291
        %6293 = vrot.lane.b32.xlu0 %v5596, 120
        %v6294 = vpop.permute.xlu0 %6293
        %6295 = vrot.lane.b32.xlu0 %v5597, 120
        %v6296 = vpop.permute.xlu0 %6295
        %6297 = vrot.lane.b32.xlu0 %v5598, 120
        %v6298 = vpop.permute.xlu0 %6297
        %6299 = vrot.lane.b32.xlu0 %v5599, 120
        %v6300 = vpop.permute.xlu0 %6299
        %6301 = vrot.lane.b32.xlu0 %v5600, 120
        %v6302 = vpop.permute.xlu0 %6301
        %6303 = vrot.lane.b32.xlu0 %v5601, 120
        %v6304 = vpop.permute.xlu0 %6303
        %6305 = vrot.lane.b32.xlu0 %v5602, 120
        %v6306 = vpop.permute.xlu0 %6305
        %6371 = vrot.lane.b32.xlu0 %v5603, 16
        %v6372 = vpop.permute.xlu0 %6371
        %6373 = vrot.lane.b32.xlu0 %v5604, 16
        %v6374 = vpop.permute.xlu0 %6373
        %6375 = vrot.lane.b32.xlu0 %v5605, 16
        %v6376 = vpop.permute.xlu0 %6375
        %6377 = vrot.lane.b32.xlu0 %v5606, 16
        %v6378 = vpop.permute.xlu0 %6377
        %6379 = vrot.lane.b32.xlu0 %v5607, 16
        %v6380 = vpop.permute.xlu0 %6379
        %6381 = vrot.lane.b32.xlu0 %v5608, 16
        %v6382 = vpop.permute.xlu0 %6381
        %6383 = vrot.lane.b32.xlu0 %v5609, 16
        %v6384 = vpop.permute.xlu0 %6383
        %6385 = vrot.lane.b32.xlu0 %v5610, 16
        %v6386 = vpop.permute.xlu0 %6385
        %6387 = vrot.lane.b32.xlu0 %v5611, 16
        %v6388 = vpop.permute.xlu0 %6387
        %6389 = vrot.lane.b32.xlu0 %v5612, 16
        %v6390 = vpop.permute.xlu0 %6389
        %6391 = vrot.lane.b32.xlu0 %v5613, 16
        %v6392 = vpop.permute.xlu0 %6391
        %6393 = vrot.lane.b32.xlu0 %v5614, 16
        %v6394 = vpop.permute.xlu0 %6393
        %6395 = vrot.lane.b32.xlu0 %v5615, 16
        %v6396 = vpop.permute.xlu0 %6395
        %6397 = vrot.lane.b32.xlu0 %v5616, 16
        %v6398 = vpop.permute.xlu0 %6397
        %6399 = vrot.lane.b32.xlu0 %v5617, 16
        %v6400 = vpop.permute.xlu0 %6399
        %6401 = vrot.lane.b32.xlu0 %v5618, 16
        %v6402 = vpop.permute.xlu0 %6401
        %6403 = vrot.lane.b32.xlu0 %v5619, 16
        %v6404 = vpop.permute.xlu0 %6403
        %6405 = vrot.lane.b32.xlu0 %v5620, 16
        %v6406 = vpop.permute.xlu0 %6405
        %6407 = vrot.lane.b32.xlu0 %v5621, 16
        %v6408 = vpop.permute.xlu0 %6407
        %6409 = vrot.lane.b32.xlu0 %v5622, 16
        %v6410 = vpop.permute.xlu0 %6409
        %6411 = vrot.lane.b32.xlu0 %v5623, 16
        %v6412 = vpop.permute.xlu0 %6411
        %6413 = vrot.lane.b32.xlu0 %v5624, 16
        %v6414 = vpop.permute.xlu0 %6413
        %6415 = vrot.lane.b32.xlu0 %v5625, 16
        %v6416 = vpop.permute.xlu0 %6415
        %6417 = vrot.lane.b32.xlu0 %v5626, 16
        %v6418 = vpop.permute.xlu0 %6417
        %6419 = vrot.lane.b32.xlu0 %v5627, 16
        %v6420 = vpop.permute.xlu0 %6419
        %6421 = vrot.lane.b32.xlu0 %v5628, 16
        %v6422 = vpop.permute.xlu0 %6421
        %6423 = vrot.lane.b32.xlu0 %v5629, 16
        %v6424 = vpop.permute.xlu0 %6423
        %6425 = vrot.lane.b32.xlu0 %v5630, 16
        %v6426 = vpop.permute.xlu0 %6425
        %6427 = vrot.lane.b32.xlu0 %v5631, 16
        %v6428 = vpop.permute.xlu0 %6427
        %6429 = vrot.lane.b32.xlu0 %v5632, 16
        %v6430 = vpop.permute.xlu0 %6429
        %6431 = vrot.lane.b32.xlu0 %v5633, 16
        %v6432 = vpop.permute.xlu0 %6431
        %6433 = vrot.lane.b32.xlu0 %v5634, 16
        %v6434 = vpop.permute.xlu0 %6433
        %6499 = vrot.lane.b32.xlu0 %v5635, 40
        %v6500 = vpop.permute.xlu0 %6499
        %6501 = vrot.lane.b32.xlu0 %v5636, 40
        %v6502 = vpop.permute.xlu0 %6501
        %6503 = vrot.lane.b32.xlu0 %v5637, 40
        %v6504 = vpop.permute.xlu0 %6503
        %6505 = vrot.lane.b32.xlu0 %v5638, 40
        %v6506 = vpop.permute.xlu0 %6505
        %6507 = vrot.lane.b32.xlu0 %v5639, 40
        %v6508 = vpop.permute.xlu0 %6507
        %6509 = vrot.lane.b32.xlu0 %v5640, 40
        %v6510 = vpop.permute.xlu0 %6509
        %6511 = vrot.lane.b32.xlu0 %v5641, 40
        %v6512 = vpop.permute.xlu0 %6511
        %6513 = vrot.lane.b32.xlu0 %v5642, 40
        %v6514 = vpop.permute.xlu0 %6513
        %6515 = vrot.lane.b32.xlu0 %v5643, 40
        %v6516 = vpop.permute.xlu0 %6515
        %6517 = vrot.lane.b32.xlu0 %v5644, 40
        %v6518 = vpop.permute.xlu0 %6517
        %6519 = vrot.lane.b32.xlu0 %v5645, 40
        %v6520 = vpop.permute.xlu0 %6519
        %6521 = vrot.lane.b32.xlu0 %v5646, 40
        %v6522 = vpop.permute.xlu0 %6521
        %6523 = vrot.lane.b32.xlu0 %v5647, 40
        %v6524 = vpop.permute.xlu0 %6523
        %6525 = vrot.lane.b32.xlu0 %v5648, 40
        %v6526 = vpop.permute.xlu0 %6525
        %6527 = vrot.lane.b32.xlu0 %v5649, 40
        %v6528 = vpop.permute.xlu0 %6527
        %6529 = vrot.lane.b32.xlu0 %v5650, 40
        %v6530 = vpop.permute.xlu0 %6529
        %6531 = vrot.lane.b32.xlu0 %v5651, 40
        %v6532 = vpop.permute.xlu0 %6531
        %6533 = vrot.lane.b32.xlu0 %v5652, 40
        %v6534 = vpop.permute.xlu0 %6533
        %6535 = vrot.lane.b32.xlu0 %v5653, 40
        %v6536 = vpop.permute.xlu0 %6535
        %6537 = vrot.lane.b32.xlu0 %v5654, 40
        %v6538 = vpop.permute.xlu0 %6537
        %6539 = vrot.lane.b32.xlu0 %v5655, 40
        %v6540 = vpop.permute.xlu0 %6539
        %6541 = vrot.lane.b32.xlu0 %v5656, 40
        %v6542 = vpop.permute.xlu0 %6541
        %6543 = vrot.lane.b32.xlu0 %v5657, 40
        %v6544 = vpop.permute.xlu0 %6543
        %6545 = vrot.lane.b32.xlu0 %v5658, 40
        %v6546 = vpop.permute.xlu0 %6545
        %6547 = vrot.lane.b32.xlu0 %v5659, 40
        %v6548 = vpop.permute.xlu0 %6547
        %6549 = vrot.lane.b32.xlu0 %v5660, 40
        %v6550 = vpop.permute.xlu0 %6549
        %6551 = vrot.lane.b32.xlu0 %v5661, 40
        %v6552 = vpop.permute.xlu0 %6551
        %6553 = vrot.lane.b32.xlu0 %v5662, 40
        %v6554 = vpop.permute.xlu0 %6553
        %6555 = vrot.lane.b32.xlu0 %v5663, 40
        %v6556 = vpop.permute.xlu0 %6555
        %6557 = vrot.lane.b32.xlu0 %v5664, 40
        %v6558 = vpop.permute.xlu0 %6557
        %6559 = vrot.lane.b32.xlu0 %v5665, 40
        %v6560 = vpop.permute.xlu0 %6559
        %6561 = vrot.lane.b32.xlu0 %v5666, 40
        %v6562 = vpop.permute.xlu0 %6561
        %6627 = vrot.lane.b32.xlu0 %v5667, 64
        %v6628 = vpop.permute.xlu0 %6627
        %6629 = vrot.lane.b32.xlu0 %v5668, 64
        %v6630 = vpop.permute.xlu0 %6629
        %6631 = vrot.lane.b32.xlu0 %v5669, 64
        %v6632 = vpop.permute.xlu0 %6631
        %6633 = vrot.lane.b32.xlu0 %v5670, 64
        %v6634 = vpop.permute.xlu0 %6633
        %6635 = vrot.lane.b32.xlu0 %v5671, 64
        %v6636 = vpop.permute.xlu0 %6635
        %6637 = vrot.lane.b32.xlu0 %v5672, 64
        %v6638 = vpop.permute.xlu0 %6637
        %6639 = vrot.lane.b32.xlu0 %v5673, 64
        %v6640 = vpop.permute.xlu0 %6639
        %6641 = vrot.lane.b32.xlu0 %v5674, 64
        %v6642 = vpop.permute.xlu0 %6641
        %6643 = vrot.lane.b32.xlu0 %v5675, 64
        %v6644 = vpop.permute.xlu0 %6643
        %6645 = vrot.lane.b32.xlu0 %v5676, 64
        %v6646 = vpop.permute.xlu0 %6645
        %6647 = vrot.lane.b32.xlu0 %v5677, 64
        %v6648 = vpop.permute.xlu0 %6647
        %6649 = vrot.lane.b32.xlu0 %v5678, 64
        %v6650 = vpop.permute.xlu0 %6649
        %6651 = vrot.lane.b32.xlu0 %v5679, 64
        %v6652 = vpop.permute.xlu0 %6651
        %6653 = vrot.lane.b32.xlu0 %v5680, 64
        %v6654 = vpop.permute.xlu0 %6653
        %6655 = vrot.lane.b32.xlu0 %v5681, 64
        %v6656 = vpop.permute.xlu0 %6655
        %6657 = vrot.lane.b32.xlu0 %v5682, 64
        %v6658 = vpop.permute.xlu0 %6657
        %6659 = vrot.lane.b32.xlu0 %v5683, 64
        %v6660 = vpop.permute.xlu0 %6659
        %6661 = vrot.lane.b32.xlu0 %v5684, 64
        %v6662 = vpop.permute.xlu0 %6661
        %6663 = vrot.lane.b32.xlu0 %v5685, 64
        %v6664 = vpop.permute.xlu0 %6663
        %6665 = vrot.lane.b32.xlu0 %v5686, 64
        %v6666 = vpop.permute.xlu0 %6665
        %6667 = vrot.lane.b32.xlu0 %v5687, 64
        %v6668 = vpop.permute.xlu0 %6667
        %6669 = vrot.lane.b32.xlu0 %v5688, 64
        %v6670 = vpop.permute.xlu0 %6669
        %6671 = vrot.lane.b32.xlu0 %v5689, 64
        %v6672 = vpop.permute.xlu0 %6671
        %6673 = vrot.lane.b32.xlu0 %v5690, 64
        %v6674 = vpop.permute.xlu0 %6673
        %6675 = vrot.lane.b32.xlu0 %v5691, 64
        %v6676 = vpop.permute.xlu0 %6675
        %6677 = vrot.lane.b32.xlu0 %v5692, 64
        %v6678 = vpop.permute.xlu0 %6677
        %6679 = vrot.lane.b32.xlu0 %v5693, 64
        %v6680 = vpop.permute.xlu0 %6679
        %6681 = vrot.lane.b32.xlu0 %v5694, 64
        %v6682 = vpop.permute.xlu0 %6681
        %6683 = vrot.lane.b32.xlu0 %v5695, 64
        %v6684 = vpop.permute.xlu0 %6683
        %6685 = vrot.lane.b32.xlu0 %v5696, 64
        %v6686 = vpop.permute.xlu0 %6685
        %6687 = vrot.lane.b32.xlu0 %v5697, 64
        %v6688 = vpop.permute.xlu0 %6687
        %6689 = vrot.lane.b32.xlu0 %v5698, 64
        %v6690 = vpop.permute.xlu0 %6689
        %v6723 = vsel %vm5378, %v5411, %v5732
        %v6724 = vsel %vm5378, %v5412, %v5734
        %v6725 = vsel %vm5378, %v5413, %v5736
        %v6726 = vsel %vm5378, %v5414, %v5738
        %v6727 = vsel %vm5378, %v5415, %v5740
        %v6728 = vsel %vm5378, %v5416, %v5742
        %v6729 = vsel %vm5378, %v5417, %v5744
        %v6730 = vsel %vm5378, %v5418, %v5746
        %v6731 = vsel %vm5378, %v5419, %v5748
        %v6732 = vsel %vm5378, %v5420, %v5750
        %v6733 = vsel %vm5378, %v5421, %v5752
        %v6734 = vsel %vm5378, %v5422, %v5754
        %v6735 = vsel %vm5378, %v5423, %v5756
        %v6736 = vsel %vm5378, %v5424, %v5758
        %v6737 = vsel %vm5378, %v5425, %v5760
        %v6738 = vsel %vm5378, %v5426, %v5762
        %v6739 = vsel %vm5378, %v5427, %v5764
        %v6740 = vsel %vm5378, %v5428, %v5766
        %v6741 = vsel %vm5378, %v5429, %v5768
        %v6742 = vsel %vm5378, %v5430, %v5770
        %v6743 = vsel %vm5378, %v5431, %v5772
        %v6744 = vsel %vm5378, %v5432, %v5774
        %v6745 = vsel %vm5378, %v5433, %v5776
        %v6746 = vsel %vm5378, %v5434, %v5778
        %v6747 = vsel %vm5378, %v5435, %v5780
        %v6748 = vsel %vm5378, %v5436, %v5782
        %v6749 = vsel %vm5378, %v5437, %v5784
        %v6750 = vsel %vm5378, %v5438, %v5786
        %v6751 = vsel %vm5378, %v5439, %v5788
        %v6752 = vsel %vm5378, %v5440, %v5790
        %v6753 = vsel %vm5378, %v5441, %v5792
        %v6754 = vsel %vm5378, %v5442, %v5794
        %vm6755 = vcmask 392192
        %v6756 = vsel %vm6755, %v6723, %v5860
        %v6757 = vsel %vm6755, %v6724, %v5862
        %v6758 = vsel %vm6755, %v6725, %v5864
        %v6759 = vsel %vm6755, %v6726, %v5866
        %v6760 = vsel %vm6755, %v6727, %v5868
        %v6761 = vsel %vm6755, %v6728, %v5870
        %v6762 = vsel %vm6755, %v6729, %v5872
        %v6763 = vsel %vm6755, %v6730, %v5874
        %v6764 = vsel %vm6755, %v6731, %v5876
        %v6765 = vsel %vm6755, %v6732, %v5878
        %v6766 = vsel %vm6755, %v6733, %v5880
        %v6767 = vsel %vm6755, %v6734, %v5882
        %v6768 = vsel %vm6755, %v6735, %v5884
        %v6769 = vsel %vm6755, %v6736, %v5886
        %v6770 = vsel %vm6755, %v6737, %v5888
        %v6771 = vsel %vm6755, %v6738, %v5890
        %v6772 = vsel %vm6755, %v6739, %v5892
        %v6773 = vsel %vm6755, %v6740, %v5894
        %v6774 = vsel %vm6755, %v6741, %v5896
        %v6775 = vsel %vm6755, %v6742, %v5898
        %v6776 = vsel %vm6755, %v6743, %v5900
        %v6777 = vsel %vm6755, %v6744, %v5902
        %v6778 = vsel %vm6755, %v6745, %v5904
        %v6779 = vsel %vm6755, %v6746, %v5906
        %v6780 = vsel %vm6755, %v6747, %v5908
        %v6781 = vsel %vm6755, %v6748, %v5910
        %v6782 = vsel %vm6755, %v6749, %v5912
        %v6783 = vsel %vm6755, %v6750, %v5914
        %v6784 = vsel %vm6755, %v6751, %v5916
        %v6785 = vsel %vm6755, %v6752, %v5918
        %v6786 = vsel %vm6755, %v6753, %v5920
        %v6787 = vsel %vm6755, %v6754, %v5922
        %vm6788 = vcmask 588800
        %v6789 = vsel %vm6788, %v6756, %v5988
        %v6790 = vsel %vm6788, %v6757, %v5990
        %v6791 = vsel %vm6788, %v6758, %v5992
        %v6792 = vsel %vm6788, %v6759, %v5994
        %v6793 = vsel %vm6788, %v6760, %v5996
        %v6794 = vsel %vm6788, %v6761, %v5998
        %v6795 = vsel %vm6788, %v6762, %v6000
        %v6796 = vsel %vm6788, %v6763, %v6002
        %v6797 = vsel %vm6788, %v6764, %v6004
        %v6798 = vsel %vm6788, %v6765, %v6006
        %v6799 = vsel %vm6788, %v6766, %v6008
        %v6800 = vsel %vm6788, %v6767, %v6010
        %v6801 = vsel %vm6788, %v6768, %v6012
        %v6802 = vsel %vm6788, %v6769, %v6014
        %v6803 = vsel %vm6788, %v6770, %v6016
        %v6804 = vsel %vm6788, %v6771, %v6018
        %v6805 = vsel %vm6788, %v6772, %v6020
        %v6806 = vsel %vm6788, %v6773, %v6022
        %v6807 = vsel %vm6788, %v6774, %v6024
        %v6808 = vsel %vm6788, %v6775, %v6026
        %v6809 = vsel %vm6788, %v6776, %v6028
        %v6810 = vsel %vm6788, %v6777, %v6030
        %v6811 = vsel %vm6788, %v6778, %v6032
        %v6812 = vsel %vm6788, %v6779, %v6034
        %v6813 = vsel %vm6788, %v6780, %v6036
        %v6814 = vsel %vm6788, %v6781, %v6038
        %v6815 = vsel %vm6788, %v6782, %v6040
        %v6816 = vsel %vm6788, %v6783, %v6042
        %v6817 = vsel %vm6788, %v6784, %v6044
        %v6818 = vsel %vm6788, %v6785, %v6046
        %v6819 = vsel %vm6788, %v6786, %v6048
        %v6820 = vsel %vm6788, %v6787, %v6050
        %vm6821 = vcmask 785408
        %v6822 = vsel %vm6821, %v6789, %v6116
        %v6823 = vsel %vm6821, %v6790, %v6118
        %v6824 = vsel %vm6821, %v6791, %v6120
        %v6825 = vsel %vm6821, %v6792, %v6122
        %v6826 = vsel %vm6821, %v6793, %v6124
        %v6827 = vsel %vm6821, %v6794, %v6126
        %v6828 = vsel %vm6821, %v6795, %v6128
        %v6829 = vsel %vm6821, %v6796, %v6130
        %v6830 = vsel %vm6821, %v6797, %v6132
        %v6831 = vsel %vm6821, %v6798, %v6134
        %v6832 = vsel %vm6821, %v6799, %v6136
        %v6833 = vsel %vm6821, %v6800, %v6138
        %v6834 = vsel %vm6821, %v6801, %v6140
        %v6835 = vsel %vm6821, %v6802, %v6142
        %v6836 = vsel %vm6821, %v6803, %v6144
        %v6837 = vsel %vm6821, %v6804, %v6146
        %v6838 = vsel %vm6821, %v6805, %v6148
        %v6839 = vsel %vm6821, %v6806, %v6150
        %v6840 = vsel %vm6821, %v6807, %v6152
        %v6841 = vsel %vm6821, %v6808, %v6154
        %v6842 = vsel %vm6821, %v6809, %v6156
        %v6843 = vsel %vm6821, %v6810, %v6158
        %v6844 = vsel %vm6821, %v6811, %v6160
        %v6845 = vsel %vm6821, %v6812, %v6162
        %v6846 = vsel %vm6821, %v6813, %v6164
        %v6847 = vsel %vm6821, %v6814, %v6166
        %v6848 = vsel %vm6821, %v6815, %v6168
        %v6849 = vsel %vm6821, %v6816, %v6170
        %v6850 = vsel %vm6821, %v6817, %v6172
        %v6851 = vsel %vm6821, %v6818, %v6174
        %v6852 = vsel %vm6821, %v6819, %v6176
        %v6853 = vsel %vm6821, %v6820, %v6178
        %v6854 = vsel %vm4295, %v6822, %v6244
        %v6855 = vsel %vm4295, %v6823, %v6246
        %v6856 = vsel %vm4295, %v6824, %v6248
        %v6857 = vsel %vm4295, %v6825, %v6250
        %v6858 = vsel %vm4295, %v6826, %v6252
        %v6859 = vsel %vm4295, %v6827, %v6254
        %v6860 = vsel %vm4295, %v6828, %v6256
        %v6861 = vsel %vm4295, %v6829, %v6258
        %v6862 = vsel %vm4295, %v6830, %v6260
        %v6863 = vsel %vm4295, %v6831, %v6262
        %v6864 = vsel %vm4295, %v6832, %v6264
        %v6865 = vsel %vm4295, %v6833, %v6266
        %v6866 = vsel %vm4295, %v6834, %v6268
        %v6867 = vsel %vm4295, %v6835, %v6270
        %v6868 = vsel %vm4295, %v6836, %v6272
        %v6869 = vsel %vm4295, %v6837, %v6274
        %v6870 = vsel %vm4295, %v6838, %v6276
        %v6871 = vsel %vm4295, %v6839, %v6278
        %v6872 = vsel %vm4295, %v6840, %v6280
        %v6873 = vsel %vm4295, %v6841, %v6282
        %v6874 = vsel %vm4295, %v6842, %v6284
        %v6875 = vsel %vm4295, %v6843, %v6286
        %v6876 = vsel %vm4295, %v6844, %v6288
        %v6877 = vsel %vm4295, %v6845, %v6290
        %v6878 = vsel %vm4295, %v6846, %v6292
        %v6879 = vsel %vm4295, %v6847, %v6294
        %v6880 = vsel %vm4295, %v6848, %v6296
        %v6881 = vsel %vm4295, %v6849, %v6298
        %v6882 = vsel %vm4295, %v6850, %v6300
        %v6883 = vsel %vm4295, %v6851, %v6302
        %v6884 = vsel %vm4295, %v6852, %v6304
        %v6885 = vsel %vm4295, %v6853, %v6306
        %vm6886 = vcmask 130048
        %v6887 = vsel %vm6886, %v6244, %v6372
        %v6888 = vsel %vm6886, %v6246, %v6374
        %v6889 = vsel %vm6886, %v6248, %v6376
        %v6890 = vsel %vm6886, %v6250, %v6378
        %v6891 = vsel %vm6886, %v6252, %v6380
        %v6892 = vsel %vm6886, %v6254, %v6382
        %v6893 = vsel %vm6886, %v6256, %v6384
        %v6894 = vsel %vm6886, %v6258, %v6386
        %v6895 = vsel %vm6886, %v6260, %v6388
        %v6896 = vsel %vm6886, %v6262, %v6390
        %v6897 = vsel %vm6886, %v6264, %v6392
        %v6898 = vsel %vm6886, %v6266, %v6394
        %v6899 = vsel %vm6886, %v6268, %v6396
        %v6900 = vsel %vm6886, %v6270, %v6398
        %v6901 = vsel %vm6886, %v6272, %v6400
        %v6902 = vsel %vm6886, %v6274, %v6402
        %v6903 = vsel %vm6886, %v6276, %v6404
        %v6904 = vsel %vm6886, %v6278, %v6406
        %v6905 = vsel %vm6886, %v6280, %v6408
        %v6906 = vsel %vm6886, %v6282, %v6410
        %v6907 = vsel %vm6886, %v6284, %v6412
        %v6908 = vsel %vm6886, %v6286, %v6414
        %v6909 = vsel %vm6886, %v6288, %v6416
        %v6910 = vsel %vm6886, %v6290, %v6418
        %v6911 = vsel %vm6886, %v6292, %v6420
        %v6912 = vsel %vm6886, %v6294, %v6422
        %v6913 = vsel %vm6886, %v6296, %v6424
        %v6914 = vsel %vm6886, %v6298, %v6426
        %v6915 = vsel %vm6886, %v6300, %v6428
        %v6916 = vsel %vm6886, %v6302, %v6430
        %v6917 = vsel %vm6886, %v6304, %v6432
        %v6918 = vsel %vm6886, %v6306, %v6434
        %vm6919 = vcmask 326656
        %v6920 = vsel %vm6919, %v6887, %v6500
        %v6921 = vsel %vm6919, %v6888, %v6502
        %v6922 = vsel %vm6919, %v6889, %v6504
        %v6923 = vsel %vm6919, %v6890, %v6506
        %v6924 = vsel %vm6919, %v6891, %v6508
        %v6925 = vsel %vm6919, %v6892, %v6510
        %v6926 = vsel %vm6919, %v6893, %v6512
        %v6927 = vsel %vm6919, %v6894, %v6514
        %v6928 = vsel %vm6919, %v6895, %v6516
        %v6929 = vsel %vm6919, %v6896, %v6518
        %v6930 = vsel %vm6919, %v6897, %v6520
        %v6931 = vsel %vm6919, %v6898, %v6522
        %v6932 = vsel %vm6919, %v6899, %v6524
        %v6933 = vsel %vm6919, %v6900, %v6526
        %v6934 = vsel %vm6919, %v6901, %v6528
        %v6935 = vsel %vm6919, %v6902, %v6530
        %v6936 = vsel %vm6919, %v6903, %v6532
        %v6937 = vsel %vm6919, %v6904, %v6534
        %v6938 = vsel %vm6919, %v6905, %v6536
        %v6939 = vsel %vm6919, %v6906, %v6538
        %v6940 = vsel %vm6919, %v6907, %v6540
        %v6941 = vsel %vm6919, %v6908, %v6542
        %v6942 = vsel %vm6919, %v6909, %v6544
        %v6943 = vsel %vm6919, %v6910, %v6546
        %v6944 = vsel %vm6919, %v6911, %v6548
        %v6945 = vsel %vm6919, %v6912, %v6550
        %v6946 = vsel %vm6919, %v6913, %v6552
        %v6947 = vsel %vm6919, %v6914, %v6554
        %v6948 = vsel %vm6919, %v6915, %v6556
        %v6949 = vsel %vm6919, %v6916, %v6558
        %v6950 = vsel %vm6919, %v6917, %v6560
        %v6951 = vsel %vm6919, %v6918, %v6562
        %vm6952 = vcmask 523264
        %v6953 = vsel %vm6952, %v6920, %v6628
        %v6954 = vsel %vm6952, %v6921, %v6630
        %v6955 = vsel %vm6952, %v6922, %v6632
        %v6956 = vsel %vm6952, %v6923, %v6634
        %v6957 = vsel %vm6952, %v6924, %v6636
        %v6958 = vsel %vm6952, %v6925, %v6638
        %v6959 = vsel %vm6952, %v6926, %v6640
        %v6960 = vsel %vm6952, %v6927, %v6642
        %v6961 = vsel %vm6952, %v6928, %v6644
        %v6962 = vsel %vm6952, %v6929, %v6646
        %v6963 = vsel %vm6952, %v6930, %v6648
        %v6964 = vsel %vm6952, %v6931, %v6650
        %v6965 = vsel %vm6952, %v6932, %v6652
        %v6966 = vsel %vm6952, %v6933, %v6654
        %v6967 = vsel %vm6952, %v6934, %v6656
        %v6968 = vsel %vm6952, %v6935, %v6658
        %v6969 = vsel %vm6952, %v6936, %v6660
        %v6970 = vsel %vm6952, %v6937, %v6662
        %v6971 = vsel %vm6952, %v6938, %v6664
        %v6972 = vsel %vm6952, %v6939, %v6666
        %v6973 = vsel %vm6952, %v6940, %v6668
        %v6974 = vsel %vm6952, %v6941, %v6670
        %v6975 = vsel %vm6952, %v6942, %v6672
        %v6976 = vsel %vm6952, %v6943, %v6674
        %v6977 = vsel %vm6952, %v6944, %v6676
        %v6978 = vsel %vm6952, %v6945, %v6678
        %v6979 = vsel %vm6952, %v6946, %v6680
        %v6980 = vsel %vm6952, %v6947, %v6682
        %v6981 = vsel %vm6952, %v6948, %v6684
        %v6982 = vsel %vm6952, %v6949, %v6686
        %v6983 = vsel %vm6952, %v6950, %v6688
        %v6984 = vsel %vm6952, %v6951, %v6690
        %v6985 = vpack.c.bf16 %v6855, %v6854
        %v6986 = vpack.c.bf16 %v6954, %v6953
        %v6987 = vpack.c.bf16 %v6857, %v6856
        %v6988 = vpack.c.bf16 %v6956, %v6955
        %v6989 = vpack.c.bf16 %v6859, %v6858
        %v6990 = vpack.c.bf16 %v6958, %v6957
        %v6991 = vpack.c.bf16 %v6861, %v6860
        %v6992 = vpack.c.bf16 %v6960, %v6959
        %v6993 = vpack.c.bf16 %v6863, %v6862
        %v6994 = vpack.c.bf16 %v6962, %v6961
        %v6995 = vpack.c.bf16 %v6865, %v6864
        %v6996 = vpack.c.bf16 %v6964, %v6963
        %v6997 = vpack.c.bf16 %v6867, %v6866
        %v6998 = vpack.c.bf16 %v6966, %v6965
        %v6999 = vpack.c.bf16 %v6869, %v6868
        %v7000 = vpack.c.bf16 %v6968, %v6967
        %v7001 = vpack.c.bf16 %v6871, %v6870
        %v7002 = vpack.c.bf16 %v6970, %v6969
        %v7003 = vpack.c.bf16 %v6873, %v6872
        %v7004 = vpack.c.bf16 %v6972, %v6971
        %v7005 = vpack.c.bf16 %v6875, %v6874
        %v7006 = vpack.c.bf16 %v6974, %v6973
        %v7007 = vpack.c.bf16 %v6877, %v6876
        %v7008 = vpack.c.bf16 %v6976, %v6975
        %v7009 = vpack.c.bf16 %v6879, %v6878
        %v7010 = vpack.c.bf16 %v6978, %v6977
        %v7011 = vpack.c.bf16 %v6881, %v6880
        %v7012 = vpack.c.bf16 %v6980, %v6979
        %v7013 = vpack.c.bf16 %v6883, %v6882
        %v7014 = vpack.c.bf16 %v6982, %v6981
        %v7015 = vpack.c.bf16 %v6885, %v6884
        %v7016 = vpack.c.bf16 %v6984, %v6983
        %v7017 = vld [vmem:[%s9] sm:$0xf]
        %v7018 = vld [vmem:[%s9 + $0x4] sm:$0xf]
        %v7019 = vld [vmem:[%s9 + $0x8] sm:$0xf]
        %v7020 = vld [vmem:[%s9 + $0xc] sm:$0xf]
        %v7021 = vld [vmem:[%s9 + $0x10] sm:$0xf]
        %v7022 = vld [vmem:[%s9 + $0x14] sm:$0xf]
        %v7023 = vld [vmem:[%s9 + $0x18] sm:$0xf]
        %v7024 = vld [vmem:[%s9 + $0x1c] sm:$0xf]
        %v7025 = vld [vmem:[%s9 + $0x20] sm:$0xf]
        %v7026 = vld [vmem:[%s9 + $0x24] sm:$0xf]
        %v7027 = vld [vmem:[%s9 + $0x28] sm:$0xf]
        %v7028 = vld [vmem:[%s9 + $0x2c] sm:$0xf]
        %v7029 = vld [vmem:[%s9 + $0x30] sm:$0xf]
        %v7030 = vld [vmem:[%s9 + $0x34] sm:$0xf]
        %v7031 = vld [vmem:[%s9 + $0x38] sm:$0xf]
        %v7032 = vld [vmem:[%s9 + $0x3c] sm:$0xf]
        %v7033 = vld [vmem:[%s9 + $0x40] sm:$0xf]
        %v7034 = vld [vmem:[%s9 + $0x44] sm:$0xf]
        %v7035 = vld [vmem:[%s9 + $0x48] sm:$0xf]
        %v7036 = vld [vmem:[%s9 + $0x4c] sm:$0xf]
        %v7037 = vld [vmem:[%s9 + $0x50] sm:$0xf]
        %v7038 = vld [vmem:[%s9 + $0x54] sm:$0xf]
        %v7039 = vld [vmem:[%s9 + $0x58] sm:$0xf]
        %v7040 = vld [vmem:[%s9 + $0x5c] sm:$0xf]
        %v7041 = vld [vmem:[%s9 + $0x60] sm:$0xf]
        %v7042 = vld [vmem:[%s9 + $0x64] sm:$0xf]
        %v7043 = vld [vmem:[%s9 + $0x68] sm:$0xf]
        %v7044 = vld [vmem:[%s10] sm:$0x1]
        %v7046 = vlaneseq
        %v7047 = vshrl.u32 %v7046, 7
        %v7048 = vsub.s32 0, %v7047
        %v7049 = vrot.slane %v7044, %v7048
        %v7078 = vunpack.c.l.b16 %v7017
        %v7079 = vunpack.c.l.b16 %v7018
        %v7080 = vunpack.c.l.b16 %v7019
        %v7081 = vunpack.c.l.b16 %v7020
        %v7082 = vunpack.c.l.b16 %v7021
        %v7083 = vunpack.c.l.b16 %v7022
        %v7084 = vunpack.c.l.b16 %v7023
        %v7085 = vunpack.c.l.b16 %v7024
        %v7086 = vunpack.c.l.b16 %v7025
        %v7087 = vunpack.c.l.b16 %v7026
        %v7088 = vunpack.c.l.b16 %v7027
        %v7089 = vunpack.c.l.b16 %v7028
        %v7090 = vunpack.c.l.b16 %v7029
        %v7091 = vunpack.c.l.b16 %v7030
        %v7092 = vunpack.c.l.b16 %v7031
        %v7093 = vunpack.c.l.b16 %v7032
        %v7094 = vunpack.c.l.b16 %v7033
        %v7095 = vunpack.c.l.b16 %v7034
        %v7096 = vunpack.c.l.b16 %v7035
        %v7097 = vunpack.c.l.b16 %v7036
        %v7098 = vunpack.c.l.b16 %v7037
        %v7099 = vunpack.c.l.b16 %v7038
        %v7100 = vunpack.c.l.b16 %v7039
        %v7101 = vunpack.c.l.b16 %v7040
        %v7102 = vunpack.c.l.b16 %v7041
        %v7103 = vunpack.c.l.b16 %v7042
        %v7104 = vunpack.c.l.b16 %v7043
        %v7105 = vpack.c.b16 %v7079, %v7078
        %v7106 = vpack.c.b16 %v7081, %v7080
        %v7107 = vpack.c.b16 %v7083, %v7082
        %v7108 = vpack.c.b16 %v7085, %v7084
        %v7109 = vpack.c.b16 %v7087, %v7086
        %v7110 = vpack.c.b16 %v7089, %v7088
        %v7111 = vpack.c.b16 %v7091, %v7090
        %v7112 = vpack.c.b16 %v7093, %v7092
        %v7113 = vpack.c.b16 %v7095, %v7094
        %v7114 = vpack.c.b16 %v7097, %v7096
        %v7115 = vpack.c.b16 %v7099, %v7098
        %v7116 = vpack.c.b16 %v7101, %v7100
        %v7117 = vpack.c.b16 %v7103, %v7102
        %v7118 = vpack.c.b16 %v7104, %v7104
        %vm7132 = vcmask 719872
        %v7134 = vsel %vm7132, %v6986, 0
        %v7137 = vsel %vm7132, %v6988, 0
        %v7140 = vsel %vm7132, %v6990, 0
        %v7143 = vsel %vm7132, %v6992, 0
        %v7146 = vsel %vm7132, %v6994, 0
        %v7149 = vsel %vm7132, %v6996, 0
        %v7152 = vsel %vm7132, %v6998, 0
        %v7155 = vsel %vm7132, %v7000, 0
        %v7158 = vsel %vm7132, %v7002, 0
        %v7161 = vsel %vm7132, %v7004, 0
        %v7164 = vsel %vm7132, %v7006, 0
        %v7167 = vsel %vm7132, %v7008, 0
        %v7170 = vsel %vm7132, %v7010, 0
        %v7173 = vsel %vm7132, %v7012, 0
        %v7176 = vsel %vm7132, %v7014, 0
        %v7179 = vsel %vm7132, %v7016, 0
        %vm7181 = vcmask 1043456
        %v7183 = vsel %vm7181, %v7118, 0
        %7185 = vmatprep.subr.bf16.mxu0 0
        %7186 = vmatpush1.bf16.msra.mxu0 %v7112
        %7187 = vmatprep.subr.bf16.mxu0 0
        %7188 = vmatpush1.bf16.msra.mxu0 %v7111
        %7189 = vmatprep.subr.bf16.mxu0 0
        %7190 = vmatpush1.bf16.msra.mxu0 %v7110
        %7191 = vmatprep.subr.bf16.mxu0 0
        %7192 = vmatpush1.bf16.msra.mxu0 %v7109
        %7193 = vmatprep.subr.bf16.mxu0 0
        %7194 = vmatpush1.bf16.msra.mxu0 %v7108
        %7195 = vmatprep.subr.bf16.mxu0 0
        %7196 = vmatpush1.bf16.msra.mxu0 %v7107
        %7197 = vmatprep.subr.bf16.mxu0 0
        %7198 = vmatpush1.bf16.msra.mxu0 %v7106
        %7199 = vmatprep.subr.bf16.mxu0 0
        %7200 = vmatpush1.bf16.msra.mxu0 %v7105
        %7201 = vmatprep.subr.bf16.mxu0 0
        %7202 = vmatpush2.bf16.msra.mxu0 0
        %7203 = vmatprep.subr.bf16.mxu0 0
        %7204 = vmatpush2.bf16.msra.mxu0 0
        %7205 = vmatprep.subr.bf16.mxu0 0
        %7206 = vmatpush2.bf16.msra.mxu0 %v7183
        %7207 = vmatprep.subr.bf16.mxu0 0
        %7208 = vmatpush2.bf16.msra.mxu0 %v7117
        %7209 = vmatprep.subr.bf16.mxu0 0
        %7210 = vmatpush2.bf16.msra.mxu0 %v7116
        %7211 = vmatprep.subr.bf16.mxu0 0
        %7212 = vmatpush2.bf16.msra.mxu0 %v7115
        %7213 = vmatprep.subr.bf16.mxu0 0
        %7214 = vmatpush2.bf16.msra.mxu0 %v7114
        %7215 = vmatprep.subr.bf16.mxu0 0
        %7216 = vmatpush2.bf16.msra.mxu0 %v7113
        %7217 = vmatprep.mubr.bf16.mxu0 %v7134
        %7218 = vmatmul.mubr.bf16.gmra.mxu0 %v6985
        %v7219 = vpop.f32.mrf.mxu0
        %v7220 = vadd.f32 %v7049, %v7219
        %v7221 = vpop.f32.mrf.mxu0
        %v7222 = vpop.f32.mrf.mxu0
        %v7223 = vadd.f32 %v7049, %v7222
        %v7224 = vpop.f32.mrf.mxu0
        %7225 = vmatprep.mubr.bf16.mxu0 %v7137
        %7226 = vmatmul.mubr.bf16.gmra.mxu0 %v6987
        %v7227 = vpop.f32.mrf.mxu0
        %v7228 = vadd.f32 %v7049, %v7227
        %v7229 = vpop.f32.mrf.mxu0
        %v7230 = vpop.f32.mrf.mxu0
        %v7231 = vadd.f32 %v7049, %v7230
        %v7232 = vpop.f32.mrf.mxu0
        %7233 = vmatprep.mubr.bf16.mxu0 %v7140
        %7234 = vmatmul.mubr.bf16.gmra.mxu0 %v6989
        %v7235 = vpop.f32.mrf.mxu0
        %v7236 = vadd.f32 %v7049, %v7235
        %v7237 = vpop.f32.mrf.mxu0
        %v7238 = vpop.f32.mrf.mxu0
        %v7239 = vadd.f32 %v7049, %v7238
        %v7240 = vpop.f32.mrf.mxu0
        %7241 = vmatprep.mubr.bf16.mxu0 %v7143
        %7242 = vmatmul.mubr.bf16.gmra.mxu0 %v6991
        %v7243 = vpop.f32.mrf.mxu0
        %v7244 = vadd.f32 %v7049, %v7243
        %v7245 = vpop.f32.mrf.mxu0
        %v7246 = vpop.f32.mrf.mxu0
        %v7247 = vadd.f32 %v7049, %v7246
        %v7248 = vpop.f32.mrf.mxu0
        %7249 = vmatprep.mubr.bf16.mxu0 %v7146
        %7250 = vmatmul.mubr.bf16.gmra.mxu0 %v6993
        %v7251 = vpop.f32.mrf.mxu0
        %v7252 = vadd.f32 %v7049, %v7251
        %v7253 = vpop.f32.mrf.mxu0
        %v7254 = vpop.f32.mrf.mxu0
        %v7255 = vadd.f32 %v7049, %v7254
        %v7256 = vpop.f32.mrf.mxu0
        %7257 = vmatprep.mubr.bf16.mxu0 %v7149
        %7258 = vmatmul.mubr.bf16.gmra.mxu0 %v6995
        %v7259 = vpop.f32.mrf.mxu0
        %v7260 = vadd.f32 %v7049, %v7259
        %v7261 = vpop.f32.mrf.mxu0
        %v7262 = vpop.f32.mrf.mxu0
        %v7263 = vadd.f32 %v7049, %v7262
        %v7264 = vpop.f32.mrf.mxu0
        %7265 = vmatprep.mubr.bf16.mxu0 %v7152
        %7266 = vmatmul.mubr.bf16.gmra.mxu0 %v6997
        %v7267 = vpop.f32.mrf.mxu0
        %v7268 = vadd.f32 %v7049, %v7267
        %v7269 = vpop.f32.mrf.mxu0
        %v7270 = vpop.f32.mrf.mxu0
        %v7271 = vadd.f32 %v7049, %v7270
        %v7272 = vpop.f32.mrf.mxu0
        %7273 = vmatprep.mubr.bf16.mxu0 %v7155
        %7274 = vmatmul.mubr.bf16.gmra.mxu0 %v6999
        %v7275 = vpop.f32.mrf.mxu0
        %v7276 = vadd.f32 %v7049, %v7275
        %v7277 = vpop.f32.mrf.mxu0
        %v7278 = vpop.f32.mrf.mxu0
        %v7279 = vadd.f32 %v7049, %v7278
        %v7280 = vpop.f32.mrf.mxu0
        %7281 = vmatprep.mubr.bf16.mxu0 %v7158
        %7282 = vmatmul.mubr.bf16.gmra.mxu0 %v7001
        %v7283 = vpop.f32.mrf.mxu0
        %v7284 = vadd.f32 %v7049, %v7283
        %v7285 = vpop.f32.mrf.mxu0
        %v7286 = vpop.f32.mrf.mxu0
        %v7287 = vadd.f32 %v7049, %v7286
        %v7288 = vpop.f32.mrf.mxu0
        %7289 = vmatprep.mubr.bf16.mxu0 %v7161
        %7290 = vmatmul.mubr.bf16.gmra.mxu0 %v7003
        %v7291 = vpop.f32.mrf.mxu0
        %v7292 = vadd.f32 %v7049, %v7291
        %v7293 = vpop.f32.mrf.mxu0
        %v7294 = vpop.f32.mrf.mxu0
        %v7295 = vadd.f32 %v7049, %v7294
        %v7296 = vpop.f32.mrf.mxu0
        %7297 = vmatprep.mubr.bf16.mxu0 %v7164
        %7298 = vmatmul.mubr.bf16.gmra.mxu0 %v7005
        %v7299 = vpop.f32.mrf.mxu0
        %v7300 = vadd.f32 %v7049, %v7299
        %v7301 = vpop.f32.mrf.mxu0
        %v7302 = vpop.f32.mrf.mxu0
        %v7303 = vadd.f32 %v7049, %v7302
        %v7304 = vpop.f32.mrf.mxu0
        %7305 = vmatprep.mubr.bf16.mxu0 %v7167
        %7306 = vmatmul.mubr.bf16.gmra.mxu0 %v7007
        %v7307 = vpop.f32.mrf.mxu0
        %v7308 = vadd.f32 %v7049, %v7307
        %v7309 = vpop.f32.mrf.mxu0
        %v7310 = vpop.f32.mrf.mxu0
        %v7311 = vadd.f32 %v7049, %v7310
        %v7312 = vpop.f32.mrf.mxu0
        %7313 = vmatprep.mubr.bf16.mxu0 %v7170
        %7314 = vmatmul.mubr.bf16.gmra.mxu0 %v7009
        %v7315 = vpop.f32.mrf.mxu0
        %v7316 = vadd.f32 %v7049, %v7315
        %v7317 = vpop.f32.mrf.mxu0
        %v7318 = vpop.f32.mrf.mxu0
        %v7319 = vadd.f32 %v7049, %v7318
        %v7320 = vpop.f32.mrf.mxu0
        %7321 = vmatprep.mubr.bf16.mxu0 %v7173
        %7322 = vmatmul.mubr.bf16.gmra.mxu0 %v7011
        %v7323 = vpop.f32.mrf.mxu0
        %v7324 = vadd.f32 %v7049, %v7323
        %v7325 = vpop.f32.mrf.mxu0
        %v7326 = vpop.f32.mrf.mxu0
        %v7327 = vadd.f32 %v7049, %v7326
        %v7328 = vpop.f32.mrf.mxu0
        %7329 = vmatprep.mubr.bf16.mxu0 %v7176
        %7330 = vmatmul.mubr.bf16.gmra.mxu0 %v7013
        %v7331 = vpop.f32.mrf.mxu0
        %v7332 = vadd.f32 %v7049, %v7331
        %v7333 = vpop.f32.mrf.mxu0
        %v7334 = vpop.f32.mrf.mxu0
        %v7335 = vadd.f32 %v7049, %v7334
        %v7336 = vpop.f32.mrf.mxu0
        %7337 = vmatprep.mubr.bf16.mxu0 %v7179
        %7338 = vmatmul.mubr.bf16.gmra.mxu0 %v7015
        %v7339 = vpop.f32.mrf.mxu0
        %v7340 = vadd.f32 %v7049, %v7339
        %v7341 = vpop.f32.mrf.mxu0
        %v7342 = vpop.f32.mrf.mxu0
        %v7343 = vadd.f32 %v7049, %v7342
        %v7344 = vpop.f32.mrf.mxu0
        %7345 = vdwg.mxu0
        %v7346 = vadd.f32 %v5088, %v7220
        %v7347 = vadd.f32 %v5089, %v7223
        %v7348 = vadd.f32 %v5090, %v7228
        %v7349 = vadd.f32 %v5091, %v7231
        %v7350 = vadd.f32 %v5092, %v7236
        %v7351 = vadd.f32 %v5093, %v7239
        %v7352 = vadd.f32 %v5094, %v7244
        %v7353 = vadd.f32 %v5095, %v7247
        %v7354 = vadd.f32 %v5096, %v7252
        %v7355 = vadd.f32 %v5097, %v7255
        %v7356 = vadd.f32 %v5098, %v7260
        %v7357 = vadd.f32 %v5099, %v7263
        %v7358 = vadd.f32 %v5100, %v7268
        %v7359 = vadd.f32 %v5101, %v7271
        %v7360 = vadd.f32 %v5102, %v7276
        %v7361 = vadd.f32 %v5103, %v7279
        %v7362 = vadd.f32 %v5104, %v7284
        %v7363 = vadd.f32 %v5105, %v7287
        %v7364 = vadd.f32 %v5106, %v7292
        %v7365 = vadd.f32 %v5107, %v7295
        %v7366 = vadd.f32 %v5108, %v7300
        %v7367 = vadd.f32 %v5109, %v7303
        %v7368 = vadd.f32 %v5110, %v7308
        %v7369 = vadd.f32 %v5111, %v7311
        %v7370 = vadd.f32 %v5112, %v7316
        %v7371 = vadd.f32 %v5113, %v7319
        %v7372 = vadd.f32 %v5114, %v7324
        %v7373 = vadd.f32 %v5115, %v7327
        %v7374 = vadd.f32 %v5116, %v7332
        %v7375 = vadd.f32 %v5117, %v7335
        %v7376 = vadd.f32 %v5118, %v7340
        %v7377 = vadd.f32 %v5119, %v7343
        %7378 = vst.msk [vmem:[#allocation2] sm:$0xff] %vm2523, %v7346
        %7379 = vst.msk [vmem:[#allocation2 + $0x8] sm:$0xff] %vm2523, %v7347
        %7380 = vst.msk [vmem:[#allocation2 + $0x10] sm:$0xff] %vm2523, %v7348
        %7381 = vst.msk [vmem:[#allocation2 + $0x18] sm:$0xff] %vm2523, %v7349
        %7382 = vst.msk [vmem:[#allocation2 + $0x20] sm:$0xff] %vm2523, %v7350
        %7383 = vst.msk [vmem:[#allocation2 + $0x28] sm:$0xff] %vm2523, %v7351
        %7384 = vst.msk [vmem:[#allocation2 + $0x30] sm:$0xff] %vm2523, %v7352
        %7385 = vst.msk [vmem:[#allocation2 + $0x38] sm:$0xff] %vm2523, %v7353
        %7386 = vst.msk [vmem:[#allocation2 + $0x40] sm:$0xff] %vm2523, %v7354
        %7387 = vst.msk [vmem:[#allocation2 + $0x48] sm:$0xff] %vm2523, %v7355
        %7388 = vst.msk [vmem:[#allocation2 + $0x50] sm:$0xff] %vm2523, %v7356
        %7389 = vst.msk [vmem:[#allocation2 + $0x58] sm:$0xff] %vm2523, %v7357
        %7390 = vst.msk [vmem:[#allocation2 + $0x60] sm:$0xff] %vm2523, %v7358
        %7391 = vst.msk [vmem:[#allocation2 + $0x68] sm:$0xff] %vm2523, %v7359
        %7392 = vst.msk [vmem:[#allocation2 + $0x70] sm:$0xff] %vm2523, %v7360
        %7393 = vst.msk [vmem:[#allocation2 + $0x78] sm:$0xff] %vm2523, %v7361
        %7394 = vst.msk [vmem:[#allocation2 + $0x80] sm:$0xff] %vm2523, %v7362
        %7395 = vst.msk [vmem:[#allocation2 + $0x88] sm:$0xff] %vm2523, %v7363
        %7396 = vst.msk [vmem:[#allocation2 + $0x90] sm:$0xff] %vm2523, %v7364
        %7397 = vst.msk [vmem:[#allocation2 + $0x98] sm:$0xff] %vm2523, %v7365
        %7398 = vst.msk [vmem:[#allocation2 + $0xa0] sm:$0xff] %vm2523, %v7366
        %7399 = vst.msk [vmem:[#allocation2 + $0xa8] sm:$0xff] %vm2523, %v7367
        %7400 = vst.msk [vmem:[#allocation2 + $0xb0] sm:$0xff] %vm2523, %v7368
        %7401 = vst.msk [vmem:[#allocation2 + $0xb8] sm:$0xff] %vm2523, %v7369
        %7402 = vst.msk [vmem:[#allocation2 + $0xc0] sm:$0xff] %vm2523, %v7370
        %7403 = vst.msk [vmem:[#allocation2 + $0xc8] sm:$0xff] %vm2523, %v7371
        %7404 = vst.msk [vmem:[#allocation2 + $0xd0] sm:$0xff] %vm2523, %v7372
        %7405 = vst.msk [vmem:[#allocation2 + $0xd8] sm:$0xff] %vm2523, %v7373
        %7406 = vst.msk [vmem:[#allocation2 + $0xe0] sm:$0xff] %vm2523, %v7374
        %7407 = vst.msk [vmem:[#allocation2 + $0xe8] sm:$0xff] %vm2523, %v7375
        %7408 = vst.msk [vmem:[#allocation2 + $0xf0] sm:$0xff] %vm2523, %v7376
        %7409 = vst.msk [vmem:[#allocation2 + $0xf8] sm:$0xff] %vm2523, %v7377
        %v7410 = vld [vmem:[#allocation2] sm:$0xff]
        %v7411 = vld [vmem:[#allocation2 + $0x8] sm:$0xff]
        %v7412 = vld [vmem:[#allocation2 + $0x10] sm:$0xff]
        %v7413 = vld [vmem:[#allocation2 + $0x18] sm:$0xff]
        %v7414 = vld [vmem:[#allocation2 + $0x20] sm:$0xff]
        %v7415 = vld [vmem:[#allocation2 + $0x28] sm:$0xff]
        %v7416 = vld [vmem:[#allocation2 + $0x30] sm:$0xff]
        %v7417 = vld [vmem:[#allocation2 + $0x38] sm:$0xff]
        %v7418 = vld [vmem:[#allocation2 + $0x40] sm:$0xff]
        %v7419 = vld [vmem:[#allocation2 + $0x48] sm:$0xff]
        %v7420 = vld [vmem:[#allocation2 + $0x50] sm:$0xff]
        %v7421 = vld [vmem:[#allocation2 + $0x58] sm:$0xff]
        %v7422 = vld [vmem:[#allocation2 + $0x60] sm:$0xff]
        %v7423 = vld [vmem:[#allocation2 + $0x68] sm:$0xff]
        %v7424 = vld [vmem:[#allocation2 + $0x70] sm:$0xff]
        %v7425 = vld [vmem:[#allocation2 + $0x78] sm:$0xff]
        %v7426 = vld [vmem:[#allocation2 + $0x80] sm:$0xff]
        %v7427 = vld [vmem:[#allocation2 + $0x88] sm:$0xff]
        %v7428 = vld [vmem:[#allocation2 + $0x90] sm:$0xff]
        %v7429 = vld [vmem:[#allocation2 + $0x98] sm:$0xff]
        %v7430 = vld [vmem:[#allocation2 + $0xa0] sm:$0xff]
        %v7431 = vld [vmem:[#allocation2 + $0xa8] sm:$0xff]
        %v7432 = vld [vmem:[#allocation2 + $0xb0] sm:$0xff]
        %v7433 = vld [vmem:[#allocation2 + $0xb8] sm:$0xff]
        %v7434 = vld [vmem:[#allocation2 + $0xc0] sm:$0xff]
        %v7435 = vld [vmem:[#allocation2 + $0xc8] sm:$0xff]
        %v7436 = vld [vmem:[#allocation2 + $0xd0] sm:$0xff]
        %v7437 = vld [vmem:[#allocation2 + $0xd8] sm:$0xff]
        %v7438 = vld [vmem:[#allocation2 + $0xe0] sm:$0xff]
        %v7439 = vld [vmem:[#allocation2 + $0xe8] sm:$0xff]
        %v7440 = vld [vmem:[#allocation2 + $0xf0] sm:$0xff]
        %v7441 = vld [vmem:[#allocation2 + $0xf8] sm:$0xff]
        %v7442 = vsel %vm2523, %v7410, 0.0
        %v7443 = vsel %vm2523, %v7411, 0.0
        %v7444 = vadd.f32 %v7442, %v7443
        %v7445 = vsel %vm2523, %v7412, 0.0
        %v7446 = vadd.f32 %v7444, %v7445
        %v7447 = vsel %vm2523, %v7413, 0.0
        %v7448 = vadd.f32 %v7446, %v7447
        %v7449 = vsel %vm2523, %v7414, 0.0
        %v7450 = vadd.f32 %v7448, %v7449
        %v7451 = vsel %vm2523, %v7415, 0.0
        %v7452 = vadd.f32 %v7450, %v7451
        %v7453 = vsel %vm2523, %v7416, 0.0
        %v7454 = vadd.f32 %v7452, %v7453
        %v7455 = vsel %vm2523, %v7417, 0.0
        %v7456 = vadd.f32 %v7454, %v7455
        %v7457 = vsel %vm2523, %v7418, 0.0
        %v7458 = vadd.f32 %v7456, %v7457
        %v7459 = vsel %vm2523, %v7419, 0.0
        %v7460 = vadd.f32 %v7458, %v7459
        %v7461 = vsel %vm2523, %v7420, 0.0
        %v7462 = vadd.f32 %v7460, %v7461
        %v7463 = vsel %vm2523, %v7421, 0.0
        %v7464 = vadd.f32 %v7462, %v7463
        %v7465 = vsel %vm2523, %v7422, 0.0
        %v7466 = vadd.f32 %v7464, %v7465
        %v7467 = vsel %vm2523, %v7423, 0.0
        %v7468 = vadd.f32 %v7466, %v7467
        %v7469 = vsel %vm2523, %v7424, 0.0
        %v7470 = vadd.f32 %v7468, %v7469
        %v7471 = vsel %vm2523, %v7425, 0.0
        %v7472 = vadd.f32 %v7470, %v7471
        %v7473 = vsel %vm2523, %v7426, 0.0
        %v7474 = vadd.f32 %v7472, %v7473
        %v7475 = vsel %vm2523, %v7427, 0.0
        %v7476 = vadd.f32 %v7474, %v7475
        %v7477 = vsel %vm2523, %v7428, 0.0
        %v7478 = vadd.f32 %v7476, %v7477
        %v7479 = vsel %vm2523, %v7429, 0.0
        %v7480 = vadd.f32 %v7478, %v7479
        %v7481 = vsel %vm2523, %v7430, 0.0
        %v7482 = vadd.f32 %v7480, %v7481
        %v7483 = vsel %vm2523, %v7431, 0.0
        %v7484 = vadd.f32 %v7482, %v7483
        %v7485 = vsel %vm2523, %v7432, 0.0
        %v7486 = vadd.f32 %v7484, %v7485
        %v7487 = vsel %vm2523, %v7433, 0.0
        %v7488 = vadd.f32 %v7486, %v7487
        %v7489 = vsel %vm2523, %v7434, 0.0
        %v7490 = vadd.f32 %v7488, %v7489
        %v7491 = vsel %vm2523, %v7435, 0.0
        %v7492 = vadd.f32 %v7490, %v7491
        %v7493 = vsel %vm2523, %v7436, 0.0
        %v7494 = vadd.f32 %v7492, %v7493
        %v7495 = vsel %vm2523, %v7437, 0.0
        %v7496 = vadd.f32 %v7494, %v7495
        %v7497 = vsel %vm2523, %v7438, 0.0
        %v7498 = vadd.f32 %v7496, %v7497
        %v7499 = vsel %vm2523, %v7439, 0.0
        %v7500 = vadd.f32 %v7498, %v7499
        %v7501 = vsel %vm2523, %v7440, 0.0
        %v7502 = vadd.f32 %v7500, %v7501
        %v7503 = vsel %vm2523, %v7441, 0.0
        %v7504 = vadd.f32 %v7502, %v7503
        %v7505 = vrot.slane %v7504, 4
        %v7506 = vadd.f32 %v7504, %v7505
        %v7507 = vrot.slane %v7506, 2
        %v7508 = vadd.f32 %v7506, %v7507
        %v7509 = vrot.slane %v7508, 1
        %v7510 = vadd.f32 %v7508, %v7509
        %v7511 = vrcp.pop 256.0
        %v7512 = vmul.f32 %v7510, %v7511
        %v7513 = vld [vmem:[%s11] sm:$0x1]
        %v7514 = vmul.f32 %v7512, %v7513
        %v7515 = vld [vmem:[%s12] sm:$0x1]
        %v7516 = vadd.f32 %v7514, %v7515
        %v7517 = vld [vmem:[%s13] sm:$0xff]
        %v7518 = vld [vmem:[%s13 + $0x8] sm:$0xff]
        %v7519 = vld [vmem:[%s13 + $0x10] sm:$0xff]
        %v7520 = vld [vmem:[%s13 + $0x18] sm:$0xff]
        %v7521 = vld [vmem:[%s13 + $0x20] sm:$0xff]
        %v7522 = vld [vmem:[%s13 + $0x28] sm:$0x1f]
        %v7523 = vld [vmem:[%s14] sm:$0x1]
        %v7525 = vsel %vm2523, %v7516, 0
        %vm7527 = vcmask 1044480
        %v7529 = vsel %vm7527, %v7522, 0
        %7531 = vmatprep.subr.mxu0 0.0
        %7532 = vmatpush1.msra.mxu0 0.0
        %7533 = vmatprep.subr.mxu0 0.0
        %7534 = vmatpush1.msra.mxu0 0.0
        %7535 = vmatprep.subr.mxu0 0.0
        %7536 = vmatpush1.msra.mxu0 0.0
        %7537 = vmatprep.subr.mxu0 0.0
        %7538 = vmatpush1.msra.mxu0 0.0
        %7539 = vmatprep.subr.mxu0 0.0
        %7540 = vmatpush1.msra.mxu0 0.0
        %7541 = vmatprep.subr.mxu0 0.0
        %7542 = vmatpush1.msra.mxu0 0.0
        %7543 = vmatprep.subr.mxu0 0.0
        %7544 = vmatpush1.msra.mxu0 0.0
        %7545 = vmatprep.subr.mxu0 0.0
        %7546 = vmatpush1.msra.mxu0 0.0
        %7547 = vmatprep.subr.mxu0 0.0
        %7548 = vmatpush1.msra.mxu0 0.0
        %7549 = vmatprep.subr.mxu0 0.0
        %7550 = vmatpush1.msra.mxu0 0.0
        %7551 = vmatprep.subr.mxu0 0.0
        %7552 = vmatpush1.msra.mxu0 %v7529
        %7553 = vmatprep.subr.mxu0 0.0
        %7554 = vmatpush1.msra.mxu0 %v7521
        %7555 = vmatprep.subr.mxu0 0.0
        %7556 = vmatpush1.msra.mxu0 %v7520
        %7557 = vmatprep.subr.mxu0 0.0
        %7558 = vmatpush1.msra.mxu0 %v7519
        %7559 = vmatprep.subr.mxu0 0.0
        %7560 = vmatpush1.msra.mxu0 %v7518
        %7561 = vmatprep.subr.mxu0 0.0
        %7562 = vmatpush1.msra.mxu0 %v7517
        %7563 = vmatprep.subr.mxu0 0.0
        %7564 = vmatpush2.msra.mxu0 0.0
        %7565 = vmatprep.subr.mxu0 0.0
        %7566 = vmatpush2.msra.mxu0 0.0
        %7567 = vmatprep.subr.mxu0 0.0
        %7568 = vmatpush2.msra.mxu0 0.0
        %7569 = vmatprep.subr.mxu0 0.0
        %7570 = vmatpush2.msra.mxu0 0.0
        %7571 = vmatprep.subr.mxu0 0.0
        %7572 = vmatpush2.msra.mxu0 0.0
        %7573 = vmatprep.subr.mxu0 0.0
        %7574 = vmatpush2.msra.mxu0 0.0
        %7575 = vmatprep.subr.mxu0 0.0
        %7576 = vmatpush2.msra.mxu0 0.0
        %7577 = vmatprep.subr.mxu0 0.0
        %7578 = vmatpush2.msra.mxu0 0.0
        %7579 = vmatprep.subr.mxu0 0.0
        %7580 = vmatpush2.msra.mxu0 0.0
        %7581 = vmatprep.subr.mxu0 0.0
        %7582 = vmatpush2.msra.mxu0 0.0
        %7583 = vmatprep.subr.mxu0 0.0
        %7584 = vmatpush2.msra.mxu0 0.0
        %7585 = vmatprep.subr.mxu0 0.0
        %7586 = vmatpush2.msra.mxu0 0.0
        %7587 = vmatprep.subr.mxu0 0.0
        %7588 = vmatpush2.msra.mxu0 0.0
        %7589 = vmatprep.subr.mxu0 0.0
        %7590 = vmatpush2.msra.mxu0 0.0
        %7591 = vmatprep.subr.mxu0 0.0
        %7592 = vmatpush2.msra.mxu0 0.0
        %7593 = vmatprep.subr.mxu0 0.0
        %7594 = vmatpush2.msra.mxu0 0.0
        %7595 = vmatprep.mubr.f32.mxu0 0.0
        %7596 = vmatmul.mubr.f32.gmra.mxu0 %v7525
        %v7597 = vpop.f32.mrf.mxu0
        %v7598 = vadd.f32 %v7523, %v7597
        %v7599 = vpop.f32.mrf.mxu0
        %7600 = vdwg.mxu0
        %vm7601 = vcmask 90112
        %v7602 = vsel %vm7601, %v7598, -inf
        %7603 = vmax.xlane.f32.xlu0 %v7602
        %v7604 = vpop.xlane.xlu0 %7603
        %v7605 = vsub.f32 %v7598, %v7604
        %v7606 = vmul.f32 %v7605, 1.442695
        %v7607 = vpow.pop %v7606
        %v7608 = vsel %vm7601, %v7607, 0.0
        %7609 = vadd.xlane.f32.xlu0 %v7608
        %v7610 = vpop.xlane.xlu0 %7609
        %v7611 = vlog2.pop %v7610
        %v7612 = vmul.f32 %v7611, 0.6931472
        %v7613 = vadd.f32 %v7604, %v7612
        %v7614 = vsub.f32 %v7598, %v7613
        %7615 = vst.msk [vmem:[%s486] sm:$0x1] %vm7601, %v7614
        %s7616 = sand.u32 %s357, 1
        %s7617 = scalar_lea.sflag [#allocation6], %s7616
        %s7618 = sand.u32 %s357, 1
        %s7619 = scalar_lea.vmem [#allocation5], %s7618
        // Predicated region
        $region81: #{edge_speech_net_forward.1} parent=79 // pred_check
          %p7620 = pneg %p367
        $region82: #{edge_speech_net_forward.1} parent=79 // pred_check_branch
          %7622 = sbr.rel (%p7620) target = $region84
        $region83: #{edge_speech_net_forward.1} parent=79 // pred_region
          %s7624 = ssub.s32 16, 16
          %7625 = vsyncadd %s7617, %s7624
          %s7626 = smul.addr %s29, 16
          %s7627 = scalar_lea.hbm %s15, %s7626
          %s7629 = sshll.u32 %s7619, 4
          %s7630 = int_to_ptr.vmem [resolvable:$true] %s7629
          %7632 = dma.vmem_to_hbm [thread:$0]  %s7630, 16, %s7627, %s7617
        $region84: #{edge_speech_net_forward.1} parent=79 // pred_fallthru
          _
      $region80: #{edge_speech_net_forward.1} parent=5 // pred_fallthru
        _
      %p7633 = scmp.le.s32.totalorder 2, %s24
      // Predicated region
      $region85: #{edge_speech_net_forward.1} parent=5 // pred_check
        %p7634 = pneg %p7633
      $region86: #{edge_speech_net_forward.1} parent=5 // pred_check_branch
        %7636 = sbr.rel (%p7634) target = $region88
      $region87: #{edge_speech_net_forward.1} parent=5 // pred_region
        %s7637 = ssub.s32 %s24, 2
        // Predicated region
        $region89: #{edge_speech_net_forward.1} parent=87 // pred_check
          %p7638 = pneg %p373
        $region90: #{edge_speech_net_forward.1} parent=87 // pred_check_branch
          %7640 = sbr.rel (%p7638) target = $region92
        $region91: #{edge_speech_net_forward.1} parent=87 // pred_region
          %s7641 = sand.u32 %s358, 1
          %s7642 = scalar_lea.sflag [#allocation6], %s7641
          %s7643 = sand.u32 %s358, 1
          %s7644 = scalar_lea.vmem [#allocation5], %s7643
          %7645 = dma.done %s7642, 16
        $region92: #{edge_speech_net_forward.1} parent=87 // pred_fallthru
          _
      $region88: #{edge_speech_net_forward.1} parent=5 // pred_fallthru
        _
    $region6: #{edge_speech_net_forward.1} parent=1 // loop_footer
      %s28 = sadd.s32 1, %s24
    $region7: #{edge_speech_net_forward.1} parent=1 // loop_footer_branch
      %23 = sbr.rel target = $region3
    $region8: #{edge_speech_net_forward.1} parent=1 // loop_exit
      _
    %7646 = vsyncpa [#allocation6], 1
    %s7647 = scalar_lea.sflag [#allocation6], 1
    %7648 = vsyncpa %s7647, 1

</llo_original>
